<compile_context>
chip_gen: v5e
topology: v5e:2x2
jax: 0.10.0
libtpu: 0.0.40
codegen_flags: <defaults>
</compile_context>

<pallas_src>
import functools

import jax
import jax.numpy as jnp
import numpy as np
from jax import lax
from jax.experimental import pallas as pl
from jax.experimental.pallas import tpu as pltpu

LEAKY_SLOPE = 0.2
BN_EPS = 1e-5
VMEM_LIMIT = 32 * 1024 * 1024  # fits v5e/v6e/v7x scoped budgets; kernels use ~2 MiB


def _full_spec(shape):
    shape = tuple(int(d) for d in shape)
    return pl.BlockSpec(shape, lambda i: (0,) * len(shape))


# ---------------------------------------------------------------------------
# Fused conv (+bias, optional BatchNorm, LeakyReLU) Pallas kernel
# ---------------------------------------------------------------------------
def _conv_kernel(xph_ref, bd_ref, bias_ref, *rest, n_batch, ho, wo, cout, bn):
    """xph_ref : (4, N, Ho+1, (Wo+1)*Cin) f32   phase-decomposed padded input
       bd_ref  : (8, (Wo+1)*Cin, Wo*Cout)  bf16 banded weights (per row phase/offset)
       bias_ref: (1, Wo*Cout) f32          bias pre-tiled over wo
       bn refs : S (P,Cout), S^T (Cout,P), gamma (1,Cout), beta (1,Cout)
       output  : (N*Ho, Wo*Cout) f32       lane-dense (256 wide)
    """
    if bn:
        s_ref, st_ref, g_ref, be_ref, o_ref = rest
    else:
        (o_ref,) = rest
    P = wo * cout

    accs = []
    for n in range(n_batch):
        acc = jnp.zeros((ho, P), jnp.float32)
        for rh in range(2):
            for rw in range(2):
                p = rh * 2 + rw
                for ah in range(2):
                    j = p * 2 + ah
                    # rows (n, ho), lanes (wo+aw, cin); banded weight folds in
                    # both kw taps of this phase -> one MXU dot per (phase, ah).
                    lhs = xph_ref[p, n, ah:ah + ho, :].astype(jnp.bfloat16)
                    acc = acc + jnp.dot(lhs, bd_ref[j],
                                        preferred_element_type=jnp.float32)
        accs.append(acc + bias_ref[...])

    if bn:
        # Per-channel batch statistics computed in the GEMM epilogue
        # (no HBM round trip, no separate BN pallas_call).
        cnt = float(n_batch * ho * wo)
        rows = jnp.zeros((1, P), jnp.float32)
        rows2 = jnp.zeros((1, P), jnp.float32)
        for a in accs:
            rows = rows + jnp.sum(a, axis=0, keepdims=True)
            rows2 = rows2 + jnp.sum(a * a, axis=0, keepdims=True)
        # fold the wo lane-groups into per-channel sums with a 0/1 matrix (MXU)
        csum = jnp.dot(rows, s_ref[...], preferred_element_type=jnp.float32)
        csum2 = jnp.dot(rows2, s_ref[...], preferred_element_type=jnp.float32)
        mean = csum / cnt
        var = csum2 / cnt - mean * mean
        scale = g_ref[...] * lax.rsqrt(var + BN_EPS)
        shift = be_ref[...] - mean * scale
        # tile (1, Cout) -> (1, Wo*Cout) via S^T (MXU, no relayout/reshape)
        scale_row = jnp.dot(scale, st_ref[...], preferred_element_type=jnp.float32)
        shift_row = jnp.dot(shift, st_ref[...], preferred_element_type=jnp.float32)

    for n in range(n_batch):
        y = accs[n]
        if bn:
            y = y * scale_row + shift_row
        y = jnp.where(y >= 0, y, LEAKY_SLOPE * y)
        o_ref[n * ho:(n + 1) * ho, :] = y


def conv_block(a_nhwc, layer_prep):
    """One fused conv(+BN)+LeakyReLU layer.  a_nhwc: (N, H, W, C) f32.
    Returns (N*Ho, Wo*Cout) f32, rows ordered (n, ho), lanes ordered (wo, c)."""
    bd, bias_row, s_mat, st_mat, gamma, beta = layer_prep
    N, H, W, C = a_nhwc.shape
    Ho, Wo = H // 2, W // 2
    Lw = (Wo + 1) * C
    assert bd.shape[1] == Lw
    P = bd.shape[2]
    Cout = P // Wo
    bn = gamma is not None

    # pad + 2x2 parity (phase) decomposition: same total bytes as the input,
    # replaces the 16x-duplicated im2col buffer of the previous version.
    xpad = jnp.pad(a_nhwc, ((0, 0), (1, 1), (1, 1), (0, 0)))
    phases = [xpad[:, rh::2, rw::2, :] for rh in range(2) for rw in range(2)]
    xph = jnp.stack(phases, axis=0).reshape(4, N, Ho + 1, Lw)

    inputs = [xph, bd, bias_row]
    if bn:
        inputs += [s_mat, st_mat, gamma, beta]

    kernel = functools.partial(_conv_kernel, n_batch=N, ho=Ho, wo=Wo,
                               cout=Cout, bn=bn)
    return pl.pallas_call(
        kernel,
        out_shape=jax.ShapeDtypeStruct((N * Ho, P), jnp.float32),
        grid=(1,),
        in_specs=[_full_spec(v.shape) for v in inputs],
        out_specs=_full_spec((N * Ho, P)),
        compiler_params=pltpu.CompilerParams(
            dimension_semantics=("arbitrary",),
            vmem_limit_bytes=VMEM_LIMIT),
    )(*inputs)


# ---------------------------------------------------------------------------
# Fused fc1 + fc2 Pallas kernel
# ---------------------------------------------------------------------------
def _fc_kernel(x_ref, w1_ref, b1_ref, w2_ref, b2_ref, o_ref):
    h = jnp.dot(x_ref[...], w1_ref[...],
                preferred_element_type=jnp.float32) + b1_ref[...]
    # fc2 has a single output unit: lane reduction instead of a degenerate matmul
    o_ref[...] = jnp.sum(h * w2_ref[...], axis=1, keepdims=True) + b2_ref[...]


def fc_head(feat, fc_prep):
    w1t, b1, w2, b2 = fc_prep
    N = feat.shape[0]
    Rp = ((N + 7) // 8) * 8                      # works for any batch size
    featp = jnp.pad(feat, ((0, Rp - N), (0, 0))).astype(jnp.bfloat16)
    inputs = [featp, w1t, b1, w2, b2]
    out = pl.pallas_call(
        _fc_kernel,
        out_shape=jax.ShapeDtypeStruct((Rp, 1), jnp.float32),
        grid=(1,),
        in_specs=[_full_spec(v.shape) for v in inputs],
        out_specs=_full_spec((Rp, 1)),
        compiler_params=pltpu.CompilerParams(
            dimension_semantics=("arbitrary",),
            vmem_limit_bytes=VMEM_LIMIT),
    )(*inputs)
    return out[:N]


# ---------------------------------------------------------------------------
# Parameters (deterministic, synthetic -- PyTorch layouts)
# ---------------------------------------------------------------------------
def init_params(key, conv_dim):
    keys = jax.random.split(key, 20)
    chans = [3, conv_dim, conv_dim * 2, conv_dim * 4, conv_dim * 8]
    convs = []
    for li in range(4):
        cin, cout = chans[li], chans[li + 1]
        W = 0.05 * jax.random.normal(keys[4 * li], (cout, cin, 4, 4), jnp.float32)  # OIHW
        b = 0.05 * jax.random.normal(keys[4 * li + 1], (cout,), jnp.float32)
        if li == 0:
            gb = None  # conv1 has batch_norm=False
        else:
            gamma = 1.0 + 0.1 * jax.random.normal(keys[4 * li + 2], (cout,), jnp.float32)
            beta = 0.1 * jax.random.normal(keys[4 * li + 3], (cout,), jnp.float32)
            gb = (gamma, beta)
        convs.append((W, b, gb))
    fc1_in, fc1_out = conv_dim * 4 * 4 * 8, conv_dim * 4 * 8
    Wfc1 = 0.02 * jax.random.normal(keys[16], (fc1_out, fc1_in), jnp.float32)  # (out, in)
    bfc1 = 0.02 * jax.random.normal(keys[17], (fc1_out,), jnp.float32)
    Wfc2 = 0.02 * jax.random.normal(keys[18], (1, fc1_out), jnp.float32)
    bfc2 = 0.02 * jax.random.normal(keys[19], (1,), jnp.float32)
    return {"convs": convs, "fc1": (Wfc1, bfc1), "fc2": (Wfc2, bfc2)}


def prepare_params(params):
    """Hoist ALL weight re-layouts out of the forward pass (run once at init)."""
    spatial = [32, 16, 8, 4]  # output spatial size of each conv for 64x64 input
    convs = []
    for (W_pt, b, gb), Wo in zip(params["convs"], spatial):
        W_pt = np.asarray(W_pt)
        b = np.asarray(b)
        Cout, Cin, _, _ = W_pt.shape
        Wk = np.transpose(W_pt, (2, 3, 1, 0))          # (kh, kw, cin, cout)
        Lw = (Wo + 1) * Cin
        P = Wo * Cout
        # banded weights: j = (row phase rh, col phase rw, row offset ah)
        bd = np.zeros((8, Lw, P), np.float32)
        for rh in range(2):
            for rw in range(2):
                for ah in range(2):
                    j = (rh * 2 + rw) * 2 + ah
                    kh = 2 * ah + rh
                    for aw in range(2):
                        kw = 2 * aw + rw
                        blk = Wk[kh, kw]               # (Cin, Cout)
                        for wo in range(Wo):
                            v = wo + aw
                            bd[j, v * Cin:(v + 1) * Cin,
                               wo * Cout:(wo + 1) * Cout] += blk
        bias_row = np.tile(b, Wo)[None, :]             # (1, P)
        if gb is None:
            s_mat = st_mat = gamma = beta = None
        else:
            eye = np.eye(Cout, dtype=np.float32)
            s_mat = np.tile(eye, (Wo, 1))              # (P, Cout)  lane-group fold
            st_mat = np.tile(eye, (1, Wo))             # (Cout, P)  channel tile
            gamma = np.asarray(gb[0])[None, :]
            beta = np.asarray(gb[1])[None, :]
        convs.append((
            jnp.asarray(bd, jnp.bfloat16),
            jnp.asarray(bias_row, jnp.float32),
            None if s_mat is None else jnp.asarray(s_mat, jnp.float32),
            None if st_mat is None else jnp.asarray(st_mat, jnp.float32),
            None if gamma is None else jnp.asarray(gamma, jnp.float32),
            None if beta is None else jnp.asarray(beta, jnp.float32),
        ))

    Wfc1 = np.asarray(params["fc1"][0])
    bfc1 = np.asarray(params["fc1"][1])
    Wfc2 = np.asarray(params["fc2"][0])
    bfc2 = np.asarray(params["fc2"][1])
    C4 = np.asarray(params["convs"][-1][0]).shape[0]   # conv_dim * 8
    # fc1 consumes PyTorch's NCHW flatten (c, h, w); the kernel's conv4 output
    # is (h, w, c)-ordered -> fold the permutation into the weight at init.
    perm = np.asarray([c * 16 + h * 4 + w
                       for h in range(4) for w in range(4) for c in range(C4)])
    w1t = Wfc1.T[perm, :]                              # (16*C4, fc1_out)
    fc = (jnp.asarray(w1t, jnp.bfloat16),
          jnp.asarray(bfc1[None, :], jnp.float32),
          jnp.asarray(Wfc2, jnp.float32),              # (1, fc1_out)
          jnp.asarray(bfc2[None, :], jnp.float32))     # (1, 1)
    return {"convs": convs, "fc": fc}


# ---------------------------------------------------------------------------
# Forward pass using the Pallas kernels
# ---------------------------------------------------------------------------
def discriminator_forward(x_nchw, prep):
    x = jnp.transpose(x_nchw, (0, 2, 3, 1)).astype(jnp.float32)   # NCHW -> NHWC
    N = x.shape[0]
    for layer_prep in prep["convs"]:
        y = conv_block(x, layer_prep)                 # (N*Ho, Wo*Cout) f32
        Ho = y.shape[0] // N                          # square spatial: Wo == Ho
        Cout = y.shape[1] // Ho
        x = y.reshape(N, Ho, Ho, Cout)
    feat = x.reshape(N, -1)                           # (h, w, c)-ordered flatten
    return fc_head(feat, prep["fc"])


# ---------------------------------------------------------------------------
# Pure-JAX reference (mirrors the PyTorch module exactly, PyTorch weight layouts)
# ---------------------------------------------------------------------------
def reference_forward(x_nchw, params):
    y = x_nchw.astype(jnp.float32)
    for (W_pt, b, gb) in params["convs"]:
        y = lax.conv_general_dilated(
            y, W_pt, window_strides=(2, 2), padding=((1, 1), (1, 1)),
            dimension_numbers=("NCHW", "OIHW", "NCHW"),
            precision=lax.Precision.HIGHEST)
        y = y + b[None, :, None, None]
        if gb is not None:
            g, be = gb
            m = jnp.mean(y, axis=(0, 2, 3), keepdims=True)
            v = jnp.mean(jnp.square(y - m), axis=(0, 2, 3), keepdims=True)
            y = (y - m) * lax.rsqrt(v + BN_EPS) * g[None, :, None, None] \
                + be[None, :, None, None]
        y = jnp.where(y >= 0, y, LEAKY_SLOPE * y)
    flat = y.reshape(y.shape[0], -1)
    Wfc1, bfc1 = params["fc1"]
    Wfc2, bfc2 = params["fc2"]
    h = jnp.dot(flat, Wfc1.T, precision=lax.Precision.HIGHEST) + bfc1
    return jnp.dot(h, Wfc2.T, precision=lax.Precision.HIGHEST) + bfc2


if __name__ == "__main__":
    conv_dim = 8                      # small conv_dim; spatial must be 64x64
    key = jax.random.PRNGKey(0)
    kx, kp = jax.random.split(key)
    x = jax.random.normal(kx, (2, 3, 64, 64), jnp.float32)   # NCHW like PyTorch
    params = init_params(kp, conv_dim)
    prep = prepare_params(params)     # hoisted weight re-layouts (init-time only)

    fwd = jax.jit(discriminator_forward)
    out = jax.block_until_ready(fwd(x, prep))
    ref = jax.block_until_ready(reference_forward(x, params))

    assert out.shape == (2, 1), out.shape
    np.testing.assert_allclose(np.asarray(out), np.asarray(ref), rtol=2e-2, atol=2e-2)
    print("KERNEL_OK")
</pallas_src>

<mosaic_0001>
module attributes {stable_mosaic.version = 11 : i64} {
  func.func @_conv_kernel(%arg0: i32, %arg1: memref<4x2x33x99xf32, #tpu.memory_space<vmem>>, %arg2: memref<8x99x256xbf16, #tpu.memory_space<vmem>>, %arg3: memref<1x256xf32, #tpu.memory_space<vmem>>, %arg4: memref<64x256xf32, #tpu.memory_space<vmem>>) attributes {dimension_semantics = [#tpu.dimension_semantics<arbitrary>], iteration_bounds = array<i64: 1>, scalar_prefetch = 0 : i64, scratch_operands = 0 : i64, tpu.core_type = #tpu.core_type<tc>, window_params = [{pipeline_mode = #tpu.pipeline_mode<synchronous>, transform_indices = @transform_0, window_bounds = array<i64: 4, 2, 33, 99>}, {pipeline_mode = #tpu.pipeline_mode<synchronous>, transform_indices = @transform_1, window_bounds = array<i64: 8, 99, 256>}, {pipeline_mode = #tpu.pipeline_mode<synchronous>, transform_indices = @transform_2, window_bounds = array<i64: 1, 256>}, {pipeline_mode = #tpu.pipeline_mode<synchronous>, transform_indices = @transform_3, window_bounds = array<i64: 64, 256>}]} {
    %cst = arith.constant 0.000000e+00 : f32
    %0 = vector.broadcast %cst : f32 to vector<32x256xf32>
    %c0 = arith.constant 0 : index
    %c0_0 = arith.constant 0 : index
    %c0_1 = arith.constant 0 : index
    %c0_2 = arith.constant 0 : index
    %1 = vector.load %arg1[%c0, %c0_0, %c0_1, %c0_2] : memref<4x2x33x99xf32, #tpu.memory_space<vmem>>, vector<1x1x32x99xf32>
    %2 = vector.shape_cast %1 : vector<1x1x32x99xf32> to vector<32x99xf32>
    %3 = arith.truncf %2 : vector<32x99xf32> to vector<32x99xbf16>
    %c0_3 = arith.constant 0 : index
    %c0_4 = arith.constant 0 : index
    %c0_5 = arith.constant 0 : index
    %4 = vector.load %arg2[%c0_3, %c0_4, %c0_5] : memref<8x99x256xbf16, #tpu.memory_space<vmem>>, vector<1x99x256xbf16>
    %5 = vector.shape_cast %4 : vector<1x99x256xbf16> to vector<99x256xbf16>
    %cst_6 = arith.constant dense<0.000000e+00> : vector<32x256xf32>
    %6 = tpu.matmul %3, %5, %cst_6 {dimension_numbers = #tpu.dot_dimension_numbers<[1], [0], [0], [1], [0, 0, 1, 1], [], []>} : vector<32x99xbf16>, vector<99x256xbf16>, vector<32x256xf32> -> vector<32x256xf32>
    %7 = arith.addf %0, %6 : vector<32x256xf32>
    %c0_7 = arith.constant 0 : index
    %c0_8 = arith.constant 0 : index
    %c1 = arith.constant 1 : index
    %c0_9 = arith.constant 0 : index
    %8 = vector.load %arg1[%c0_7, %c0_8, %c1, %c0_9] : memref<4x2x33x99xf32, #tpu.memory_space<vmem>>, vector<1x1x32x99xf32>
    %9 = vector.shape_cast %8 : vector<1x1x32x99xf32> to vector<32x99xf32>
    %10 = arith.truncf %9 : vector<32x99xf32> to vector<32x99xbf16>
    %c1_10 = arith.constant 1 : index
    %c0_11 = arith.constant 0 : index
    %c0_12 = arith.constant 0 : index
    %11 = vector.load %arg2[%c1_10, %c0_11, %c0_12] : memref<8x99x256xbf16, #tpu.memory_space<vmem>>, vector<1x99x256xbf16>
    %12 = vector.shape_cast %11 : vector<1x99x256xbf16> to vector<99x256xbf16>
    %cst_13 = arith.constant dense<0.000000e+00> : vector<32x256xf32>
    %13 = tpu.matmul %10, %12, %cst_13 {dimension_numbers = #tpu.dot_dimension_numbers<[1], [0], [0], [1], [0, 0, 1, 1], [], []>} : vector<32x99xbf16>, vector<99x256xbf16>, vector<32x256xf32> -> vector<32x256xf32>
    %14 = arith.addf %7, %13 : vector<32x256xf32>
    %c1_14 = arith.constant 1 : index
    %c0_15 = arith.constant 0 : index
    %c0_16 = arith.constant 0 : index
    %c0_17 = arith.constant 0 : index
    %15 = vector.load %arg1[%c1_14, %c0_15, %c0_16, %c0_17] : memref<4x2x33x99xf32, #tpu.memory_space<vmem>>, vector<1x1x32x99xf32>
    %16 = vector.shape_cast %15 : vector<1x1x32x99xf32> to vector<32x99xf32>
    %17 = arith.truncf %16 : vector<32x99xf32> to vector<32x99xbf16>
    %c2 = arith.constant 2 : index
    %c0_18 = arith.constant 0 : index
    %c0_19 = arith.constant 0 : index
    %18 = vector.load %arg2[%c2, %c0_18, %c0_19] : memref<8x99x256xbf16, #tpu.memory_space<vmem>>, vector<1x99x256xbf16>
    %19 = vector.shape_cast %18 : vector<1x99x256xbf16> to vector<99x256xbf16>
    %cst_20 = arith.constant dense<0.000000e+00> : vector<32x256xf32>
    %20 = tpu.matmul %17, %19, %cst_20 {dimension_numbers = #tpu.dot_dimension_numbers<[1], [0], [0], [1], [0, 0, 1, 1], [], []>} : vector<32x99xbf16>, vector<99x256xbf16>, vector<32x256xf32> -> vector<32x256xf32>
    %21 = arith.addf %14, %20 : vector<32x256xf32>
    %c1_21 = arith.constant 1 : index
    %c0_22 = arith.constant 0 : index
    %c1_23 = arith.constant 1 : index
    %c0_24 = arith.constant 0 : index
    %22 = vector.load %arg1[%c1_21, %c0_22, %c1_23, %c0_24] : memref<4x2x33x99xf32, #tpu.memory_space<vmem>>, vector<1x1x32x99xf32>
    %23 = vector.shape_cast %22 : vector<1x1x32x99xf32> to vector<32x99xf32>
    %24 = arith.truncf %23 : vector<32x99xf32> to vector<32x99xbf16>
    %c3 = arith.constant 3 : index
    %c0_25 = arith.constant 0 : index
    %c0_26 = arith.constant 0 : index
    %25 = vector.load %arg2[%c3, %c0_25, %c0_26] : memref<8x99x256xbf16, #tpu.memory_space<vmem>>, vector<1x99x256xbf16>
    %26 = vector.shape_cast %25 : vector<1x99x256xbf16> to vector<99x256xbf16>
    %cst_27 = arith.constant dense<0.000000e+00> : vector<32x256xf32>
    %27 = tpu.matmul %24, %26, %cst_27 {dimension_numbers = #tpu.dot_dimension_numbers<[1], [0], [0], [1], [0, 0, 1, 1], [], []>} : vector<32x99xbf16>, vector<99x256xbf16>, vector<32x256xf32> -> vector<32x256xf32>
    %28 = arith.addf %21, %27 : vector<32x256xf32>
    %c2_28 = arith.constant 2 : index
    %c0_29 = arith.constant 0 : index
    %c0_30 = arith.constant 0 : index
    %c0_31 = arith.constant 0 : index
    %29 = vector.load %arg1[%c2_28, %c0_29, %c0_30, %c0_31] : memref<4x2x33x99xf32, #tpu.memory_space<vmem>>, vector<1x1x32x99xf32>
    %30 = vector.shape_cast %29 : vector<1x1x32x99xf32> to vector<32x99xf32>
    %31 = arith.truncf %30 : vector<32x99xf32> to vector<32x99xbf16>
    %c4 = arith.constant 4 : index
    %c0_32 = arith.constant 0 : index
    %c0_33 = arith.constant 0 : index
    %32 = vector.load %arg2[%c4, %c0_32, %c0_33] : memref<8x99x256xbf16, #tpu.memory_space<vmem>>, vector<1x99x256xbf16>
    %33 = vector.shape_cast %32 : vector<1x99x256xbf16> to vector<99x256xbf16>
    %cst_34 = arith.constant dense<0.000000e+00> : vector<32x256xf32>
    %34 = tpu.matmul %31, %33, %cst_34 {dimension_numbers = #tpu.dot_dimension_numbers<[1], [0], [0], [1], [0, 0, 1, 1], [], []>} : vector<32x99xbf16>, vector<99x256xbf16>, vector<32x256xf32> -> vector<32x256xf32>
    %35 = arith.addf %28, %34 : vector<32x256xf32>
    %c2_35 = arith.constant 2 : index
    %c0_36 = arith.constant 0 : index
    %c1_37 = arith.constant 1 : index
    %c0_38 = arith.constant 0 : index
    %36 = vector.load %arg1[%c2_35, %c0_36, %c1_37, %c0_38] : memref<4x2x33x99xf32, #tpu.memory_space<vmem>>, vector<1x1x32x99xf32>
    %37 = vector.shape_cast %36 : vector<1x1x32x99xf32> to vector<32x99xf32>
    %38 = arith.truncf %37 : vector<32x99xf32> to vector<32x99xbf16>
    %c5 = arith.constant 5 : index
    %c0_39 = arith.constant 0 : index
    %c0_40 = arith.constant 0 : index
    %39 = vector.load %arg2[%c5, %c0_39, %c0_40] : memref<8x99x256xbf16, #tpu.memory_space<vmem>>, vector<1x99x256xbf16>
    %40 = vector.shape_cast %39 : vector<1x99x256xbf16> to vector<99x256xbf16>
    %cst_41 = arith.constant dense<0.000000e+00> : vector<32x256xf32>
    %41 = tpu.matmul %38, %40, %cst_41 {dimension_numbers = #tpu.dot_dimension_numbers<[1], [0], [0], [1], [0, 0, 1, 1], [], []>} : vector<32x99xbf16>, vector<99x256xbf16>, vector<32x256xf32> -> vector<32x256xf32>
    %42 = arith.addf %35, %41 : vector<32x256xf32>
    %c3_42 = arith.constant 3 : index
    %c0_43 = arith.constant 0 : index
    %c0_44 = arith.constant 0 : index
    %c0_45 = arith.constant 0 : index
    %43 = vector.load %arg1[%c3_42, %c0_43, %c0_44, %c0_45] : memref<4x2x33x99xf32, #tpu.memory_space<vmem>>, vector<1x1x32x99xf32>
    %44 = vector.shape_cast %43 : vector<1x1x32x99xf32> to vector<32x99xf32>
    %45 = arith.truncf %44 : vector<32x99xf32> to vector<32x99xbf16>
    %c6 = arith.constant 6 : index
    %c0_46 = arith.constant 0 : index
    %c0_47 = arith.constant 0 : index
    %46 = vector.load %arg2[%c6, %c0_46, %c0_47] : memref<8x99x256xbf16, #tpu.memory_space<vmem>>, vector<1x99x256xbf16>
    %47 = vector.shape_cast %46 : vector<1x99x256xbf16> to vector<99x256xbf16>
    %cst_48 = arith.constant dense<0.000000e+00> : vector<32x256xf32>
    %48 = tpu.matmul %45, %47, %cst_48 {dimension_numbers = #tpu.dot_dimension_numbers<[1], [0], [0], [1], [0, 0, 1, 1], [], []>} : vector<32x99xbf16>, vector<99x256xbf16>, vector<32x256xf32> -> vector<32x256xf32>
    %49 = arith.addf %42, %48 : vector<32x256xf32>
    %c3_49 = arith.constant 3 : index
    %c0_50 = arith.constant 0 : index
    %c1_51 = arith.constant 1 : index
    %c0_52 = arith.constant 0 : index
    %50 = vector.load %arg1[%c3_49, %c0_50, %c1_51, %c0_52] : memref<4x2x33x99xf32, #tpu.memory_space<vmem>>, vector<1x1x32x99xf32>
    %51 = vector.shape_cast %50 : vector<1x1x32x99xf32> to vector<32x99xf32>
    %52 = arith.truncf %51 : vector<32x99xf32> to vector<32x99xbf16>
    %c7 = arith.constant 7 : index
    %c0_53 = arith.constant 0 : index
    %c0_54 = arith.constant 0 : index
    %53 = vector.load %arg2[%c7, %c0_53, %c0_54] : memref<8x99x256xbf16, #tpu.memory_space<vmem>>, vector<1x99x256xbf16>
    %54 = vector.shape_cast %53 : vector<1x99x256xbf16> to vector<99x256xbf16>
    %cst_55 = arith.constant dense<0.000000e+00> : vector<32x256xf32>
    %55 = tpu.matmul %52, %54, %cst_55 {dimension_numbers = #tpu.dot_dimension_numbers<[1], [0], [0], [1], [0, 0, 1, 1], [], []>} : vector<32x99xbf16>, vector<99x256xbf16>, vector<32x256xf32> -> vector<32x256xf32>
    %56 = arith.addf %49, %55 : vector<32x256xf32>
    %c0_56 = arith.constant 0 : index
    %c0_57 = arith.constant 0 : index
    %57 = vector.load %arg3[%c0_56, %c0_57] : memref<1x256xf32, #tpu.memory_space<vmem>>, vector<1x256xf32>
    %58 = vector.broadcast %57 : vector<1x256xf32> to vector<32x256xf32>
    %59 = arith.addf %56, %58 : vector<32x256xf32>
    %cst_58 = arith.constant 0.000000e+00 : f32
    %60 = vector.broadcast %cst_58 : f32 to vector<32x256xf32>
    %c0_59 = arith.constant 0 : index
    %c1_60 = arith.constant 1 : index
    %c0_61 = arith.constant 0 : index
    %c0_62 = arith.constant 0 : index
    %61 = vector.load %arg1[%c0_59, %c1_60, %c0_61, %c0_62] : memref<4x2x33x99xf32, #tpu.memory_space<vmem>>, vector<1x1x32x99xf32>
    %62 = vector.shape_cast %61 : vector<1x1x32x99xf32> to vector<32x99xf32>
    %63 = arith.truncf %62 : vector<32x99xf32> to vector<32x99xbf16>
    %c0_63 = arith.constant 0 : index
    %c0_64 = arith.constant 0 : index
    %c0_65 = arith.constant 0 : index
    %64 = vector.load %arg2[%c0_63, %c0_64, %c0_65] : memref<8x99x256xbf16, #tpu.memory_space<vmem>>, vector<1x99x256xbf16>
    %65 = vector.shape_cast %64 : vector<1x99x256xbf16> to vector<99x256xbf16>
    %cst_66 = arith.constant dense<0.000000e+00> : vector<32x256xf32>
    %66 = tpu.matmul %63, %65, %cst_66 {dimension_numbers = #tpu.dot_dimension_numbers<[1], [0], [0], [1], [0, 0, 1, 1], [], []>} : vector<32x99xbf16>, vector<99x256xbf16>, vector<32x256xf32> -> vector<32x256xf32>
    %67 = arith.addf %60, %66 : vector<32x256xf32>
    %c0_67 = arith.constant 0 : index
    %c1_68 = arith.constant 1 : index
    %c1_69 = arith.constant 1 : index
    %c0_70 = arith.constant 0 : index
    %68 = vector.load %arg1[%c0_67, %c1_68, %c1_69, %c0_70] : memref<4x2x33x99xf32, #tpu.memory_space<vmem>>, vector<1x1x32x99xf32>
    %69 = vector.shape_cast %68 : vector<1x1x32x99xf32> to vector<32x99xf32>
    %70 = arith.truncf %69 : vector<32x99xf32> to vector<32x99xbf16>
    %c1_71 = arith.constant 1 : index
    %c0_72 = arith.constant 0 : index
    %c0_73 = arith.constant 0 : index
    %71 = vector.load %arg2[%c1_71, %c0_72, %c0_73] : memref<8x99x256xbf16, #tpu.memory_space<vmem>>, vector<1x99x256xbf16>
    %72 = vector.shape_cast %71 : vector<1x99x256xbf16> to vector<99x256xbf16>
    %cst_74 = arith.constant dense<0.000000e+00> : vector<32x256xf32>
    %73 = tpu.matmul %70, %72, %cst_74 {dimension_numbers = #tpu.dot_dimension_numbers<[1], [0], [0], [1], [0, 0, 1, 1], [], []>} : vector<32x99xbf16>, vector<99x256xbf16>, vector<32x256xf32> -> vector<32x256xf32>
    %74 = arith.addf %67, %73 : vector<32x256xf32>
    %c1_75 = arith.constant 1 : index
    %c1_76 = arith.constant 1 : index
    %c0_77 = arith.constant 0 : index
    %c0_78 = arith.constant 0 : index
    %75 = vector.load %arg1[%c1_75, %c1_76, %c0_77, %c0_78] : memref<4x2x33x99xf32, #tpu.memory_space<vmem>>, vector<1x1x32x99xf32>
    %76 = vector.shape_cast %75 : vector<1x1x32x99xf32> to vector<32x99xf32>
    %77 = arith.truncf %76 : vector<32x99xf32> to vector<32x99xbf16>
    %c2_79 = arith.constant 2 : index
    %c0_80 = arith.constant 0 : index
    %c0_81 = arith.constant 0 : index
    %78 = vector.load %arg2[%c2_79, %c0_80, %c0_81] : memref<8x99x256xbf16, #tpu.memory_space<vmem>>, vector<1x99x256xbf16>
    %79 = vector.shape_cast %78 : vector<1x99x256xbf16> to vector<99x256xbf16>
    %cst_82 = arith.constant dense<0.000000e+00> : vector<32x256xf32>
    %80 = tpu.matmul %77, %79, %cst_82 {dimension_numbers = #tpu.dot_dimension_numbers<[1], [0], [0], [1], [0, 0, 1, 1], [], []>} : vector<32x99xbf16>, vector<99x256xbf16>, vector<32x256xf32> -> vector<32x256xf32>
    %81 = arith.addf %74, %80 : vector<32x256xf32>
    %c1_83 = arith.constant 1 : index
    %c1_84 = arith.constant 1 : index
    %c1_85 = arith.constant 1 : index
    %c0_86 = arith.constant 0 : index
    %82 = vector.load %arg1[%c1_83, %c1_84, %c1_85, %c0_86] : memref<4x2x33x99xf32, #tpu.memory_space<vmem>>, vector<1x1x32x99xf32>
    %83 = vector.shape_cast %82 : vector<1x1x32x99xf32> to vector<32x99xf32>
    %84 = arith.truncf %83 : vector<32x99xf32> to vector<32x99xbf16>
    %c3_87 = arith.constant 3 : index
    %c0_88 = arith.constant 0 : index
    %c0_89 = arith.constant 0 : index
    %85 = vector.load %arg2[%c3_87, %c0_88, %c0_89] : memref<8x99x256xbf16, #tpu.memory_space<vmem>>, vector<1x99x256xbf16>
    %86 = vector.shape_cast %85 : vector<1x99x256xbf16> to vector<99x256xbf16>
    %cst_90 = arith.constant dense<0.000000e+00> : vector<32x256xf32>
    %87 = tpu.matmul %84, %86, %cst_90 {dimension_numbers = #tpu.dot_dimension_numbers<[1], [0], [0], [1], [0, 0, 1, 1], [], []>} : vector<32x99xbf16>, vector<99x256xbf16>, vector<32x256xf32> -> vector<32x256xf32>
    %88 = arith.addf %81, %87 : vector<32x256xf32>
    %c2_91 = arith.constant 2 : index
    %c1_92 = arith.constant 1 : index
    %c0_93 = arith.constant 0 : index
    %c0_94 = arith.constant 0 : index
    %89 = vector.load %arg1[%c2_91, %c1_92, %c0_93, %c0_94] : memref<4x2x33x99xf32, #tpu.memory_space<vmem>>, vector<1x1x32x99xf32>
    %90 = vector.shape_cast %89 : vector<1x1x32x99xf32> to vector<32x99xf32>
    %91 = arith.truncf %90 : vector<32x99xf32> to vector<32x99xbf16>
    %c4_95 = arith.constant 4 : index
    %c0_96 = arith.constant 0 : index
    %c0_97 = arith.constant 0 : index
    %92 = vector.load %arg2[%c4_95, %c0_96, %c0_97] : memref<8x99x256xbf16, #tpu.memory_space<vmem>>, vector<1x99x256xbf16>
    %93 = vector.shape_cast %92 : vector<1x99x256xbf16> to vector<99x256xbf16>
    %cst_98 = arith.constant dense<0.000000e+00> : vector<32x256xf32>
    %94 = tpu.matmul %91, %93, %cst_98 {dimension_numbers = #tpu.dot_dimension_numbers<[1], [0], [0], [1], [0, 0, 1, 1], [], []>} : vector<32x99xbf16>, vector<99x256xbf16>, vector<32x256xf32> -> vector<32x256xf32>
    %95 = arith.addf %88, %94 : vector<32x256xf32>
    %c2_99 = arith.constant 2 : index
    %c1_100 = arith.constant 1 : index
    %c1_101 = arith.constant 1 : index
    %c0_102 = arith.constant 0 : index
    %96 = vector.load %arg1[%c2_99, %c1_100, %c1_101, %c0_102] : memref<4x2x33x99xf32, #tpu.memory_space<vmem>>, vector<1x1x32x99xf32>
    %97 = vector.shape_cast %96 : vector<1x1x32x99xf32> to vector<32x99xf32>
    %98 = arith.truncf %97 : vector<32x99xf32> to vector<32x99xbf16>
    %c5_103 = arith.constant 5 : index
    %c0_104 = arith.constant 0 : index
    %c0_105 = arith.constant 0 : index
    %99 = vector.load %arg2[%c5_103, %c0_104, %c0_105] : memref<8x99x256xbf16, #tpu.memory_space<vmem>>, vector<1x99x256xbf16>
    %100 = vector.shape_cast %99 : vector<1x99x256xbf16> to vector<99x256xbf16>
    %cst_106 = arith.constant dense<0.000000e+00> : vector<32x256xf32>
    %101 = tpu.matmul %98, %100, %cst_106 {dimension_numbers = #tpu.dot_dimension_numbers<[1], [0], [0], [1], [0, 0, 1, 1], [], []>} : vector<32x99xbf16>, vector<99x256xbf16>, vector<32x256xf32> -> vector<32x256xf32>
    %102 = arith.addf %95, %101 : vector<32x256xf32>
    %c3_107 = arith.constant 3 : index
    %c1_108 = arith.constant 1 : index
    %c0_109 = arith.constant 0 : index
    %c0_110 = arith.constant 0 : index
    %103 = vector.load %arg1[%c3_107, %c1_108, %c0_109, %c0_110] : memref<4x2x33x99xf32, #tpu.memory_space<vmem>>, vector<1x1x32x99xf32>
    %104 = vector.shape_cast %103 : vector<1x1x32x99xf32> to vector<32x99xf32>
    %105 = arith.truncf %104 : vector<32x99xf32> to vector<32x99xbf16>
    %c6_111 = arith.constant 6 : index
    %c0_112 = arith.constant 0 : index
    %c0_113 = arith.constant 0 : index
    %106 = vector.load %arg2[%c6_111, %c0_112, %c0_113] : memref<8x99x256xbf16, #tpu.memory_space<vmem>>, vector<1x99x256xbf16>
    %107 = vector.shape_cast %106 : vector<1x99x256xbf16> to vector<99x256xbf16>
    %cst_114 = arith.constant dense<0.000000e+00> : vector<32x256xf32>
    %108 = tpu.matmul %105, %107, %cst_114 {dimension_numbers = #tpu.dot_dimension_numbers<[1], [0], [0], [1], [0, 0, 1, 1], [], []>} : vector<32x99xbf16>, vector<99x256xbf16>, vector<32x256xf32> -> vector<32x256xf32>
    %109 = arith.addf %102, %108 : vector<32x256xf32>
    %c3_115 = arith.constant 3 : index
    %c1_116 = arith.constant 1 : index
    %c1_117 = arith.constant 1 : index
    %c0_118 = arith.constant 0 : index
    %110 = vector.load %arg1[%c3_115, %c1_116, %c1_117, %c0_118] : memref<4x2x33x99xf32, #tpu.memory_space<vmem>>, vector<1x1x32x99xf32>
    %111 = vector.shape_cast %110 : vector<1x1x32x99xf32> to vector<32x99xf32>
    %112 = arith.truncf %111 : vector<32x99xf32> to vector<32x99xbf16>
    %c7_119 = arith.constant 7 : index
    %c0_120 = arith.constant 0 : index
    %c0_121 = arith.constant 0 : index
    %113 = vector.load %arg2[%c7_119, %c0_120, %c0_121] : memref<8x99x256xbf16, #tpu.memory_space<vmem>>, vector<1x99x256xbf16>
    %114 = vector.shape_cast %113 : vector<1x99x256xbf16> to vector<99x256xbf16>
    %cst_122 = arith.constant dense<0.000000e+00> : vector<32x256xf32>
    %115 = tpu.matmul %112, %114, %cst_122 {dimension_numbers = #tpu.dot_dimension_numbers<[1], [0], [0], [1], [0, 0, 1, 1], [], []>} : vector<32x99xbf16>, vector<99x256xbf16>, vector<32x256xf32> -> vector<32x256xf32>
    %116 = arith.addf %109, %115 : vector<32x256xf32>
    %c0_123 = arith.constant 0 : index
    %c0_124 = arith.constant 0 : index
    %117 = vector.load %arg3[%c0_123, %c0_124] : memref<1x256xf32, #tpu.memory_space<vmem>>, vector<1x256xf32>
    %118 = vector.broadcast %117 : vector<1x256xf32> to vector<32x256xf32>
    %119 = arith.addf %116, %118 : vector<32x256xf32>
    %cst_125 = arith.constant 0.000000e+00 : f32
    %120 = vector.broadcast %cst_125 : f32 to vector<32x256xf32>
    %121 = arith.cmpf oge, %59, %120 : vector<32x256xf32>
    %cst_126 = arith.constant 2.000000e-01 : f32
    %122 = vector.broadcast %cst_126 : f32 to vector<32x256xf32>
    %123 = arith.mulf %122, %59 : vector<32x256xf32>
    %124 = arith.select %121, %59, %123 : vector<32x256xi1>, vector<32x256xf32>
    %c0_127 = arith.constant 0 : index
    %c0_128 = arith.constant 0 : index
    %125 = vector.load %arg4[%c0_127, %c0_128] : memref<64x256xf32, #tpu.memory_space<vmem>>, vector<32x256xf32>
    tpu.vector_store %arg4[%c0_127, %c0_128], %124 {strides = array<i32>} : memref<64x256xf32, #tpu.memory_space<vmem>>, vector<32x256xf32>,
    %cst_129 = arith.constant 0.000000e+00 : f32
    %126 = vector.broadcast %cst_129 : f32 to vector<32x256xf32>
    %127 = arith.cmpf oge, %119, %126 : vector<32x256xf32>
    %cst_130 = arith.constant 2.000000e-01 : f32
    %128 = vector.broadcast %cst_130 : f32 to vector<32x256xf32>
    %129 = arith.mulf %128, %119 : vector<32x256xf32>
    %130 = arith.select %127, %119, %129 : vector<32x256xi1>, vector<32x256xf32>
    %c32 = arith.constant 32 : index
    %c0_131 = arith.constant 0 : index
    %131 = vector.load %arg4[%c32, %c0_131] : memref<64x256xf32, #tpu.memory_space<vmem>>, vector<32x256xf32>
    tpu.vector_store %arg4[%c32, %c0_131], %130 {strides = array<i32>} : memref<64x256xf32, #tpu.memory_space<vmem>>, vector<32x256xf32>,
    return
  }
  func.func @transform_0(%arg0: i32) -> (i32, i32, i32, i32) {
    %c0_i32 = arith.constant 0 : i32
    %c0_i32_0 = arith.constant 0 : i32
    %c0_i32_1 = arith.constant 0 : i32
    %c0_i32_2 = arith.constant 0 : i32
    %c0_i32_3 = arith.constant 0 : i32
    return %c0_i32, %c0_i32_0, %c0_i32_1, %c0_i32_2 : i32, i32, i32, i32
  }
  func.func @transform_1(%arg0: i32) -> (i32, i32, i32) {
    %c0_i32 = arith.constant 0 : i32
    %c0_i32_0 = arith.constant 0 : i32
    %c0_i32_1 = arith.constant 0 : i32
    %c0_i32_2 = arith.constant 0 : i32
    return %c0_i32, %c0_i32_0, %c0_i32_1 : i32, i32, i32
  }
  func.func @transform_2(%arg0: i32) -> (i32, i32) {
    %c0_i32 = arith.constant 0 : i32
    %c0_i32_0 = arith.constant 0 : i32
    %c0_i32_1 = arith.constant 0 : i32
    return %c0_i32, %c0_i32_0 : i32, i32
  }
  func.func @transform_3(%arg0: i32) -> (i32, i32) {
    %c0_i32 = arith.constant 0 : i32
    %c0_i32_0 = arith.constant 0 : i32
    %c0_i32_1 = arith.constant 0 : i32
    return %c0_i32, %c0_i32_0 : i32, i32
  }
}

module attributes {stable_mosaic.version = 11 : i64} {
  func.func @_conv_kernel(%arg0: i32, %arg1: memref<4x2x17x136xf32, #tpu.memory_space<vmem>>, %arg2: memref<8x136x256xbf16, #tpu.memory_space<vmem>>, %arg3: memref<1x256xf32, #tpu.memory_space<vmem>>, %arg4: memref<256x16xf32, #tpu.memory_space<vmem>>, %arg5: memref<16x256xf32, #tpu.memory_space<vmem>>, %arg6: memref<1x16xf32, #tpu.memory_space<vmem>>, %arg7: memref<1x16xf32, #tpu.memory_space<vmem>>, %arg8: memref<32x256xf32, #tpu.memory_space<vmem>>) attributes {dimension_semantics = [#tpu.dimension_semantics<arbitrary>], iteration_bounds = array<i64: 1>, scalar_prefetch = 0 : i64, scratch_operands = 0 : i64, tpu.core_type = #tpu.core_type<tc>, window_params = [{pipeline_mode = #tpu.pipeline_mode<synchronous>, transform_indices = @transform_0, window_bounds = array<i64: 4, 2, 17, 136>}, {pipeline_mode = #tpu.pipeline_mode<synchronous>, transform_indices = @transform_1, window_bounds = array<i64: 8, 136, 256>}, {pipeline_mode = #tpu.pipeline_mode<synchronous>, transform_indices = @transform_2, window_bounds = array<i64: 1, 256>}, {pipeline_mode = #tpu.pipeline_mode<synchronous>, transform_indices = @transform_3, window_bounds = array<i64: 256, 16>}, {pipeline_mode = #tpu.pipeline_mode<synchronous>, transform_indices = @transform_4, window_bounds = array<i64: 16, 256>}, {pipeline_mode = #tpu.pipeline_mode<synchronous>, transform_indices = @transform_5, window_bounds = array<i64: 1, 16>}, {pipeline_mode = #tpu.pipeline_mode<synchronous>, transform_indices = @transform_6, window_bounds = array<i64: 1, 16>}, {pipeline_mode = #tpu.pipeline_mode<synchronous>, transform_indices = @transform_7, window_bounds = array<i64: 32, 256>}]} {
    %cst = arith.constant 0.000000e+00 : f32
    %0 = vector.broadcast %cst : f32 to vector<16x256xf32>
    %c0 = arith.constant 0 : index
    %c0_0 = arith.constant 0 : index
    %c0_1 = arith.constant 0 : index
    %c0_2 = arith.constant 0 : index
    %1 = vector.load %arg1[%c0, %c0_0, %c0_1, %c0_2] : memref<4x2x17x136xf32, #tpu.memory_space<vmem>>, vector<1x1x16x136xf32>
    %2 = vector.shape_cast %1 : vector<1x1x16x136xf32> to vector<16x136xf32>
    %3 = arith.truncf %2 : vector<16x136xf32> to vector<16x136xbf16>
    %c0_3 = arith.constant 0 : index
    %c0_4 = arith.constant 0 : index
    %c0_5 = arith.constant 0 : index
    %4 = vector.load %arg2[%c0_3, %c0_4, %c0_5] : memref<8x136x256xbf16, #tpu.memory_space<vmem>>, vector<1x136x256xbf16>
    %5 = vector.shape_cast %4 : vector<1x136x256xbf16> to vector<136x256xbf16>
    %cst_6 = arith.constant dense<0.000000e+00> : vector<16x256xf32>
    %6 = tpu.matmul %3, %5, %cst_6 {dimension_numbers = #tpu.dot_dimension_numbers<[1], [0], [0], [1], [0, 0, 1, 1], [], []>} : vector<16x136xbf16>, vector<136x256xbf16>, vector<16x256xf32> -> vector<16x256xf32>
    %7 = arith.addf %0, %6 : vector<16x256xf32>
    %c0_7 = arith.constant 0 : index
    %c0_8 = arith.constant 0 : index
    %c1 = arith.constant 1 : index
    %c0_9 = arith.constant 0 : index
    %8 = vector.load %arg1[%c0_7, %c0_8, %c1, %c0_9] : memref<4x2x17x136xf32, #tpu.memory_space<vmem>>, vector<1x1x16x136xf32>
    %9 = vector.shape_cast %8 : vector<1x1x16x136xf32> to vector<16x136xf32>
    %10 = arith.truncf %9 : vector<16x136xf32> to vector<16x136xbf16>
    %c1_10 = arith.constant 1 : index
    %c0_11 = arith.constant 0 : index
    %c0_12 = arith.constant 0 : index
    %11 = vector.load %arg2[%c1_10, %c0_11, %c0_12] : memref<8x136x256xbf16, #tpu.memory_space<vmem>>, vector<1x136x256xbf16>
    %12 = vector.shape_cast %11 : vector<1x136x256xbf16> to vector<136x256xbf16>
    %cst_13 = arith.constant dense<0.000000e+00> : vector<16x256xf32>
    %13 = tpu.matmul %10, %12, %cst_13 {dimension_numbers = #tpu.dot_dimension_numbers<[1], [0], [0], [1], [0, 0, 1, 1], [], []>} : vector<16x136xbf16>, vector<136x256xbf16>, vector<16x256xf32> -> vector<16x256xf32>
    %14 = arith.addf %7, %13 : vector<16x256xf32>
    %c1_14 = arith.constant 1 : index
    %c0_15 = arith.constant 0 : index
    %c0_16 = arith.constant 0 : index
    %c0_17 = arith.constant 0 : index
    %15 = vector.load %arg1[%c1_14, %c0_15, %c0_16, %c0_17] : memref<4x2x17x136xf32, #tpu.memory_space<vmem>>, vector<1x1x16x136xf32>
    %16 = vector.shape_cast %15 : vector<1x1x16x136xf32> to vector<16x136xf32>
    %17 = arith.truncf %16 : vector<16x136xf32> to vector<16x136xbf16>
    %c2 = arith.constant 2 : index
    %c0_18 = arith.constant 0 : index
    %c0_19 = arith.constant 0 : index
    %18 = vector.load %arg2[%c2, %c0_18, %c0_19] : memref<8x136x256xbf16, #tpu.memory_space<vmem>>, vector<1x136x256xbf16>
    %19 = vector.shape_cast %18 : vector<1x136x256xbf16> to vector<136x256xbf16>
    %cst_20 = arith.constant dense<0.000000e+00> : vector<16x256xf32>
    %20 = tpu.matmul %17, %19, %cst_20 {dimension_numbers = #tpu.dot_dimension_numbers<[1], [0], [0], [1], [0, 0, 1, 1], [], []>} : vector<16x136xbf16>, vector<136x256xbf16>, vector<16x256xf32> -> vector<16x256xf32>
    %21 = arith.addf %14, %20 : vector<16x256xf32>
    %c1_21 = arith.constant 1 : index
    %c0_22 = arith.constant 0 : index
    %c1_23 = arith.constant 1 : index
    %c0_24 = arith.constant 0 : index
    %22 = vector.load %arg1[%c1_21, %c0_22, %c1_23, %c0_24] : memref<4x2x17x136xf32, #tpu.memory_space<vmem>>, vector<1x1x16x136xf32>
    %23 = vector.shape_cast %22 : vector<1x1x16x136xf32> to vector<16x136xf32>
    %24 = arith.truncf %23 : vector<16x136xf32> to vector<16x136xbf16>
    %c3 = arith.constant 3 : index
    %c0_25 = arith.constant 0 : index
    %c0_26 = arith.constant 0 : index
    %25 = vector.load %arg2[%c3, %c0_25, %c0_26] : memref<8x136x256xbf16, #tpu.memory_space<vmem>>, vector<1x136x256xbf16>
    %26 = vector.shape_cast %25 : vector<1x136x256xbf16> to vector<136x256xbf16>
    %cst_27 = arith.constant dense<0.000000e+00> : vector<16x256xf32>
    %27 = tpu.matmul %24, %26, %cst_27 {dimension_numbers = #tpu.dot_dimension_numbers<[1], [0], [0], [1], [0, 0, 1, 1], [], []>} : vector<16x136xbf16>, vector<136x256xbf16>, vector<16x256xf32> -> vector<16x256xf32>
    %28 = arith.addf %21, %27 : vector<16x256xf32>
    %c2_28 = arith.constant 2 : index
    %c0_29 = arith.constant 0 : index
    %c0_30 = arith.constant 0 : index
    %c0_31 = arith.constant 0 : index
    %29 = vector.load %arg1[%c2_28, %c0_29, %c0_30, %c0_31] : memref<4x2x17x136xf32, #tpu.memory_space<vmem>>, vector<1x1x16x136xf32>
    %30 = vector.shape_cast %29 : vector<1x1x16x136xf32> to vector<16x136xf32>
    %31 = arith.truncf %30 : vector<16x136xf32> to vector<16x136xbf16>
    %c4 = arith.constant 4 : index
    %c0_32 = arith.constant 0 : index
    %c0_33 = arith.constant 0 : index
    %32 = vector.load %arg2[%c4, %c0_32, %c0_33] : memref<8x136x256xbf16, #tpu.memory_space<vmem>>, vector<1x136x256xbf16>
    %33 = vector.shape_cast %32 : vector<1x136x256xbf16> to vector<136x256xbf16>
    %cst_34 = arith.constant dense<0.000000e+00> : vector<16x256xf32>
    %34 = tpu.matmul %31, %33, %cst_34 {dimension_numbers = #tpu.dot_dimension_numbers<[1], [0], [0], [1], [0, 0, 1, 1], [], []>} : vector<16x136xbf16>, vector<136x256xbf16>, vector<16x256xf32> -> vector<16x256xf32>
    %35 = arith.addf %28, %34 : vector<16x256xf32>
    %c2_35 = arith.constant 2 : index
    %c0_36 = arith.constant 0 : index
    %c1_37 = arith.constant 1 : index
    %c0_38 = arith.constant 0 : index
    %36 = vector.load %arg1[%c2_35, %c0_36, %c1_37, %c0_38] : memref<4x2x17x136xf32, #tpu.memory_space<vmem>>, vector<1x1x16x136xf32>
    %37 = vector.shape_cast %36 : vector<1x1x16x136xf32> to vector<16x136xf32>
    %38 = arith.truncf %37 : vector<16x136xf32> to vector<16x136xbf16>
    %c5 = arith.constant 5 : index
    %c0_39 = arith.constant 0 : index
    %c0_40 = arith.constant 0 : index
    %39 = vector.load %arg2[%c5, %c0_39, %c0_40] : memref<8x136x256xbf16, #tpu.memory_space<vmem>>, vector<1x136x256xbf16>
    %40 = vector.shape_cast %39 : vector<1x136x256xbf16> to vector<136x256xbf16>
    %cst_41 = arith.constant dense<0.000000e+00> : vector<16x256xf32>
    %41 = tpu.matmul %38, %40, %cst_41 {dimension_numbers = #tpu.dot_dimension_numbers<[1], [0], [0], [1], [0, 0, 1, 1], [], []>} : vector<16x136xbf16>, vector<136x256xbf16>, vector<16x256xf32> -> vector<16x256xf32>
    %42 = arith.addf %35, %41 : vector<16x256xf32>
    %c3_42 = arith.constant 3 : index
    %c0_43 = arith.constant 0 : index
    %c0_44 = arith.constant 0 : index
    %c0_45 = arith.constant 0 : index
    %43 = vector.load %arg1[%c3_42, %c0_43, %c0_44, %c0_45] : memref<4x2x17x136xf32, #tpu.memory_space<vmem>>, vector<1x1x16x136xf32>
    %44 = vector.shape_cast %43 : vector<1x1x16x136xf32> to vector<16x136xf32>
    %45 = arith.truncf %44 : vector<16x136xf32> to vector<16x136xbf16>
    %c6 = arith.constant 6 : index
    %c0_46 = arith.constant 0 : index
    %c0_47 = arith.constant 0 : index
    %46 = vector.load %arg2[%c6, %c0_46, %c0_47] : memref<8x136x256xbf16, #tpu.memory_space<vmem>>, vector<1x136x256xbf16>
    %47 = vector.shape_cast %46 : vector<1x136x256xbf16> to vector<136x256xbf16>
    %cst_48 = arith.constant dense<0.000000e+00> : vector<16x256xf32>
    %48 = tpu.matmul %45, %47, %cst_48 {dimension_numbers = #tpu.dot_dimension_numbers<[1], [0], [0], [1], [0, 0, 1, 1], [], []>} : vector<16x136xbf16>, vector<136x256xbf16>, vector<16x256xf32> -> vector<16x256xf32>
    %49 = arith.addf %42, %48 : vector<16x256xf32>
    %c3_49 = arith.constant 3 : index
    %c0_50 = arith.constant 0 : index
    %c1_51 = arith.constant 1 : index
    %c0_52 = arith.constant 0 : index
    %50 = vector.load %arg1[%c3_49, %c0_50, %c1_51, %c0_52] : memref<4x2x17x136xf32, #tpu.memory_space<vmem>>, vector<1x1x16x136xf32>
    %51 = vector.shape_cast %50 : vector<1x1x16x136xf32> to vector<16x136xf32>
    %52 = arith.truncf %51 : vector<16x136xf32> to vector<16x136xbf16>
    %c7 = arith.constant 7 : index
    %c0_53 = arith.constant 0 : index
    %c0_54 = arith.constant 0 : index
    %53 = vector.load %arg2[%c7, %c0_53, %c0_54] : memref<8x136x256xbf16, #tpu.memory_space<vmem>>, vector<1x136x256xbf16>
    %54 = vector.shape_cast %53 : vector<1x136x256xbf16> to vector<136x256xbf16>
    %cst_55 = arith.constant dense<0.000000e+00> : vector<16x256xf32>
    %55 = tpu.matmul %52, %54, %cst_55 {dimension_numbers = #tpu.dot_dimension_numbers<[1], [0], [0], [1], [0, 0, 1, 1], [], []>} : vector<16x136xbf16>, vector<136x256xbf16>, vector<16x256xf32> -> vector<16x256xf32>
    %56 = arith.addf %49, %55 : vector<16x256xf32>
    %c0_56 = arith.constant 0 : index
    %c0_57 = arith.constant 0 : index
    %57 = vector.load %arg3[%c0_56, %c0_57] : memref<1x256xf32, #tpu.memory_space<vmem>>, vector<1x256xf32>
    %58 = vector.broadcast %57 : vector<1x256xf32> to vector<16x256xf32>
    %59 = arith.addf %56, %58 : vector<16x256xf32>
    %cst_58 = arith.constant 0.000000e+00 : f32
    %60 = vector.broadcast %cst_58 : f32 to vector<16x256xf32>
    %c0_59 = arith.constant 0 : index
    %c1_60 = arith.constant 1 : index
    %c0_61 = arith.constant 0 : index
    %c0_62 = arith.constant 0 : index
    %61 = vector.load %arg1[%c0_59, %c1_60, %c0_61, %c0_62] : memref<4x2x17x136xf32, #tpu.memory_space<vmem>>, vector<1x1x16x136xf32>
    %62 = vector.shape_cast %61 : vector<1x1x16x136xf32> to vector<16x136xf32>
    %63 = arith.truncf %62 : vector<16x136xf32> to vector<16x136xbf16>
    %c0_63 = arith.constant 0 : index
    %c0_64 = arith.constant 0 : index
    %c0_65 = arith.constant 0 : index
    %64 = vector.load %arg2[%c0_63, %c0_64, %c0_65] : memref<8x136x256xbf16, #tpu.memory_space<vmem>>, vector<1x136x256xbf16>
    %65 = vector.shape_cast %64 : vector<1x136x256xbf16> to vector<136x256xbf16>
    %cst_66 = arith.constant dense<0.000000e+00> : vector<16x256xf32>
    %66 = tpu.matmul %63, %65, %cst_66 {dimension_numbers = #tpu.dot_dimension_numbers<[1], [0], [0], [1], [0, 0, 1, 1], [], []>} : vector<16x136xbf16>, vector<136x256xbf16>, vector<16x256xf32> -> vector<16x256xf32>
    %67 = arith.addf %60, %66 : vector<16x256xf32>
    %c0_67 = arith.constant 0 : index
    %c1_68 = arith.constant 1 : index
    %c1_69 = arith.constant 1 : index
    %c0_70 = arith.constant 0 : index
    %68 = vector.load %arg1[%c0_67, %c1_68, %c1_69, %c0_70] : memref<4x2x17x136xf32, #tpu.memory_space<vmem>>, vector<1x1x16x136xf32>
    %69 = vector.shape_cast %68 : vector<1x1x16x136xf32> to vector<16x136xf32>
    %70 = arith.truncf %69 : vector<16x136xf32> to vector<16x136xbf16>
    %c1_71 = arith.constant 1 : index
    %c0_72 = arith.constant 0 : index
    %c0_73 = arith.constant 0 : index
    %71 = vector.load %arg2[%c1_71, %c0_72, %c0_73] : memref<8x136x256xbf16, #tpu.memory_space<vmem>>, vector<1x136x256xbf16>
    %72 = vector.shape_cast %71 : vector<1x136x256xbf16> to vector<136x256xbf16>
    %cst_74 = arith.constant dense<0.000000e+00> : vector<16x256xf32>
    %73 = tpu.matmul %70, %72, %cst_74 {dimension_numbers = #tpu.dot_dimension_numbers<[1], [0], [0], [1], [0, 0, 1, 1], [], []>} : vector<16x136xbf16>, vector<136x256xbf16>, vector<16x256xf32> -> vector<16x256xf32>
    %74 = arith.addf %67, %73 : vector<16x256xf32>
    %c1_75 = arith.constant 1 : index
    %c1_76 = arith.constant 1 : index
    %c0_77 = arith.constant 0 : index
    %c0_78 = arith.constant 0 : index
    %75 = vector.load %arg1[%c1_75, %c1_76, %c0_77, %c0_78] : memref<4x2x17x136xf32, #tpu.memory_space<vmem>>, vector<1x1x16x136xf32>
    %76 = vector.shape_cast %75 : vector<1x1x16x136xf32> to vector<16x136xf32>
    %77 = arith.truncf %76 : vector<16x136xf32> to vector<16x136xbf16>
    %c2_79 = arith.constant 2 : index
    %c0_80 = arith.constant 0 : index
    %c0_81 = arith.constant 0 : index
    %78 = vector.load %arg2[%c2_79, %c0_80, %c0_81] : memref<8x136x256xbf16, #tpu.memory_space<vmem>>, vector<1x136x256xbf16>
    %79 = vector.shape_cast %78 : vector<1x136x256xbf16> to vector<136x256xbf16>
    %cst_82 = arith.constant dense<0.000000e+00> : vector<16x256xf32>
    %80 = tpu.matmul %77, %79, %cst_82 {dimension_numbers = #tpu.dot_dimension_numbers<[1], [0], [0], [1], [0, 0, 1, 1], [], []>} : vector<16x136xbf16>, vector<136x256xbf16>, vector<16x256xf32> -> vector<16x256xf32>
    %81 = arith.addf %74, %80 : vector<16x256xf32>
    %c1_83 = arith.constant 1 : index
    %c1_84 = arith.constant 1 : index
    %c1_85 = arith.constant 1 : index
    %c0_86 = arith.constant 0 : index
    %82 = vector.load %arg1[%c1_83, %c1_84, %c1_85, %c0_86] : memref<4x2x17x136xf32, #tpu.memory_space<vmem>>, vector<1x1x16x136xf32>
    %83 = vector.shape_cast %82 : vector<1x1x16x136xf32> to vector<16x136xf32>
    %84 = arith.truncf %83 : vector<16x136xf32> to vector<16x136xbf16>
    %c3_87 = arith.constant 3 : index
    %c0_88 = arith.constant 0 : index
    %c0_89 = arith.constant 0 : index
    %85 = vector.load %arg2[%c3_87, %c0_88, %c0_89] : memref<8x136x256xbf16, #tpu.memory_space<vmem>>, vector<1x136x256xbf16>
    %86 = vector.shape_cast %85 : vector<1x136x256xbf16> to vector<136x256xbf16>
    %cst_90 = arith.constant dense<0.000000e+00> : vector<16x256xf32>
    %87 = tpu.matmul %84, %86, %cst_90 {dimension_numbers = #tpu.dot_dimension_numbers<[1], [0], [0], [1], [0, 0, 1, 1], [], []>} : vector<16x136xbf16>, vector<136x256xbf16>, vector<16x256xf32> -> vector<16x256xf32>
    %88 = arith.addf %81, %87 : vector<16x256xf32>
    %c2_91 = arith.constant 2 : index
    %c1_92 = arith.constant 1 : index
    %c0_93 = arith.constant 0 : index
    %c0_94 = arith.constant 0 : index
    %89 = vector.load %arg1[%c2_91, %c1_92, %c0_93, %c0_94] : memref<4x2x17x136xf32, #tpu.memory_space<vmem>>, vector<1x1x16x136xf32>
    %90 = vector.shape_cast %89 : vector<1x1x16x136xf32> to vector<16x136xf32>
    %91 = arith.truncf %90 : vector<16x136xf32> to vector<16x136xbf16>
    %c4_95 = arith.constant 4 : index
    %c0_96 = arith.constant 0 : index
    %c0_97 = arith.constant 0 : index
    %92 = vector.load %arg2[%c4_95, %c0_96, %c0_97] : memref<8x136x256xbf16, #tpu.memory_space<vmem>>, vector<1x136x256xbf16>
    %93 = vector.shape_cast %92 : vector<1x136x256xbf16> to vector<136x256xbf16>
    %cst_98 = arith.constant dense<0.000000e+00> : vector<16x256xf32>
    %94 = tpu.matmul %91, %93, %cst_98 {dimension_numbers = #tpu.dot_dimension_numbers<[1], [0], [0], [1], [0, 0, 1, 1], [], []>} : vector<16x136xbf16>, vector<136x256xbf16>, vector<16x256xf32> -> vector<16x256xf32>
    %95 = arith.addf %88, %94 : vector<16x256xf32>
    %c2_99 = arith.constant 2 : index
    %c1_100 = arith.constant 1 : index
    %c1_101 = arith.constant 1 : index
    %c0_102 = arith.constant 0 : index
    %96 = vector.load %arg1[%c2_99, %c1_100, %c1_101, %c0_102] : memref<4x2x17x136xf32, #tpu.memory_space<vmem>>, vector<1x1x16x136xf32>
    %97 = vector.shape_cast %96 : vector<1x1x16x136xf32> to vector<16x136xf32>
    %98 = arith.truncf %97 : vector<16x136xf32> to vector<16x136xbf16>
    %c5_103 = arith.constant 5 : index
    %c0_104 = arith.constant 0 : index
    %c0_105 = arith.constant 0 : index
    %99 = vector.load %arg2[%c5_103, %c0_104, %c0_105] : memref<8x136x256xbf16, #tpu.memory_space<vmem>>, vector<1x136x256xbf16>
    %100 = vector.shape_cast %99 : vector<1x136x256xbf16> to vector<136x256xbf16>
    %cst_106 = arith.constant dense<0.000000e+00> : vector<16x256xf32>
    %101 = tpu.matmul %98, %100, %cst_106 {dimension_numbers = #tpu.dot_dimension_numbers<[1], [0], [0], [1], [0, 0, 1, 1], [], []>} : vector<16x136xbf16>, vector<136x256xbf16>, vector<16x256xf32> -> vector<16x256xf32>
    %102 = arith.addf %95, %101 : vector<16x256xf32>
    %c3_107 = arith.constant 3 : index
    %c1_108 = arith.constant 1 : index
    %c0_109 = arith.constant 0 : index
    %c0_110 = arith.constant 0 : index
    %103 = vector.load %arg1[%c3_107, %c1_108, %c0_109, %c0_110] : memref<4x2x17x136xf32, #tpu.memory_space<vmem>>, vector<1x1x16x136xf32>
    %104 = vector.shape_cast %103 : vector<1x1x16x136xf32> to vector<16x136xf32>
    %105 = arith.truncf %104 : vector<16x136xf32> to vector<16x136xbf16>
    %c6_111 = arith.constant 6 : index
    %c0_112 = arith.constant 0 : index
    %c0_113 = arith.constant 0 : index
    %106 = vector.load %arg2[%c6_111, %c0_112, %c0_113] : memref<8x136x256xbf16, #tpu.memory_space<vmem>>, vector<1x136x256xbf16>
    %107 = vector.shape_cast %106 : vector<1x136x256xbf16> to vector<136x256xbf16>
    %cst_114 = arith.constant dense<0.000000e+00> : vector<16x256xf32>
    %108 = tpu.matmul %105, %107, %cst_114 {dimension_numbers = #tpu.dot_dimension_numbers<[1], [0], [0], [1], [0, 0, 1, 1], [], []>} : vector<16x136xbf16>, vector<136x256xbf16>, vector<16x256xf32> -> vector<16x256xf32>
    %109 = arith.addf %102, %108 : vector<16x256xf32>
    %c3_115 = arith.constant 3 : index
    %c1_116 = arith.constant 1 : index
    %c1_117 = arith.constant 1 : index
    %c0_118 = arith.constant 0 : index
    %110 = vector.load %arg1[%c3_115, %c1_116, %c1_117, %c0_118] : memref<4x2x17x136xf32, #tpu.memory_space<vmem>>, vector<1x1x16x136xf32>
    %111 = vector.shape_cast %110 : vector<1x1x16x136xf32> to vector<16x136xf32>
    %112 = arith.truncf %111 : vector<16x136xf32> to vector<16x136xbf16>
    %c7_119 = arith.constant 7 : index
    %c0_120 = arith.constant 0 : index
    %c0_121 = arith.constant 0 : index
    %113 = vector.load %arg2[%c7_119, %c0_120, %c0_121] : memref<8x136x256xbf16, #tpu.memory_space<vmem>>, vector<1x136x256xbf16>
    %114 = vector.shape_cast %113 : vector<1x136x256xbf16> to vector<136x256xbf16>
    %cst_122 = arith.constant dense<0.000000e+00> : vector<16x256xf32>
    %115 = tpu.matmul %112, %114, %cst_122 {dimension_numbers = #tpu.dot_dimension_numbers<[1], [0], [0], [1], [0, 0, 1, 1], [], []>} : vector<16x136xbf16>, vector<136x256xbf16>, vector<16x256xf32> -> vector<16x256xf32>
    %116 = arith.addf %109, %115 : vector<16x256xf32>
    %c0_123 = arith.constant 0 : index
    %c0_124 = arith.constant 0 : index
    %117 = vector.load %arg3[%c0_123, %c0_124] : memref<1x256xf32, #tpu.memory_space<vmem>>, vector<1x256xf32>
    %118 = vector.broadcast %117 : vector<1x256xf32> to vector<16x256xf32>
    %119 = arith.addf %116, %118 : vector<16x256xf32>
    %cst_125 = arith.constant 0.000000e+00 : f32
    %120 = vector.broadcast %cst_125 : f32 to vector<1x256xf32>
    %cst_126 = arith.constant 0.000000e+00 : f32
    %121 = vector.broadcast %cst_126 : f32 to vector<1x256xf32>
    %cst_127 = arith.constant dense<0.000000e+00> : vector<256xf32>
    %122 = vector.multi_reduction <add>, %59, %cst_127 [0] : vector<16x256xf32> to vector<256xf32>
    %123 = vector.shape_cast %122 : vector<256xf32> to vector<1x256xf32>
    %124 = arith.addf %120, %123 : vector<1x256xf32>
    %125 = arith.mulf %59, %59 : vector<16x256xf32>
    %cst_128 = arith.constant dense<0.000000e+00> : vector<256xf32>
    %126 = vector.multi_reduction <add>, %125, %cst_128 [0] : vector<16x256xf32> to vector<256xf32>
    %127 = vector.shape_cast %126 : vector<256xf32> to vector<1x256xf32>
    %128 = arith.addf %121, %127 : vector<1x256xf32>
    %cst_129 = arith.constant dense<0.000000e+00> : vector<256xf32>
    %129 = vector.multi_reduction <add>, %119, %cst_129 [0] : vector<16x256xf32> to vector<256xf32>
    %130 = vector.shape_cast %129 : vector<256xf32> to vector<1x256xf32>
    %131 = arith.addf %124, %130 : vector<1x256xf32>
    %132 = arith.mulf %119, %119 : vector<16x256xf32>
    %cst_130 = arith.constant dense<0.000000e+00> : vector<256xf32>
    %133 = vector.multi_reduction <add>, %132, %cst_130 [0] : vector<16x256xf32> to vector<256xf32>
    %134 = vector.shape_cast %133 : vector<256xf32> to vector<1x256xf32>
    %135 = arith.addf %128, %134 : vector<1x256xf32>
    %c0_131 = arith.constant 0 : index
    %c0_132 = arith.constant 0 : index
    %136 = vector.load %arg4[%c0_131, %c0_132] : memref<256x16xf32, #tpu.memory_space<vmem>>, vector<256x16xf32>
    %cst_133 = arith.constant dense<0.000000e+00> : vector<1x16xf32>
    %137 = tpu.matmul %131, %136, %cst_133 {dimension_numbers = #tpu.dot_dimension_numbers<[1], [0], [0], [1], [0, 0, 1, 1], [], []>} : vector<1x256xf32>, vector<256x16xf32>, vector<1x16xf32> -> vector<1x16xf32>
    %c0_134 = arith.constant 0 : index
    %c0_135 = arith.constant 0 : index
    %138 = vector.load %arg4[%c0_134, %c0_135] : memref<256x16xf32, #tpu.memory_space<vmem>>, vector<256x16xf32>
    %cst_136 = arith.constant dense<0.000000e+00> : vector<1x16xf32>
    %139 = tpu.matmul %135, %138, %cst_136 {dimension_numbers = #tpu.dot_dimension_numbers<[1], [0], [0], [1], [0, 0, 1, 1], [], []>} : vector<1x256xf32>, vector<256x16xf32>, vector<1x16xf32> -> vector<1x16xf32>
    %cst_137 = arith.constant 5.120000e+02 : f32
    %140 = vector.broadcast %cst_137 : f32 to vector<1x16xf32>
    %141 = arith.divf %137, %140 : vector<1x16xf32>
    %cst_138 = arith.constant 5.120000e+02 : f32
    %142 = vector.broadcast %cst_138 : f32 to vector<1x16xf32>
    %143 = arith.divf %139, %142 : vector<1x16xf32>
    %144 = arith.mulf %141, %141 : vector<1x16xf32>
    %145 = arith.subf %143, %144 : vector<1x16xf32>
    %c0_139 = arith.constant 0 : index
    %c0_140 = arith.constant 0 : index
    %146 = vector.load %arg6[%c0_139, %c0_140] : memref<1x16xf32, #tpu.memory_space<vmem>>, vector<1x16xf32>
    %cst_141 = arith.constant 9.99999974E-6 : f32
    %147 = vector.broadcast %cst_141 : f32 to vector<1x16xf32>
    %148 = arith.addf %145, %147 : vector<1x16xf32>
    %149 = math.rsqrt %148 : vector<1x16xf32>
    %150 = arith.mulf %146, %149 : vector<1x16xf32>
    %c0_142 = arith.constant 0 : index
    %c0_143 = arith.constant 0 : index
    %151 = vector.load %arg7[%c0_142, %c0_143] : memref<1x16xf32, #tpu.memory_space<vmem>>, vector<1x16xf32>
    %152 = arith.mulf %141, %150 : vector<1x16xf32>
    %153 = arith.subf %151, %152 : vector<1x16xf32>
    %c0_144 = arith.constant 0 : index
    %c0_145 = arith.constant 0 : index
    %154 = vector.load %arg5[%c0_144, %c0_145] : memref<16x256xf32, #tpu.memory_space<vmem>>, vector<16x256xf32>
    %cst_146 = arith.constant dense<0.000000e+00> : vector<1x256xf32>
    %155 = tpu.matmul %150, %154, %cst_146 {dimension_numbers = #tpu.dot_dimension_numbers<[1], [0], [0], [1], [0, 0, 1, 1], [], []>} : vector<1x16xf32>, vector<16x256xf32>, vector<1x256xf32> -> vector<1x256xf32>
    %c0_147 = arith.constant 0 : index
    %c0_148 = arith.constant 0 : index
    %156 = vector.load %arg5[%c0_147, %c0_148] : memref<16x256xf32, #tpu.memory_space<vmem>>, vector<16x256xf32>
    %cst_149 = arith.constant dense<0.000000e+00> : vector<1x256xf32>
    %157 = tpu.matmul %153, %156, %cst_149 {dimension_numbers = #tpu.dot_dimension_numbers<[1], [0], [0], [1], [0, 0, 1, 1], [], []>} : vector<1x16xf32>, vector<16x256xf32>, vector<1x256xf32> -> vector<1x256xf32>
    %158 = vector.broadcast %155 : vector<1x256xf32> to vector<16x256xf32>
    %159 = arith.mulf %59, %158 : vector<16x256xf32>
    %160 = vector.broadcast %157 : vector<1x256xf32> to vector<16x256xf32>
    %161 = arith.addf %159, %160 : vector<16x256xf32>
    %cst_150 = arith.constant 0.000000e+00 : f32
    %162 = vector.broadcast %cst_150 : f32 to vector<16x256xf32>
    %163 = arith.cmpf oge, %161, %162 : vector<16x256xf32>
    %cst_151 = arith.constant 2.000000e-01 : f32
    %164 = vector.broadcast %cst_151 : f32 to vector<16x256xf32>
    %165 = arith.mulf %164, %161 : vector<16x256xf32>
    %166 = arith.select %163, %161, %165 : vector<16x256xi1>, vector<16x256xf32>
    %c0_152 = arith.constant 0 : index
    %c0_153 = arith.constant 0 : index
    %167 = vector.load %arg8[%c0_152, %c0_153] : memref<32x256xf32, #tpu.memory_space<vmem>>, vector<16x256xf32>
    tpu.vector_store %arg8[%c0_152, %c0_153], %166 {strides = array<i32>} : memref<32x256xf32, #tpu.memory_space<vmem>>, vector<16x256xf32>,
    %168 = vector.broadcast %155 : vector<1x256xf32> to vector<16x256xf32>
    %169 = arith.mulf %119, %168 : vector<16x256xf32>
    %170 = vector.broadcast %157 : vector<1x256xf32> to vector<16x256xf32>
    %171 = arith.addf %169, %170 : vector<16x256xf32>
    %cst_154 = arith.constant 0.000000e+00 : f32
    %172 = vector.broadcast %cst_154 : f32 to vector<16x256xf32>
    %173 = arith.cmpf oge, %171, %172 : vector<16x256xf32>
    %cst_155 = arith.constant 2.000000e-01 : f32
    %174 = vector.broadcast %cst_155 : f32 to vector<16x256xf32>
    %175 = arith.mulf %174, %171 : vector<16x256xf32>
    %176 = arith.select %173, %171, %175 : vector<16x256xi1>, vector<16x256xf32>
    %c16 = arith.constant 16 : index
    %c0_156 = arith.constant 0 : index
    %177 = vector.load %arg8[%c16, %c0_156] : memref<32x256xf32, #tpu.memory_space<vmem>>, vector<16x256xf32>
    tpu.vector_store %arg8[%c16, %c0_156], %176 {strides = array<i32>} : memref<32x256xf32, #tpu.memory_space<vmem>>, vector<16x256xf32>,
    return
  }
  func.func @transform_0(%arg0: i32) -> (i32, i32, i32, i32) {
    %c0_i32 = arith.constant 0 : i32
    %c0_i32_0 = arith.constant 0 : i32
    %c0_i32_1 = arith.constant 0 : i32
    %c0_i32_2 = arith.constant 0 : i32
    %c0_i32_3 = arith.constant 0 : i32
    return %c0_i32, %c0_i32_0, %c0_i32_1, %c0_i32_2 : i32, i32, i32, i32
  }
  func.func @transform_1(%arg0: i32) -> (i32, i32, i32) {
    %c0_i32 = arith.constant 0 : i32
    %c0_i32_0 = arith.constant 0 : i32
    %c0_i32_1 = arith.constant 0 : i32
    %c0_i32_2 = arith.constant 0 : i32
    return %c0_i32, %c0_i32_0, %c0_i32_1 : i32, i32, i32
  }
  func.func @transform_2(%arg0: i32) -> (i32, i32) {
    %c0_i32 = arith.constant 0 : i32
    %c0_i32_0 = arith.constant 0 : i32
    %c0_i32_1 = arith.constant 0 : i32
    return %c0_i32, %c0_i32_0 : i32, i32
  }
  func.func @transform_3(%arg0: i32) -> (i32, i32) {
    %c0_i32 = arith.constant 0 : i32
    %c0_i32_0 = arith.constant 0 : i32
    %c0_i32_1 = arith.constant 0 : i32
    return %c0_i32, %c0_i32_0 : i32, i32
  }
  func.func @transform_4(%arg0: i32) -> (i32, i32) {
    %c0_i32 = arith.constant 0 : i32
    %c0_i32_0 = arith.constant 0 : i32
    %c0_i32_1 = arith.constant 0 : i32
    return %c0_i32, %c0_i32_0 : i32, i32
  }
  func.func @transform_5(%arg0: i32) -> (i32, i32) {
    %c0_i32 = arith.constant 0 : i32
    %c0_i32_0 = arith.constant 0 : i32
    %c0_i32_1 = arith.constant 0 : i32
    return %c0_i32, %c0_i32_0 : i32, i32
  }
  func.func @transform_6(%arg0: i32) -> (i32, i32) {
    %c0_i32 = arith.constant 0 : i32
    %c0_i32_0 = arith.constant 0 : i32
    %c0_i32_1 = arith.constant 0 : i32
    return %c0_i32, %c0_i32_0 : i32, i32
  }
  func.func @transform_7(%arg0: i32) -> (i32, i32) {
    %c0_i32 = arith.constant 0 : i32
    %c0_i32_0 = arith.constant 0 : i32
    %c0_i32_1 = arith.constant 0 : i32
    return %c0_i32, %c0_i32_0 : i32, i32
  }
}

module attributes {stable_mosaic.version = 11 : i64} {
  func.func @_conv_kernel(%arg0: i32, %arg1: memref<4x2x9x144xf32, #tpu.memory_space<vmem>>, %arg2: memref<8x144x256xbf16, #tpu.memory_space<vmem>>, %arg3: memref<1x256xf32, #tpu.memory_space<vmem>>, %arg4: memref<256x32xf32, #tpu.memory_space<vmem>>, %arg5: memref<32x256xf32, #tpu.memory_space<vmem>>, %arg6: memref<1x32xf32, #tpu.memory_space<vmem>>, %arg7: memref<1x32xf32, #tpu.memory_space<vmem>>, %arg8: memref<16x256xf32, #tpu.memory_space<vmem>>) attributes {dimension_semantics = [#tpu.dimension_semantics<arbitrary>], iteration_bounds = array<i64: 1>, scalar_prefetch = 0 : i64, scratch_operands = 0 : i64, tpu.core_type = #tpu.core_type<tc>, window_params = [{pipeline_mode = #tpu.pipeline_mode<synchronous>, transform_indices = @transform_0, window_bounds = array<i64: 4, 2, 9, 144>}, {pipeline_mode = #tpu.pipeline_mode<synchronous>, transform_indices = @transform_1, window_bounds = array<i64: 8, 144, 256>}, {pipeline_mode = #tpu.pipeline_mode<synchronous>, transform_indices = @transform_2, window_bounds = array<i64: 1, 256>}, {pipeline_mode = #tpu.pipeline_mode<synchronous>, transform_indices = @transform_3, window_bounds = array<i64: 256, 32>}, {pipeline_mode = #tpu.pipeline_mode<synchronous>, transform_indices = @transform_4, window_bounds = array<i64: 32, 256>}, {pipeline_mode = #tpu.pipeline_mode<synchronous>, transform_indices = @transform_5, window_bounds = array<i64: 1, 32>}, {pipeline_mode = #tpu.pipeline_mode<synchronous>, transform_indices = @transform_6, window_bounds = array<i64: 1, 32>}, {pipeline_mode = #tpu.pipeline_mode<synchronous>, transform_indices = @transform_7, window_bounds = array<i64: 16, 256>}]} {
    %cst = arith.constant 0.000000e+00 : f32
    %0 = vector.broadcast %cst : f32 to vector<8x256xf32>
    %c0 = arith.constant 0 : index
    %c0_0 = arith.constant 0 : index
    %c0_1 = arith.constant 0 : index
    %c0_2 = arith.constant 0 : index
    %1 = vector.load %arg1[%c0, %c0_0, %c0_1, %c0_2] : memref<4x2x9x144xf32, #tpu.memory_space<vmem>>, vector<1x1x8x144xf32>
    %2 = vector.shape_cast %1 : vector<1x1x8x144xf32> to vector<8x144xf32>
    %3 = arith.truncf %2 : vector<8x144xf32> to vector<8x144xbf16>
    %c0_3 = arith.constant 0 : index
    %c0_4 = arith.constant 0 : index
    %c0_5 = arith.constant 0 : index
    %4 = vector.load %arg2[%c0_3, %c0_4, %c0_5] : memref<8x144x256xbf16, #tpu.memory_space<vmem>>, vector<1x144x256xbf16>
    %5 = vector.shape_cast %4 : vector<1x144x256xbf16> to vector<144x256xbf16>
    %cst_6 = arith.constant dense<0.000000e+00> : vector<8x256xf32>
    %6 = tpu.matmul %3, %5, %cst_6 {dimension_numbers = #tpu.dot_dimension_numbers<[1], [0], [0], [1], [0, 0, 1, 1], [], []>} : vector<8x144xbf16>, vector<144x256xbf16>, vector<8x256xf32> -> vector<8x256xf32>
    %7 = arith.addf %0, %6 : vector<8x256xf32>
    %c0_7 = arith.constant 0 : index
    %c0_8 = arith.constant 0 : index
    %c1 = arith.constant 1 : index
    %c0_9 = arith.constant 0 : index
    %8 = vector.load %arg1[%c0_7, %c0_8, %c1, %c0_9] : memref<4x2x9x144xf32, #tpu.memory_space<vmem>>, vector<1x1x8x144xf32>
    %9 = vector.shape_cast %8 : vector<1x1x8x144xf32> to vector<8x144xf32>
    %10 = arith.truncf %9 : vector<8x144xf32> to vector<8x144xbf16>
    %c1_10 = arith.constant 1 : index
    %c0_11 = arith.constant 0 : index
    %c0_12 = arith.constant 0 : index
    %11 = vector.load %arg2[%c1_10, %c0_11, %c0_12] : memref<8x144x256xbf16, #tpu.memory_space<vmem>>, vector<1x144x256xbf16>
    %12 = vector.shape_cast %11 : vector<1x144x256xbf16> to vector<144x256xbf16>
    %cst_13 = arith.constant dense<0.000000e+00> : vector<8x256xf32>
    %13 = tpu.matmul %10, %12, %cst_13 {dimension_numbers = #tpu.dot_dimension_numbers<[1], [0], [0], [1], [0, 0, 1, 1], [], []>} : vector<8x144xbf16>, vector<144x256xbf16>, vector<8x256xf32> -> vector<8x256xf32>
    %14 = arith.addf %7, %13 : vector<8x256xf32>
    %c1_14 = arith.constant 1 : index
    %c0_15 = arith.constant 0 : index
    %c0_16 = arith.constant 0 : index
    %c0_17 = arith.constant 0 : index
    %15 = vector.load %arg1[%c1_14, %c0_15, %c0_16, %c0_17] : memref<4x2x9x144xf32, #tpu.memory_space<vmem>>, vector<1x1x8x144xf32>
    %16 = vector.shape_cast %15 : vector<1x1x8x144xf32> to vector<8x144xf32>
    %17 = arith.truncf %16 : vector<8x144xf32> to vector<8x144xbf16>
    %c2 = arith.constant 2 : index
    %c0_18 = arith.constant 0 : index
    %c0_19 = arith.constant 0 : index
    %18 = vector.load %arg2[%c2, %c0_18, %c0_19] : memref<8x144x256xbf16, #tpu.memory_space<vmem>>, vector<1x144x256xbf16>
    %19 = vector.shape_cast %18 : vector<1x144x256xbf16> to vector<144x256xbf16>
    %cst_20 = arith.constant dense<0.000000e+00> : vector<8x256xf32>
    %20 = tpu.matmul %17, %19, %cst_20 {dimension_numbers = #tpu.dot_dimension_numbers<[1], [0], [0], [1], [0, 0, 1, 1], [], []>} : vector<8x144xbf16>, vector<144x256xbf16>, vector<8x256xf32> -> vector<8x256xf32>
    %21 = arith.addf %14, %20 : vector<8x256xf32>
    %c1_21 = arith.constant 1 : index
    %c0_22 = arith.constant 0 : index
    %c1_23 = arith.constant 1 : index
    %c0_24 = arith.constant 0 : index
    %22 = vector.load %arg1[%c1_21, %c0_22, %c1_23, %c0_24] : memref<4x2x9x144xf32, #tpu.memory_space<vmem>>, vector<1x1x8x144xf32>
    %23 = vector.shape_cast %22 : vector<1x1x8x144xf32> to vector<8x144xf32>
    %24 = arith.truncf %23 : vector<8x144xf32> to vector<8x144xbf16>
    %c3 = arith.constant 3 : index
    %c0_25 = arith.constant 0 : index
    %c0_26 = arith.constant 0 : index
    %25 = vector.load %arg2[%c3, %c0_25, %c0_26] : memref<8x144x256xbf16, #tpu.memory_space<vmem>>, vector<1x144x256xbf16>
    %26 = vector.shape_cast %25 : vector<1x144x256xbf16> to vector<144x256xbf16>
    %cst_27 = arith.constant dense<0.000000e+00> : vector<8x256xf32>
    %27 = tpu.matmul %24, %26, %cst_27 {dimension_numbers = #tpu.dot_dimension_numbers<[1], [0], [0], [1], [0, 0, 1, 1], [], []>} : vector<8x144xbf16>, vector<144x256xbf16>, vector<8x256xf32> -> vector<8x256xf32>
    %28 = arith.addf %21, %27 : vector<8x256xf32>
    %c2_28 = arith.constant 2 : index
    %c0_29 = arith.constant 0 : index
    %c0_30 = arith.constant 0 : index
    %c0_31 = arith.constant 0 : index
    %29 = vector.load %arg1[%c2_28, %c0_29, %c0_30, %c0_31] : memref<4x2x9x144xf32, #tpu.memory_space<vmem>>, vector<1x1x8x144xf32>
    %30 = vector.shape_cast %29 : vector<1x1x8x144xf32> to vector<8x144xf32>
    %31 = arith.truncf %30 : vector<8x144xf32> to vector<8x144xbf16>
    %c4 = arith.constant 4 : index
    %c0_32 = arith.constant 0 : index
    %c0_33 = arith.constant 0 : index
    %32 = vector.load %arg2[%c4, %c0_32, %c0_33] : memref<8x144x256xbf16, #tpu.memory_space<vmem>>, vector<1x144x256xbf16>
    %33 = vector.shape_cast %32 : vector<1x144x256xbf16> to vector<144x256xbf16>
    %cst_34 = arith.constant dense<0.000000e+00> : vector<8x256xf32>
    %34 = tpu.matmul %31, %33, %cst_34 {dimension_numbers = #tpu.dot_dimension_numbers<[1], [0], [0], [1], [0, 0, 1, 1], [], []>} : vector<8x144xbf16>, vector<144x256xbf16>, vector<8x256xf32> -> vector<8x256xf32>
    %35 = arith.addf %28, %34 : vector<8x256xf32>
    %c2_35 = arith.constant 2 : index
    %c0_36 = arith.constant 0 : index
    %c1_37 = arith.constant 1 : index
    %c0_38 = arith.constant 0 : index
    %36 = vector.load %arg1[%c2_35, %c0_36, %c1_37, %c0_38] : memref<4x2x9x144xf32, #tpu.memory_space<vmem>>, vector<1x1x8x144xf32>
    %37 = vector.shape_cast %36 : vector<1x1x8x144xf32> to vector<8x144xf32>
    %38 = arith.truncf %37 : vector<8x144xf32> to vector<8x144xbf16>
    %c5 = arith.constant 5 : index
    %c0_39 = arith.constant 0 : index
    %c0_40 = arith.constant 0 : index
    %39 = vector.load %arg2[%c5, %c0_39, %c0_40] : memref<8x144x256xbf16, #tpu.memory_space<vmem>>, vector<1x144x256xbf16>
    %40 = vector.shape_cast %39 : vector<1x144x256xbf16> to vector<144x256xbf16>
    %cst_41 = arith.constant dense<0.000000e+00> : vector<8x256xf32>
    %41 = tpu.matmul %38, %40, %cst_41 {dimension_numbers = #tpu.dot_dimension_numbers<[1], [0], [0], [1], [0, 0, 1, 1], [], []>} : vector<8x144xbf16>, vector<144x256xbf16>, vector<8x256xf32> -> vector<8x256xf32>
    %42 = arith.addf %35, %41 : vector<8x256xf32>
    %c3_42 = arith.constant 3 : index
    %c0_43 = arith.constant 0 : index
    %c0_44 = arith.constant 0 : index
    %c0_45 = arith.constant 0 : index
    %43 = vector.load %arg1[%c3_42, %c0_43, %c0_44, %c0_45] : memref<4x2x9x144xf32, #tpu.memory_space<vmem>>, vector<1x1x8x144xf32>
    %44 = vector.shape_cast %43 : vector<1x1x8x144xf32> to vector<8x144xf32>
    %45 = arith.truncf %44 : vector<8x144xf32> to vector<8x144xbf16>
    %c6 = arith.constant 6 : index
    %c0_46 = arith.constant 0 : index
    %c0_47 = arith.constant 0 : index
    %46 = vector.load %arg2[%c6, %c0_46, %c0_47] : memref<8x144x256xbf16, #tpu.memory_space<vmem>>, vector<1x144x256xbf16>
    %47 = vector.shape_cast %46 : vector<1x144x256xbf16> to vector<144x256xbf16>
    %cst_48 = arith.constant dense<0.000000e+00> : vector<8x256xf32>
    %48 = tpu.matmul %45, %47, %cst_48 {dimension_numbers = #tpu.dot_dimension_numbers<[1], [0], [0], [1], [0, 0, 1, 1], [], []>} : vector<8x144xbf16>, vector<144x256xbf16>, vector<8x256xf32> -> vector<8x256xf32>
    %49 = arith.addf %42, %48 : vector<8x256xf32>
    %c3_49 = arith.constant 3 : index
    %c0_50 = arith.constant 0 : index
    %c1_51 = arith.constant 1 : index
    %c0_52 = arith.constant 0 : index
    %50 = vector.load %arg1[%c3_49, %c0_50, %c1_51, %c0_52] : memref<4x2x9x144xf32, #tpu.memory_space<vmem>>, vector<1x1x8x144xf32>
    %51 = vector.shape_cast %50 : vector<1x1x8x144xf32> to vector<8x144xf32>
    %52 = arith.truncf %51 : vector<8x144xf32> to vector<8x144xbf16>
    %c7 = arith.constant 7 : index
    %c0_53 = arith.constant 0 : index
    %c0_54 = arith.constant 0 : index
    %53 = vector.load %arg2[%c7, %c0_53, %c0_54] : memref<8x144x256xbf16, #tpu.memory_space<vmem>>, vector<1x144x256xbf16>
    %54 = vector.shape_cast %53 : vector<1x144x256xbf16> to vector<144x256xbf16>
    %cst_55 = arith.constant dense<0.000000e+00> : vector<8x256xf32>
    %55 = tpu.matmul %52, %54, %cst_55 {dimension_numbers = #tpu.dot_dimension_numbers<[1], [0], [0], [1], [0, 0, 1, 1], [], []>} : vector<8x144xbf16>, vector<144x256xbf16>, vector<8x256xf32> -> vector<8x256xf32>
    %56 = arith.addf %49, %55 : vector<8x256xf32>
    %c0_56 = arith.constant 0 : index
    %c0_57 = arith.constant 0 : index
    %57 = vector.load %arg3[%c0_56, %c0_57] : memref<1x256xf32, #tpu.memory_space<vmem>>, vector<1x256xf32>
    %58 = vector.broadcast %57 : vector<1x256xf32> to vector<8x256xf32>
    %59 = arith.addf %56, %58 : vector<8x256xf32>
    %cst_58 = arith.constant 0.000000e+00 : f32
    %60 = vector.broadcast %cst_58 : f32 to vector<8x256xf32>
    %c0_59 = arith.constant 0 : index
    %c1_60 = arith.constant 1 : index
    %c0_61 = arith.constant 0 : index
    %c0_62 = arith.constant 0 : index
    %61 = vector.load %arg1[%c0_59, %c1_60, %c0_61, %c0_62] : memref<4x2x9x144xf32, #tpu.memory_space<vmem>>, vector<1x1x8x144xf32>
    %62 = vector.shape_cast %61 : vector<1x1x8x144xf32> to vector<8x144xf32>
    %63 = arith.truncf %62 : vector<8x144xf32> to vector<8x144xbf16>
    %c0_63 = arith.constant 0 : index
    %c0_64 = arith.constant 0 : index
    %c0_65 = arith.constant 0 : index
    %64 = vector.load %arg2[%c0_63, %c0_64, %c0_65] : memref<8x144x256xbf16, #tpu.memory_space<vmem>>, vector<1x144x256xbf16>
    %65 = vector.shape_cast %64 : vector<1x144x256xbf16> to vector<144x256xbf16>
    %cst_66 = arith.constant dense<0.000000e+00> : vector<8x256xf32>
    %66 = tpu.matmul %63, %65, %cst_66 {dimension_numbers = #tpu.dot_dimension_numbers<[1], [0], [0], [1], [0, 0, 1, 1], [], []>} : vector<8x144xbf16>, vector<144x256xbf16>, vector<8x256xf32> -> vector<8x256xf32>
    %67 = arith.addf %60, %66 : vector<8x256xf32>
    %c0_67 = arith.constant 0 : index
    %c1_68 = arith.constant 1 : index
    %c1_69 = arith.constant 1 : index
    %c0_70 = arith.constant 0 : index
    %68 = vector.load %arg1[%c0_67, %c1_68, %c1_69, %c0_70] : memref<4x2x9x144xf32, #tpu.memory_space<vmem>>, vector<1x1x8x144xf32>
    %69 = vector.shape_cast %68 : vector<1x1x8x144xf32> to vector<8x144xf32>
    %70 = arith.truncf %69 : vector<8x144xf32> to vector<8x144xbf16>
    %c1_71 = arith.constant 1 : index
    %c0_72 = arith.constant 0 : index
    %c0_73 = arith.constant 0 : index
    %71 = vector.load %arg2[%c1_71, %c0_72, %c0_73] : memref<8x144x256xbf16, #tpu.memory_space<vmem>>, vector<1x144x256xbf16>
    %72 = vector.shape_cast %71 : vector<1x144x256xbf16> to vector<144x256xbf16>
    %cst_74 = arith.constant dense<0.000000e+00> : vector<8x256xf32>
    %73 = tpu.matmul %70, %72, %cst_74 {dimension_numbers = #tpu.dot_dimension_numbers<[1], [0], [0], [1], [0, 0, 1, 1], [], []>} : vector<8x144xbf16>, vector<144x256xbf16>, vector<8x256xf32> -> vector<8x256xf32>
    %74 = arith.addf %67, %73 : vector<8x256xf32>
    %c1_75 = arith.constant 1 : index
    %c1_76 = arith.constant 1 : index
    %c0_77 = arith.constant 0 : index
    %c0_78 = arith.constant 0 : index
    %75 = vector.load %arg1[%c1_75, %c1_76, %c0_77, %c0_78] : memref<4x2x9x144xf32, #tpu.memory_space<vmem>>, vector<1x1x8x144xf32>
    %76 = vector.shape_cast %75 : vector<1x1x8x144xf32> to vector<8x144xf32>
    %77 = arith.truncf %76 : vector<8x144xf32> to vector<8x144xbf16>
    %c2_79 = arith.constant 2 : index
    %c0_80 = arith.constant 0 : index
    %c0_81 = arith.constant 0 : index
    %78 = vector.load %arg2[%c2_79, %c0_80, %c0_81] : memref<8x144x256xbf16, #tpu.memory_space<vmem>>, vector<1x144x256xbf16>
    %79 = vector.shape_cast %78 : vector<1x144x256xbf16> to vector<144x256xbf16>
    %cst_82 = arith.constant dense<0.000000e+00> : vector<8x256xf32>
    %80 = tpu.matmul %77, %79, %cst_82 {dimension_numbers = #tpu.dot_dimension_numbers<[1], [0], [0], [1], [0, 0, 1, 1], [], []>} : vector<8x144xbf16>, vector<144x256xbf16>, vector<8x256xf32> -> vector<8x256xf32>
    %81 = arith.addf %74, %80 : vector<8x256xf32>
    %c1_83 = arith.constant 1 : index
    %c1_84 = arith.constant 1 : index
    %c1_85 = arith.constant 1 : index
    %c0_86 = arith.constant 0 : index
    %82 = vector.load %arg1[%c1_83, %c1_84, %c1_85, %c0_86] : memref<4x2x9x144xf32, #tpu.memory_space<vmem>>, vector<1x1x8x144xf32>
    %83 = vector.shape_cast %82 : vector<1x1x8x144xf32> to vector<8x144xf32>
    %84 = arith.truncf %83 : vector<8x144xf32> to vector<8x144xbf16>
    %c3_87 = arith.constant 3 : index
    %c0_88 = arith.constant 0 : index
    %c0_89 = arith.constant 0 : index
    %85 = vector.load %arg2[%c3_87, %c0_88, %c0_89] : memref<8x144x256xbf16, #tpu.memory_space<vmem>>, vector<1x144x256xbf16>
    %86 = vector.shape_cast %85 : vector<1x144x256xbf16> to vector<144x256xbf16>
    %cst_90 = arith.constant dense<0.000000e+00> : vector<8x256xf32>
    %87 = tpu.matmul %84, %86, %cst_90 {dimension_numbers = #tpu.dot_dimension_numbers<[1], [0], [0], [1], [0, 0, 1, 1], [], []>} : vector<8x144xbf16>, vector<144x256xbf16>, vector<8x256xf32> -> vector<8x256xf32>
    %88 = arith.addf %81, %87 : vector<8x256xf32>
    %c2_91 = arith.constant 2 : index
    %c1_92 = arith.constant 1 : index
    %c0_93 = arith.constant 0 : index
    %c0_94 = arith.constant 0 : index
    %89 = vector.load %arg1[%c2_91, %c1_92, %c0_93, %c0_94] : memref<4x2x9x144xf32, #tpu.memory_space<vmem>>, vector<1x1x8x144xf32>
    %90 = vector.shape_cast %89 : vector<1x1x8x144xf32> to vector<8x144xf32>
    %91 = arith.truncf %90 : vector<8x144xf32> to vector<8x144xbf16>
    %c4_95 = arith.constant 4 : index
    %c0_96 = arith.constant 0 : index
    %c0_97 = arith.constant 0 : index
    %92 = vector.load %arg2[%c4_95, %c0_96, %c0_97] : memref<8x144x256xbf16, #tpu.memory_space<vmem>>, vector<1x144x256xbf16>
    %93 = vector.shape_cast %92 : vector<1x144x256xbf16> to vector<144x256xbf16>
    %cst_98 = arith.constant dense<0.000000e+00> : vector<8x256xf32>
    %94 = tpu.matmul %91, %93, %cst_98 {dimension_numbers = #tpu.dot_dimension_numbers<[1], [0], [0], [1], [0, 0, 1, 1], [], []>} : vector<8x144xbf16>, vector<144x256xbf16>, vector<8x256xf32> -> vector<8x256xf32>
    %95 = arith.addf %88, %94 : vector<8x256xf32>
    %c2_99 = arith.constant 2 : index
    %c1_100 = arith.constant 1 : index
    %c1_101 = arith.constant 1 : index
    %c0_102 = arith.constant 0 : index
    %96 = vector.load %arg1[%c2_99, %c1_100, %c1_101, %c0_102] : memref<4x2x9x144xf32, #tpu.memory_space<vmem>>, vector<1x1x8x144xf32>
    %97 = vector.shape_cast %96 : vector<1x1x8x144xf32> to vector<8x144xf32>
    %98 = arith.truncf %97 : vector<8x144xf32> to vector<8x144xbf16>
    %c5_103 = arith.constant 5 : index
    %c0_104 = arith.constant 0 : index
    %c0_105 = arith.constant 0 : index
    %99 = vector.load %arg2[%c5_103, %c0_104, %c0_105] : memref<8x144x256xbf16, #tpu.memory_space<vmem>>, vector<1x144x256xbf16>
    %100 = vector.shape_cast %99 : vector<1x144x256xbf16> to vector<144x256xbf16>
    %cst_106 = arith.constant dense<0.000000e+00> : vector<8x256xf32>
    %101 = tpu.matmul %98, %100, %cst_106 {dimension_numbers = #tpu.dot_dimension_numbers<[1], [0], [0], [1], [0, 0, 1, 1], [], []>} : vector<8x144xbf16>, vector<144x256xbf16>, vector<8x256xf32> -> vector<8x256xf32>
    %102 = arith.addf %95, %101 : vector<8x256xf32>
    %c3_107 = arith.constant 3 : index
    %c1_108 = arith.constant 1 : index
    %c0_109 = arith.constant 0 : index
    %c0_110 = arith.constant 0 : index
    %103 = vector.load %arg1[%c3_107, %c1_108, %c0_109, %c0_110] : memref<4x2x9x144xf32, #tpu.memory_space<vmem>>, vector<1x1x8x144xf32>
    %104 = vector.shape_cast %103 : vector<1x1x8x144xf32> to vector<8x144xf32>
    %105 = arith.truncf %104 : vector<8x144xf32> to vector<8x144xbf16>
    %c6_111 = arith.constant 6 : index
    %c0_112 = arith.constant 0 : index
    %c0_113 = arith.constant 0 : index
    %106 = vector.load %arg2[%c6_111, %c0_112, %c0_113] : memref<8x144x256xbf16, #tpu.memory_space<vmem>>, vector<1x144x256xbf16>
    %107 = vector.shape_cast %106 : vector<1x144x256xbf16> to vector<144x256xbf16>
    %cst_114 = arith.constant dense<0.000000e+00> : vector<8x256xf32>
    %108 = tpu.matmul %105, %107, %cst_114 {dimension_numbers = #tpu.dot_dimension_numbers<[1], [0], [0], [1], [0, 0, 1, 1], [], []>} : vector<8x144xbf16>, vector<144x256xbf16>, vector<8x256xf32> -> vector<8x256xf32>
    %109 = arith.addf %102, %108 : vector<8x256xf32>
    %c3_115 = arith.constant 3 : index
    %c1_116 = arith.constant 1 : index
    %c1_117 = arith.constant 1 : index
    %c0_118 = arith.constant 0 : index
    %110 = vector.load %arg1[%c3_115, %c1_116, %c1_117, %c0_118] : memref<4x2x9x144xf32, #tpu.memory_space<vmem>>, vector<1x1x8x144xf32>
    %111 = vector.shape_cast %110 : vector<1x1x8x144xf32> to vector<8x144xf32>
    %112 = arith.truncf %111 : vector<8x144xf32> to vector<8x144xbf16>
    %c7_119 = arith.constant 7 : index
    %c0_120 = arith.constant 0 : index
    %c0_121 = arith.constant 0 : index
    %113 = vector.load %arg2[%c7_119, %c0_120, %c0_121] : memref<8x144x256xbf16, #tpu.memory_space<vmem>>, vector<1x144x256xbf16>
    %114 = vector.shape_cast %113 : vector<1x144x256xbf16> to vector<144x256xbf16>
    %cst_122 = arith.constant dense<0.000000e+00> : vector<8x256xf32>
    %115 = tpu.matmul %112, %114, %cst_122 {dimension_numbers = #tpu.dot_dimension_numbers<[1], [0], [0], [1], [0, 0, 1, 1], [], []>} : vector<8x144xbf16>, vector<144x256xbf16>, vector<8x256xf32> -> vector<8x256xf32>
    %116 = arith.addf %109, %115 : vector<8x256xf32>
    %c0_123 = arith.constant 0 : index
    %c0_124 = arith.constant 0 : index
    %117 = vector.load %arg3[%c0_123, %c0_124] : memref<1x256xf32, #tpu.memory_space<vmem>>, vector<1x256xf32>
    %118 = vector.broadcast %117 : vector<1x256xf32> to vector<8x256xf32>
    %119 = arith.addf %116, %118 : vector<8x256xf32>
    %cst_125 = arith.constant 0.000000e+00 : f32
    %120 = vector.broadcast %cst_125 : f32 to vector<1x256xf32>
    %cst_126 = arith.constant 0.000000e+00 : f32
    %121 = vector.broadcast %cst_126 : f32 to vector<1x256xf32>
    %cst_127 = arith.constant dense<0.000000e+00> : vector<256xf32>
    %122 = vector.multi_reduction <add>, %59, %cst_127 [0] : vector<8x256xf32> to vector<256xf32>
    %123 = vector.shape_cast %122 : vector<256xf32> to vector<1x256xf32>
    %124 = arith.addf %120, %123 : vector<1x256xf32>
    %125 = arith.mulf %59, %59 : vector<8x256xf32>
    %cst_128 = arith.constant dense<0.000000e+00> : vector<256xf32>
    %126 = vector.multi_reduction <add>, %125, %cst_128 [0] : vector<8x256xf32> to vector<256xf32>
    %127 = vector.shape_cast %126 : vector<256xf32> to vector<1x256xf32>
    %128 = arith.addf %121, %127 : vector<1x256xf32>
    %cst_129 = arith.constant dense<0.000000e+00> : vector<256xf32>
    %129 = vector.multi_reduction <add>, %119, %cst_129 [0] : vector<8x256xf32> to vector<256xf32>
    %130 = vector.shape_cast %129 : vector<256xf32> to vector<1x256xf32>
    %131 = arith.addf %124, %130 : vector<1x256xf32>
    %132 = arith.mulf %119, %119 : vector<8x256xf32>
    %cst_130 = arith.constant dense<0.000000e+00> : vector<256xf32>
    %133 = vector.multi_reduction <add>, %132, %cst_130 [0] : vector<8x256xf32> to vector<256xf32>
    %134 = vector.shape_cast %133 : vector<256xf32> to vector<1x256xf32>
    %135 = arith.addf %128, %134 : vector<1x256xf32>
    %c0_131 = arith.constant 0 : index
    %c0_132 = arith.constant 0 : index
    %136 = vector.load %arg4[%c0_131, %c0_132] : memref<256x32xf32, #tpu.memory_space<vmem>>, vector<256x32xf32>
    %cst_133 = arith.constant dense<0.000000e+00> : vector<1x32xf32>
    %137 = tpu.matmul %131, %136, %cst_133 {dimension_numbers = #tpu.dot_dimension_numbers<[1], [0], [0], [1], [0, 0, 1, 1], [], []>} : vector<1x256xf32>, vector<256x32xf32>, vector<1x32xf32> -> vector<1x32xf32>
    %c0_134 = arith.constant 0 : index
    %c0_135 = arith.constant 0 : index
    %138 = vector.load %arg4[%c0_134, %c0_135] : memref<256x32xf32, #tpu.memory_space<vmem>>, vector<256x32xf32>
    %cst_136 = arith.constant dense<0.000000e+00> : vector<1x32xf32>
    %139 = tpu.matmul %135, %138, %cst_136 {dimension_numbers = #tpu.dot_dimension_numbers<[1], [0], [0], [1], [0, 0, 1, 1], [], []>} : vector<1x256xf32>, vector<256x32xf32>, vector<1x32xf32> -> vector<1x32xf32>
    %cst_137 = arith.constant 1.280000e+02 : f32
    %140 = vector.broadcast %cst_137 : f32 to vector<1x32xf32>
    %141 = arith.divf %137, %140 : vector<1x32xf32>
    %cst_138 = arith.constant 1.280000e+02 : f32
    %142 = vector.broadcast %cst_138 : f32 to vector<1x32xf32>
    %143 = arith.divf %139, %142 : vector<1x32xf32>
    %144 = arith.mulf %141, %141 : vector<1x32xf32>
    %145 = arith.subf %143, %144 : vector<1x32xf32>
    %c0_139 = arith.constant 0 : index
    %c0_140 = arith.constant 0 : index
    %146 = vector.load %arg6[%c0_139, %c0_140] : memref<1x32xf32, #tpu.memory_space<vmem>>, vector<1x32xf32>
    %cst_141 = arith.constant 9.99999974E-6 : f32
    %147 = vector.broadcast %cst_141 : f32 to vector<1x32xf32>
    %148 = arith.addf %145, %147 : vector<1x32xf32>
    %149 = math.rsqrt %148 : vector<1x32xf32>
    %150 = arith.mulf %146, %149 : vector<1x32xf32>
    %c0_142 = arith.constant 0 : index
    %c0_143 = arith.constant 0 : index
    %151 = vector.load %arg7[%c0_142, %c0_143] : memref<1x32xf32, #tpu.memory_space<vmem>>, vector<1x32xf32>
    %152 = arith.mulf %141, %150 : vector<1x32xf32>
    %153 = arith.subf %151, %152 : vector<1x32xf32>
    %c0_144 = arith.constant 0 : index
    %c0_145 = arith.constant 0 : index
    %154 = vector.load %arg5[%c0_144, %c0_145] : memref<32x256xf32, #tpu.memory_space<vmem>>, vector<32x256xf32>
    %cst_146 = arith.constant dense<0.000000e+00> : vector<1x256xf32>
    %155 = tpu.matmul %150, %154, %cst_146 {dimension_numbers = #tpu.dot_dimension_numbers<[1], [0], [0], [1], [0, 0, 1, 1], [], []>} : vector<1x32xf32>, vector<32x256xf32>, vector<1x256xf32> -> vector<1x256xf32>
    %c0_147 = arith.constant 0 : index
    %c0_148 = arith.constant 0 : index
    %156 = vector.load %arg5[%c0_147, %c0_148] : memref<32x256xf32, #tpu.memory_space<vmem>>, vector<32x256xf32>
    %cst_149 = arith.constant dense<0.000000e+00> : vector<1x256xf32>
    %157 = tpu.matmul %153, %156, %cst_149 {dimension_numbers = #tpu.dot_dimension_numbers<[1], [0], [0], [1], [0, 0, 1, 1], [], []>} : vector<1x32xf32>, vector<32x256xf32>, vector<1x256xf32> -> vector<1x256xf32>
    %158 = vector.broadcast %155 : vector<1x256xf32> to vector<8x256xf32>
    %159 = arith.mulf %59, %158 : vector<8x256xf32>
    %160 = vector.broadcast %157 : vector<1x256xf32> to vector<8x256xf32>
    %161 = arith.addf %159, %160 : vector<8x256xf32>
    %cst_150 = arith.constant 0.000000e+00 : f32
    %162 = vector.broadcast %cst_150 : f32 to vector<8x256xf32>
    %163 = arith.cmpf oge, %161, %162 : vector<8x256xf32>
    %cst_151 = arith.constant 2.000000e-01 : f32
    %164 = vector.broadcast %cst_151 : f32 to vector<8x256xf32>
    %165 = arith.mulf %164, %161 : vector<8x256xf32>
    %166 = arith.select %163, %161, %165 : vector<8x256xi1>, vector<8x256xf32>
    %c0_152 = arith.constant 0 : index
    %c0_153 = arith.constant 0 : index
    %167 = vector.load %arg8[%c0_152, %c0_153] : memref<16x256xf32, #tpu.memory_space<vmem>>, vector<8x256xf32>
    tpu.vector_store %arg8[%c0_152, %c0_153], %166 {strides = array<i32>} : memref<16x256xf32, #tpu.memory_space<vmem>>, vector<8x256xf32>,
    %168 = vector.broadcast %155 : vector<1x256xf32> to vector<8x256xf32>
    %169 = arith.mulf %119, %168 : vector<8x256xf32>
    %170 = vector.broadcast %157 : vector<1x256xf32> to vector<8x256xf32>
    %171 = arith.addf %169, %170 : vector<8x256xf32>
    %cst_154 = arith.constant 0.000000e+00 : f32
    %172 = vector.broadcast %cst_154 : f32 to vector<8x256xf32>
    %173 = arith.cmpf oge, %171, %172 : vector<8x256xf32>
    %cst_155 = arith.constant 2.000000e-01 : f32
    %174 = vector.broadcast %cst_155 : f32 to vector<8x256xf32>
    %175 = arith.mulf %174, %171 : vector<8x256xf32>
    %176 = arith.select %173, %171, %175 : vector<8x256xi1>, vector<8x256xf32>
    %c8 = arith.constant 8 : index
    %c0_156 = arith.constant 0 : index
    %177 = vector.load %arg8[%c8, %c0_156] : memref<16x256xf32, #tpu.memory_space<vmem>>, vector<8x256xf32>
    tpu.vector_store %arg8[%c8, %c0_156], %176 {strides = array<i32>} : memref<16x256xf32, #tpu.memory_space<vmem>>, vector<8x256xf32>,
    return
  }
  func.func @transform_0(%arg0: i32) -> (i32, i32, i32, i32) {
    %c0_i32 = arith.constant 0 : i32
    %c0_i32_0 = arith.constant 0 : i32
    %c0_i32_1 = arith.constant 0 : i32
    %c0_i32_2 = arith.constant 0 : i32
    %c0_i32_3 = arith.constant 0 : i32
    return %c0_i32, %c0_i32_0, %c0_i32_1, %c0_i32_2 : i32, i32, i32, i32
  }
  func.func @transform_1(%arg0: i32) -> (i32, i32, i32) {
    %c0_i32 = arith.constant 0 : i32
    %c0_i32_0 = arith.constant 0 : i32
    %c0_i32_1 = arith.constant 0 : i32
    %c0_i32_2 = arith.constant 0 : i32
    return %c0_i32, %c0_i32_0, %c0_i32_1 : i32, i32, i32
  }
  func.func @transform_2(%arg0: i32) -> (i32, i32) {
    %c0_i32 = arith.constant 0 : i32
    %c0_i32_0 = arith.constant 0 : i32
    %c0_i32_1 = arith.constant 0 : i32
    return %c0_i32, %c0_i32_0 : i32, i32
  }
  func.func @transform_3(%arg0: i32) -> (i32, i32) {
    %c0_i32 = arith.constant 0 : i32
    %c0_i32_0 = arith.constant 0 : i32
    %c0_i32_1 = arith.constant 0 : i32
    return %c0_i32, %c0_i32_0 : i32, i32
  }
  func.func @transform_4(%arg0: i32) -> (i32, i32) {
    %c0_i32 = arith.constant 0 : i32
    %c0_i32_0 = arith.constant 0 : i32
    %c0_i32_1 = arith.constant 0 : i32
    return %c0_i32, %c0_i32_0 : i32, i32
  }
  func.func @transform_5(%arg0: i32) -> (i32, i32) {
    %c0_i32 = arith.constant 0 : i32
    %c0_i32_0 = arith.constant 0 : i32
    %c0_i32_1 = arith.constant 0 : i32
    return %c0_i32, %c0_i32_0 : i32, i32
  }
  func.func @transform_6(%arg0: i32) -> (i32, i32) {
    %c0_i32 = arith.constant 0 : i32
    %c0_i32_0 = arith.constant 0 : i32
    %c0_i32_1 = arith.constant 0 : i32
    return %c0_i32, %c0_i32_0 : i32, i32
  }
  func.func @transform_7(%arg0: i32) -> (i32, i32) {
    %c0_i32 = arith.constant 0 : i32
    %c0_i32_0 = arith.constant 0 : i32
    %c0_i32_1 = arith.constant 0 : i32
    return %c0_i32, %c0_i32_0 : i32, i32
  }
}

module attributes {stable_mosaic.version = 11 : i64} {
  func.func @_fc_kernel(%arg0: i32, %arg1: memref<8x1024xbf16, #tpu.memory_space<vmem>>, %arg2: memref<1024x256xbf16, #tpu.memory_space<vmem>>, %arg3: memref<1x256xf32, #tpu.memory_space<vmem>>, %arg4: memref<1x256xf32, #tpu.memory_space<vmem>>, %arg5: memref<1x1xf32, #tpu.memory_space<vmem>>, %arg6: memref<8x1xf32, #tpu.memory_space<vmem>>) attributes {dimension_semantics = [#tpu.dimension_semantics<arbitrary>], iteration_bounds = array<i64: 1>, scalar_prefetch = 0 : i64, scratch_operands = 0 : i64, tpu.core_type = #tpu.core_type<tc>, window_params = [{pipeline_mode = #tpu.pipeline_mode<synchronous>, transform_indices = @transform_0, window_bounds = array<i64: 8, 1024>}, {pipeline_mode = #tpu.pipeline_mode<synchronous>, transform_indices = @transform_1, window_bounds = array<i64: 1024, 256>}, {pipeline_mode = #tpu.pipeline_mode<synchronous>, transform_indices = @transform_2, window_bounds = array<i64: 1, 256>}, {pipeline_mode = #tpu.pipeline_mode<synchronous>, transform_indices = @transform_3, window_bounds = array<i64: 1, 256>}, {pipeline_mode = #tpu.pipeline_mode<synchronous>, transform_indices = @transform_4, window_bounds = array<i64: 1, 1>}, {pipeline_mode = #tpu.pipeline_mode<synchronous>, transform_indices = @transform_5, window_bounds = array<i64: 8, 1>}]} {
    %c0 = arith.constant 0 : index
    %c0_0 = arith.constant 0 : index
    %0 = vector.load %arg1[%c0, %c0_0] : memref<8x1024xbf16, #tpu.memory_space<vmem>>, vector<8x1024xbf16>
    %c0_1 = arith.constant 0 : index
    %c0_2 = arith.constant 0 : index
    %1 = vector.load %arg2[%c0_1, %c0_2] : memref<1024x256xbf16, #tpu.memory_space<vmem>>, vector<1024x256xbf16>
    %cst = arith.constant dense<0.000000e+00> : vector<8x256xf32>
    %2 = tpu.matmul %0, %1, %cst {dimension_numbers = #tpu.dot_dimension_numbers<[1], [0], [0], [1], [0, 0, 1, 1], [], []>} : vector<8x1024xbf16>, vector<1024x256xbf16>, vector<8x256xf32> -> vector<8x256xf32>
    %c0_3 = arith.constant 0 : index
    %c0_4 = arith.constant 0 : index
    %3 = vector.load %arg3[%c0_3, %c0_4] : memref<1x256xf32, #tpu.memory_space<vmem>>, vector<1x256xf32>
    %4 = vector.broadcast %3 : vector<1x256xf32> to vector<8x256xf32>
    %5 = arith.addf %2, %4 : vector<8x256xf32>
    %c0_5 = arith.constant 0 : index
    %c0_6 = arith.constant 0 : index
    %6 = vector.load %arg4[%c0_5, %c0_6] : memref<1x256xf32, #tpu.memory_space<vmem>>, vector<1x256xf32>
    %7 = vector.broadcast %6 : vector<1x256xf32> to vector<8x256xf32>
    %8 = arith.mulf %5, %7 : vector<8x256xf32>
    %cst_7 = arith.constant dense<0.000000e+00> : vector<8xf32>
    %9 = vector.multi_reduction <add>, %8, %cst_7 [1] : vector<8x256xf32> to vector<8xf32>
    %10 = vector.shape_cast %9 : vector<8xf32> to vector<8x1xf32>
    %c0_8 = arith.constant 0 : index
    %c0_9 = arith.constant 0 : index
    %11 = vector.load %arg5[%c0_8, %c0_9] : memref<1x1xf32, #tpu.memory_space<vmem>>, vector<1x1xf32>
    %12 = vector.broadcast %11 : vector<1x1xf32> to vector<8x1xf32>
    %13 = arith.addf %10, %12 : vector<8x1xf32>
    %c0_10 = arith.constant 0 : index
    %c0_11 = arith.constant 0 : index
    %14 = vector.load %arg6[%c0_10, %c0_11] : memref<8x1xf32, #tpu.memory_space<vmem>>, vector<8x1xf32>
    tpu.vector_store %arg6[%c0_10, %c0_11], %13 {strides = array<i32>} : memref<8x1xf32, #tpu.memory_space<vmem>>, vector<8x1xf32>,
    return
  }
  func.func @transform_0(%arg0: i32) -> (i32, i32) {
    %c0_i32 = arith.constant 0 : i32
    %c0_i32_0 = arith.constant 0 : i32
    %c0_i32_1 = arith.constant 0 : i32
    return %c0_i32, %c0_i32_0 : i32, i32
  }
  func.func @transform_1(%arg0: i32) -> (i32, i32) {
    %c0_i32 = arith.constant 0 : i32
    %c0_i32_0 = arith.constant 0 : i32
    %c0_i32_1 = arith.constant 0 : i32
    return %c0_i32, %c0_i32_0 : i32, i32
  }
  func.func @transform_2(%arg0: i32) -> (i32, i32) {
    %c0_i32 = arith.constant 0 : i32
    %c0_i32_0 = arith.constant 0 : i32
    %c0_i32_1 = arith.constant 0 : i32
    return %c0_i32, %c0_i32_0 : i32, i32
  }
  func.func @transform_3(%arg0: i32) -> (i32, i32) {
    %c0_i32 = arith.constant 0 : i32
    %c0_i32_0 = arith.constant 0 : i32
    %c0_i32_1 = arith.constant 0 : i32
    return %c0_i32, %c0_i32_0 : i32, i32
  }
  func.func @transform_4(%arg0: i32) -> (i32, i32) {
    %c0_i32 = arith.constant 0 : i32
    %c0_i32_0 = arith.constant 0 : i32
    %c0_i32_1 = arith.constant 0 : i32
    return %c0_i32, %c0_i32_0 : i32, i32
  }
  func.func @transform_5(%arg0: i32) -> (i32, i32) {
    %c0_i32 = arith.constant 0 : i32
    %c0_i32_0 = arith.constant 0 : i32
    %c0_i32_1 = arith.constant 0 : i32
    return %c0_i32, %c0_i32_0 : i32, i32
  }
}

module attributes {stable_mosaic.version = 11 : i64} {
  func.func @_conv_kernel(%arg0: i32, %arg1: memref<4x2x5x160xf32, #tpu.memory_space<vmem>>, %arg2: memref<8x160x256xbf16, #tpu.memory_space<vmem>>, %arg3: memref<1x256xf32, #tpu.memory_space<vmem>>, %arg4: memref<256x64xf32, #tpu.memory_space<vmem>>, %arg5: memref<64x256xf32, #tpu.memory_space<vmem>>, %arg6: memref<1x64xf32, #tpu.memory_space<vmem>>, %arg7: memref<1x64xf32, #tpu.memory_space<vmem>>, %arg8: memref<8x256xf32, #tpu.memory_space<vmem>>) attributes {dimension_semantics = [#tpu.dimension_semantics<arbitrary>], iteration_bounds = array<i64: 1>, scalar_prefetch = 0 : i64, scratch_operands = 0 : i64, tpu.core_type = #tpu.core_type<tc>, window_params = [{pipeline_mode = #tpu.pipeline_mode<synchronous>, transform_indices = @transform_0, window_bounds = array<i64: 4, 2, 5, 160>}, {pipeline_mode = #tpu.pipeline_mode<synchronous>, transform_indices = @transform_1, window_bounds = array<i64: 8, 160, 256>}, {pipeline_mode = #tpu.pipeline_mode<synchronous>, transform_indices = @transform_2, window_bounds = array<i64: 1, 256>}, {pipeline_mode = #tpu.pipeline_mode<synchronous>, transform_indices = @transform_3, window_bounds = array<i64: 256, 64>}, {pipeline_mode = #tpu.pipeline_mode<synchronous>, transform_indices = @transform_4, window_bounds = array<i64: 64, 256>}, {pipeline_mode = #tpu.pipeline_mode<synchronous>, transform_indices = @transform_5, window_bounds = array<i64: 1, 64>}, {pipeline_mode = #tpu.pipeline_mode<synchronous>, transform_indices = @transform_6, window_bounds = array<i64: 1, 64>}, {pipeline_mode = #tpu.pipeline_mode<synchronous>, transform_indices = @transform_7, window_bounds = array<i64: 8, 256>}]} {
    %cst = arith.constant 0.000000e+00 : f32
    %0 = vector.broadcast %cst : f32 to vector<4x256xf32>
    %c0 = arith.constant 0 : index
    %c0_0 = arith.constant 0 : index
    %c0_1 = arith.constant 0 : index
    %c0_2 = arith.constant 0 : index
    %1 = vector.load %arg1[%c0, %c0_0, %c0_1, %c0_2] : memref<4x2x5x160xf32, #tpu.memory_space<vmem>>, vector<1x1x4x160xf32>
    %2 = vector.shape_cast %1 : vector<1x1x4x160xf32> to vector<4x160xf32>
    %3 = arith.truncf %2 : vector<4x160xf32> to vector<4x160xbf16>
    %c0_3 = arith.constant 0 : index
    %c0_4 = arith.constant 0 : index
    %c0_5 = arith.constant 0 : index
    %4 = vector.load %arg2[%c0_3, %c0_4, %c0_5] : memref<8x160x256xbf16, #tpu.memory_space<vmem>>, vector<1x160x256xbf16>
    %5 = vector.shape_cast %4 : vector<1x160x256xbf16> to vector<160x256xbf16>
    %cst_6 = arith.constant dense<0.000000e+00> : vector<4x256xf32>
    %6 = tpu.matmul %3, %5, %cst_6 {dimension_numbers = #tpu.dot_dimension_numbers<[1], [0], [0], [1], [0, 0, 1, 1], [], []>} : vector<4x160xbf16>, vector<160x256xbf16>, vector<4x256xf32> -> vector<4x256xf32>
    %7 = arith.addf %0, %6 : vector<4x256xf32>
    %c0_7 = arith.constant 0 : index
    %c0_8 = arith.constant 0 : index
    %c1 = arith.constant 1 : index
    %c0_9 = arith.constant 0 : index
    %8 = vector.load %arg1[%c0_7, %c0_8, %c1, %c0_9] : memref<4x2x5x160xf32, #tpu.memory_space<vmem>>, vector<1x1x4x160xf32>
    %9 = vector.shape_cast %8 : vector<1x1x4x160xf32> to vector<4x160xf32>
    %10 = arith.truncf %9 : vector<4x160xf32> to vector<4x160xbf16>
    %c1_10 = arith.constant 1 : index
    %c0_11 = arith.constant 0 : index
    %c0_12 = arith.constant 0 : index
    %11 = vector.load %arg2[%c1_10, %c0_11, %c0_12] : memref<8x160x256xbf16, #tpu.memory_space<vmem>>, vector<1x160x256xbf16>
    %12 = vector.shape_cast %11 : vector<1x160x256xbf16> to vector<160x256xbf16>
    %cst_13 = arith.constant dense<0.000000e+00> : vector<4x256xf32>
    %13 = tpu.matmul %10, %12, %cst_13 {dimension_numbers = #tpu.dot_dimension_numbers<[1], [0], [0], [1], [0, 0, 1, 1], [], []>} : vector<4x160xbf16>, vector<160x256xbf16>, vector<4x256xf32> -> vector<4x256xf32>
    %14 = arith.addf %7, %13 : vector<4x256xf32>
    %c1_14 = arith.constant 1 : index
    %c0_15 = arith.constant 0 : index
    %c0_16 = arith.constant 0 : index
    %c0_17 = arith.constant 0 : index
    %15 = vector.load %arg1[%c1_14, %c0_15, %c0_16, %c0_17] : memref<4x2x5x160xf32, #tpu.memory_space<vmem>>, vector<1x1x4x160xf32>
    %16 = vector.shape_cast %15 : vector<1x1x4x160xf32> to vector<4x160xf32>
    %17 = arith.truncf %16 : vector<4x160xf32> to vector<4x160xbf16>
    %c2 = arith.constant 2 : index
    %c0_18 = arith.constant 0 : index
    %c0_19 = arith.constant 0 : index
    %18 = vector.load %arg2[%c2, %c0_18, %c0_19] : memref<8x160x256xbf16, #tpu.memory_space<vmem>>, vector<1x160x256xbf16>
    %19 = vector.shape_cast %18 : vector<1x160x256xbf16> to vector<160x256xbf16>
    %cst_20 = arith.constant dense<0.000000e+00> : vector<4x256xf32>
    %20 = tpu.matmul %17, %19, %cst_20 {dimension_numbers = #tpu.dot_dimension_numbers<[1], [0], [0], [1], [0, 0, 1, 1], [], []>} : vector<4x160xbf16>, vector<160x256xbf16>, vector<4x256xf32> -> vector<4x256xf32>
    %21 = arith.addf %14, %20 : vector<4x256xf32>
    %c1_21 = arith.constant 1 : index
    %c0_22 = arith.constant 0 : index
    %c1_23 = arith.constant 1 : index
    %c0_24 = arith.constant 0 : index
    %22 = vector.load %arg1[%c1_21, %c0_22, %c1_23, %c0_24] : memref<4x2x5x160xf32, #tpu.memory_space<vmem>>, vector<1x1x4x160xf32>
    %23 = vector.shape_cast %22 : vector<1x1x4x160xf32> to vector<4x160xf32>
    %24 = arith.truncf %23 : vector<4x160xf32> to vector<4x160xbf16>
    %c3 = arith.constant 3 : index
    %c0_25 = arith.constant 0 : index
    %c0_26 = arith.constant 0 : index
    %25 = vector.load %arg2[%c3, %c0_25, %c0_26] : memref<8x160x256xbf16, #tpu.memory_space<vmem>>, vector<1x160x256xbf16>
    %26 = vector.shape_cast %25 : vector<1x160x256xbf16> to vector<160x256xbf16>
    %cst_27 = arith.constant dense<0.000000e+00> : vector<4x256xf32>
    %27 = tpu.matmul %24, %26, %cst_27 {dimension_numbers = #tpu.dot_dimension_numbers<[1], [0], [0], [1], [0, 0, 1, 1], [], []>} : vector<4x160xbf16>, vector<160x256xbf16>, vector<4x256xf32> -> vector<4x256xf32>
    %28 = arith.addf %21, %27 : vector<4x256xf32>
    %c2_28 = arith.constant 2 : index
    %c0_29 = arith.constant 0 : index
    %c0_30 = arith.constant 0 : index
    %c0_31 = arith.constant 0 : index
    %29 = vector.load %arg1[%c2_28, %c0_29, %c0_30, %c0_31] : memref<4x2x5x160xf32, #tpu.memory_space<vmem>>, vector<1x1x4x160xf32>
    %30 = vector.shape_cast %29 : vector<1x1x4x160xf32> to vector<4x160xf32>
    %31 = arith.truncf %30 : vector<4x160xf32> to vector<4x160xbf16>
    %c4 = arith.constant 4 : index
    %c0_32 = arith.constant 0 : index
    %c0_33 = arith.constant 0 : index
    %32 = vector.load %arg2[%c4, %c0_32, %c0_33] : memref<8x160x256xbf16, #tpu.memory_space<vmem>>, vector<1x160x256xbf16>
    %33 = vector.shape_cast %32 : vector<1x160x256xbf16> to vector<160x256xbf16>
    %cst_34 = arith.constant dense<0.000000e+00> : vector<4x256xf32>
    %34 = tpu.matmul %31, %33, %cst_34 {dimension_numbers = #tpu.dot_dimension_numbers<[1], [0], [0], [1], [0, 0, 1, 1], [], []>} : vector<4x160xbf16>, vector<160x256xbf16>, vector<4x256xf32> -> vector<4x256xf32>
    %35 = arith.addf %28, %34 : vector<4x256xf32>
    %c2_35 = arith.constant 2 : index
    %c0_36 = arith.constant 0 : index
    %c1_37 = arith.constant 1 : index
    %c0_38 = arith.constant 0 : index
    %36 = vector.load %arg1[%c2_35, %c0_36, %c1_37, %c0_38] : memref<4x2x5x160xf32, #tpu.memory_space<vmem>>, vector<1x1x4x160xf32>
    %37 = vector.shape_cast %36 : vector<1x1x4x160xf32> to vector<4x160xf32>
    %38 = arith.truncf %37 : vector<4x160xf32> to vector<4x160xbf16>
    %c5 = arith.constant 5 : index
    %c0_39 = arith.constant 0 : index
    %c0_40 = arith.constant 0 : index
    %39 = vector.load %arg2[%c5, %c0_39, %c0_40] : memref<8x160x256xbf16, #tpu.memory_space<vmem>>, vector<1x160x256xbf16>
    %40 = vector.shape_cast %39 : vector<1x160x256xbf16> to vector<160x256xbf16>
    %cst_41 = arith.constant dense<0.000000e+00> : vector<4x256xf32>
    %41 = tpu.matmul %38, %40, %cst_41 {dimension_numbers = #tpu.dot_dimension_numbers<[1], [0], [0], [1], [0, 0, 1, 1], [], []>} : vector<4x160xbf16>, vector<160x256xbf16>, vector<4x256xf32> -> vector<4x256xf32>
    %42 = arith.addf %35, %41 : vector<4x256xf32>
    %c3_42 = arith.constant 3 : index
    %c0_43 = arith.constant 0 : index
    %c0_44 = arith.constant 0 : index
    %c0_45 = arith.constant 0 : index
    %43 = vector.load %arg1[%c3_42, %c0_43, %c0_44, %c0_45] : memref<4x2x5x160xf32, #tpu.memory_space<vmem>>, vector<1x1x4x160xf32>
    %44 = vector.shape_cast %43 : vector<1x1x4x160xf32> to vector<4x160xf32>
    %45 = arith.truncf %44 : vector<4x160xf32> to vector<4x160xbf16>
    %c6 = arith.constant 6 : index
    %c0_46 = arith.constant 0 : index
    %c0_47 = arith.constant 0 : index
    %46 = vector.load %arg2[%c6, %c0_46, %c0_47] : memref<8x160x256xbf16, #tpu.memory_space<vmem>>, vector<1x160x256xbf16>
    %47 = vector.shape_cast %46 : vector<1x160x256xbf16> to vector<160x256xbf16>
    %cst_48 = arith.constant dense<0.000000e+00> : vector<4x256xf32>
    %48 = tpu.matmul %45, %47, %cst_48 {dimension_numbers = #tpu.dot_dimension_numbers<[1], [0], [0], [1], [0, 0, 1, 1], [], []>} : vector<4x160xbf16>, vector<160x256xbf16>, vector<4x256xf32> -> vector<4x256xf32>
    %49 = arith.addf %42, %48 : vector<4x256xf32>
    %c3_49 = arith.constant 3 : index
    %c0_50 = arith.constant 0 : index
    %c1_51 = arith.constant 1 : index
    %c0_52 = arith.constant 0 : index
    %50 = vector.load %arg1[%c3_49, %c0_50, %c1_51, %c0_52] : memref<4x2x5x160xf32, #tpu.memory_space<vmem>>, vector<1x1x4x160xf32>
    %51 = vector.shape_cast %50 : vector<1x1x4x160xf32> to vector<4x160xf32>
    %52 = arith.truncf %51 : vector<4x160xf32> to vector<4x160xbf16>
    %c7 = arith.constant 7 : index
    %c0_53 = arith.constant 0 : index
    %c0_54 = arith.constant 0 : index
    %53 = vector.load %arg2[%c7, %c0_53, %c0_54] : memref<8x160x256xbf16, #tpu.memory_space<vmem>>, vector<1x160x256xbf16>
    %54 = vector.shape_cast %53 : vector<1x160x256xbf16> to vector<160x256xbf16>
    %cst_55 = arith.constant dense<0.000000e+00> : vector<4x256xf32>
    %55 = tpu.matmul %52, %54, %cst_55 {dimension_numbers = #tpu.dot_dimension_numbers<[1], [0], [0], [1], [0, 0, 1, 1], [], []>} : vector<4x160xbf16>, vector<160x256xbf16>, vector<4x256xf32> -> vector<4x256xf32>
    %56 = arith.addf %49, %55 : vector<4x256xf32>
    %c0_56 = arith.constant 0 : index
    %c0_57 = arith.constant 0 : index
    %57 = vector.load %arg3[%c0_56, %c0_57] : memref<1x256xf32, #tpu.memory_space<vmem>>, vector<1x256xf32>
    %58 = vector.broadcast %57 : vector<1x256xf32> to vector<4x256xf32>
    %59 = arith.addf %56, %58 : vector<4x256xf32>
    %cst_58 = arith.constant 0.000000e+00 : f32
    %60 = vector.broadcast %cst_58 : f32 to vector<4x256xf32>
    %c0_59 = arith.constant 0 : index
    %c1_60 = arith.constant 1 : index
    %c0_61 = arith.constant 0 : index
    %c0_62 = arith.constant 0 : index
    %61 = vector.load %arg1[%c0_59, %c1_60, %c0_61, %c0_62] : memref<4x2x5x160xf32, #tpu.memory_space<vmem>>, vector<1x1x4x160xf32>
    %62 = vector.shape_cast %61 : vector<1x1x4x160xf32> to vector<4x160xf32>
    %63 = arith.truncf %62 : vector<4x160xf32> to vector<4x160xbf16>
    %c0_63 = arith.constant 0 : index
    %c0_64 = arith.constant 0 : index
    %c0_65 = arith.constant 0 : index
    %64 = vector.load %arg2[%c0_63, %c0_64, %c0_65] : memref<8x160x256xbf16, #tpu.memory_space<vmem>>, vector<1x160x256xbf16>
    %65 = vector.shape_cast %64 : vector<1x160x256xbf16> to vector<160x256xbf16>
    %cst_66 = arith.constant dense<0.000000e+00> : vector<4x256xf32>
    %66 = tpu.matmul %63, %65, %cst_66 {dimension_numbers = #tpu.dot_dimension_numbers<[1], [0], [0], [1], [0, 0, 1, 1], [], []>} : vector<4x160xbf16>, vector<160x256xbf16>, vector<4x256xf32> -> vector<4x256xf32>
    %67 = arith.addf %60, %66 : vector<4x256xf32>
    %c0_67 = arith.constant 0 : index
    %c1_68 = arith.constant 1 : index
    %c1_69 = arith.constant 1 : index
    %c0_70 = arith.constant 0 : index
    %68 = vector.load %arg1[%c0_67, %c1_68, %c1_69, %c0_70] : memref<4x2x5x160xf32, #tpu.memory_space<vmem>>, vector<1x1x4x160xf32>
    %69 = vector.shape_cast %68 : vector<1x1x4x160xf32> to vector<4x160xf32>
    %70 = arith.truncf %69 : vector<4x160xf32> to vector<4x160xbf16>
    %c1_71 = arith.constant 1 : index
    %c0_72 = arith.constant 0 : index
    %c0_73 = arith.constant 0 : index
    %71 = vector.load %arg2[%c1_71, %c0_72, %c0_73] : memref<8x160x256xbf16, #tpu.memory_space<vmem>>, vector<1x160x256xbf16>
    %72 = vector.shape_cast %71 : vector<1x160x256xbf16> to vector<160x256xbf16>
    %cst_74 = arith.constant dense<0.000000e+00> : vector<4x256xf32>
    %73 = tpu.matmul %70, %72, %cst_74 {dimension_numbers = #tpu.dot_dimension_numbers<[1], [0], [0], [1], [0, 0, 1, 1], [], []>} : vector<4x160xbf16>, vector<160x256xbf16>, vector<4x256xf32> -> vector<4x256xf32>
    %74 = arith.addf %67, %73 : vector<4x256xf32>
    %c1_75 = arith.constant 1 : index
    %c1_76 = arith.constant 1 : index
    %c0_77 = arith.constant 0 : index
    %c0_78 = arith.constant 0 : index
    %75 = vector.load %arg1[%c1_75, %c1_76, %c0_77, %c0_78] : memref<4x2x5x160xf32, #tpu.memory_space<vmem>>, vector<1x1x4x160xf32>
    %76 = vector.shape_cast %75 : vector<1x1x4x160xf32> to vector<4x160xf32>
    %77 = arith.truncf %76 : vector<4x160xf32> to vector<4x160xbf16>
    %c2_79 = arith.constant 2 : index
    %c0_80 = arith.constant 0 : index
    %c0_81 = arith.constant 0 : index
    %78 = vector.load %arg2[%c2_79, %c0_80, %c0_81] : memref<8x160x256xbf16, #tpu.memory_space<vmem>>, vector<1x160x256xbf16>
    %79 = vector.shape_cast %78 : vector<1x160x256xbf16> to vector<160x256xbf16>
    %cst_82 = arith.constant dense<0.000000e+00> : vector<4x256xf32>
    %80 = tpu.matmul %77, %79, %cst_82 {dimension_numbers = #tpu.dot_dimension_numbers<[1], [0], [0], [1], [0, 0, 1, 1], [], []>} : vector<4x160xbf16>, vector<160x256xbf16>, vector<4x256xf32> -> vector<4x256xf32>
    %81 = arith.addf %74, %80 : vector<4x256xf32>
    %c1_83 = arith.constant 1 : index
    %c1_84 = arith.constant 1 : index
    %c1_85 = arith.constant 1 : index
    %c0_86 = arith.constant 0 : index
    %82 = vector.load %arg1[%c1_83, %c1_84, %c1_85, %c0_86] : memref<4x2x5x160xf32, #tpu.memory_space<vmem>>, vector<1x1x4x160xf32>
    %83 = vector.shape_cast %82 : vector<1x1x4x160xf32> to vector<4x160xf32>
    %84 = arith.truncf %83 : vector<4x160xf32> to vector<4x160xbf16>
    %c3_87 = arith.constant 3 : index
    %c0_88 = arith.constant 0 : index
    %c0_89 = arith.constant 0 : index
    %85 = vector.load %arg2[%c3_87, %c0_88, %c0_89] : memref<8x160x256xbf16, #tpu.memory_space<vmem>>, vector<1x160x256xbf16>
    %86 = vector.shape_cast %85 : vector<1x160x256xbf16> to vector<160x256xbf16>
    %cst_90 = arith.constant dense<0.000000e+00> : vector<4x256xf32>
    %87 = tpu.matmul %84, %86, %cst_90 {dimension_numbers = #tpu.dot_dimension_numbers<[1], [0], [0], [1], [0, 0, 1, 1], [], []>} : vector<4x160xbf16>, vector<160x256xbf16>, vector<4x256xf32> -> vector<4x256xf32>
    %88 = arith.addf %81, %87 : vector<4x256xf32>
    %c2_91 = arith.constant 2 : index
    %c1_92 = arith.constant 1 : index
    %c0_93 = arith.constant 0 : index
    %c0_94 = arith.constant 0 : index
    %89 = vector.load %arg1[%c2_91, %c1_92, %c0_93, %c0_94] : memref<4x2x5x160xf32, #tpu.memory_space<vmem>>, vector<1x1x4x160xf32>
    %90 = vector.shape_cast %89 : vector<1x1x4x160xf32> to vector<4x160xf32>
    %91 = arith.truncf %90 : vector<4x160xf32> to vector<4x160xbf16>
    %c4_95 = arith.constant 4 : index
    %c0_96 = arith.constant 0 : index
    %c0_97 = arith.constant 0 : index
    %92 = vector.load %arg2[%c4_95, %c0_96, %c0_97] : memref<8x160x256xbf16, #tpu.memory_space<vmem>>, vector<1x160x256xbf16>
    %93 = vector.shape_cast %92 : vector<1x160x256xbf16> to vector<160x256xbf16>
    %cst_98 = arith.constant dense<0.000000e+00> : vector<4x256xf32>
    %94 = tpu.matmul %91, %93, %cst_98 {dimension_numbers = #tpu.dot_dimension_numbers<[1], [0], [0], [1], [0, 0, 1, 1], [], []>} : vector<4x160xbf16>, vector<160x256xbf16>, vector<4x256xf32> -> vector<4x256xf32>
    %95 = arith.addf %88, %94 : vector<4x256xf32>
    %c2_99 = arith.constant 2 : index
    %c1_100 = arith.constant 1 : index
    %c1_101 = arith.constant 1 : index
    %c0_102 = arith.constant 0 : index
    %96 = vector.load %arg1[%c2_99, %c1_100, %c1_101, %c0_102] : memref<4x2x5x160xf32, #tpu.memory_space<vmem>>, vector<1x1x4x160xf32>
    %97 = vector.shape_cast %96 : vector<1x1x4x160xf32> to vector<4x160xf32>
    %98 = arith.truncf %97 : vector<4x160xf32> to vector<4x160xbf16>
    %c5_103 = arith.constant 5 : index
    %c0_104 = arith.constant 0 : index
    %c0_105 = arith.constant 0 : index
    %99 = vector.load %arg2[%c5_103, %c0_104, %c0_105] : memref<8x160x256xbf16, #tpu.memory_space<vmem>>, vector<1x160x256xbf16>
    %100 = vector.shape_cast %99 : vector<1x160x256xbf16> to vector<160x256xbf16>
    %cst_106 = arith.constant dense<0.000000e+00> : vector<4x256xf32>
    %101 = tpu.matmul %98, %100, %cst_106 {dimension_numbers = #tpu.dot_dimension_numbers<[1], [0], [0], [1], [0, 0, 1, 1], [], []>} : vector<4x160xbf16>, vector<160x256xbf16>, vector<4x256xf32> -> vector<4x256xf32>
    %102 = arith.addf %95, %101 : vector<4x256xf32>
    %c3_107 = arith.constant 3 : index
    %c1_108 = arith.constant 1 : index
    %c0_109 = arith.constant 0 : index
    %c0_110 = arith.constant 0 : index
    %103 = vector.load %arg1[%c3_107, %c1_108, %c0_109, %c0_110] : memref<4x2x5x160xf32, #tpu.memory_space<vmem>>, vector<1x1x4x160xf32>
    %104 = vector.shape_cast %103 : vector<1x1x4x160xf32> to vector<4x160xf32>
    %105 = arith.truncf %104 : vector<4x160xf32> to vector<4x160xbf16>
    %c6_111 = arith.constant 6 : index
    %c0_112 = arith.constant 0 : index
    %c0_113 = arith.constant 0 : index
    %106 = vector.load %arg2[%c6_111, %c0_112, %c0_113] : memref<8x160x256xbf16, #tpu.memory_space<vmem>>, vector<1x160x256xbf16>
    %107 = vector.shape_cast %106 : vector<1x160x256xbf16> to vector<160x256xbf16>
    %cst_114 = arith.constant dense<0.000000e+00> : vector<4x256xf32>
    %108 = tpu.matmul %105, %107, %cst_114 {dimension_numbers = #tpu.dot_dimension_numbers<[1], [0], [0], [1], [0, 0, 1, 1], [], []>} : vector<4x160xbf16>, vector<160x256xbf16>, vector<4x256xf32> -> vector<4x256xf32>
    %109 = arith.addf %102, %108 : vector<4x256xf32>
    %c3_115 = arith.constant 3 : index
    %c1_116 = arith.constant 1 : index
    %c1_117 = arith.constant 1 : index
    %c0_118 = arith.constant 0 : index
    %110 = vector.load %arg1[%c3_115, %c1_116, %c1_117, %c0_118] : memref<4x2x5x160xf32, #tpu.memory_space<vmem>>, vector<1x1x4x160xf32>
    %111 = vector.shape_cast %110 : vector<1x1x4x160xf32> to vector<4x160xf32>
    %112 = arith.truncf %111 : vector<4x160xf32> to vector<4x160xbf16>
    %c7_119 = arith.constant 7 : index
    %c0_120 = arith.constant 0 : index
    %c0_121 = arith.constant 0 : index
    %113 = vector.load %arg2[%c7_119, %c0_120, %c0_121] : memref<8x160x256xbf16, #tpu.memory_space<vmem>>, vector<1x160x256xbf16>
    %114 = vector.shape_cast %113 : vector<1x160x256xbf16> to vector<160x256xbf16>
    %cst_122 = arith.constant dense<0.000000e+00> : vector<4x256xf32>
    %115 = tpu.matmul %112, %114, %cst_122 {dimension_numbers = #tpu.dot_dimension_numbers<[1], [0], [0], [1], [0, 0, 1, 1], [], []>} : vector<4x160xbf16>, vector<160x256xbf16>, vector<4x256xf32> -> vector<4x256xf32>
    %116 = arith.addf %109, %115 : vector<4x256xf32>
    %c0_123 = arith.constant 0 : index
    %c0_124 = arith.constant 0 : index
    %117 = vector.load %arg3[%c0_123, %c0_124] : memref<1x256xf32, #tpu.memory_space<vmem>>, vector<1x256xf32>
    %118 = vector.broadcast %117 : vector<1x256xf32> to vector<4x256xf32>
    %119 = arith.addf %116, %118 : vector<4x256xf32>
    %cst_125 = arith.constant 0.000000e+00 : f32
    %120 = vector.broadcast %cst_125 : f32 to vector<1x256xf32>
    %cst_126 = arith.constant 0.000000e+00 : f32
    %121 = vector.broadcast %cst_126 : f32 to vector<1x256xf32>
    %cst_127 = arith.constant dense<0.000000e+00> : vector<256xf32>
    %122 = vector.multi_reduction <add>, %59, %cst_127 [0] : vector<4x256xf32> to vector<256xf32>
    %123 = vector.shape_cast %122 : vector<256xf32> to vector<1x256xf32>
    %124 = arith.addf %120, %123 : vector<1x256xf32>
    %125 = arith.mulf %59, %59 : vector<4x256xf32>
    %cst_128 = arith.constant dense<0.000000e+00> : vector<256xf32>
    %126 = vector.multi_reduction <add>, %125, %cst_128 [0] : vector<4x256xf32> to vector<256xf32>
    %127 = vector.shape_cast %126 : vector<256xf32> to vector<1x256xf32>
    %128 = arith.addf %121, %127 : vector<1x256xf32>
    %cst_129 = arith.constant dense<0.000000e+00> : vector<256xf32>
    %129 = vector.multi_reduction <add>, %119, %cst_129 [0] : vector<4x256xf32> to vector<256xf32>
    %130 = vector.shape_cast %129 : vector<256xf32> to vector<1x256xf32>
    %131 = arith.addf %124, %130 : vector<1x256xf32>
    %132 = arith.mulf %119, %119 : vector<4x256xf32>
    %cst_130 = arith.constant dense<0.000000e+00> : vector<256xf32>
    %133 = vector.multi_reduction <add>, %132, %cst_130 [0] : vector<4x256xf32> to vector<256xf32>
    %134 = vector.shape_cast %133 : vector<256xf32> to vector<1x256xf32>
    %135 = arith.addf %128, %134 : vector<1x256xf32>
    %c0_131 = arith.constant 0 : index
    %c0_132 = arith.constant 0 : index
    %136 = vector.load %arg4[%c0_131, %c0_132] : memref<256x64xf32, #tpu.memory_space<vmem>>, vector<256x64xf32>
    %cst_133 = arith.constant dense<0.000000e+00> : vector<1x64xf32>
    %137 = tpu.matmul %131, %136, %cst_133 {dimension_numbers = #tpu.dot_dimension_numbers<[1], [0], [0], [1], [0, 0, 1, 1], [], []>} : vector<1x256xf32>, vector<256x64xf32>, vector<1x64xf32> -> vector<1x64xf32>
    %c0_134 = arith.constant 0 : index
    %c0_135 = arith.constant 0 : index
    %138 = vector.load %arg4[%c0_134, %c0_135] : memref<256x64xf32, #tpu.memory_space<vmem>>, vector<256x64xf32>
    %cst_136 = arith.constant dense<0.000000e+00> : vector<1x64xf32>
    %139 = tpu.matmul %135, %138, %cst_136 {dimension_numbers = #tpu.dot_dimension_numbers<[1], [0], [0], [1], [0, 0, 1, 1], [], []>} : vector<1x256xf32>, vector<256x64xf32>, vector<1x64xf32> -> vector<1x64xf32>
    %cst_137 = arith.constant 3.200000e+01 : f32
    %140 = vector.broadcast %cst_137 : f32 to vector<1x64xf32>
    %141 = arith.divf %137, %140 : vector<1x64xf32>
    %cst_138 = arith.constant 3.200000e+01 : f32
    %142 = vector.broadcast %cst_138 : f32 to vector<1x64xf32>
    %143 = arith.divf %139, %142 : vector<1x64xf32>
    %144 = arith.mulf %141, %141 : vector<1x64xf32>
    %145 = arith.subf %143, %144 : vector<1x64xf32>
    %c0_139 = arith.constant 0 : index
    %c0_140 = arith.constant 0 : index
    %146 = vector.load %arg6[%c0_139, %c0_140] : memref<1x64xf32, #tpu.memory_space<vmem>>, vector<1x64xf32>
    %cst_141 = arith.constant 9.99999974E-6 : f32
    %147 = vector.broadcast %cst_141 : f32 to vector<1x64xf32>
    %148 = arith.addf %145, %147 : vector<1x64xf32>
    %149 = math.rsqrt %148 : vector<1x64xf32>
    %150 = arith.mulf %146, %149 : vector<1x64xf32>
    %c0_142 = arith.constant 0 : index
    %c0_143 = arith.constant 0 : index
    %151 = vector.load %arg7[%c0_142, %c0_143] : memref<1x64xf32, #tpu.memory_space<vmem>>, vector<1x64xf32>
    %152 = arith.mulf %141, %150 : vector<1x64xf32>
    %153 = arith.subf %151, %152 : vector<1x64xf32>
    %c0_144 = arith.constant 0 : index
    %c0_145 = arith.constant 0 : index
    %154 = vector.load %arg5[%c0_144, %c0_145] : memref<64x256xf32, #tpu.memory_space<vmem>>, vector<64x256xf32>
    %cst_146 = arith.constant dense<0.000000e+00> : vector<1x256xf32>
    %155 = tpu.matmul %150, %154, %cst_146 {dimension_numbers = #tpu.dot_dimension_numbers<[1], [0], [0], [1], [0, 0, 1, 1], [], []>} : vector<1x64xf32>, vector<64x256xf32>, vector<1x256xf32> -> vector<1x256xf32>
    %c0_147 = arith.constant 0 : index
    %c0_148 = arith.constant 0 : index
    %156 = vector.load %arg5[%c0_147, %c0_148] : memref<64x256xf32, #tpu.memory_space<vmem>>, vector<64x256xf32>
    %cst_149 = arith.constant dense<0.000000e+00> : vector<1x256xf32>
    %157 = tpu.matmul %153, %156, %cst_149 {dimension_numbers = #tpu.dot_dimension_numbers<[1], [0], [0], [1], [0, 0, 1, 1], [], []>} : vector<1x64xf32>, vector<64x256xf32>, vector<1x256xf32> -> vector<1x256xf32>
    %158 = vector.broadcast %155 : vector<1x256xf32> to vector<4x256xf32>
    %159 = arith.mulf %59, %158 : vector<4x256xf32>
    %160 = vector.broadcast %157 : vector<1x256xf32> to vector<4x256xf32>
    %161 = arith.addf %159, %160 : vector<4x256xf32>
    %cst_150 = arith.constant 0.000000e+00 : f32
    %162 = vector.broadcast %cst_150 : f32 to vector<4x256xf32>
    %163 = arith.cmpf oge, %161, %162 : vector<4x256xf32>
    %cst_151 = arith.constant 2.000000e-01 : f32
    %164 = vector.broadcast %cst_151 : f32 to vector<4x256xf32>
    %165 = arith.mulf %164, %161 : vector<4x256xf32>
    %166 = arith.select %163, %161, %165 : vector<4x256xi1>, vector<4x256xf32>
    %c0_152 = arith.constant 0 : index
    %c0_153 = arith.constant 0 : index
    %167 = vector.load %arg8[%c0_152, %c0_153] : memref<8x256xf32, #tpu.memory_space<vmem>>, vector<4x256xf32>
    tpu.vector_store %arg8[%c0_152, %c0_153], %166 {strides = array<i32>} : memref<8x256xf32, #tpu.memory_space<vmem>>, vector<4x256xf32>,
    %168 = vector.broadcast %155 : vector<1x256xf32> to vector<4x256xf32>
    %169 = arith.mulf %119, %168 : vector<4x256xf32>
    %170 = vector.broadcast %157 : vector<1x256xf32> to vector<4x256xf32>
    %171 = arith.addf %169, %170 : vector<4x256xf32>
    %cst_154 = arith.constant 0.000000e+00 : f32
    %172 = vector.broadcast %cst_154 : f32 to vector<4x256xf32>
    %173 = arith.cmpf oge, %171, %172 : vector<4x256xf32>
    %cst_155 = arith.constant 2.000000e-01 : f32
    %174 = vector.broadcast %cst_155 : f32 to vector<4x256xf32>
    %175 = arith.mulf %174, %171 : vector<4x256xf32>
    %176 = arith.select %173, %171, %175 : vector<4x256xi1>, vector<4x256xf32>
    %c4_156 = arith.constant 4 : index
    %c0_157 = arith.constant 0 : index
    %177 = vector.load %arg8[%c4_156, %c0_157] : memref<8x256xf32, #tpu.memory_space<vmem>>, vector<4x256xf32>
    tpu.vector_store %arg8[%c4_156, %c0_157], %176 {strides = array<i32>} : memref<8x256xf32, #tpu.memory_space<vmem>>, vector<4x256xf32>,
    return
  }
  func.func @transform_0(%arg0: i32) -> (i32, i32, i32, i32) {
    %c0_i32 = arith.constant 0 : i32
    %c0_i32_0 = arith.constant 0 : i32
    %c0_i32_1 = arith.constant 0 : i32
    %c0_i32_2 = arith.constant 0 : i32
    %c0_i32_3 = arith.constant 0 : i32
    return %c0_i32, %c0_i32_0, %c0_i32_1, %c0_i32_2 : i32, i32, i32, i32
  }
  func.func @transform_1(%arg0: i32) -> (i32, i32, i32) {
    %c0_i32 = arith.constant 0 : i32
    %c0_i32_0 = arith.constant 0 : i32
    %c0_i32_1 = arith.constant 0 : i32
    %c0_i32_2 = arith.constant 0 : i32
    return %c0_i32, %c0_i32_0, %c0_i32_1 : i32, i32, i32
  }
  func.func @transform_2(%arg0: i32) -> (i32, i32) {
    %c0_i32 = arith.constant 0 : i32
    %c0_i32_0 = arith.constant 0 : i32
    %c0_i32_1 = arith.constant 0 : i32
    return %c0_i32, %c0_i32_0 : i32, i32
  }
  func.func @transform_3(%arg0: i32) -> (i32, i32) {
    %c0_i32 = arith.constant 0 : i32
    %c0_i32_0 = arith.constant 0 : i32
    %c0_i32_1 = arith.constant 0 : i32
    return %c0_i32, %c0_i32_0 : i32, i32
  }
  func.func @transform_4(%arg0: i32) -> (i32, i32) {
    %c0_i32 = arith.constant 0 : i32
    %c0_i32_0 = arith.constant 0 : i32
    %c0_i32_1 = arith.constant 0 : i32
    return %c0_i32, %c0_i32_0 : i32, i32
  }
  func.func @transform_5(%arg0: i32) -> (i32, i32) {
    %c0_i32 = arith.constant 0 : i32
    %c0_i32_0 = arith.constant 0 : i32
    %c0_i32_1 = arith.constant 0 : i32
    return %c0_i32, %c0_i32_0 : i32, i32
  }
  func.func @transform_6(%arg0: i32) -> (i32, i32) {
    %c0_i32 = arith.constant 0 : i32
    %c0_i32_0 = arith.constant 0 : i32
    %c0_i32_1 = arith.constant 0 : i32
    return %c0_i32, %c0_i32_0 : i32, i32
  }
  func.func @transform_7(%arg0: i32) -> (i32, i32) {
    %c0_i32 = arith.constant 0 : i32
    %c0_i32_0 = arith.constant 0 : i32
    %c0_i32_1 = arith.constant 0 : i32
    return %c0_i32, %c0_i32_0 : i32, i32
  }
}

</mosaic_0001>

<llo_original>
// kernel: discriminator_forward.5
$region0: #{discriminator_forward.5}
  #allocation0 [shape = 'u32[]', space=smem, size = 0x4, offset = 0x4, fixed_abs, tag = 'smem constant byte address 0x4 - core index']
  #allocation1 [shape = 'u32[72,128]{1,0:T(1,128)}', space=vmem, size = 0x9000, scoped, tag = 'internal scratch']
  %s0 = inlined_call_operand.vmem [shape: f32[4,2,33,99], index: 0, kind: input, shape index: {}]
  %s1 = inlined_call_operand.vmem [shape: bf16[8,99,256], index: 1, kind: input, shape index: {}]
  %s2 = inlined_call_operand.vmem [shape: f32[1,256], index: 2, kind: input, shape index: {}]
  %s3 = inlined_call_operand.vmem [shape: f32[64,256], index: 3, kind: output, shape index: {}]
  %s4 = sld [smem:[#allocation0]]
  $region22: #{discriminator_forward.5} parent=0
    _
  %s6 = ssub.s32 1, %s4
  %s7 = scalar_select 0, %s6, %s4
  // Predicated region
  $region2: #{discriminator_forward.5} parent=0 // pred_check
    _
  $region3: #{discriminator_forward.5} parent=0 // pred_check_branch
    %9 = sbr.rel (0) target = $region5
  $region4: #{discriminator_forward.5} parent=0 // pred_region
    _
  $region5: #{discriminator_forward.5} parent=0 // pred_fallthru
    _
  // Predicated region
  $region6: #{discriminator_forward.5} parent=0 // pred_check
    _
  $region7: #{discriminator_forward.5} parent=0 // pred_check_branch
    %11 = sbr.rel (0) target = $region9
  $region8: #{discriminator_forward.5} parent=0 // pred_region
    _
  $region9: #{discriminator_forward.5} parent=0 // pred_fallthru
    _
  // Predicated region
  $region10: #{discriminator_forward.5} parent=0 // pred_check
    _
  $region11: #{discriminator_forward.5} parent=0 // pred_check_branch
    %13 = sbr.rel (0) target = $region13
  $region12: #{discriminator_forward.5} parent=0 // pred_region
    _
  $region13: #{discriminator_forward.5} parent=0 // pred_fallthru
    _
  %v15 = vld [vmem:[%s0] sm:$0xff]
  %v16 = vld [vmem:[%s0 + $0x8] sm:$0xff]
  %v17 = vld [vmem:[%s0 + $0x10] sm:$0xff]
  %v18 = vld [vmem:[%s0 + $0x18] sm:$0xff]
  %v19 = vpack.c.bf16 %v16, %v15
  %v20 = vpack.c.bf16 %v18, %v17
  %v21 = vld [vmem:[%s1] sm:$0xff]
  %v22 = vld [vmem:[%s1 + $0x8] sm:$0xff]
  %v23 = vld [vmem:[%s1 + $0x10] sm:$0xff]
  %v24 = vld [vmem:[%s1 + $0x18] sm:$0xff]
  %v25 = vld [vmem:[%s1 + $0x20] sm:$0xff]
  %v26 = vld [vmem:[%s1 + $0x28] sm:$0xff]
  %v27 = vld [vmem:[%s1 + $0x30] sm:$0xff]
  %v28 = vld [vmem:[%s1 + $0x38] sm:$0xff]
  %v29 = vld [vmem:[%s1 + $0x40] sm:$0xff]
  %v30 = vld [vmem:[%s1 + $0x48] sm:$0xff]
  %v31 = vld [vmem:[%s1 + $0x50] sm:$0xff]
  %v32 = vld [vmem:[%s1 + $0x58] sm:$0xff]
  %v33 = vld [vmem:[%s1 + $0x60] sm:$0x33]
  %v34 = vld [vmem:[%s0 + $0x1] sm:$0xff]
  %v35 = vld [vmem:[%s0 + $0x9] sm:$0xff]
  %v36 = vld [vmem:[%s0 + $0x11] sm:$0xff]
  %v37 = vld [vmem:[%s0 + $0x19] sm:$0xff]
  %v38 = vpack.c.bf16 %v35, %v34
  %v39 = vpack.c.bf16 %v37, %v36
  %s40 = scalar_lea.vmem %s1, 104
  %v41 = vld [vmem:[%s40] sm:$0xff]
  %v42 = vld [vmem:[%s40 + $0x8] sm:$0xff]
  %v43 = vld [vmem:[%s40 + $0x10] sm:$0xff]
  %v44 = vld [vmem:[%s40 + $0x18] sm:$0xff]
  %v45 = vld [vmem:[%s40 + $0x20] sm:$0xff]
  %v46 = vld [vmem:[%s40 + $0x28] sm:$0xff]
  %v47 = vld [vmem:[%s40 + $0x30] sm:$0xff]
  %v48 = vld [vmem:[%s40 + $0x38] sm:$0xff]
  %v49 = vld [vmem:[%s40 + $0x40] sm:$0xff]
  %v50 = vld [vmem:[%s40 + $0x48] sm:$0xff]
  %v51 = vld [vmem:[%s40 + $0x50] sm:$0xff]
  %v52 = vld [vmem:[%s40 + $0x58] sm:$0xff]
  %v53 = vld [vmem:[%s40 + $0x60] sm:$0x33]
  %v67 = vunpack.c.l.b16 %v41
  %v68 = vunpack.c.h.b16 %v41
  %v69 = vunpack.c.l.b16 %v42
  %v70 = vunpack.c.h.b16 %v42
  %v71 = vunpack.c.l.b16 %v43
  %v72 = vunpack.c.h.b16 %v43
  %v73 = vunpack.c.l.b16 %v44
  %v74 = vunpack.c.h.b16 %v44
  %v75 = vunpack.c.l.b16 %v45
  %v76 = vunpack.c.h.b16 %v45
  %v77 = vunpack.c.l.b16 %v46
  %v78 = vunpack.c.h.b16 %v46
  %v79 = vunpack.c.l.b16 %v47
  %v80 = vunpack.c.h.b16 %v47
  %v81 = vunpack.c.l.b16 %v48
  %v82 = vunpack.c.h.b16 %v48
  %v83 = vunpack.c.l.b16 %v49
  %v84 = vunpack.c.h.b16 %v49
  %v85 = vunpack.c.l.b16 %v50
  %v86 = vunpack.c.h.b16 %v50
  %v87 = vunpack.c.l.b16 %v51
  %v88 = vunpack.c.h.b16 %v51
  %v89 = vunpack.c.l.b16 %v52
  %v90 = vunpack.c.h.b16 %v52
  %v91 = vunpack.c.l.b16 %v53
  %v92 = vunpack.c.h.b16 %v53
  %v93 = vpack.c.b16 %v69, %v67
  %v94 = vpack.c.b16 %v70, %v68
  %v95 = vpack.c.b16 %v73, %v71
  %v96 = vpack.c.b16 %v74, %v72
  %v97 = vpack.c.b16 %v77, %v75
  %v98 = vpack.c.b16 %v78, %v76
  %v99 = vpack.c.b16 %v81, %v79
  %v100 = vpack.c.b16 %v82, %v80
  %v101 = vpack.c.b16 %v85, %v83
  %v102 = vpack.c.b16 %v86, %v84
  %v103 = vpack.c.b16 %v89, %v87
  %v104 = vpack.c.b16 %v90, %v88
  %v105 = vpack.c.b16 %v91, %v91
  %v106 = vpack.c.b16 %v92, %v92
  %vm119 = vcmask 809984
  %v121 = vsel %vm119, %v38, 0
  %v124 = vsel %vm119, %v39, 0
  %vm126 = vcmask 1040384
  %vm127 = vcmask 1041408
  %v128 = vsel %vm126, 4294967295, 65535
  %v129 = vsel %vm127, %v128, 0
  %v131 = vand.u32 %v105, %v129
  %v134 = vand.u32 %v106, %v129
  %136 = vmatpush.bf16.msra.mxu0 0
  %137 = vmatpush.bf16.msra.mxu0 %v131
  %138 = vmatpush.bf16.msra.mxu0 %v103
  %139 = vmatpush.bf16.msra.mxu0 %v101
  %140 = vmatpush.bf16.msra.mxu0 %v99
  %141 = vmatpush.bf16.msra.mxu0 %v97
  %142 = vmatpush.bf16.msra.mxu0 %v95
  %143 = vmatpush.bf16.msra.mxu0 %v93
  %144 = vmatmul.bf16.gmra.mxu0 %v121
  %v145 = vpop.f32.mrf.mxu0
  %v146 = vadd.f32 0.0, %v145
  %v147 = vpop.f32.mrf.mxu0
  %v148 = vadd.f32 0.0, %v147
  %149 = vmatmul.bf16.gmra.mxu0 %v124
  %v150 = vpop.f32.mrf.mxu0
  %v151 = vadd.f32 0.0, %v150
  %v152 = vpop.f32.mrf.mxu0
  %v153 = vadd.f32 0.0, %v152
  %154 = vdwg.mxu0
  %155 = vmatpush.bf16.msra.mxu0 0
  %156 = vmatpush.bf16.msra.mxu0 %v134
  %157 = vmatpush.bf16.msra.mxu0 %v104
  %158 = vmatpush.bf16.msra.mxu0 %v102
  %159 = vmatpush.bf16.msra.mxu0 %v100
  %160 = vmatpush.bf16.msra.mxu0 %v98
  %161 = vmatpush.bf16.msra.mxu0 %v96
  %162 = vmatpush.bf16.msra.mxu0 %v94
  %163 = vmatmul.bf16.gmra.mxu0 %v121
  %v164 = vpop.f32.mrf.mxu0
  %v165 = vadd.f32 0.0, %v164
  %v166 = vpop.f32.mrf.mxu0
  %v167 = vadd.f32 0.0, %v166
  %168 = vmatmul.bf16.gmra.mxu0 %v124
  %v169 = vpop.f32.mrf.mxu0
  %v170 = vadd.f32 0.0, %v169
  %v171 = vpop.f32.mrf.mxu0
  %v172 = vadd.f32 0.0, %v171
  %173 = vdwg.mxu0
  %v187 = vunpack.c.l.b16 %v21
  %v188 = vunpack.c.h.b16 %v21
  %v189 = vunpack.c.l.b16 %v22
  %v190 = vunpack.c.h.b16 %v22
  %v191 = vunpack.c.l.b16 %v23
  %v192 = vunpack.c.h.b16 %v23
  %v193 = vunpack.c.l.b16 %v24
  %v194 = vunpack.c.h.b16 %v24
  %v195 = vunpack.c.l.b16 %v25
  %v196 = vunpack.c.h.b16 %v25
  %v197 = vunpack.c.l.b16 %v26
  %v198 = vunpack.c.h.b16 %v26
  %v199 = vunpack.c.l.b16 %v27
  %v200 = vunpack.c.h.b16 %v27
  %v201 = vunpack.c.l.b16 %v28
  %v202 = vunpack.c.h.b16 %v28
  %v203 = vunpack.c.l.b16 %v29
  %v204 = vunpack.c.h.b16 %v29
  %v205 = vunpack.c.l.b16 %v30
  %v206 = vunpack.c.h.b16 %v30
  %v207 = vunpack.c.l.b16 %v31
  %v208 = vunpack.c.h.b16 %v31
  %v209 = vunpack.c.l.b16 %v32
  %v210 = vunpack.c.h.b16 %v32
  %v211 = vunpack.c.l.b16 %v33
  %v212 = vunpack.c.h.b16 %v33
  %v213 = vpack.c.b16 %v189, %v187
  %v214 = vpack.c.b16 %v190, %v188
  %v215 = vpack.c.b16 %v193, %v191
  %v216 = vpack.c.b16 %v194, %v192
  %v217 = vpack.c.b16 %v197, %v195
  %v218 = vpack.c.b16 %v198, %v196
  %v219 = vpack.c.b16 %v201, %v199
  %v220 = vpack.c.b16 %v202, %v200
  %v221 = vpack.c.b16 %v205, %v203
  %v222 = vpack.c.b16 %v206, %v204
  %v223 = vpack.c.b16 %v209, %v207
  %v224 = vpack.c.b16 %v210, %v208
  %v225 = vpack.c.b16 %v211, %v211
  %v226 = vpack.c.b16 %v212, %v212
  %v240 = vsel %vm119, %v19, 0
  %v243 = vsel %vm119, %v20, 0
  %v246 = vand.u32 %v225, %v129
  %v249 = vand.u32 %v226, %v129
  %251 = vmatpush.bf16.msra.mxu0 0
  %252 = vmatpush.bf16.msra.mxu0 %v246
  %253 = vmatpush.bf16.msra.mxu0 %v223
  %254 = vmatpush.bf16.msra.mxu0 %v221
  %255 = vmatpush.bf16.msra.mxu0 %v219
  %256 = vmatpush.bf16.msra.mxu0 %v217
  %257 = vmatpush.bf16.msra.mxu0 %v215
  %258 = vmatpush.bf16.msra.mxu0 %v213
  %259 = vmatmul.bf16.gmra.mxu0 %v240
  %v260 = vpop.f32.mrf.mxu0
  %v261 = vadd.f32 %v146, %v260
  %v262 = vpop.f32.mrf.mxu0
  %v263 = vadd.f32 %v148, %v262
  %264 = vmatmul.bf16.gmra.mxu0 %v243
  %v265 = vpop.f32.mrf.mxu0
  %v266 = vadd.f32 %v151, %v265
  %v267 = vpop.f32.mrf.mxu0
  %v268 = vadd.f32 %v153, %v267
  %269 = vdwg.mxu0
  %270 = vmatpush.bf16.msra.mxu0 0
  %271 = vmatpush.bf16.msra.mxu0 %v249
  %272 = vmatpush.bf16.msra.mxu0 %v224
  %273 = vmatpush.bf16.msra.mxu0 %v222
  %274 = vmatpush.bf16.msra.mxu0 %v220
  %275 = vmatpush.bf16.msra.mxu0 %v218
  %276 = vmatpush.bf16.msra.mxu0 %v216
  %277 = vmatpush.bf16.msra.mxu0 %v214
  %278 = vmatmul.bf16.gmra.mxu0 %v240
  %v279 = vpop.f32.mrf.mxu0
  %v280 = vadd.f32 %v165, %v279
  %v281 = vpop.f32.mrf.mxu0
  %v282 = vadd.f32 %v167, %v281
  %283 = vmatmul.bf16.gmra.mxu0 %v243
  %v284 = vpop.f32.mrf.mxu0
  %v285 = vadd.f32 %v170, %v284
  %v286 = vpop.f32.mrf.mxu0
  %v287 = vadd.f32 %v172, %v286
  %288 = vdwg.mxu0
  %s289 = scalar_lea.vmem %s0, 80
  %v290 = vld [vmem:[%s289] sm:$0xff]
  %v291 = vld [vmem:[%s289 + $0x8] sm:$0xff]
  %v292 = vld [vmem:[%s289 + $0x10] sm:$0xff]
  %v293 = vld [vmem:[%s289 + $0x18] sm:$0xff]
  %v294 = vpack.c.bf16 %v291, %v290
  %v295 = vpack.c.bf16 %v293, %v292
  %s296 = scalar_lea.vmem %s1, 208
  %v297 = vld [vmem:[%s296] sm:$0xff]
  %v298 = vld [vmem:[%s296 + $0x8] sm:$0xff]
  %v299 = vld [vmem:[%s296 + $0x10] sm:$0xff]
  %v300 = vld [vmem:[%s296 + $0x18] sm:$0xff]
  %v301 = vld [vmem:[%s296 + $0x20] sm:$0xff]
  %v302 = vld [vmem:[%s296 + $0x28] sm:$0xff]
  %v303 = vld [vmem:[%s296 + $0x30] sm:$0xff]
  %v304 = vld [vmem:[%s296 + $0x38] sm:$0xff]
  %v305 = vld [vmem:[%s296 + $0x40] sm:$0xff]
  %v306 = vld [vmem:[%s296 + $0x48] sm:$0xff]
  %v307 = vld [vmem:[%s296 + $0x50] sm:$0xff]
  %v308 = vld [vmem:[%s296 + $0x58] sm:$0xff]
  %v309 = vld [vmem:[%s296 + $0x60] sm:$0x33]
  %v323 = vunpack.c.l.b16 %v297
  %v324 = vunpack.c.h.b16 %v297
  %v325 = vunpack.c.l.b16 %v298
  %v326 = vunpack.c.h.b16 %v298
  %v327 = vunpack.c.l.b16 %v299
  %v328 = vunpack.c.h.b16 %v299
  %v329 = vunpack.c.l.b16 %v300
  %v330 = vunpack.c.h.b16 %v300
  %v331 = vunpack.c.l.b16 %v301
  %v332 = vunpack.c.h.b16 %v301
  %v333 = vunpack.c.l.b16 %v302
  %v334 = vunpack.c.h.b16 %v302
  %v335 = vunpack.c.l.b16 %v303
  %v336 = vunpack.c.h.b16 %v303
  %v337 = vunpack.c.l.b16 %v304
  %v338 = vunpack.c.h.b16 %v304
  %v339 = vunpack.c.l.b16 %v305
  %v340 = vunpack.c.h.b16 %v305
  %v341 = vunpack.c.l.b16 %v306
  %v342 = vunpack.c.h.b16 %v306
  %v343 = vunpack.c.l.b16 %v307
  %v344 = vunpack.c.h.b16 %v307
  %v345 = vunpack.c.l.b16 %v308
  %v346 = vunpack.c.h.b16 %v308
  %v347 = vunpack.c.l.b16 %v309
  %v348 = vunpack.c.h.b16 %v309
  %v349 = vpack.c.b16 %v325, %v323
  %v350 = vpack.c.b16 %v326, %v324
  %v351 = vpack.c.b16 %v329, %v327
  %v352 = vpack.c.b16 %v330, %v328
  %v353 = vpack.c.b16 %v333, %v331
  %v354 = vpack.c.b16 %v334, %v332
  %v355 = vpack.c.b16 %v337, %v335
  %v356 = vpack.c.b16 %v338, %v336
  %v357 = vpack.c.b16 %v341, %v339
  %v358 = vpack.c.b16 %v342, %v340
  %v359 = vpack.c.b16 %v345, %v343
  %v360 = vpack.c.b16 %v346, %v344
  %v361 = vpack.c.b16 %v347, %v347
  %v362 = vpack.c.b16 %v348, %v348
  %v376 = vsel %vm119, %v294, 0
  %v379 = vsel %vm119, %v295, 0
  %v382 = vand.u32 %v361, %v129
  %v385 = vand.u32 %v362, %v129
  %387 = vmatpush.bf16.msra.mxu0 0
  %388 = vmatpush.bf16.msra.mxu0 %v382
  %389 = vmatpush.bf16.msra.mxu0 %v359
  %390 = vmatpush.bf16.msra.mxu0 %v357
  %391 = vmatpush.bf16.msra.mxu0 %v355
  %392 = vmatpush.bf16.msra.mxu0 %v353
  %393 = vmatpush.bf16.msra.mxu0 %v351
  %394 = vmatpush.bf16.msra.mxu0 %v349
  %395 = vmatmul.bf16.gmra.mxu0 %v376
  %v396 = vpop.f32.mrf.mxu0
  %v397 = vadd.f32 0.0, %v396
  %v398 = vpop.f32.mrf.mxu0
  %v399 = vadd.f32 0.0, %v398
  %400 = vmatmul.bf16.gmra.mxu0 %v379
  %v401 = vpop.f32.mrf.mxu0
  %v402 = vadd.f32 0.0, %v401
  %v403 = vpop.f32.mrf.mxu0
  %v404 = vadd.f32 0.0, %v403
  %405 = vdwg.mxu0
  %406 = vmatpush.bf16.msra.mxu0 0
  %407 = vmatpush.bf16.msra.mxu0 %v385
  %408 = vmatpush.bf16.msra.mxu0 %v360
  %409 = vmatpush.bf16.msra.mxu0 %v358
  %410 = vmatpush.bf16.msra.mxu0 %v356
  %411 = vmatpush.bf16.msra.mxu0 %v354
  %412 = vmatpush.bf16.msra.mxu0 %v352
  %413 = vmatpush.bf16.msra.mxu0 %v350
  %414 = vmatmul.bf16.gmra.mxu0 %v376
  %v415 = vpop.f32.mrf.mxu0
  %v416 = vadd.f32 0.0, %v415
  %v417 = vpop.f32.mrf.mxu0
  %v418 = vadd.f32 0.0, %v417
  %419 = vmatmul.bf16.gmra.mxu0 %v379
  %v420 = vpop.f32.mrf.mxu0
  %v421 = vadd.f32 0.0, %v420
  %v422 = vpop.f32.mrf.mxu0
  %v423 = vadd.f32 0.0, %v422
  %424 = vdwg.mxu0
  %v425 = vadd.f32 %v261, %v397
  %v426 = vadd.f32 %v280, %v416
  %v427 = vadd.f32 %v263, %v399
  %v428 = vadd.f32 %v282, %v418
  %v429 = vadd.f32 %v266, %v402
  %v430 = vadd.f32 %v285, %v421
  %v431 = vadd.f32 %v268, %v404
  %v432 = vadd.f32 %v287, %v423
  %v433 = vld [vmem:[%s289 + $0x1] sm:$0xff]
  %v434 = vld [vmem:[%s289 + $0x9] sm:$0xff]
  %v435 = vld [vmem:[%s289 + $0x11] sm:$0xff]
  %v436 = vld [vmem:[%s289 + $0x19] sm:$0xff]
  %v437 = vpack.c.bf16 %v434, %v433
  %v438 = vpack.c.bf16 %v436, %v435
  %s439 = scalar_lea.vmem %s1, 312
  %v440 = vld [vmem:[%s439] sm:$0xff]
  %v441 = vld [vmem:[%s439 + $0x8] sm:$0xff]
  %v442 = vld [vmem:[%s439 + $0x10] sm:$0xff]
  %v443 = vld [vmem:[%s439 + $0x18] sm:$0xff]
  %v444 = vld [vmem:[%s439 + $0x20] sm:$0xff]
  %v445 = vld [vmem:[%s439 + $0x28] sm:$0xff]
  %v446 = vld [vmem:[%s439 + $0x30] sm:$0xff]
  %v447 = vld [vmem:[%s439 + $0x38] sm:$0xff]
  %v448 = vld [vmem:[%s439 + $0x40] sm:$0xff]
  %v449 = vld [vmem:[%s439 + $0x48] sm:$0xff]
  %v450 = vld [vmem:[%s439 + $0x50] sm:$0xff]
  %v451 = vld [vmem:[%s439 + $0x58] sm:$0xff]
  %v452 = vld [vmem:[%s439 + $0x60] sm:$0x33]
  %v466 = vunpack.c.l.b16 %v440
  %v467 = vunpack.c.h.b16 %v440
  %v468 = vunpack.c.l.b16 %v441
  %v469 = vunpack.c.h.b16 %v441
  %v470 = vunpack.c.l.b16 %v442
  %v471 = vunpack.c.h.b16 %v442
  %v472 = vunpack.c.l.b16 %v443
  %v473 = vunpack.c.h.b16 %v443
  %v474 = vunpack.c.l.b16 %v444
  %v475 = vunpack.c.h.b16 %v444
  %v476 = vunpack.c.l.b16 %v445
  %v477 = vunpack.c.h.b16 %v445
  %v478 = vunpack.c.l.b16 %v446
  %v479 = vunpack.c.h.b16 %v446
  %v480 = vunpack.c.l.b16 %v447
  %v481 = vunpack.c.h.b16 %v447
  %v482 = vunpack.c.l.b16 %v448
  %v483 = vunpack.c.h.b16 %v448
  %v484 = vunpack.c.l.b16 %v449
  %v485 = vunpack.c.h.b16 %v449
  %v486 = vunpack.c.l.b16 %v450
  %v487 = vunpack.c.h.b16 %v450
  %v488 = vunpack.c.l.b16 %v451
  %v489 = vunpack.c.h.b16 %v451
  %v490 = vunpack.c.l.b16 %v452
  %v491 = vunpack.c.h.b16 %v452
  %v492 = vpack.c.b16 %v468, %v466
  %v493 = vpack.c.b16 %v469, %v467
  %v494 = vpack.c.b16 %v472, %v470
  %v495 = vpack.c.b16 %v473, %v471
  %v496 = vpack.c.b16 %v476, %v474
  %v497 = vpack.c.b16 %v477, %v475
  %v498 = vpack.c.b16 %v480, %v478
  %v499 = vpack.c.b16 %v481, %v479
  %v500 = vpack.c.b16 %v484, %v482
  %v501 = vpack.c.b16 %v485, %v483
  %v502 = vpack.c.b16 %v488, %v486
  %v503 = vpack.c.b16 %v489, %v487
  %v504 = vpack.c.b16 %v490, %v490
  %v505 = vpack.c.b16 %v491, %v491
  %v519 = vsel %vm119, %v437, 0
  %v522 = vsel %vm119, %v438, 0
  %v525 = vand.u32 %v504, %v129
  %v528 = vand.u32 %v505, %v129
  %530 = vmatpush.bf16.msra.mxu0 0
  %531 = vmatpush.bf16.msra.mxu0 %v525
  %532 = vmatpush.bf16.msra.mxu0 %v502
  %533 = vmatpush.bf16.msra.mxu0 %v500
  %534 = vmatpush.bf16.msra.mxu0 %v498
  %535 = vmatpush.bf16.msra.mxu0 %v496
  %536 = vmatpush.bf16.msra.mxu0 %v494
  %537 = vmatpush.bf16.msra.mxu0 %v492
  %538 = vmatmul.bf16.gmra.mxu0 %v519
  %v539 = vpop.f32.mrf.mxu0
  %v540 = vadd.f32 0.0, %v539
  %v541 = vpop.f32.mrf.mxu0
  %v542 = vadd.f32 0.0, %v541
  %543 = vmatmul.bf16.gmra.mxu0 %v522
  %v544 = vpop.f32.mrf.mxu0
  %v545 = vadd.f32 0.0, %v544
  %v546 = vpop.f32.mrf.mxu0
  %v547 = vadd.f32 0.0, %v546
  %548 = vdwg.mxu0
  %549 = vmatpush.bf16.msra.mxu0 0
  %550 = vmatpush.bf16.msra.mxu0 %v528
  %551 = vmatpush.bf16.msra.mxu0 %v503
  %552 = vmatpush.bf16.msra.mxu0 %v501
  %553 = vmatpush.bf16.msra.mxu0 %v499
  %554 = vmatpush.bf16.msra.mxu0 %v497
  %555 = vmatpush.bf16.msra.mxu0 %v495
  %556 = vmatpush.bf16.msra.mxu0 %v493
  %557 = vmatmul.bf16.gmra.mxu0 %v519
  %v558 = vpop.f32.mrf.mxu0
  %v559 = vadd.f32 0.0, %v558
  %v560 = vpop.f32.mrf.mxu0
  %v561 = vadd.f32 0.0, %v560
  %562 = vmatmul.bf16.gmra.mxu0 %v522
  %v563 = vpop.f32.mrf.mxu0
  %v564 = vadd.f32 0.0, %v563
  %v565 = vpop.f32.mrf.mxu0
  %v566 = vadd.f32 0.0, %v565
  %567 = vdwg.mxu0
  %v568 = vadd.f32 %v425, %v540
  %v569 = vadd.f32 %v426, %v559
  %v570 = vadd.f32 %v427, %v542
  %v571 = vadd.f32 %v428, %v561
  %v572 = vadd.f32 %v429, %v545
  %v573 = vadd.f32 %v430, %v564
  %v574 = vadd.f32 %v431, %v547
  %v575 = vadd.f32 %v432, %v566
  %s576 = scalar_lea.vmem %s0, 160
  %v577 = vld [vmem:[%s576] sm:$0xff]
  %v578 = vld [vmem:[%s576 + $0x8] sm:$0xff]
  %v579 = vld [vmem:[%s576 + $0x10] sm:$0xff]
  %v580 = vld [vmem:[%s576 + $0x18] sm:$0xff]
  %v581 = vpack.c.bf16 %v578, %v577
  %v582 = vpack.c.bf16 %v580, %v579
  %s583 = scalar_lea.vmem %s1, 416
  %v584 = vld [vmem:[%s583] sm:$0xff]
  %v585 = vld [vmem:[%s583 + $0x8] sm:$0xff]
  %v586 = vld [vmem:[%s583 + $0x10] sm:$0xff]
  %v587 = vld [vmem:[%s583 + $0x18] sm:$0xff]
  %v588 = vld [vmem:[%s583 + $0x20] sm:$0xff]
  %v589 = vld [vmem:[%s583 + $0x28] sm:$0xff]
  %v590 = vld [vmem:[%s583 + $0x30] sm:$0xff]
  %v591 = vld [vmem:[%s583 + $0x38] sm:$0xff]
  %v592 = vld [vmem:[%s583 + $0x40] sm:$0xff]
  %v593 = vld [vmem:[%s583 + $0x48] sm:$0xff]
  %v594 = vld [vmem:[%s583 + $0x50] sm:$0xff]
  %v595 = vld [vmem:[%s583 + $0x58] sm:$0xff]
  %v596 = vld [vmem:[%s583 + $0x60] sm:$0x33]
  %v610 = vunpack.c.l.b16 %v584
  %v611 = vunpack.c.h.b16 %v584
  %v612 = vunpack.c.l.b16 %v585
  %v613 = vunpack.c.h.b16 %v585
  %v614 = vunpack.c.l.b16 %v586
  %v615 = vunpack.c.h.b16 %v586
  %v616 = vunpack.c.l.b16 %v587
  %v617 = vunpack.c.h.b16 %v587
  %v618 = vunpack.c.l.b16 %v588
  %v619 = vunpack.c.h.b16 %v588
  %v620 = vunpack.c.l.b16 %v589
  %v621 = vunpack.c.h.b16 %v589
  %v622 = vunpack.c.l.b16 %v590
  %v623 = vunpack.c.h.b16 %v590
  %v624 = vunpack.c.l.b16 %v591
  %v625 = vunpack.c.h.b16 %v591
  %v626 = vunpack.c.l.b16 %v592
  %v627 = vunpack.c.h.b16 %v592
  %v628 = vunpack.c.l.b16 %v593
  %v629 = vunpack.c.h.b16 %v593
  %v630 = vunpack.c.l.b16 %v594
  %v631 = vunpack.c.h.b16 %v594
  %v632 = vunpack.c.l.b16 %v595
  %v633 = vunpack.c.h.b16 %v595
  %v634 = vunpack.c.l.b16 %v596
  %v635 = vunpack.c.h.b16 %v596
  %v636 = vpack.c.b16 %v612, %v610
  %v637 = vpack.c.b16 %v613, %v611
  %v638 = vpack.c.b16 %v616, %v614
  %v639 = vpack.c.b16 %v617, %v615
  %v640 = vpack.c.b16 %v620, %v618
  %v641 = vpack.c.b16 %v621, %v619
  %v642 = vpack.c.b16 %v624, %v622
  %v643 = vpack.c.b16 %v625, %v623
  %v644 = vpack.c.b16 %v628, %v626
  %v645 = vpack.c.b16 %v629, %v627
  %v646 = vpack.c.b16 %v632, %v630
  %v647 = vpack.c.b16 %v633, %v631
  %v648 = vpack.c.b16 %v634, %v634
  %v649 = vpack.c.b16 %v635, %v635
  %v663 = vsel %vm119, %v581, 0
  %v666 = vsel %vm119, %v582, 0
  %v669 = vand.u32 %v648, %v129
  %v672 = vand.u32 %v649, %v129
  %674 = vmatpush.bf16.msra.mxu0 0
  %675 = vmatpush.bf16.msra.mxu0 %v669
  %676 = vmatpush.bf16.msra.mxu0 %v646
  %677 = vmatpush.bf16.msra.mxu0 %v644
  %678 = vmatpush.bf16.msra.mxu0 %v642
  %679 = vmatpush.bf16.msra.mxu0 %v640
  %680 = vmatpush.bf16.msra.mxu0 %v638
  %681 = vmatpush.bf16.msra.mxu0 %v636
  %682 = vmatmul.bf16.gmra.mxu0 %v663
  %v683 = vpop.f32.mrf.mxu0
  %v684 = vadd.f32 0.0, %v683
  %v685 = vpop.f32.mrf.mxu0
  %v686 = vadd.f32 0.0, %v685
  %687 = vmatmul.bf16.gmra.mxu0 %v666
  %v688 = vpop.f32.mrf.mxu0
  %v689 = vadd.f32 0.0, %v688
  %v690 = vpop.f32.mrf.mxu0
  %v691 = vadd.f32 0.0, %v690
  %692 = vdwg.mxu0
  %693 = vmatpush.bf16.msra.mxu0 0
  %694 = vmatpush.bf16.msra.mxu0 %v672
  %695 = vmatpush.bf16.msra.mxu0 %v647
  %696 = vmatpush.bf16.msra.mxu0 %v645
  %697 = vmatpush.bf16.msra.mxu0 %v643
  %698 = vmatpush.bf16.msra.mxu0 %v641
  %699 = vmatpush.bf16.msra.mxu0 %v639
  %700 = vmatpush.bf16.msra.mxu0 %v637
  %701 = vmatmul.bf16.gmra.mxu0 %v663
  %v702 = vpop.f32.mrf.mxu0
  %v703 = vadd.f32 0.0, %v702
  %v704 = vpop.f32.mrf.mxu0
  %v705 = vadd.f32 0.0, %v704
  %706 = vmatmul.bf16.gmra.mxu0 %v666
  %v707 = vpop.f32.mrf.mxu0
  %v708 = vadd.f32 0.0, %v707
  %v709 = vpop.f32.mrf.mxu0
  %v710 = vadd.f32 0.0, %v709
  %711 = vdwg.mxu0
  %v712 = vadd.f32 %v568, %v684
  %v713 = vadd.f32 %v569, %v703
  %v714 = vadd.f32 %v570, %v686
  %v715 = vadd.f32 %v571, %v705
  %v716 = vadd.f32 %v572, %v689
  %v717 = vadd.f32 %v573, %v708
  %v718 = vadd.f32 %v574, %v691
  %v719 = vadd.f32 %v575, %v710
  %v720 = vld [vmem:[%s576 + $0x1] sm:$0xff]
  %v721 = vld [vmem:[%s576 + $0x9] sm:$0xff]
  %v722 = vld [vmem:[%s576 + $0x11] sm:$0xff]
  %v723 = vld [vmem:[%s576 + $0x19] sm:$0xff]
  %v724 = vpack.c.bf16 %v721, %v720
  %v725 = vpack.c.bf16 %v723, %v722
  %s726 = scalar_lea.vmem %s1, 520
  %v727 = vld [vmem:[%s726] sm:$0xff]
  %v728 = vld [vmem:[%s726 + $0x8] sm:$0xff]
  %v729 = vld [vmem:[%s726 + $0x10] sm:$0xff]
  %v730 = vld [vmem:[%s726 + $0x18] sm:$0xff]
  %v731 = vld [vmem:[%s726 + $0x20] sm:$0xff]
  %v732 = vld [vmem:[%s726 + $0x28] sm:$0xff]
  %v733 = vld [vmem:[%s726 + $0x30] sm:$0xff]
  %v734 = vld [vmem:[%s726 + $0x38] sm:$0xff]
  %v735 = vld [vmem:[%s726 + $0x40] sm:$0xff]
  %v736 = vld [vmem:[%s726 + $0x48] sm:$0xff]
  %v737 = vld [vmem:[%s726 + $0x50] sm:$0xff]
  %v738 = vld [vmem:[%s726 + $0x58] sm:$0xff]
  %v739 = vld [vmem:[%s726 + $0x60] sm:$0x33]
  %v753 = vunpack.c.l.b16 %v727
  %v754 = vunpack.c.h.b16 %v727
  %v755 = vunpack.c.l.b16 %v728
  %v756 = vunpack.c.h.b16 %v728
  %v757 = vunpack.c.l.b16 %v729
  %v758 = vunpack.c.h.b16 %v729
  %v759 = vunpack.c.l.b16 %v730
  %v760 = vunpack.c.h.b16 %v730
  %v761 = vunpack.c.l.b16 %v731
  %v762 = vunpack.c.h.b16 %v731
  %v763 = vunpack.c.l.b16 %v732
  %v764 = vunpack.c.h.b16 %v732
  %v765 = vunpack.c.l.b16 %v733
  %v766 = vunpack.c.h.b16 %v733
  %v767 = vunpack.c.l.b16 %v734
  %v768 = vunpack.c.h.b16 %v734
  %v769 = vunpack.c.l.b16 %v735
  %v770 = vunpack.c.h.b16 %v735
  %v771 = vunpack.c.l.b16 %v736
  %v772 = vunpack.c.h.b16 %v736
  %v773 = vunpack.c.l.b16 %v737
  %v774 = vunpack.c.h.b16 %v737
  %v775 = vunpack.c.l.b16 %v738
  %v776 = vunpack.c.h.b16 %v738
  %v777 = vunpack.c.l.b16 %v739
  %v778 = vunpack.c.h.b16 %v739
  %v779 = vpack.c.b16 %v755, %v753
  %v780 = vpack.c.b16 %v756, %v754
  %v781 = vpack.c.b16 %v759, %v757
  %v782 = vpack.c.b16 %v760, %v758
  %v783 = vpack.c.b16 %v763, %v761
  %v784 = vpack.c.b16 %v764, %v762
  %v785 = vpack.c.b16 %v767, %v765
  %v786 = vpack.c.b16 %v768, %v766
  %v787 = vpack.c.b16 %v771, %v769
  %v788 = vpack.c.b16 %v772, %v770
  %v789 = vpack.c.b16 %v775, %v773
  %v790 = vpack.c.b16 %v776, %v774
  %v791 = vpack.c.b16 %v777, %v777
  %v792 = vpack.c.b16 %v778, %v778
  %v806 = vsel %vm119, %v724, 0
  %v809 = vsel %vm119, %v725, 0
  %v812 = vand.u32 %v791, %v129
  %v815 = vand.u32 %v792, %v129
  %817 = vmatpush.bf16.msra.mxu0 0
  %818 = vmatpush.bf16.msra.mxu0 %v812
  %819 = vmatpush.bf16.msra.mxu0 %v789
  %820 = vmatpush.bf16.msra.mxu0 %v787
  %821 = vmatpush.bf16.msra.mxu0 %v785
  %822 = vmatpush.bf16.msra.mxu0 %v783
  %823 = vmatpush.bf16.msra.mxu0 %v781
  %824 = vmatpush.bf16.msra.mxu0 %v779
  %825 = vmatmul.bf16.gmra.mxu0 %v806
  %v826 = vpop.f32.mrf.mxu0
  %v827 = vadd.f32 0.0, %v826
  %v828 = vpop.f32.mrf.mxu0
  %v829 = vadd.f32 0.0, %v828
  %830 = vmatmul.bf16.gmra.mxu0 %v809
  %v831 = vpop.f32.mrf.mxu0
  %v832 = vadd.f32 0.0, %v831
  %v833 = vpop.f32.mrf.mxu0
  %v834 = vadd.f32 0.0, %v833
  %835 = vdwg.mxu0
  %836 = vmatpush.bf16.msra.mxu0 0
  %837 = vmatpush.bf16.msra.mxu0 %v815
  %838 = vmatpush.bf16.msra.mxu0 %v790
  %839 = vmatpush.bf16.msra.mxu0 %v788
  %840 = vmatpush.bf16.msra.mxu0 %v786
  %841 = vmatpush.bf16.msra.mxu0 %v784
  %842 = vmatpush.bf16.msra.mxu0 %v782
  %843 = vmatpush.bf16.msra.mxu0 %v780
  %844 = vmatmul.bf16.gmra.mxu0 %v806
  %v845 = vpop.f32.mrf.mxu0
  %v846 = vadd.f32 0.0, %v845
  %v847 = vpop.f32.mrf.mxu0
  %v848 = vadd.f32 0.0, %v847
  %849 = vmatmul.bf16.gmra.mxu0 %v809
  %v850 = vpop.f32.mrf.mxu0
  %v851 = vadd.f32 0.0, %v850
  %v852 = vpop.f32.mrf.mxu0
  %v853 = vadd.f32 0.0, %v852
  %854 = vdwg.mxu0
  %v855 = vadd.f32 %v712, %v827
  %v856 = vadd.f32 %v713, %v846
  %v857 = vadd.f32 %v714, %v829
  %v858 = vadd.f32 %v715, %v848
  %v859 = vadd.f32 %v716, %v832
  %v860 = vadd.f32 %v717, %v851
  %v861 = vadd.f32 %v718, %v834
  %v862 = vadd.f32 %v719, %v853
  %s863 = scalar_lea.vmem %s0, 240
  %v864 = vld [vmem:[%s863] sm:$0xff]
  %v865 = vld [vmem:[%s863 + $0x8] sm:$0xff]
  %v866 = vld [vmem:[%s863 + $0x10] sm:$0xff]
  %v867 = vld [vmem:[%s863 + $0x18] sm:$0xff]
  %v868 = vpack.c.bf16 %v865, %v864
  %v869 = vpack.c.bf16 %v867, %v866
  %s870 = scalar_lea.vmem %s1, 624
  %v871 = vld [vmem:[%s870] sm:$0xff]
  %v872 = vld [vmem:[%s870 + $0x8] sm:$0xff]
  %v873 = vld [vmem:[%s870 + $0x10] sm:$0xff]
  %v874 = vld [vmem:[%s870 + $0x18] sm:$0xff]
  %v875 = vld [vmem:[%s870 + $0x20] sm:$0xff]
  %v876 = vld [vmem:[%s870 + $0x28] sm:$0xff]
  %v877 = vld [vmem:[%s870 + $0x30] sm:$0xff]
  %v878 = vld [vmem:[%s870 + $0x38] sm:$0xff]
  %v879 = vld [vmem:[%s870 + $0x40] sm:$0xff]
  %v880 = vld [vmem:[%s870 + $0x48] sm:$0xff]
  %v881 = vld [vmem:[%s870 + $0x50] sm:$0xff]
  %v882 = vld [vmem:[%s870 + $0x58] sm:$0xff]
  %v883 = vld [vmem:[%s870 + $0x60] sm:$0x33]
  %v897 = vunpack.c.l.b16 %v871
  %v898 = vunpack.c.h.b16 %v871
  %v899 = vunpack.c.l.b16 %v872
  %v900 = vunpack.c.h.b16 %v872
  %v901 = vunpack.c.l.b16 %v873
  %v902 = vunpack.c.h.b16 %v873
  %v903 = vunpack.c.l.b16 %v874
  %v904 = vunpack.c.h.b16 %v874
  %v905 = vunpack.c.l.b16 %v875
  %v906 = vunpack.c.h.b16 %v875
  %v907 = vunpack.c.l.b16 %v876
  %v908 = vunpack.c.h.b16 %v876
  %v909 = vunpack.c.l.b16 %v877
  %v910 = vunpack.c.h.b16 %v877
  %v911 = vunpack.c.l.b16 %v878
  %v912 = vunpack.c.h.b16 %v878
  %v913 = vunpack.c.l.b16 %v879
  %v914 = vunpack.c.h.b16 %v879
  %v915 = vunpack.c.l.b16 %v880
  %v916 = vunpack.c.h.b16 %v880
  %v917 = vunpack.c.l.b16 %v881
  %v918 = vunpack.c.h.b16 %v881
  %v919 = vunpack.c.l.b16 %v882
  %v920 = vunpack.c.h.b16 %v882
  %v921 = vunpack.c.l.b16 %v883
  %v922 = vunpack.c.h.b16 %v883
  %v923 = vpack.c.b16 %v899, %v897
  %v924 = vpack.c.b16 %v900, %v898
  %v925 = vpack.c.b16 %v903, %v901
  %v926 = vpack.c.b16 %v904, %v902
  %v927 = vpack.c.b16 %v907, %v905
  %v928 = vpack.c.b16 %v908, %v906
  %v929 = vpack.c.b16 %v911, %v909
  %v930 = vpack.c.b16 %v912, %v910
  %v931 = vpack.c.b16 %v915, %v913
  %v932 = vpack.c.b16 %v916, %v914
  %v933 = vpack.c.b16 %v919, %v917
  %v934 = vpack.c.b16 %v920, %v918
  %v935 = vpack.c.b16 %v921, %v921
  %v936 = vpack.c.b16 %v922, %v922
  %v950 = vsel %vm119, %v868, 0
  %v953 = vsel %vm119, %v869, 0
  %v956 = vand.u32 %v935, %v129
  %v959 = vand.u32 %v936, %v129
  %961 = vmatpush.bf16.msra.mxu0 0
  %962 = vmatpush.bf16.msra.mxu0 %v956
  %963 = vmatpush.bf16.msra.mxu0 %v933
  %964 = vmatpush.bf16.msra.mxu0 %v931
  %965 = vmatpush.bf16.msra.mxu0 %v929
  %966 = vmatpush.bf16.msra.mxu0 %v927
  %967 = vmatpush.bf16.msra.mxu0 %v925
  %968 = vmatpush.bf16.msra.mxu0 %v923
  %969 = vmatmul.bf16.gmra.mxu0 %v950
  %v970 = vpop.f32.mrf.mxu0
  %v971 = vadd.f32 0.0, %v970
  %v972 = vpop.f32.mrf.mxu0
  %v973 = vadd.f32 0.0, %v972
  %974 = vmatmul.bf16.gmra.mxu0 %v953
  %v975 = vpop.f32.mrf.mxu0
  %v976 = vadd.f32 0.0, %v975
  %v977 = vpop.f32.mrf.mxu0
  %v978 = vadd.f32 0.0, %v977
  %979 = vdwg.mxu0
  %980 = vmatpush.bf16.msra.mxu0 0
  %981 = vmatpush.bf16.msra.mxu0 %v959
  %982 = vmatpush.bf16.msra.mxu0 %v934
  %983 = vmatpush.bf16.msra.mxu0 %v932
  %984 = vmatpush.bf16.msra.mxu0 %v930
  %985 = vmatpush.bf16.msra.mxu0 %v928
  %986 = vmatpush.bf16.msra.mxu0 %v926
  %987 = vmatpush.bf16.msra.mxu0 %v924
  %988 = vmatmul.bf16.gmra.mxu0 %v950
  %v989 = vpop.f32.mrf.mxu0
  %v990 = vadd.f32 0.0, %v989
  %v991 = vpop.f32.mrf.mxu0
  %v992 = vadd.f32 0.0, %v991
  %993 = vmatmul.bf16.gmra.mxu0 %v953
  %v994 = vpop.f32.mrf.mxu0
  %v995 = vadd.f32 0.0, %v994
  %v996 = vpop.f32.mrf.mxu0
  %v997 = vadd.f32 0.0, %v996
  %998 = vdwg.mxu0
  %v999 = vadd.f32 %v855, %v971
  %v1000 = vadd.f32 %v856, %v990
  %v1001 = vadd.f32 %v857, %v973
  %v1002 = vadd.f32 %v858, %v992
  %v1003 = vadd.f32 %v859, %v976
  %v1004 = vadd.f32 %v860, %v995
  %v1005 = vadd.f32 %v861, %v978
  %v1006 = vadd.f32 %v862, %v997
  %v1007 = vld [vmem:[%s863 + $0x1] sm:$0xff]
  %v1008 = vld [vmem:[%s863 + $0x9] sm:$0xff]
  %v1009 = vld [vmem:[%s863 + $0x11] sm:$0xff]
  %v1010 = vld [vmem:[%s863 + $0x19] sm:$0xff]
  %v1011 = vpack.c.bf16 %v1008, %v1007
  %v1012 = vpack.c.bf16 %v1010, %v1009
  %s1013 = scalar_lea.vmem %s1, 728
  %v1014 = vld [vmem:[%s1013] sm:$0xff]
  %v1015 = vld [vmem:[%s1013 + $0x8] sm:$0xff]
  %v1016 = vld [vmem:[%s1013 + $0x10] sm:$0xff]
  %v1017 = vld [vmem:[%s1013 + $0x18] sm:$0xff]
  %v1018 = vld [vmem:[%s1013 + $0x20] sm:$0xff]
  %v1019 = vld [vmem:[%s1013 + $0x28] sm:$0xff]
  %v1020 = vld [vmem:[%s1013 + $0x30] sm:$0xff]
  %v1021 = vld [vmem:[%s1013 + $0x38] sm:$0xff]
  %v1022 = vld [vmem:[%s1013 + $0x40] sm:$0xff]
  %v1023 = vld [vmem:[%s1013 + $0x48] sm:$0xff]
  %v1024 = vld [vmem:[%s1013 + $0x50] sm:$0xff]
  %v1025 = vld [vmem:[%s1013 + $0x58] sm:$0xff]
  %v1026 = vld [vmem:[%s1013 + $0x60] sm:$0x33]
  %v1040 = vunpack.c.l.b16 %v1014
  %v1041 = vunpack.c.h.b16 %v1014
  %v1042 = vunpack.c.l.b16 %v1015
  %v1043 = vunpack.c.h.b16 %v1015
  %v1044 = vunpack.c.l.b16 %v1016
  %v1045 = vunpack.c.h.b16 %v1016
  %v1046 = vunpack.c.l.b16 %v1017
  %v1047 = vunpack.c.h.b16 %v1017
  %v1048 = vunpack.c.l.b16 %v1018
  %v1049 = vunpack.c.h.b16 %v1018
  %v1050 = vunpack.c.l.b16 %v1019
  %v1051 = vunpack.c.h.b16 %v1019
  %v1052 = vunpack.c.l.b16 %v1020
  %v1053 = vunpack.c.h.b16 %v1020
  %v1054 = vunpack.c.l.b16 %v1021
  %v1055 = vunpack.c.h.b16 %v1021
  %v1056 = vunpack.c.l.b16 %v1022
  %v1057 = vunpack.c.h.b16 %v1022
  %v1058 = vunpack.c.l.b16 %v1023
  %v1059 = vunpack.c.h.b16 %v1023
  %v1060 = vunpack.c.l.b16 %v1024
  %v1061 = vunpack.c.h.b16 %v1024
  %v1062 = vunpack.c.l.b16 %v1025
  %v1063 = vunpack.c.h.b16 %v1025
  %v1064 = vunpack.c.l.b16 %v1026
  %v1065 = vunpack.c.h.b16 %v1026
  %v1066 = vpack.c.b16 %v1042, %v1040
  %v1067 = vpack.c.b16 %v1043, %v1041
  %v1068 = vpack.c.b16 %v1046, %v1044
  %v1069 = vpack.c.b16 %v1047, %v1045
  %v1070 = vpack.c.b16 %v1050, %v1048
  %v1071 = vpack.c.b16 %v1051, %v1049
  %v1072 = vpack.c.b16 %v1054, %v1052
  %v1073 = vpack.c.b16 %v1055, %v1053
  %v1074 = vpack.c.b16 %v1058, %v1056
  %v1075 = vpack.c.b16 %v1059, %v1057
  %v1076 = vpack.c.b16 %v1062, %v1060
  %v1077 = vpack.c.b16 %v1063, %v1061
  %v1078 = vpack.c.b16 %v1064, %v1064
  %v1079 = vpack.c.b16 %v1065, %v1065
  %v1093 = vsel %vm119, %v1011, 0
  %v1096 = vsel %vm119, %v1012, 0
  %v1099 = vand.u32 %v1078, %v129
  %v1102 = vand.u32 %v1079, %v129
  %1104 = vmatpush.bf16.msra.mxu0 0
  %1105 = vmatpush.bf16.msra.mxu0 %v1099
  %1106 = vmatpush.bf16.msra.mxu0 %v1076
  %1107 = vmatpush.bf16.msra.mxu0 %v1074
  %1108 = vmatpush.bf16.msra.mxu0 %v1072
  %1109 = vmatpush.bf16.msra.mxu0 %v1070
  %1110 = vmatpush.bf16.msra.mxu0 %v1068
  %1111 = vmatpush.bf16.msra.mxu0 %v1066
  %1112 = vmatmul.bf16.gmra.mxu0 %v1093
  %v1113 = vpop.f32.mrf.mxu0
  %v1114 = vadd.f32 0.0, %v1113
  %v1115 = vpop.f32.mrf.mxu0
  %v1116 = vadd.f32 0.0, %v1115
  %1117 = vmatmul.bf16.gmra.mxu0 %v1096
  %v1118 = vpop.f32.mrf.mxu0
  %v1119 = vadd.f32 0.0, %v1118
  %v1120 = vpop.f32.mrf.mxu0
  %v1121 = vadd.f32 0.0, %v1120
  %1122 = vdwg.mxu0
  %1123 = vmatpush.bf16.msra.mxu0 0
  %1124 = vmatpush.bf16.msra.mxu0 %v1102
  %1125 = vmatpush.bf16.msra.mxu0 %v1077
  %1126 = vmatpush.bf16.msra.mxu0 %v1075
  %1127 = vmatpush.bf16.msra.mxu0 %v1073
  %1128 = vmatpush.bf16.msra.mxu0 %v1071
  %1129 = vmatpush.bf16.msra.mxu0 %v1069
  %1130 = vmatpush.bf16.msra.mxu0 %v1067
  %1131 = vmatmul.bf16.gmra.mxu0 %v1093
  %v1132 = vpop.f32.mrf.mxu0
  %v1133 = vadd.f32 0.0, %v1132
  %v1134 = vpop.f32.mrf.mxu0
  %v1135 = vadd.f32 0.0, %v1134
  %1136 = vmatmul.bf16.gmra.mxu0 %v1096
  %v1137 = vpop.f32.mrf.mxu0
  %v1138 = vadd.f32 0.0, %v1137
  %v1139 = vpop.f32.mrf.mxu0
  %v1140 = vadd.f32 0.0, %v1139
  %1141 = vdwg.mxu0
  %v1142 = vadd.f32 %v999, %v1114
  %v1143 = vadd.f32 %v1000, %v1133
  %v1144 = vadd.f32 %v1001, %v1116
  %v1145 = vadd.f32 %v1002, %v1135
  %v1146 = vadd.f32 %v1003, %v1119
  %v1147 = vadd.f32 %v1004, %v1138
  %v1148 = vadd.f32 %v1005, %v1121
  %v1149 = vadd.f32 %v1006, %v1140
  %v1150 = vld [vmem:[%s2] sm:$0x3]
  %v1152 = vperm.slane %v1150, 0
  %v1153 = vperm.slane %v1150, 1
  %v1156 = vadd.f32 %v1142, %v1152
  %v1157 = vadd.f32 %v1143, %v1153
  %v1158 = vadd.f32 %v1144, %v1152
  %v1159 = vadd.f32 %v1145, %v1153
  %v1160 = vadd.f32 %v1146, %v1152
  %v1161 = vadd.f32 %v1147, %v1153
  %v1162 = vadd.f32 %v1148, %v1152
  %v1163 = vadd.f32 %v1149, %v1153
  %s1164 = scalar_lea.vmem %s0, 40
  %v1165 = vld [vmem:[%s1164] sm:$0xff]
  %v1166 = vld [vmem:[%s1164 + $0x8] sm:$0xff]
  %v1167 = vld [vmem:[%s1164 + $0x10] sm:$0xff]
  %v1168 = vld [vmem:[%s1164 + $0x18] sm:$0xff]
  %v1169 = vpack.c.bf16 %v1166, %v1165
  %v1170 = vpack.c.bf16 %v1168, %v1167
  %v1171 = vld [vmem:[%s1164 + $0x1] sm:$0xff]
  %v1172 = vld [vmem:[%s1164 + $0x9] sm:$0xff]
  %v1173 = vld [vmem:[%s1164 + $0x11] sm:$0xff]
  %v1174 = vld [vmem:[%s1164 + $0x19] sm:$0xff]
  %v1175 = vpack.c.bf16 %v1172, %v1171
  %v1176 = vpack.c.bf16 %v1174, %v1173
  %v1178 = vsel %vm119, %v1175, 0
  %v1181 = vsel %vm119, %v1176, 0
  %1183 = vmatpush.bf16.msra.mxu0 0
  %1184 = vmatpush.bf16.msra.mxu0 %v131
  %1185 = vmatpush.bf16.msra.mxu0 %v103
  %1186 = vmatpush.bf16.msra.mxu0 %v101
  %1187 = vmatpush.bf16.msra.mxu0 %v99
  %1188 = vmatpush.bf16.msra.mxu0 %v97
  %1189 = vmatpush.bf16.msra.mxu0 %v95
  %1190 = vmatpush.bf16.msra.mxu0 %v93
  %1191 = vmatmul.bf16.gmra.mxu0 %v1178
  %v1192 = vpop.f32.mrf.mxu0
  %v1193 = vadd.f32 0.0, %v1192
  %v1194 = vpop.f32.mrf.mxu0
  %v1195 = vadd.f32 0.0, %v1194
  %1196 = vmatmul.bf16.gmra.mxu0 %v1181
  %v1197 = vpop.f32.mrf.mxu0
  %v1198 = vadd.f32 0.0, %v1197
  %v1199 = vpop.f32.mrf.mxu0
  %v1200 = vadd.f32 0.0, %v1199
  %1201 = vdwg.mxu0
  %1202 = vmatpush.bf16.msra.mxu0 0
  %1203 = vmatpush.bf16.msra.mxu0 %v134
  %1204 = vmatpush.bf16.msra.mxu0 %v104
  %1205 = vmatpush.bf16.msra.mxu0 %v102
  %1206 = vmatpush.bf16.msra.mxu0 %v100
  %1207 = vmatpush.bf16.msra.mxu0 %v98
  %1208 = vmatpush.bf16.msra.mxu0 %v96
  %1209 = vmatpush.bf16.msra.mxu0 %v94
  %1210 = vmatmul.bf16.gmra.mxu0 %v1178
  %v1211 = vpop.f32.mrf.mxu0
  %v1212 = vadd.f32 0.0, %v1211
  %v1213 = vpop.f32.mrf.mxu0
  %v1214 = vadd.f32 0.0, %v1213
  %1215 = vmatmul.bf16.gmra.mxu0 %v1181
  %v1216 = vpop.f32.mrf.mxu0
  %v1217 = vadd.f32 0.0, %v1216
  %v1218 = vpop.f32.mrf.mxu0
  %v1219 = vadd.f32 0.0, %v1218
  %1220 = vdwg.mxu0
  %v1222 = vsel %vm119, %v1169, 0
  %v1225 = vsel %vm119, %v1170, 0
  %1227 = vmatpush.bf16.msra.mxu0 0
  %1228 = vmatpush.bf16.msra.mxu0 %v246
  %1229 = vmatpush.bf16.msra.mxu0 %v223
  %1230 = vmatpush.bf16.msra.mxu0 %v221
  %1231 = vmatpush.bf16.msra.mxu0 %v219
  %1232 = vmatpush.bf16.msra.mxu0 %v217
  %1233 = vmatpush.bf16.msra.mxu0 %v215
  %1234 = vmatpush.bf16.msra.mxu0 %v213
  %1235 = vmatmul.bf16.gmra.mxu0 %v1222
  %v1236 = vpop.f32.mrf.mxu0
  %v1237 = vadd.f32 %v1193, %v1236
  %v1238 = vpop.f32.mrf.mxu0
  %v1239 = vadd.f32 %v1195, %v1238
  %1240 = vmatmul.bf16.gmra.mxu0 %v1225
  %v1241 = vpop.f32.mrf.mxu0
  %v1242 = vadd.f32 %v1198, %v1241
  %v1243 = vpop.f32.mrf.mxu0
  %v1244 = vadd.f32 %v1200, %v1243
  %1245 = vdwg.mxu0
  %1246 = vmatpush.bf16.msra.mxu0 0
  %1247 = vmatpush.bf16.msra.mxu0 %v249
  %1248 = vmatpush.bf16.msra.mxu0 %v224
  %1249 = vmatpush.bf16.msra.mxu0 %v222
  %1250 = vmatpush.bf16.msra.mxu0 %v220
  %1251 = vmatpush.bf16.msra.mxu0 %v218
  %1252 = vmatpush.bf16.msra.mxu0 %v216
  %1253 = vmatpush.bf16.msra.mxu0 %v214
  %1254 = vmatmul.bf16.gmra.mxu0 %v1222
  %v1255 = vpop.f32.mrf.mxu0
  %v1256 = vadd.f32 %v1212, %v1255
  %v1257 = vpop.f32.mrf.mxu0
  %v1258 = vadd.f32 %v1214, %v1257
  %1259 = vmatmul.bf16.gmra.mxu0 %v1225
  %v1260 = vpop.f32.mrf.mxu0
  %v1261 = vadd.f32 %v1217, %v1260
  %v1262 = vpop.f32.mrf.mxu0
  %v1263 = vadd.f32 %v1219, %v1262
  %1264 = vdwg.mxu0
  %s1265 = scalar_lea.vmem %s0, 120
  %v1266 = vld [vmem:[%s1265] sm:$0xff]
  %v1267 = vld [vmem:[%s1265 + $0x8] sm:$0xff]
  %v1268 = vld [vmem:[%s1265 + $0x10] sm:$0xff]
  %v1269 = vld [vmem:[%s1265 + $0x18] sm:$0xff]
  %v1270 = vpack.c.bf16 %v1267, %v1266
  %v1271 = vpack.c.bf16 %v1269, %v1268
  %v1273 = vsel %vm119, %v1270, 0
  %v1276 = vsel %vm119, %v1271, 0
  %1278 = vmatpush.bf16.msra.mxu0 0
  %1279 = vmatpush.bf16.msra.mxu0 %v382
  %1280 = vmatpush.bf16.msra.mxu0 %v359
  %1281 = vmatpush.bf16.msra.mxu0 %v357
  %1282 = vmatpush.bf16.msra.mxu0 %v355
  %1283 = vmatpush.bf16.msra.mxu0 %v353
  %1284 = vmatpush.bf16.msra.mxu0 %v351
  %1285 = vmatpush.bf16.msra.mxu0 %v349
  %1286 = vmatmul.bf16.gmra.mxu0 %v1273
  %v1287 = vpop.f32.mrf.mxu0
  %v1288 = vadd.f32 0.0, %v1287
  %v1289 = vpop.f32.mrf.mxu0
  %v1290 = vadd.f32 0.0, %v1289
  %1291 = vmatmul.bf16.gmra.mxu0 %v1276
  %v1292 = vpop.f32.mrf.mxu0
  %v1293 = vadd.f32 0.0, %v1292
  %v1294 = vpop.f32.mrf.mxu0
  %v1295 = vadd.f32 0.0, %v1294
  %1296 = vdwg.mxu0
  %1297 = vmatpush.bf16.msra.mxu0 0
  %1298 = vmatpush.bf16.msra.mxu0 %v385
  %1299 = vmatpush.bf16.msra.mxu0 %v360
  %1300 = vmatpush.bf16.msra.mxu0 %v358
  %1301 = vmatpush.bf16.msra.mxu0 %v356
  %1302 = vmatpush.bf16.msra.mxu0 %v354
  %1303 = vmatpush.bf16.msra.mxu0 %v352
  %1304 = vmatpush.bf16.msra.mxu0 %v350
  %1305 = vmatmul.bf16.gmra.mxu0 %v1273
  %v1306 = vpop.f32.mrf.mxu0
  %v1307 = vadd.f32 0.0, %v1306
  %v1308 = vpop.f32.mrf.mxu0
  %v1309 = vadd.f32 0.0, %v1308
  %1310 = vmatmul.bf16.gmra.mxu0 %v1276
  %v1311 = vpop.f32.mrf.mxu0
  %v1312 = vadd.f32 0.0, %v1311
  %v1313 = vpop.f32.mrf.mxu0
  %v1314 = vadd.f32 0.0, %v1313
  %1315 = vdwg.mxu0
  %v1316 = vadd.f32 %v1237, %v1288
  %v1317 = vadd.f32 %v1256, %v1307
  %v1318 = vadd.f32 %v1239, %v1290
  %v1319 = vadd.f32 %v1258, %v1309
  %v1320 = vadd.f32 %v1242, %v1293
  %v1321 = vadd.f32 %v1261, %v1312
  %v1322 = vadd.f32 %v1244, %v1295
  %v1323 = vadd.f32 %v1263, %v1314
  %v1324 = vld [vmem:[%s1265 + $0x1] sm:$0xff]
  %v1325 = vld [vmem:[%s1265 + $0x9] sm:$0xff]
  %v1326 = vld [vmem:[%s1265 + $0x11] sm:$0xff]
  %v1327 = vld [vmem:[%s1265 + $0x19] sm:$0xff]
  %v1328 = vpack.c.bf16 %v1325, %v1324
  %v1329 = vpack.c.bf16 %v1327, %v1326
  %v1331 = vsel %vm119, %v1328, 0
  %v1334 = vsel %vm119, %v1329, 0
  %1336 = vmatpush.bf16.msra.mxu0 0
  %1337 = vmatpush.bf16.msra.mxu0 %v525
  %1338 = vmatpush.bf16.msra.mxu0 %v502
  %1339 = vmatpush.bf16.msra.mxu0 %v500
  %1340 = vmatpush.bf16.msra.mxu0 %v498
  %1341 = vmatpush.bf16.msra.mxu0 %v496
  %1342 = vmatpush.bf16.msra.mxu0 %v494
  %1343 = vmatpush.bf16.msra.mxu0 %v492
  %1344 = vmatmul.bf16.gmra.mxu0 %v1331
  %v1345 = vpop.f32.mrf.mxu0
  %v1346 = vadd.f32 0.0, %v1345
  %v1347 = vpop.f32.mrf.mxu0
  %v1348 = vadd.f32 0.0, %v1347
  %1349 = vmatmul.bf16.gmra.mxu0 %v1334
  %v1350 = vpop.f32.mrf.mxu0
  %v1351 = vadd.f32 0.0, %v1350
  %v1352 = vpop.f32.mrf.mxu0
  %v1353 = vadd.f32 0.0, %v1352
  %1354 = vdwg.mxu0
  %1355 = vmatpush.bf16.msra.mxu0 0
  %1356 = vmatpush.bf16.msra.mxu0 %v528
  %1357 = vmatpush.bf16.msra.mxu0 %v503
  %1358 = vmatpush.bf16.msra.mxu0 %v501
  %1359 = vmatpush.bf16.msra.mxu0 %v499
  %1360 = vmatpush.bf16.msra.mxu0 %v497
  %1361 = vmatpush.bf16.msra.mxu0 %v495
  %1362 = vmatpush.bf16.msra.mxu0 %v493
  %1363 = vmatmul.bf16.gmra.mxu0 %v1331
  %v1364 = vpop.f32.mrf.mxu0
  %v1365 = vadd.f32 0.0, %v1364
  %v1366 = vpop.f32.mrf.mxu0
  %v1367 = vadd.f32 0.0, %v1366
  %1368 = vmatmul.bf16.gmra.mxu0 %v1334
  %v1369 = vpop.f32.mrf.mxu0
  %v1370 = vadd.f32 0.0, %v1369
  %v1371 = vpop.f32.mrf.mxu0
  %v1372 = vadd.f32 0.0, %v1371
  %1373 = vdwg.mxu0
  %v1374 = vadd.f32 %v1316, %v1346
  %v1375 = vadd.f32 %v1317, %v1365
  %v1376 = vadd.f32 %v1318, %v1348
  %v1377 = vadd.f32 %v1319, %v1367
  %v1378 = vadd.f32 %v1320, %v1351
  %v1379 = vadd.f32 %v1321, %v1370
  %v1380 = vadd.f32 %v1322, %v1353
  %v1381 = vadd.f32 %v1323, %v1372
  %s1382 = scalar_lea.vmem %s0, 200
  %v1383 = vld [vmem:[%s1382] sm:$0xff]
  %v1384 = vld [vmem:[%s1382 + $0x8] sm:$0xff]
  %v1385 = vld [vmem:[%s1382 + $0x10] sm:$0xff]
  %v1386 = vld [vmem:[%s1382 + $0x18] sm:$0xff]
  %v1387 = vpack.c.bf16 %v1384, %v1383
  %v1388 = vpack.c.bf16 %v1386, %v1385
  %v1390 = vsel %vm119, %v1387, 0
  %v1393 = vsel %vm119, %v1388, 0
  %1395 = vmatpush.bf16.msra.mxu0 0
  %1396 = vmatpush.bf16.msra.mxu0 %v669
  %1397 = vmatpush.bf16.msra.mxu0 %v646
  %1398 = vmatpush.bf16.msra.mxu0 %v644
  %1399 = vmatpush.bf16.msra.mxu0 %v642
  %1400 = vmatpush.bf16.msra.mxu0 %v640
  %1401 = vmatpush.bf16.msra.mxu0 %v638
  %1402 = vmatpush.bf16.msra.mxu0 %v636
  %1403 = vmatmul.bf16.gmra.mxu0 %v1390
  %v1404 = vpop.f32.mrf.mxu0
  %v1405 = vadd.f32 0.0, %v1404
  %v1406 = vpop.f32.mrf.mxu0
  %v1407 = vadd.f32 0.0, %v1406
  %1408 = vmatmul.bf16.gmra.mxu0 %v1393
  %v1409 = vpop.f32.mrf.mxu0
  %v1410 = vadd.f32 0.0, %v1409
  %v1411 = vpop.f32.mrf.mxu0
  %v1412 = vadd.f32 0.0, %v1411
  %1413 = vdwg.mxu0
  %1414 = vmatpush.bf16.msra.mxu0 0
  %1415 = vmatpush.bf16.msra.mxu0 %v672
  %1416 = vmatpush.bf16.msra.mxu0 %v647
  %1417 = vmatpush.bf16.msra.mxu0 %v645
  %1418 = vmatpush.bf16.msra.mxu0 %v643
  %1419 = vmatpush.bf16.msra.mxu0 %v641
  %1420 = vmatpush.bf16.msra.mxu0 %v639
  %1421 = vmatpush.bf16.msra.mxu0 %v637
  %1422 = vmatmul.bf16.gmra.mxu0 %v1390
  %v1423 = vpop.f32.mrf.mxu0
  %v1424 = vadd.f32 0.0, %v1423
  %v1425 = vpop.f32.mrf.mxu0
  %v1426 = vadd.f32 0.0, %v1425
  %1427 = vmatmul.bf16.gmra.mxu0 %v1393
  %v1428 = vpop.f32.mrf.mxu0
  %v1429 = vadd.f32 0.0, %v1428
  %v1430 = vpop.f32.mrf.mxu0
  %v1431 = vadd.f32 0.0, %v1430
  %1432 = vdwg.mxu0
  %v1433 = vadd.f32 %v1374, %v1405
  %v1434 = vadd.f32 %v1375, %v1424
  %v1435 = vadd.f32 %v1376, %v1407
  %v1436 = vadd.f32 %v1377, %v1426
  %v1437 = vadd.f32 %v1378, %v1410
  %v1438 = vadd.f32 %v1379, %v1429
  %v1439 = vadd.f32 %v1380, %v1412
  %v1440 = vadd.f32 %v1381, %v1431
  %v1441 = vld [vmem:[%s1382 + $0x1] sm:$0xff]
  %v1442 = vld [vmem:[%s1382 + $0x9] sm:$0xff]
  %v1443 = vld [vmem:[%s1382 + $0x11] sm:$0xff]
  %v1444 = vld [vmem:[%s1382 + $0x19] sm:$0xff]
  %v1445 = vpack.c.bf16 %v1442, %v1441
  %v1446 = vpack.c.bf16 %v1444, %v1443
  %v1448 = vsel %vm119, %v1445, 0
  %v1451 = vsel %vm119, %v1446, 0
  %1453 = vmatpush.bf16.msra.mxu0 0
  %1454 = vmatpush.bf16.msra.mxu0 %v812
  %1455 = vmatpush.bf16.msra.mxu0 %v789
  %1456 = vmatpush.bf16.msra.mxu0 %v787
  %1457 = vmatpush.bf16.msra.mxu0 %v785
  %1458 = vmatpush.bf16.msra.mxu0 %v783
  %1459 = vmatpush.bf16.msra.mxu0 %v781
  %1460 = vmatpush.bf16.msra.mxu0 %v779
  %1461 = vmatmul.bf16.gmra.mxu0 %v1448
  %v1462 = vpop.f32.mrf.mxu0
  %v1463 = vadd.f32 0.0, %v1462
  %v1464 = vpop.f32.mrf.mxu0
  %v1465 = vadd.f32 0.0, %v1464
  %1466 = vmatmul.bf16.gmra.mxu0 %v1451
  %v1467 = vpop.f32.mrf.mxu0
  %v1468 = vadd.f32 0.0, %v1467
  %v1469 = vpop.f32.mrf.mxu0
  %v1470 = vadd.f32 0.0, %v1469
  %1471 = vdwg.mxu0
  %1472 = vmatpush.bf16.msra.mxu0 0
  %1473 = vmatpush.bf16.msra.mxu0 %v815
  %1474 = vmatpush.bf16.msra.mxu0 %v790
  %1475 = vmatpush.bf16.msra.mxu0 %v788
  %1476 = vmatpush.bf16.msra.mxu0 %v786
  %1477 = vmatpush.bf16.msra.mxu0 %v784
  %1478 = vmatpush.bf16.msra.mxu0 %v782
  %1479 = vmatpush.bf16.msra.mxu0 %v780
  %1480 = vmatmul.bf16.gmra.mxu0 %v1448
  %v1481 = vpop.f32.mrf.mxu0
  %v1482 = vadd.f32 0.0, %v1481
  %v1483 = vpop.f32.mrf.mxu0
  %v1484 = vadd.f32 0.0, %v1483
  %1485 = vmatmul.bf16.gmra.mxu0 %v1451
  %v1486 = vpop.f32.mrf.mxu0
  %v1487 = vadd.f32 0.0, %v1486
  %v1488 = vpop.f32.mrf.mxu0
  %v1489 = vadd.f32 0.0, %v1488
  %1490 = vdwg.mxu0
  %v1491 = vadd.f32 %v1433, %v1463
  %v1492 = vadd.f32 %v1434, %v1482
  %v1493 = vadd.f32 %v1435, %v1465
  %v1494 = vadd.f32 %v1436, %v1484
  %v1495 = vadd.f32 %v1437, %v1468
  %v1496 = vadd.f32 %v1438, %v1487
  %v1497 = vadd.f32 %v1439, %v1470
  %v1498 = vadd.f32 %v1440, %v1489
  %s1499 = scalar_lea.vmem %s0, 280
  %v1500 = vld [vmem:[%s1499] sm:$0xff]
  %v1501 = vld [vmem:[%s1499 + $0x8] sm:$0xff]
  %v1502 = vld [vmem:[%s1499 + $0x10] sm:$0xff]
  %v1503 = vld [vmem:[%s1499 + $0x18] sm:$0xff]
  %v1504 = vpack.c.bf16 %v1501, %v1500
  %v1505 = vpack.c.bf16 %v1503, %v1502
  %v1507 = vsel %vm119, %v1504, 0
  %v1510 = vsel %vm119, %v1505, 0
  %1512 = vmatpush.bf16.msra.mxu0 0
  %1513 = vmatpush.bf16.msra.mxu0 %v956
  %1514 = vmatpush.bf16.msra.mxu0 %v933
  %1515 = vmatpush.bf16.msra.mxu0 %v931
  %1516 = vmatpush.bf16.msra.mxu0 %v929
  %1517 = vmatpush.bf16.msra.mxu0 %v927
  %1518 = vmatpush.bf16.msra.mxu0 %v925
  %1519 = vmatpush.bf16.msra.mxu0 %v923
  %1520 = vmatmul.bf16.gmra.mxu0 %v1507
  %v1521 = vpop.f32.mrf.mxu0
  %v1522 = vadd.f32 0.0, %v1521
  %v1523 = vpop.f32.mrf.mxu0
  %v1524 = vadd.f32 0.0, %v1523
  %1525 = vmatmul.bf16.gmra.mxu0 %v1510
  %v1526 = vpop.f32.mrf.mxu0
  %v1527 = vadd.f32 0.0, %v1526
  %v1528 = vpop.f32.mrf.mxu0
  %v1529 = vadd.f32 0.0, %v1528
  %1530 = vdwg.mxu0
  %1531 = vmatpush.bf16.msra.mxu0 0
  %1532 = vmatpush.bf16.msra.mxu0 %v959
  %1533 = vmatpush.bf16.msra.mxu0 %v934
  %1534 = vmatpush.bf16.msra.mxu0 %v932
  %1535 = vmatpush.bf16.msra.mxu0 %v930
  %1536 = vmatpush.bf16.msra.mxu0 %v928
  %1537 = vmatpush.bf16.msra.mxu0 %v926
  %1538 = vmatpush.bf16.msra.mxu0 %v924
  %1539 = vmatmul.bf16.gmra.mxu0 %v1507
  %v1540 = vpop.f32.mrf.mxu0
  %v1541 = vadd.f32 0.0, %v1540
  %v1542 = vpop.f32.mrf.mxu0
  %v1543 = vadd.f32 0.0, %v1542
  %1544 = vmatmul.bf16.gmra.mxu0 %v1510
  %v1545 = vpop.f32.mrf.mxu0
  %v1546 = vadd.f32 0.0, %v1545
  %v1547 = vpop.f32.mrf.mxu0
  %v1548 = vadd.f32 0.0, %v1547
  %1549 = vdwg.mxu0
  %v1550 = vadd.f32 %v1491, %v1522
  %v1551 = vadd.f32 %v1492, %v1541
  %v1552 = vadd.f32 %v1493, %v1524
  %v1553 = vadd.f32 %v1494, %v1543
  %v1554 = vadd.f32 %v1495, %v1527
  %v1555 = vadd.f32 %v1496, %v1546
  %v1556 = vadd.f32 %v1497, %v1529
  %v1557 = vadd.f32 %v1498, %v1548
  %v1558 = vld [vmem:[%s1499 + $0x1] sm:$0xff]
  %v1559 = vld [vmem:[%s1499 + $0x9] sm:$0xff]
  %v1560 = vld [vmem:[%s1499 + $0x11] sm:$0xff]
  %v1561 = vld [vmem:[%s1499 + $0x19] sm:$0xff]
  %v1562 = vpack.c.bf16 %v1559, %v1558
  %v1563 = vpack.c.bf16 %v1561, %v1560
  %v1565 = vsel %vm119, %v1562, 0
  %v1568 = vsel %vm119, %v1563, 0
  %1570 = vmatpush.bf16.msra.mxu0 0
  %1571 = vmatpush.bf16.msra.mxu0 %v1099
  %1572 = vmatpush.bf16.msra.mxu0 %v1076
  %1573 = vmatpush.bf16.msra.mxu0 %v1074
  %1574 = vmatpush.bf16.msra.mxu0 %v1072
  %1575 = vmatpush.bf16.msra.mxu0 %v1070
  %1576 = vmatpush.bf16.msra.mxu0 %v1068
  %1577 = vmatpush.bf16.msra.mxu0 %v1066
  %1578 = vmatmul.bf16.gmra.mxu0 %v1565
  %v1579 = vpop.f32.mrf.mxu0
  %v1580 = vadd.f32 0.0, %v1579
  %v1581 = vpop.f32.mrf.mxu0
  %v1582 = vadd.f32 0.0, %v1581
  %1583 = vmatmul.bf16.gmra.mxu0 %v1568
  %v1584 = vpop.f32.mrf.mxu0
  %v1585 = vadd.f32 0.0, %v1584
  %v1586 = vpop.f32.mrf.mxu0
  %v1587 = vadd.f32 0.0, %v1586
  %1588 = vdwg.mxu0
  %1589 = vmatpush.bf16.msra.mxu0 0
  %1590 = vmatpush.bf16.msra.mxu0 %v1102
  %1591 = vmatpush.bf16.msra.mxu0 %v1077
  %1592 = vmatpush.bf16.msra.mxu0 %v1075
  %1593 = vmatpush.bf16.msra.mxu0 %v1073
  %1594 = vmatpush.bf16.msra.mxu0 %v1071
  %1595 = vmatpush.bf16.msra.mxu0 %v1069
  %1596 = vmatpush.bf16.msra.mxu0 %v1067
  %1597 = vmatmul.bf16.gmra.mxu0 %v1565
  %v1598 = vpop.f32.mrf.mxu0
  %v1599 = vadd.f32 0.0, %v1598
  %v1600 = vpop.f32.mrf.mxu0
  %v1601 = vadd.f32 0.0, %v1600
  %1602 = vmatmul.bf16.gmra.mxu0 %v1568
  %v1603 = vpop.f32.mrf.mxu0
  %v1604 = vadd.f32 0.0, %v1603
  %v1605 = vpop.f32.mrf.mxu0
  %v1606 = vadd.f32 0.0, %v1605
  %1607 = vdwg.mxu0
  %v1608 = vadd.f32 %v1550, %v1580
  %v1609 = vadd.f32 %v1551, %v1599
  %v1610 = vadd.f32 %v1552, %v1582
  %v1611 = vadd.f32 %v1553, %v1601
  %v1612 = vadd.f32 %v1554, %v1585
  %v1613 = vadd.f32 %v1555, %v1604
  %v1614 = vadd.f32 %v1556, %v1587
  %v1615 = vadd.f32 %v1557, %v1606
  %v1616 = vadd.f32 %v1608, %v1152
  %v1617 = vadd.f32 %v1609, %v1153
  %v1618 = vadd.f32 %v1610, %v1152
  %v1619 = vadd.f32 %v1611, %v1153
  %v1620 = vadd.f32 %v1612, %v1152
  %v1621 = vadd.f32 %v1613, %v1153
  %v1622 = vadd.f32 %v1614, %v1152
  %v1623 = vadd.f32 %v1615, %v1153
  %vm1624 = vcmp.ge.f32.partialorder %v1156, 0.0
  %vm1625 = vcmp.ge.f32.partialorder %v1157, 0.0
  %vm1626 = vcmp.ge.f32.partialorder %v1158, 0.0
  %vm1627 = vcmp.ge.f32.partialorder %v1159, 0.0
  %vm1628 = vcmp.ge.f32.partialorder %v1160, 0.0
  %vm1629 = vcmp.ge.f32.partialorder %v1161, 0.0
  %vm1630 = vcmp.ge.f32.partialorder %v1162, 0.0
  %vm1631 = vcmp.ge.f32.partialorder %v1163, 0.0
  %v1632 = vmul.f32 %v1156, 0.2
  %v1633 = vmul.f32 %v1157, 0.2
  %v1634 = vmul.f32 %v1158, 0.2
  %v1635 = vmul.f32 %v1159, 0.2
  %v1636 = vmul.f32 %v1160, 0.2
  %v1637 = vmul.f32 %v1161, 0.2
  %v1638 = vmul.f32 %v1162, 0.2
  %v1639 = vmul.f32 %v1163, 0.2
  %v1640 = vsel %vm1624, %v1156, %v1632
  %v1641 = vsel %vm1625, %v1157, %v1633
  %v1642 = vsel %vm1626, %v1158, %v1634
  %v1643 = vsel %vm1627, %v1159, %v1635
  %v1644 = vsel %vm1628, %v1160, %v1636
  %v1645 = vsel %vm1629, %v1161, %v1637
  %v1646 = vsel %vm1630, %v1162, %v1638
  %v1647 = vsel %vm1631, %v1163, %v1639
  %1648 = vst [vmem:[%s3] sm:$0xff] %v1640
  %1649 = vst [vmem:[%s3 + $0x8] sm:$0xff] %v1641
  %1650 = vst [vmem:[%s3 + $0x10] sm:$0xff] %v1642
  %1651 = vst [vmem:[%s3 + $0x18] sm:$0xff] %v1643
  %1652 = vst [vmem:[%s3 + $0x20] sm:$0xff] %v1644
  %1653 = vst [vmem:[%s3 + $0x28] sm:$0xff] %v1645
  %1654 = vst [vmem:[%s3 + $0x30] sm:$0xff] %v1646
  %1655 = vst [vmem:[%s3 + $0x38] sm:$0xff] %v1647
  %vm1656 = vcmp.ge.f32.partialorder %v1616, 0.0
  %vm1657 = vcmp.ge.f32.partialorder %v1617, 0.0
  %vm1658 = vcmp.ge.f32.partialorder %v1618, 0.0
  %vm1659 = vcmp.ge.f32.partialorder %v1619, 0.0
  %vm1660 = vcmp.ge.f32.partialorder %v1620, 0.0
  %vm1661 = vcmp.ge.f32.partialorder %v1621, 0.0
  %vm1662 = vcmp.ge.f32.partialorder %v1622, 0.0
  %vm1663 = vcmp.ge.f32.partialorder %v1623, 0.0
  %v1664 = vmul.f32 %v1616, 0.2
  %v1665 = vmul.f32 %v1617, 0.2
  %v1666 = vmul.f32 %v1618, 0.2
  %v1667 = vmul.f32 %v1619, 0.2
  %v1668 = vmul.f32 %v1620, 0.2
  %v1669 = vmul.f32 %v1621, 0.2
  %v1670 = vmul.f32 %v1622, 0.2
  %v1671 = vmul.f32 %v1623, 0.2
  %v1672 = vsel %vm1656, %v1616, %v1664
  %v1673 = vsel %vm1657, %v1617, %v1665
  %v1674 = vsel %vm1658, %v1618, %v1666
  %v1675 = vsel %vm1659, %v1619, %v1667
  %v1676 = vsel %vm1660, %v1620, %v1668
  %v1677 = vsel %vm1661, %v1621, %v1669
  %v1678 = vsel %vm1662, %v1622, %v1670
  %v1679 = vsel %vm1663, %v1623, %v1671
  %1680 = vst [vmem:[%s3 + $0x40] sm:$0xff] %v1672
  %1681 = vst [vmem:[%s3 + $0x48] sm:$0xff] %v1673
  %1682 = vst [vmem:[%s3 + $0x50] sm:$0xff] %v1674
  %1683 = vst [vmem:[%s3 + $0x58] sm:$0xff] %v1675
  %1684 = vst [vmem:[%s3 + $0x60] sm:$0xff] %v1676
  %1685 = vst [vmem:[%s3 + $0x68] sm:$0xff] %v1677
  %1686 = vst [vmem:[%s3 + $0x70] sm:$0xff] %v1678
  %1687 = vst [vmem:[%s3 + $0x78] sm:$0xff] %v1679
  // Predicated region
  $region14: #{discriminator_forward.5} parent=0 // pred_check
    _
  $region15: #{discriminator_forward.5} parent=0 // pred_check_branch
    %1689 = sbr.rel (0) target = $region17
  $region16: #{discriminator_forward.5} parent=0 // pred_region
    _
  $region17: #{discriminator_forward.5} parent=0 // pred_fallthru
    _
  // Predicated region
  $region18: #{discriminator_forward.5} parent=0 // pred_check
    _
  $region19: #{discriminator_forward.5} parent=0 // pred_check_branch
    %1691 = sbr.rel (0) target = $region21
  $region20: #{discriminator_forward.5} parent=0 // pred_region
    _
  $region21: #{discriminator_forward.5} parent=0 // pred_fallthru
    _

// kernel: discriminator_forward.6
$region0: #{discriminator_forward.6}
  #allocation0 [shape = 'u32[]', space=smem, size = 0x4, offset = 0x4, fixed_abs, tag = 'smem constant byte address 0x4 - core index']
  #allocation1 [shape = 'u32[72,128]{1,0:T(1,128)}', space=vmem, size = 0x9000, scoped, tag = 'internal scratch']
  %s0 = inlined_call_operand.vmem [shape: f32[4,2,17,136], index: 0, kind: input, shape index: {}]
  %s1 = inlined_call_operand.vmem [shape: bf16[8,136,256], index: 1, kind: input, shape index: {}]
  %s2 = inlined_call_operand.vmem [shape: f32[1,256], index: 2, kind: input, shape index: {}]
  %s3 = inlined_call_operand.vmem [shape: f32[256,16], index: 3, kind: input, shape index: {}]
  %s4 = inlined_call_operand.vmem [shape: f32[16,256], index: 4, kind: input, shape index: {}]
  %s5 = inlined_call_operand.vmem [shape: f32[1,16], index: 5, kind: input, shape index: {}]
  %s6 = inlined_call_operand.vmem [shape: f32[1,16], index: 6, kind: input, shape index: {}]
  %s7 = inlined_call_operand.vmem [shape: f32[32,256], index: 7, kind: output, shape index: {}]
  %s8 = sld [smem:[#allocation0]]
  $region38: #{discriminator_forward.6} parent=0
    _
  %s10 = ssub.s32 1, %s8
  %s11 = scalar_select 0, %s10, %s8
  // Predicated region
  $region2: #{discriminator_forward.6} parent=0 // pred_check
    _
  $region3: #{discriminator_forward.6} parent=0 // pred_check_branch
    %13 = sbr.rel (0) target = $region5
  $region4: #{discriminator_forward.6} parent=0 // pred_region
    _
  $region5: #{discriminator_forward.6} parent=0 // pred_fallthru
    _
  // Predicated region
  $region6: #{discriminator_forward.6} parent=0 // pred_check
    _
  $region7: #{discriminator_forward.6} parent=0 // pred_check_branch
    %15 = sbr.rel (0) target = $region9
  $region8: #{discriminator_forward.6} parent=0 // pred_region
    _
  $region9: #{discriminator_forward.6} parent=0 // pred_fallthru
    _
  // Predicated region
  $region10: #{discriminator_forward.6} parent=0 // pred_check
    _
  $region11: #{discriminator_forward.6} parent=0 // pred_check_branch
    %17 = sbr.rel (0) target = $region13
  $region12: #{discriminator_forward.6} parent=0 // pred_region
    _
  $region13: #{discriminator_forward.6} parent=0 // pred_fallthru
    _
  // Predicated region
  $region14: #{discriminator_forward.6} parent=0 // pred_check
    _
  $region15: #{discriminator_forward.6} parent=0 // pred_check_branch
    %19 = sbr.rel (0) target = $region17
  $region16: #{discriminator_forward.6} parent=0 // pred_region
    _
  $region17: #{discriminator_forward.6} parent=0 // pred_fallthru
    _
  // Predicated region
  $region18: #{discriminator_forward.6} parent=0 // pred_check
    _
  $region19: #{discriminator_forward.6} parent=0 // pred_check_branch
    %21 = sbr.rel (0) target = $region21
  $region20: #{discriminator_forward.6} parent=0 // pred_region
    _
  $region21: #{discriminator_forward.6} parent=0 // pred_fallthru
    _
  // Predicated region
  $region22: #{discriminator_forward.6} parent=0 // pred_check
    _
  $region23: #{discriminator_forward.6} parent=0 // pred_check_branch
    %23 = sbr.rel (0) target = $region25
  $region24: #{discriminator_forward.6} parent=0 // pred_region
    _
  $region25: #{discriminator_forward.6} parent=0 // pred_fallthru
    _
  // Predicated region
  $region26: #{discriminator_forward.6} parent=0 // pred_check
    _
  $region27: #{discriminator_forward.6} parent=0 // pred_check_branch
    %25 = sbr.rel (0) target = $region29
  $region28: #{discriminator_forward.6} parent=0 // pred_region
    _
  $region29: #{discriminator_forward.6} parent=0 // pred_fallthru
    _
  %v27 = vld [vmem:[%s0] sm:$0xff]
  %v28 = vld [vmem:[%s0 + $0x8] sm:$0xff]
  %v29 = vld [vmem:[%s0 + $0x10] sm:$0xff]
  %v30 = vld [vmem:[%s0 + $0x18] sm:$0xff]
  %v31 = vpack.c.bf16 %v29, %v27
  %v32 = vpack.c.bf16 %v30, %v28
  %v33 = vld [vmem:[%s1] sm:$0xff]
  %v34 = vld [vmem:[%s1 + $0x8] sm:$0xff]
  %v35 = vld [vmem:[%s1 + $0x10] sm:$0xff]
  %v36 = vld [vmem:[%s1 + $0x18] sm:$0xff]
  %v37 = vld [vmem:[%s1 + $0x20] sm:$0xff]
  %v38 = vld [vmem:[%s1 + $0x28] sm:$0xff]
  %v39 = vld [vmem:[%s1 + $0x30] sm:$0xff]
  %v40 = vld [vmem:[%s1 + $0x38] sm:$0xff]
  %v41 = vld [vmem:[%s1 + $0x40] sm:$0xff]
  %v42 = vld [vmem:[%s1 + $0x48] sm:$0xff]
  %v43 = vld [vmem:[%s1 + $0x50] sm:$0xff]
  %v44 = vld [vmem:[%s1 + $0x58] sm:$0xff]
  %v45 = vld [vmem:[%s1 + $0x60] sm:$0xff]
  %v46 = vld [vmem:[%s1 + $0x68] sm:$0xff]
  %v47 = vld [vmem:[%s1 + $0x70] sm:$0xff]
  %v48 = vld [vmem:[%s1 + $0x78] sm:$0xff]
  %v49 = vld [vmem:[%s1 + $0x80] sm:$0xff]
  %v50 = vld [vmem:[%s0] sm:$0xfe]
  %v51 = vld [vmem:[%s0 + $0x8] sm:$0xfe]
  %v52 = vld [vmem:[%s0 + $0x20] sm:$0x1]
  %v53 = vld [vmem:[%s0 + $0x28] sm:$0x1]
  %v54 = vpack.c.bf16 %v29, %v50
  %v55 = vpack.c.bf16 %v30, %v51
  %v56 = vpack.c.bf16 %v52, %v52
  %v57 = vpack.c.bf16 %v53, %v53
  %s58 = scalar_lea.vmem %s1, 136
  %v59 = vld [vmem:[%s58] sm:$0xff]
  %v60 = vld [vmem:[%s58 + $0x8] sm:$0xff]
  %v61 = vld [vmem:[%s58 + $0x10] sm:$0xff]
  %v62 = vld [vmem:[%s58 + $0x18] sm:$0xff]
  %v63 = vld [vmem:[%s58 + $0x20] sm:$0xff]
  %v64 = vld [vmem:[%s58 + $0x28] sm:$0xff]
  %v65 = vld [vmem:[%s58 + $0x30] sm:$0xff]
  %v66 = vld [vmem:[%s58 + $0x38] sm:$0xff]
  %v67 = vld [vmem:[%s58 + $0x40] sm:$0xff]
  %v68 = vld [vmem:[%s58 + $0x48] sm:$0xff]
  %v69 = vld [vmem:[%s58 + $0x50] sm:$0xff]
  %v70 = vld [vmem:[%s58 + $0x58] sm:$0xff]
  %v71 = vld [vmem:[%s58 + $0x60] sm:$0xff]
  %v72 = vld [vmem:[%s58 + $0x68] sm:$0xff]
  %v73 = vld [vmem:[%s58 + $0x70] sm:$0xff]
  %v74 = vld [vmem:[%s58 + $0x78] sm:$0xff]
  %v75 = vld [vmem:[%s58 + $0x80] sm:$0xff]
  %vm76 = vsmask.f32 7424
  %v78 = vshrl.u32 %v54, 16
  %v80 = vshll.u32 %v54, 16
  %v82 = vrot.slane %v80, 1
  %v83 = vor.u32 %v78, %v82
  %v85 = vshll.u32 %v56, 16
  %v87 = vrot.slane %v85, 1
  %v88 = vsel %vm76, %v83, %v87
  %v90 = vshrl.u32 %v55, 16
  %v92 = vshll.u32 %v55, 16
  %v94 = vrot.slane %v92, 1
  %v95 = vor.u32 %v90, %v94
  %v97 = vshll.u32 %v57, 16
  %v99 = vrot.slane %v97, 1
  %v100 = vsel %vm76, %v95, %v99
  %v119 = vunpack.c.l.b16 %v59
  %v120 = vunpack.c.h.b16 %v59
  %v121 = vunpack.c.l.b16 %v60
  %v122 = vunpack.c.h.b16 %v60
  %v123 = vunpack.c.l.b16 %v61
  %v124 = vunpack.c.h.b16 %v61
  %v125 = vunpack.c.l.b16 %v62
  %v126 = vunpack.c.h.b16 %v62
  %v127 = vunpack.c.l.b16 %v63
  %v128 = vunpack.c.h.b16 %v63
  %v129 = vunpack.c.l.b16 %v64
  %v130 = vunpack.c.h.b16 %v64
  %v131 = vunpack.c.l.b16 %v65
  %v132 = vunpack.c.h.b16 %v65
  %v133 = vunpack.c.l.b16 %v66
  %v134 = vunpack.c.h.b16 %v66
  %v135 = vunpack.c.l.b16 %v67
  %v136 = vunpack.c.h.b16 %v67
  %v137 = vunpack.c.l.b16 %v68
  %v138 = vunpack.c.h.b16 %v68
  %v139 = vunpack.c.l.b16 %v69
  %v140 = vunpack.c.h.b16 %v69
  %v141 = vunpack.c.l.b16 %v70
  %v142 = vunpack.c.h.b16 %v70
  %v143 = vunpack.c.l.b16 %v71
  %v144 = vunpack.c.h.b16 %v71
  %v145 = vunpack.c.l.b16 %v72
  %v146 = vunpack.c.h.b16 %v72
  %v147 = vunpack.c.l.b16 %v73
  %v148 = vunpack.c.h.b16 %v73
  %v149 = vunpack.c.l.b16 %v74
  %v150 = vunpack.c.h.b16 %v74
  %v151 = vunpack.c.l.b16 %v75
  %v152 = vunpack.c.h.b16 %v75
  %v153 = vpack.c.b16 %v121, %v119
  %v154 = vpack.c.b16 %v122, %v120
  %v155 = vpack.c.b16 %v125, %v123
  %v156 = vpack.c.b16 %v126, %v124
  %v157 = vpack.c.b16 %v129, %v127
  %v158 = vpack.c.b16 %v130, %v128
  %v159 = vpack.c.b16 %v133, %v131
  %v160 = vpack.c.b16 %v134, %v132
  %v161 = vpack.c.b16 %v137, %v135
  %v162 = vpack.c.b16 %v138, %v136
  %v163 = vpack.c.b16 %v141, %v139
  %v164 = vpack.c.b16 %v142, %v140
  %v165 = vpack.c.b16 %v145, %v143
  %v166 = vpack.c.b16 %v146, %v144
  %v167 = vpack.c.b16 %v149, %v147
  %v168 = vpack.c.b16 %v150, %v148
  %v169 = vpack.c.b16 %v151, %v151
  %v170 = vpack.c.b16 %v152, %v152
  %vm187 = vcmask 64512
  %v189 = vsel %vm187, %v100, 0
  %vm191 = vcmask 1043456
  %v193 = vsel %vm191, %v169, 0
  %v196 = vsel %vm191, %v170, 0
  %198 = vmatpush.bf16.msra.mxu0 %v167
  %199 = vmatpush.bf16.msra.mxu0 %v165
  %200 = vmatpush.bf16.msra.mxu0 %v163
  %201 = vmatpush.bf16.msra.mxu0 %v161
  %202 = vmatpush.bf16.msra.mxu0 %v159
  %203 = vmatpush.bf16.msra.mxu0 %v157
  %204 = vmatpush.bf16.msra.mxu0 %v155
  %205 = vmatpush.bf16.msra.mxu0 %v153
  %206 = vmatmul.bf16.gmra.mxu0 %v88
  %v207 = vpop.f32.mrf.mxu0
  %v208 = vadd.f32 0.0, %v207
  %v209 = vpop.f32.mrf.mxu0
  %v210 = vadd.f32 0.0, %v209
  %211 = vdwg.mxu0
  %212 = vmatpush.bf16.msra.mxu0 0
  %213 = vmatpush.bf16.msra.mxu0 0
  %214 = vmatpush.bf16.msra.mxu0 0
  %215 = vmatpush.bf16.msra.mxu0 0
  %216 = vmatpush.bf16.msra.mxu0 0
  %217 = vmatpush.bf16.msra.mxu0 0
  %218 = vmatpush.bf16.msra.mxu0 0
  %219 = vmatpush.bf16.msra.mxu0 %v193
  %220 = vmatmul.bf16.gmra.mxu0 %v189
  %v221 = vpop.f32.mrf.mxu0
  %v222 = vadd.f32 %v208, %v221
  %v223 = vpop.f32.mrf.mxu0
  %v224 = vadd.f32 %v210, %v223
  %225 = vdwg.mxu0
  %226 = vmatpush.bf16.msra.mxu0 %v168
  %227 = vmatpush.bf16.msra.mxu0 %v166
  %228 = vmatpush.bf16.msra.mxu0 %v164
  %229 = vmatpush.bf16.msra.mxu0 %v162
  %230 = vmatpush.bf16.msra.mxu0 %v160
  %231 = vmatpush.bf16.msra.mxu0 %v158
  %232 = vmatpush.bf16.msra.mxu0 %v156
  %233 = vmatpush.bf16.msra.mxu0 %v154
  %234 = vmatmul.bf16.gmra.mxu0 %v88
  %v235 = vpop.f32.mrf.mxu0
  %v236 = vadd.f32 0.0, %v235
  %v237 = vpop.f32.mrf.mxu0
  %v238 = vadd.f32 0.0, %v237
  %239 = vdwg.mxu0
  %240 = vmatpush.bf16.msra.mxu0 0
  %241 = vmatpush.bf16.msra.mxu0 0
  %242 = vmatpush.bf16.msra.mxu0 0
  %243 = vmatpush.bf16.msra.mxu0 0
  %244 = vmatpush.bf16.msra.mxu0 0
  %245 = vmatpush.bf16.msra.mxu0 0
  %246 = vmatpush.bf16.msra.mxu0 0
  %247 = vmatpush.bf16.msra.mxu0 %v196
  %248 = vmatmul.bf16.gmra.mxu0 %v189
  %v249 = vpop.f32.mrf.mxu0
  %v250 = vadd.f32 %v236, %v249
  %v251 = vpop.f32.mrf.mxu0
  %v252 = vadd.f32 %v238, %v251
  %253 = vdwg.mxu0
  %v271 = vunpack.c.l.b16 %v33
  %v272 = vunpack.c.h.b16 %v33
  %v273 = vunpack.c.l.b16 %v34
  %v274 = vunpack.c.h.b16 %v34
  %v275 = vunpack.c.l.b16 %v35
  %v276 = vunpack.c.h.b16 %v35
  %v277 = vunpack.c.l.b16 %v36
  %v278 = vunpack.c.h.b16 %v36
  %v279 = vunpack.c.l.b16 %v37
  %v280 = vunpack.c.h.b16 %v37
  %v281 = vunpack.c.l.b16 %v38
  %v282 = vunpack.c.h.b16 %v38
  %v283 = vunpack.c.l.b16 %v39
  %v284 = vunpack.c.h.b16 %v39
  %v285 = vunpack.c.l.b16 %v40
  %v286 = vunpack.c.h.b16 %v40
  %v287 = vunpack.c.l.b16 %v41
  %v288 = vunpack.c.h.b16 %v41
  %v289 = vunpack.c.l.b16 %v42
  %v290 = vunpack.c.h.b16 %v42
  %v291 = vunpack.c.l.b16 %v43
  %v292 = vunpack.c.h.b16 %v43
  %v293 = vunpack.c.l.b16 %v44
  %v294 = vunpack.c.h.b16 %v44
  %v295 = vunpack.c.l.b16 %v45
  %v296 = vunpack.c.h.b16 %v45
  %v297 = vunpack.c.l.b16 %v46
  %v298 = vunpack.c.h.b16 %v46
  %v299 = vunpack.c.l.b16 %v47
  %v300 = vunpack.c.h.b16 %v47
  %v301 = vunpack.c.l.b16 %v48
  %v302 = vunpack.c.h.b16 %v48
  %v303 = vunpack.c.l.b16 %v49
  %v304 = vunpack.c.h.b16 %v49
  %v305 = vpack.c.b16 %v273, %v271
  %v306 = vpack.c.b16 %v274, %v272
  %v307 = vpack.c.b16 %v277, %v275
  %v308 = vpack.c.b16 %v278, %v276
  %v309 = vpack.c.b16 %v281, %v279
  %v310 = vpack.c.b16 %v282, %v280
  %v311 = vpack.c.b16 %v285, %v283
  %v312 = vpack.c.b16 %v286, %v284
  %v313 = vpack.c.b16 %v289, %v287
  %v314 = vpack.c.b16 %v290, %v288
  %v315 = vpack.c.b16 %v293, %v291
  %v316 = vpack.c.b16 %v294, %v292
  %v317 = vpack.c.b16 %v297, %v295
  %v318 = vpack.c.b16 %v298, %v296
  %v319 = vpack.c.b16 %v301, %v299
  %v320 = vpack.c.b16 %v302, %v300
  %v321 = vpack.c.b16 %v303, %v303
  %v322 = vpack.c.b16 %v304, %v304
  %v340 = vsel %vm187, %v32, 0
  %v343 = vsel %vm191, %v321, 0
  %v346 = vsel %vm191, %v322, 0
  %348 = vmatpush.bf16.msra.mxu0 %v319
  %349 = vmatpush.bf16.msra.mxu0 %v317
  %350 = vmatpush.bf16.msra.mxu0 %v315
  %351 = vmatpush.bf16.msra.mxu0 %v313
  %352 = vmatpush.bf16.msra.mxu0 %v311
  %353 = vmatpush.bf16.msra.mxu0 %v309
  %354 = vmatpush.bf16.msra.mxu0 %v307
  %355 = vmatpush.bf16.msra.mxu0 %v305
  %356 = vmatmul.bf16.gmra.mxu0 %v31
  %v357 = vpop.f32.mrf.mxu0
  %v358 = vadd.f32 %v222, %v357
  %v359 = vpop.f32.mrf.mxu0
  %v360 = vadd.f32 %v224, %v359
  %361 = vdwg.mxu0
  %362 = vmatpush.bf16.msra.mxu0 0
  %363 = vmatpush.bf16.msra.mxu0 0
  %364 = vmatpush.bf16.msra.mxu0 0
  %365 = vmatpush.bf16.msra.mxu0 0
  %366 = vmatpush.bf16.msra.mxu0 0
  %367 = vmatpush.bf16.msra.mxu0 0
  %368 = vmatpush.bf16.msra.mxu0 0
  %369 = vmatpush.bf16.msra.mxu0 %v343
  %370 = vmatmul.bf16.gmra.mxu0 %v340
  %v371 = vpop.f32.mrf.mxu0
  %v372 = vadd.f32 %v358, %v371
  %v373 = vpop.f32.mrf.mxu0
  %v374 = vadd.f32 %v360, %v373
  %375 = vdwg.mxu0
  %376 = vmatpush.bf16.msra.mxu0 %v320
  %377 = vmatpush.bf16.msra.mxu0 %v318
  %378 = vmatpush.bf16.msra.mxu0 %v316
  %379 = vmatpush.bf16.msra.mxu0 %v314
  %380 = vmatpush.bf16.msra.mxu0 %v312
  %381 = vmatpush.bf16.msra.mxu0 %v310
  %382 = vmatpush.bf16.msra.mxu0 %v308
  %383 = vmatpush.bf16.msra.mxu0 %v306
  %384 = vmatmul.bf16.gmra.mxu0 %v31
  %v385 = vpop.f32.mrf.mxu0
  %v386 = vadd.f32 %v250, %v385
  %v387 = vpop.f32.mrf.mxu0
  %v388 = vadd.f32 %v252, %v387
  %389 = vdwg.mxu0
  %390 = vmatpush.bf16.msra.mxu0 0
  %391 = vmatpush.bf16.msra.mxu0 0
  %392 = vmatpush.bf16.msra.mxu0 0
  %393 = vmatpush.bf16.msra.mxu0 0
  %394 = vmatpush.bf16.msra.mxu0 0
  %395 = vmatpush.bf16.msra.mxu0 0
  %396 = vmatpush.bf16.msra.mxu0 0
  %397 = vmatpush.bf16.msra.mxu0 %v346
  %398 = vmatmul.bf16.gmra.mxu0 %v340
  %v399 = vpop.f32.mrf.mxu0
  %v400 = vadd.f32 %v386, %v399
  %v401 = vpop.f32.mrf.mxu0
  %v402 = vadd.f32 %v388, %v401
  %403 = vdwg.mxu0
  %s404 = scalar_lea.vmem %s0, 96
  %v405 = vld [vmem:[%s404] sm:$0xff]
  %v406 = vld [vmem:[%s404 + $0x8] sm:$0xff]
  %v407 = vld [vmem:[%s404 + $0x10] sm:$0xff]
  %v408 = vld [vmem:[%s404 + $0x18] sm:$0xff]
  %v409 = vpack.c.bf16 %v407, %v405
  %v410 = vpack.c.bf16 %v408, %v406
  %s411 = scalar_lea.vmem %s1, 272
  %v412 = vld [vmem:[%s411] sm:$0xff]
  %v413 = vld [vmem:[%s411 + $0x8] sm:$0xff]
  %v414 = vld [vmem:[%s411 + $0x10] sm:$0xff]
  %v415 = vld [vmem:[%s411 + $0x18] sm:$0xff]
  %v416 = vld [vmem:[%s411 + $0x20] sm:$0xff]
  %v417 = vld [vmem:[%s411 + $0x28] sm:$0xff]
  %v418 = vld [vmem:[%s411 + $0x30] sm:$0xff]
  %v419 = vld [vmem:[%s411 + $0x38] sm:$0xff]
  %v420 = vld [vmem:[%s411 + $0x40] sm:$0xff]
  %v421 = vld [vmem:[%s411 + $0x48] sm:$0xff]
  %v422 = vld [vmem:[%s411 + $0x50] sm:$0xff]
  %v423 = vld [vmem:[%s411 + $0x58] sm:$0xff]
  %v424 = vld [vmem:[%s411 + $0x60] sm:$0xff]
  %v425 = vld [vmem:[%s411 + $0x68] sm:$0xff]
  %v426 = vld [vmem:[%s411 + $0x70] sm:$0xff]
  %v427 = vld [vmem:[%s411 + $0x78] sm:$0xff]
  %v428 = vld [vmem:[%s411 + $0x80] sm:$0xff]
  %v446 = vunpack.c.l.b16 %v412
  %v447 = vunpack.c.h.b16 %v412
  %v448 = vunpack.c.l.b16 %v413
  %v449 = vunpack.c.h.b16 %v413
  %v450 = vunpack.c.l.b16 %v414
  %v451 = vunpack.c.h.b16 %v414
  %v452 = vunpack.c.l.b16 %v415
  %v453 = vunpack.c.h.b16 %v415
  %v454 = vunpack.c.l.b16 %v416
  %v455 = vunpack.c.h.b16 %v416
  %v456 = vunpack.c.l.b16 %v417
  %v457 = vunpack.c.h.b16 %v417
  %v458 = vunpack.c.l.b16 %v418
  %v459 = vunpack.c.h.b16 %v418
  %v460 = vunpack.c.l.b16 %v419
  %v461 = vunpack.c.h.b16 %v419
  %v462 = vunpack.c.l.b16 %v420
  %v463 = vunpack.c.h.b16 %v420
  %v464 = vunpack.c.l.b16 %v421
  %v465 = vunpack.c.h.b16 %v421
  %v466 = vunpack.c.l.b16 %v422
  %v467 = vunpack.c.h.b16 %v422
  %v468 = vunpack.c.l.b16 %v423
  %v469 = vunpack.c.h.b16 %v423
  %v470 = vunpack.c.l.b16 %v424
  %v471 = vunpack.c.h.b16 %v424
  %v472 = vunpack.c.l.b16 %v425
  %v473 = vunpack.c.h.b16 %v425
  %v474 = vunpack.c.l.b16 %v426
  %v475 = vunpack.c.h.b16 %v426
  %v476 = vunpack.c.l.b16 %v427
  %v477 = vunpack.c.h.b16 %v427
  %v478 = vunpack.c.l.b16 %v428
  %v479 = vunpack.c.h.b16 %v428
  %v480 = vpack.c.b16 %v448, %v446
  %v481 = vpack.c.b16 %v449, %v447
  %v482 = vpack.c.b16 %v452, %v450
  %v483 = vpack.c.b16 %v453, %v451
  %v484 = vpack.c.b16 %v456, %v454
  %v485 = vpack.c.b16 %v457, %v455
  %v486 = vpack.c.b16 %v460, %v458
  %v487 = vpack.c.b16 %v461, %v459
  %v488 = vpack.c.b16 %v464, %v462
  %v489 = vpack.c.b16 %v465, %v463
  %v490 = vpack.c.b16 %v468, %v466
  %v491 = vpack.c.b16 %v469, %v467
  %v492 = vpack.c.b16 %v472, %v470
  %v493 = vpack.c.b16 %v473, %v471
  %v494 = vpack.c.b16 %v476, %v474
  %v495 = vpack.c.b16 %v477, %v475
  %v496 = vpack.c.b16 %v478, %v478
  %v497 = vpack.c.b16 %v479, %v479
  %v515 = vsel %vm187, %v410, 0
  %v518 = vsel %vm191, %v496, 0
  %v521 = vsel %vm191, %v497, 0
  %523 = vmatpush.bf16.msra.mxu0 %v494
  %524 = vmatpush.bf16.msra.mxu0 %v492
  %525 = vmatpush.bf16.msra.mxu0 %v490
  %526 = vmatpush.bf16.msra.mxu0 %v488
  %527 = vmatpush.bf16.msra.mxu0 %v486
  %528 = vmatpush.bf16.msra.mxu0 %v484
  %529 = vmatpush.bf16.msra.mxu0 %v482
  %530 = vmatpush.bf16.msra.mxu0 %v480
  %531 = vmatmul.bf16.gmra.mxu0 %v409
  %v532 = vpop.f32.mrf.mxu0
  %v533 = vadd.f32 0.0, %v532
  %v534 = vpop.f32.mrf.mxu0
  %v535 = vadd.f32 0.0, %v534
  %536 = vdwg.mxu0
  %537 = vmatpush.bf16.msra.mxu0 0
  %538 = vmatpush.bf16.msra.mxu0 0
  %539 = vmatpush.bf16.msra.mxu0 0
  %540 = vmatpush.bf16.msra.mxu0 0
  %541 = vmatpush.bf16.msra.mxu0 0
  %542 = vmatpush.bf16.msra.mxu0 0
  %543 = vmatpush.bf16.msra.mxu0 0
  %544 = vmatpush.bf16.msra.mxu0 %v518
  %545 = vmatmul.bf16.gmra.mxu0 %v515
  %v546 = vpop.f32.mrf.mxu0
  %v547 = vadd.f32 %v533, %v546
  %v548 = vpop.f32.mrf.mxu0
  %v549 = vadd.f32 %v535, %v548
  %550 = vdwg.mxu0
  %551 = vmatpush.bf16.msra.mxu0 %v495
  %552 = vmatpush.bf16.msra.mxu0 %v493
  %553 = vmatpush.bf16.msra.mxu0 %v491
  %554 = vmatpush.bf16.msra.mxu0 %v489
  %555 = vmatpush.bf16.msra.mxu0 %v487
  %556 = vmatpush.bf16.msra.mxu0 %v485
  %557 = vmatpush.bf16.msra.mxu0 %v483
  %558 = vmatpush.bf16.msra.mxu0 %v481
  %559 = vmatmul.bf16.gmra.mxu0 %v409
  %v560 = vpop.f32.mrf.mxu0
  %v561 = vadd.f32 0.0, %v560
  %v562 = vpop.f32.mrf.mxu0
  %v563 = vadd.f32 0.0, %v562
  %564 = vdwg.mxu0
  %565 = vmatpush.bf16.msra.mxu0 0
  %566 = vmatpush.bf16.msra.mxu0 0
  %567 = vmatpush.bf16.msra.mxu0 0
  %568 = vmatpush.bf16.msra.mxu0 0
  %569 = vmatpush.bf16.msra.mxu0 0
  %570 = vmatpush.bf16.msra.mxu0 0
  %571 = vmatpush.bf16.msra.mxu0 0
  %572 = vmatpush.bf16.msra.mxu0 %v521
  %573 = vmatmul.bf16.gmra.mxu0 %v515
  %v574 = vpop.f32.mrf.mxu0
  %v575 = vadd.f32 %v561, %v574
  %v576 = vpop.f32.mrf.mxu0
  %v577 = vadd.f32 %v563, %v576
  %578 = vdwg.mxu0
  %v579 = vadd.f32 %v372, %v547
  %v580 = vadd.f32 %v400, %v575
  %v581 = vadd.f32 %v374, %v549
  %v582 = vadd.f32 %v402, %v577
  %v583 = vld [vmem:[%s404] sm:$0xfe]
  %v584 = vld [vmem:[%s404 + $0x8] sm:$0xfe]
  %v585 = vld [vmem:[%s404 + $0x10] sm:$0xff]
  %v586 = vld [vmem:[%s404 + $0x18] sm:$0xff]
  %v587 = vld [vmem:[%s404 + $0x20] sm:$0x1]
  %v588 = vld [vmem:[%s404 + $0x28] sm:$0x1]
  %v589 = vpack.c.bf16 %v585, %v583
  %v590 = vpack.c.bf16 %v586, %v584
  %v591 = vpack.c.bf16 %v587, %v587
  %v592 = vpack.c.bf16 %v588, %v588
  %s593 = scalar_lea.vmem %s1, 408
  %v594 = vld [vmem:[%s593] sm:$0xff]
  %v595 = vld [vmem:[%s593 + $0x8] sm:$0xff]
  %v596 = vld [vmem:[%s593 + $0x10] sm:$0xff]
  %v597 = vld [vmem:[%s593 + $0x18] sm:$0xff]
  %v598 = vld [vmem:[%s593 + $0x20] sm:$0xff]
  %v599 = vld [vmem:[%s593 + $0x28] sm:$0xff]
  %v600 = vld [vmem:[%s593 + $0x30] sm:$0xff]
  %v601 = vld [vmem:[%s593 + $0x38] sm:$0xff]
  %v602 = vld [vmem:[%s593 + $0x40] sm:$0xff]
  %v603 = vld [vmem:[%s593 + $0x48] sm:$0xff]
  %v604 = vld [vmem:[%s593 + $0x50] sm:$0xff]
  %v605 = vld [vmem:[%s593 + $0x58] sm:$0xff]
  %v606 = vld [vmem:[%s593 + $0x60] sm:$0xff]
  %v607 = vld [vmem:[%s593 + $0x68] sm:$0xff]
  %v608 = vld [vmem:[%s593 + $0x70] sm:$0xff]
  %v609 = vld [vmem:[%s593 + $0x78] sm:$0xff]
  %v610 = vld [vmem:[%s593 + $0x80] sm:$0xff]
  %v612 = vshrl.u32 %v589, 16
  %v614 = vshll.u32 %v589, 16
  %v616 = vrot.slane %v614, 1
  %v617 = vor.u32 %v612, %v616
  %v619 = vshll.u32 %v591, 16
  %v621 = vrot.slane %v619, 1
  %v622 = vsel %vm76, %v617, %v621
  %v624 = vshrl.u32 %v590, 16
  %v626 = vshll.u32 %v590, 16
  %v628 = vrot.slane %v626, 1
  %v629 = vor.u32 %v624, %v628
  %v631 = vshll.u32 %v592, 16
  %v633 = vrot.slane %v631, 1
  %v634 = vsel %vm76, %v629, %v633
  %v653 = vunpack.c.l.b16 %v594
  %v654 = vunpack.c.h.b16 %v594
  %v655 = vunpack.c.l.b16 %v595
  %v656 = vunpack.c.h.b16 %v595
  %v657 = vunpack.c.l.b16 %v596
  %v658 = vunpack.c.h.b16 %v596
  %v659 = vunpack.c.l.b16 %v597
  %v660 = vunpack.c.h.b16 %v597
  %v661 = vunpack.c.l.b16 %v598
  %v662 = vunpack.c.h.b16 %v598
  %v663 = vunpack.c.l.b16 %v599
  %v664 = vunpack.c.h.b16 %v599
  %v665 = vunpack.c.l.b16 %v600
  %v666 = vunpack.c.h.b16 %v600
  %v667 = vunpack.c.l.b16 %v601
  %v668 = vunpack.c.h.b16 %v601
  %v669 = vunpack.c.l.b16 %v602
  %v670 = vunpack.c.h.b16 %v602
  %v671 = vunpack.c.l.b16 %v603
  %v672 = vunpack.c.h.b16 %v603
  %v673 = vunpack.c.l.b16 %v604
  %v674 = vunpack.c.h.b16 %v604
  %v675 = vunpack.c.l.b16 %v605
  %v676 = vunpack.c.h.b16 %v605
  %v677 = vunpack.c.l.b16 %v606
  %v678 = vunpack.c.h.b16 %v606
  %v679 = vunpack.c.l.b16 %v607
  %v680 = vunpack.c.h.b16 %v607
  %v681 = vunpack.c.l.b16 %v608
  %v682 = vunpack.c.h.b16 %v608
  %v683 = vunpack.c.l.b16 %v609
  %v684 = vunpack.c.h.b16 %v609
  %v685 = vunpack.c.l.b16 %v610
  %v686 = vunpack.c.h.b16 %v610
  %v687 = vpack.c.b16 %v655, %v653
  %v688 = vpack.c.b16 %v656, %v654
  %v689 = vpack.c.b16 %v659, %v657
  %v690 = vpack.c.b16 %v660, %v658
  %v691 = vpack.c.b16 %v663, %v661
  %v692 = vpack.c.b16 %v664, %v662
  %v693 = vpack.c.b16 %v667, %v665
  %v694 = vpack.c.b16 %v668, %v666
  %v695 = vpack.c.b16 %v671, %v669
  %v696 = vpack.c.b16 %v672, %v670
  %v697 = vpack.c.b16 %v675, %v673
  %v698 = vpack.c.b16 %v676, %v674
  %v699 = vpack.c.b16 %v679, %v677
  %v700 = vpack.c.b16 %v680, %v678
  %v701 = vpack.c.b16 %v683, %v681
  %v702 = vpack.c.b16 %v684, %v682
  %v703 = vpack.c.b16 %v685, %v685
  %v704 = vpack.c.b16 %v686, %v686
  %v722 = vsel %vm187, %v634, 0
  %v725 = vsel %vm191, %v703, 0
  %v728 = vsel %vm191, %v704, 0
  %730 = vmatpush.bf16.msra.mxu0 %v701
  %731 = vmatpush.bf16.msra.mxu0 %v699
  %732 = vmatpush.bf16.msra.mxu0 %v697
  %733 = vmatpush.bf16.msra.mxu0 %v695
  %734 = vmatpush.bf16.msra.mxu0 %v693
  %735 = vmatpush.bf16.msra.mxu0 %v691
  %736 = vmatpush.bf16.msra.mxu0 %v689
  %737 = vmatpush.bf16.msra.mxu0 %v687
  %738 = vmatmul.bf16.gmra.mxu0 %v622
  %v739 = vpop.f32.mrf.mxu0
  %v740 = vadd.f32 0.0, %v739
  %v741 = vpop.f32.mrf.mxu0
  %v742 = vadd.f32 0.0, %v741
  %743 = vdwg.mxu0
  %744 = vmatpush.bf16.msra.mxu0 0
  %745 = vmatpush.bf16.msra.mxu0 0
  %746 = vmatpush.bf16.msra.mxu0 0
  %747 = vmatpush.bf16.msra.mxu0 0
  %748 = vmatpush.bf16.msra.mxu0 0
  %749 = vmatpush.bf16.msra.mxu0 0
  %750 = vmatpush.bf16.msra.mxu0 0
  %751 = vmatpush.bf16.msra.mxu0 %v725
  %752 = vmatmul.bf16.gmra.mxu0 %v722
  %v753 = vpop.f32.mrf.mxu0
  %v754 = vadd.f32 %v740, %v753
  %v755 = vpop.f32.mrf.mxu0
  %v756 = vadd.f32 %v742, %v755
  %757 = vdwg.mxu0
  %758 = vmatpush.bf16.msra.mxu0 %v702
  %759 = vmatpush.bf16.msra.mxu0 %v700
  %760 = vmatpush.bf16.msra.mxu0 %v698
  %761 = vmatpush.bf16.msra.mxu0 %v696
  %762 = vmatpush.bf16.msra.mxu0 %v694
  %763 = vmatpush.bf16.msra.mxu0 %v692
  %764 = vmatpush.bf16.msra.mxu0 %v690
  %765 = vmatpush.bf16.msra.mxu0 %v688
  %766 = vmatmul.bf16.gmra.mxu0 %v622
  %v767 = vpop.f32.mrf.mxu0
  %v768 = vadd.f32 0.0, %v767
  %v769 = vpop.f32.mrf.mxu0
  %v770 = vadd.f32 0.0, %v769
  %771 = vdwg.mxu0
  %772 = vmatpush.bf16.msra.mxu0 0
  %773 = vmatpush.bf16.msra.mxu0 0
  %774 = vmatpush.bf16.msra.mxu0 0
  %775 = vmatpush.bf16.msra.mxu0 0
  %776 = vmatpush.bf16.msra.mxu0 0
  %777 = vmatpush.bf16.msra.mxu0 0
  %778 = vmatpush.bf16.msra.mxu0 0
  %779 = vmatpush.bf16.msra.mxu0 %v728
  %780 = vmatmul.bf16.gmra.mxu0 %v722
  %v781 = vpop.f32.mrf.mxu0
  %v782 = vadd.f32 %v768, %v781
  %v783 = vpop.f32.mrf.mxu0
  %v784 = vadd.f32 %v770, %v783
  %785 = vdwg.mxu0
  %v786 = vadd.f32 %v579, %v754
  %v787 = vadd.f32 %v580, %v782
  %v788 = vadd.f32 %v581, %v756
  %v789 = vadd.f32 %v582, %v784
  %s790 = scalar_lea.vmem %s0, 192
  %v791 = vld [vmem:[%s790] sm:$0xff]
  %v792 = vld [vmem:[%s790 + $0x8] sm:$0xff]
  %v793 = vld [vmem:[%s790 + $0x10] sm:$0xff]
  %v794 = vld [vmem:[%s790 + $0x18] sm:$0xff]
  %v795 = vpack.c.bf16 %v793, %v791
  %v796 = vpack.c.bf16 %v794, %v792
  %s797 = scalar_lea.vmem %s1, 544
  %v798 = vld [vmem:[%s797] sm:$0xff]
  %v799 = vld [vmem:[%s797 + $0x8] sm:$0xff]
  %v800 = vld [vmem:[%s797 + $0x10] sm:$0xff]
  %v801 = vld [vmem:[%s797 + $0x18] sm:$0xff]
  %v802 = vld [vmem:[%s797 + $0x20] sm:$0xff]
  %v803 = vld [vmem:[%s797 + $0x28] sm:$0xff]
  %v804 = vld [vmem:[%s797 + $0x30] sm:$0xff]
  %v805 = vld [vmem:[%s797 + $0x38] sm:$0xff]
  %v806 = vld [vmem:[%s797 + $0x40] sm:$0xff]
  %v807 = vld [vmem:[%s797 + $0x48] sm:$0xff]
  %v808 = vld [vmem:[%s797 + $0x50] sm:$0xff]
  %v809 = vld [vmem:[%s797 + $0x58] sm:$0xff]
  %v810 = vld [vmem:[%s797 + $0x60] sm:$0xff]
  %v811 = vld [vmem:[%s797 + $0x68] sm:$0xff]
  %v812 = vld [vmem:[%s797 + $0x70] sm:$0xff]
  %v813 = vld [vmem:[%s797 + $0x78] sm:$0xff]
  %v814 = vld [vmem:[%s797 + $0x80] sm:$0xff]
  %v832 = vunpack.c.l.b16 %v798
  %v833 = vunpack.c.h.b16 %v798
  %v834 = vunpack.c.l.b16 %v799
  %v835 = vunpack.c.h.b16 %v799
  %v836 = vunpack.c.l.b16 %v800
  %v837 = vunpack.c.h.b16 %v800
  %v838 = vunpack.c.l.b16 %v801
  %v839 = vunpack.c.h.b16 %v801
  %v840 = vunpack.c.l.b16 %v802
  %v841 = vunpack.c.h.b16 %v802
  %v842 = vunpack.c.l.b16 %v803
  %v843 = vunpack.c.h.b16 %v803
  %v844 = vunpack.c.l.b16 %v804
  %v845 = vunpack.c.h.b16 %v804
  %v846 = vunpack.c.l.b16 %v805
  %v847 = vunpack.c.h.b16 %v805
  %v848 = vunpack.c.l.b16 %v806
  %v849 = vunpack.c.h.b16 %v806
  %v850 = vunpack.c.l.b16 %v807
  %v851 = vunpack.c.h.b16 %v807
  %v852 = vunpack.c.l.b16 %v808
  %v853 = vunpack.c.h.b16 %v808
  %v854 = vunpack.c.l.b16 %v809
  %v855 = vunpack.c.h.b16 %v809
  %v856 = vunpack.c.l.b16 %v810
  %v857 = vunpack.c.h.b16 %v810
  %v858 = vunpack.c.l.b16 %v811
  %v859 = vunpack.c.h.b16 %v811
  %v860 = vunpack.c.l.b16 %v812
  %v861 = vunpack.c.h.b16 %v812
  %v862 = vunpack.c.l.b16 %v813
  %v863 = vunpack.c.h.b16 %v813
  %v864 = vunpack.c.l.b16 %v814
  %v865 = vunpack.c.h.b16 %v814
  %v866 = vpack.c.b16 %v834, %v832
  %v867 = vpack.c.b16 %v835, %v833
  %v868 = vpack.c.b16 %v838, %v836
  %v869 = vpack.c.b16 %v839, %v837
  %v870 = vpack.c.b16 %v842, %v840
  %v871 = vpack.c.b16 %v843, %v841
  %v872 = vpack.c.b16 %v846, %v844
  %v873 = vpack.c.b16 %v847, %v845
  %v874 = vpack.c.b16 %v850, %v848
  %v875 = vpack.c.b16 %v851, %v849
  %v876 = vpack.c.b16 %v854, %v852
  %v877 = vpack.c.b16 %v855, %v853
  %v878 = vpack.c.b16 %v858, %v856
  %v879 = vpack.c.b16 %v859, %v857
  %v880 = vpack.c.b16 %v862, %v860
  %v881 = vpack.c.b16 %v863, %v861
  %v882 = vpack.c.b16 %v864, %v864
  %v883 = vpack.c.b16 %v865, %v865
  %v901 = vsel %vm187, %v796, 0
  %v904 = vsel %vm191, %v882, 0
  %v907 = vsel %vm191, %v883, 0
  %909 = vmatpush.bf16.msra.mxu0 %v880
  %910 = vmatpush.bf16.msra.mxu0 %v878
  %911 = vmatpush.bf16.msra.mxu0 %v876
  %912 = vmatpush.bf16.msra.mxu0 %v874
  %913 = vmatpush.bf16.msra.mxu0 %v872
  %914 = vmatpush.bf16.msra.mxu0 %v870
  %915 = vmatpush.bf16.msra.mxu0 %v868
  %916 = vmatpush.bf16.msra.mxu0 %v866
  %917 = vmatmul.bf16.gmra.mxu0 %v795
  %v918 = vpop.f32.mrf.mxu0
  %v919 = vadd.f32 0.0, %v918
  %v920 = vpop.f32.mrf.mxu0
  %v921 = vadd.f32 0.0, %v920
  %922 = vdwg.mxu0
  %923 = vmatpush.bf16.msra.mxu0 0
  %924 = vmatpush.bf16.msra.mxu0 0
  %925 = vmatpush.bf16.msra.mxu0 0
  %926 = vmatpush.bf16.msra.mxu0 0
  %927 = vmatpush.bf16.msra.mxu0 0
  %928 = vmatpush.bf16.msra.mxu0 0
  %929 = vmatpush.bf16.msra.mxu0 0
  %930 = vmatpush.bf16.msra.mxu0 %v904
  %931 = vmatmul.bf16.gmra.mxu0 %v901
  %v932 = vpop.f32.mrf.mxu0
  %v933 = vadd.f32 %v919, %v932
  %v934 = vpop.f32.mrf.mxu0
  %v935 = vadd.f32 %v921, %v934
  %936 = vdwg.mxu0
  %937 = vmatpush.bf16.msra.mxu0 %v881
  %938 = vmatpush.bf16.msra.mxu0 %v879
  %939 = vmatpush.bf16.msra.mxu0 %v877
  %940 = vmatpush.bf16.msra.mxu0 %v875
  %941 = vmatpush.bf16.msra.mxu0 %v873
  %942 = vmatpush.bf16.msra.mxu0 %v871
  %943 = vmatpush.bf16.msra.mxu0 %v869
  %944 = vmatpush.bf16.msra.mxu0 %v867
  %945 = vmatmul.bf16.gmra.mxu0 %v795
  %v946 = vpop.f32.mrf.mxu0
  %v947 = vadd.f32 0.0, %v946
  %v948 = vpop.f32.mrf.mxu0
  %v949 = vadd.f32 0.0, %v948
  %950 = vdwg.mxu0
  %951 = vmatpush.bf16.msra.mxu0 0
  %952 = vmatpush.bf16.msra.mxu0 0
  %953 = vmatpush.bf16.msra.mxu0 0
  %954 = vmatpush.bf16.msra.mxu0 0
  %955 = vmatpush.bf16.msra.mxu0 0
  %956 = vmatpush.bf16.msra.mxu0 0
  %957 = vmatpush.bf16.msra.mxu0 0
  %958 = vmatpush.bf16.msra.mxu0 %v907
  %959 = vmatmul.bf16.gmra.mxu0 %v901
  %v960 = vpop.f32.mrf.mxu0
  %v961 = vadd.f32 %v947, %v960
  %v962 = vpop.f32.mrf.mxu0
  %v963 = vadd.f32 %v949, %v962
  %964 = vdwg.mxu0
  %v965 = vadd.f32 %v786, %v933
  %v966 = vadd.f32 %v787, %v961
  %v967 = vadd.f32 %v788, %v935
  %v968 = vadd.f32 %v789, %v963
  %v969 = vld [vmem:[%s790] sm:$0xfe]
  %v970 = vld [vmem:[%s790 + $0x8] sm:$0xfe]
  %v971 = vld [vmem:[%s790 + $0x10] sm:$0xff]
  %v972 = vld [vmem:[%s790 + $0x18] sm:$0xff]
  %v973 = vld [vmem:[%s790 + $0x20] sm:$0x1]
  %v974 = vld [vmem:[%s790 + $0x28] sm:$0x1]
  %v975 = vpack.c.bf16 %v971, %v969
  %v976 = vpack.c.bf16 %v972, %v970
  %v977 = vpack.c.bf16 %v973, %v973
  %v978 = vpack.c.bf16 %v974, %v974
  %s979 = scalar_lea.vmem %s1, 680
  %v980 = vld [vmem:[%s979] sm:$0xff]
  %v981 = vld [vmem:[%s979 + $0x8] sm:$0xff]
  %v982 = vld [vmem:[%s979 + $0x10] sm:$0xff]
  %v983 = vld [vmem:[%s979 + $0x18] sm:$0xff]
  %v984 = vld [vmem:[%s979 + $0x20] sm:$0xff]
  %v985 = vld [vmem:[%s979 + $0x28] sm:$0xff]
  %v986 = vld [vmem:[%s979 + $0x30] sm:$0xff]
  %v987 = vld [vmem:[%s979 + $0x38] sm:$0xff]
  %v988 = vld [vmem:[%s979 + $0x40] sm:$0xff]
  %v989 = vld [vmem:[%s979 + $0x48] sm:$0xff]
  %v990 = vld [vmem:[%s979 + $0x50] sm:$0xff]
  %v991 = vld [vmem:[%s979 + $0x58] sm:$0xff]
  %v992 = vld [vmem:[%s979 + $0x60] sm:$0xff]
  %v993 = vld [vmem:[%s979 + $0x68] sm:$0xff]
  %v994 = vld [vmem:[%s979 + $0x70] sm:$0xff]
  %v995 = vld [vmem:[%s979 + $0x78] sm:$0xff]
  %v996 = vld [vmem:[%s979 + $0x80] sm:$0xff]
  %v998 = vshrl.u32 %v975, 16
  %v1000 = vshll.u32 %v975, 16
  %v1002 = vrot.slane %v1000, 1
  %v1003 = vor.u32 %v998, %v1002
  %v1005 = vshll.u32 %v977, 16
  %v1007 = vrot.slane %v1005, 1
  %v1008 = vsel %vm76, %v1003, %v1007
  %v1010 = vshrl.u32 %v976, 16
  %v1012 = vshll.u32 %v976, 16
  %v1014 = vrot.slane %v1012, 1
  %v1015 = vor.u32 %v1010, %v1014
  %v1017 = vshll.u32 %v978, 16
  %v1019 = vrot.slane %v1017, 1
  %v1020 = vsel %vm76, %v1015, %v1019
  %v1039 = vunpack.c.l.b16 %v980
  %v1040 = vunpack.c.h.b16 %v980
  %v1041 = vunpack.c.l.b16 %v981
  %v1042 = vunpack.c.h.b16 %v981
  %v1043 = vunpack.c.l.b16 %v982
  %v1044 = vunpack.c.h.b16 %v982
  %v1045 = vunpack.c.l.b16 %v983
  %v1046 = vunpack.c.h.b16 %v983
  %v1047 = vunpack.c.l.b16 %v984
  %v1048 = vunpack.c.h.b16 %v984
  %v1049 = vunpack.c.l.b16 %v985
  %v1050 = vunpack.c.h.b16 %v985
  %v1051 = vunpack.c.l.b16 %v986
  %v1052 = vunpack.c.h.b16 %v986
  %v1053 = vunpack.c.l.b16 %v987
  %v1054 = vunpack.c.h.b16 %v987
  %v1055 = vunpack.c.l.b16 %v988
  %v1056 = vunpack.c.h.b16 %v988
  %v1057 = vunpack.c.l.b16 %v989
  %v1058 = vunpack.c.h.b16 %v989
  %v1059 = vunpack.c.l.b16 %v990
  %v1060 = vunpack.c.h.b16 %v990
  %v1061 = vunpack.c.l.b16 %v991
  %v1062 = vunpack.c.h.b16 %v991
  %v1063 = vunpack.c.l.b16 %v992
  %v1064 = vunpack.c.h.b16 %v992
  %v1065 = vunpack.c.l.b16 %v993
  %v1066 = vunpack.c.h.b16 %v993
  %v1067 = vunpack.c.l.b16 %v994
  %v1068 = vunpack.c.h.b16 %v994
  %v1069 = vunpack.c.l.b16 %v995
  %v1070 = vunpack.c.h.b16 %v995
  %v1071 = vunpack.c.l.b16 %v996
  %v1072 = vunpack.c.h.b16 %v996
  %v1073 = vpack.c.b16 %v1041, %v1039
  %v1074 = vpack.c.b16 %v1042, %v1040
  %v1075 = vpack.c.b16 %v1045, %v1043
  %v1076 = vpack.c.b16 %v1046, %v1044
  %v1077 = vpack.c.b16 %v1049, %v1047
  %v1078 = vpack.c.b16 %v1050, %v1048
  %v1079 = vpack.c.b16 %v1053, %v1051
  %v1080 = vpack.c.b16 %v1054, %v1052
  %v1081 = vpack.c.b16 %v1057, %v1055
  %v1082 = vpack.c.b16 %v1058, %v1056
  %v1083 = vpack.c.b16 %v1061, %v1059
  %v1084 = vpack.c.b16 %v1062, %v1060
  %v1085 = vpack.c.b16 %v1065, %v1063
  %v1086 = vpack.c.b16 %v1066, %v1064
  %v1087 = vpack.c.b16 %v1069, %v1067
  %v1088 = vpack.c.b16 %v1070, %v1068
  %v1089 = vpack.c.b16 %v1071, %v1071
  %v1090 = vpack.c.b16 %v1072, %v1072
  %v1108 = vsel %vm187, %v1020, 0
  %v1111 = vsel %vm191, %v1089, 0
  %v1114 = vsel %vm191, %v1090, 0
  %1116 = vmatpush.bf16.msra.mxu0 %v1087
  %1117 = vmatpush.bf16.msra.mxu0 %v1085
  %1118 = vmatpush.bf16.msra.mxu0 %v1083
  %1119 = vmatpush.bf16.msra.mxu0 %v1081
  %1120 = vmatpush.bf16.msra.mxu0 %v1079
  %1121 = vmatpush.bf16.msra.mxu0 %v1077
  %1122 = vmatpush.bf16.msra.mxu0 %v1075
  %1123 = vmatpush.bf16.msra.mxu0 %v1073
  %1124 = vmatmul.bf16.gmra.mxu0 %v1008
  %v1125 = vpop.f32.mrf.mxu0
  %v1126 = vadd.f32 0.0, %v1125
  %v1127 = vpop.f32.mrf.mxu0
  %v1128 = vadd.f32 0.0, %v1127
  %1129 = vdwg.mxu0
  %1130 = vmatpush.bf16.msra.mxu0 0
  %1131 = vmatpush.bf16.msra.mxu0 0
  %1132 = vmatpush.bf16.msra.mxu0 0
  %1133 = vmatpush.bf16.msra.mxu0 0
  %1134 = vmatpush.bf16.msra.mxu0 0
  %1135 = vmatpush.bf16.msra.mxu0 0
  %1136 = vmatpush.bf16.msra.mxu0 0
  %1137 = vmatpush.bf16.msra.mxu0 %v1111
  %1138 = vmatmul.bf16.gmra.mxu0 %v1108
  %v1139 = vpop.f32.mrf.mxu0
  %v1140 = vadd.f32 %v1126, %v1139
  %v1141 = vpop.f32.mrf.mxu0
  %v1142 = vadd.f32 %v1128, %v1141
  %1143 = vdwg.mxu0
  %1144 = vmatpush.bf16.msra.mxu0 %v1088
  %1145 = vmatpush.bf16.msra.mxu0 %v1086
  %1146 = vmatpush.bf16.msra.mxu0 %v1084
  %1147 = vmatpush.bf16.msra.mxu0 %v1082
  %1148 = vmatpush.bf16.msra.mxu0 %v1080
  %1149 = vmatpush.bf16.msra.mxu0 %v1078
  %1150 = vmatpush.bf16.msra.mxu0 %v1076
  %1151 = vmatpush.bf16.msra.mxu0 %v1074
  %1152 = vmatmul.bf16.gmra.mxu0 %v1008
  %v1153 = vpop.f32.mrf.mxu0
  %v1154 = vadd.f32 0.0, %v1153
  %v1155 = vpop.f32.mrf.mxu0
  %v1156 = vadd.f32 0.0, %v1155
  %1157 = vdwg.mxu0
  %1158 = vmatpush.bf16.msra.mxu0 0
  %1159 = vmatpush.bf16.msra.mxu0 0
  %1160 = vmatpush.bf16.msra.mxu0 0
  %1161 = vmatpush.bf16.msra.mxu0 0
  %1162 = vmatpush.bf16.msra.mxu0 0
  %1163 = vmatpush.bf16.msra.mxu0 0
  %1164 = vmatpush.bf16.msra.mxu0 0
  %1165 = vmatpush.bf16.msra.mxu0 %v1114
  %1166 = vmatmul.bf16.gmra.mxu0 %v1108
  %v1167 = vpop.f32.mrf.mxu0
  %v1168 = vadd.f32 %v1154, %v1167
  %v1169 = vpop.f32.mrf.mxu0
  %v1170 = vadd.f32 %v1156, %v1169
  %1171 = vdwg.mxu0
  %v1172 = vadd.f32 %v965, %v1140
  %v1173 = vadd.f32 %v966, %v1168
  %v1174 = vadd.f32 %v967, %v1142
  %v1175 = vadd.f32 %v968, %v1170
  %s1176 = scalar_lea.vmem %s0, 288
  %v1177 = vld [vmem:[%s1176] sm:$0xff]
  %v1178 = vld [vmem:[%s1176 + $0x8] sm:$0xff]
  %v1179 = vld [vmem:[%s1176 + $0x10] sm:$0xff]
  %v1180 = vld [vmem:[%s1176 + $0x18] sm:$0xff]
  %v1181 = vpack.c.bf16 %v1179, %v1177
  %v1182 = vpack.c.bf16 %v1180, %v1178
  %s1183 = scalar_lea.vmem %s1, 816
  %v1184 = vld [vmem:[%s1183] sm:$0xff]
  %v1185 = vld [vmem:[%s1183 + $0x8] sm:$0xff]
  %v1186 = vld [vmem:[%s1183 + $0x10] sm:$0xff]
  %v1187 = vld [vmem:[%s1183 + $0x18] sm:$0xff]
  %v1188 = vld [vmem:[%s1183 + $0x20] sm:$0xff]
  %v1189 = vld [vmem:[%s1183 + $0x28] sm:$0xff]
  %v1190 = vld [vmem:[%s1183 + $0x30] sm:$0xff]
  %v1191 = vld [vmem:[%s1183 + $0x38] sm:$0xff]
  %v1192 = vld [vmem:[%s1183 + $0x40] sm:$0xff]
  %v1193 = vld [vmem:[%s1183 + $0x48] sm:$0xff]
  %v1194 = vld [vmem:[%s1183 + $0x50] sm:$0xff]
  %v1195 = vld [vmem:[%s1183 + $0x58] sm:$0xff]
  %v1196 = vld [vmem:[%s1183 + $0x60] sm:$0xff]
  %v1197 = vld [vmem:[%s1183 + $0x68] sm:$0xff]
  %v1198 = vld [vmem:[%s1183 + $0x70] sm:$0xff]
  %v1199 = vld [vmem:[%s1183 + $0x78] sm:$0xff]
  %v1200 = vld [vmem:[%s1183 + $0x80] sm:$0xff]
  %v1218 = vunpack.c.l.b16 %v1184
  %v1219 = vunpack.c.h.b16 %v1184
  %v1220 = vunpack.c.l.b16 %v1185
  %v1221 = vunpack.c.h.b16 %v1185
  %v1222 = vunpack.c.l.b16 %v1186
  %v1223 = vunpack.c.h.b16 %v1186
  %v1224 = vunpack.c.l.b16 %v1187
  %v1225 = vunpack.c.h.b16 %v1187
  %v1226 = vunpack.c.l.b16 %v1188
  %v1227 = vunpack.c.h.b16 %v1188
  %v1228 = vunpack.c.l.b16 %v1189
  %v1229 = vunpack.c.h.b16 %v1189
  %v1230 = vunpack.c.l.b16 %v1190
  %v1231 = vunpack.c.h.b16 %v1190
  %v1232 = vunpack.c.l.b16 %v1191
  %v1233 = vunpack.c.h.b16 %v1191
  %v1234 = vunpack.c.l.b16 %v1192
  %v1235 = vunpack.c.h.b16 %v1192
  %v1236 = vunpack.c.l.b16 %v1193
  %v1237 = vunpack.c.h.b16 %v1193
  %v1238 = vunpack.c.l.b16 %v1194
  %v1239 = vunpack.c.h.b16 %v1194
  %v1240 = vunpack.c.l.b16 %v1195
  %v1241 = vunpack.c.h.b16 %v1195
  %v1242 = vunpack.c.l.b16 %v1196
  %v1243 = vunpack.c.h.b16 %v1196
  %v1244 = vunpack.c.l.b16 %v1197
  %v1245 = vunpack.c.h.b16 %v1197
  %v1246 = vunpack.c.l.b16 %v1198
  %v1247 = vunpack.c.h.b16 %v1198
  %v1248 = vunpack.c.l.b16 %v1199
  %v1249 = vunpack.c.h.b16 %v1199
  %v1250 = vunpack.c.l.b16 %v1200
  %v1251 = vunpack.c.h.b16 %v1200
  %v1252 = vpack.c.b16 %v1220, %v1218
  %v1253 = vpack.c.b16 %v1221, %v1219
  %v1254 = vpack.c.b16 %v1224, %v1222
  %v1255 = vpack.c.b16 %v1225, %v1223
  %v1256 = vpack.c.b16 %v1228, %v1226
  %v1257 = vpack.c.b16 %v1229, %v1227
  %v1258 = vpack.c.b16 %v1232, %v1230
  %v1259 = vpack.c.b16 %v1233, %v1231
  %v1260 = vpack.c.b16 %v1236, %v1234
  %v1261 = vpack.c.b16 %v1237, %v1235
  %v1262 = vpack.c.b16 %v1240, %v1238
  %v1263 = vpack.c.b16 %v1241, %v1239
  %v1264 = vpack.c.b16 %v1244, %v1242
  %v1265 = vpack.c.b16 %v1245, %v1243
  %v1266 = vpack.c.b16 %v1248, %v1246
  %v1267 = vpack.c.b16 %v1249, %v1247
  %v1268 = vpack.c.b16 %v1250, %v1250
  %v1269 = vpack.c.b16 %v1251, %v1251
  %v1287 = vsel %vm187, %v1182, 0
  %v1290 = vsel %vm191, %v1268, 0
  %v1293 = vsel %vm191, %v1269, 0
  %1295 = vmatpush.bf16.msra.mxu0 %v1266
  %1296 = vmatpush.bf16.msra.mxu0 %v1264
  %1297 = vmatpush.bf16.msra.mxu0 %v1262
  %1298 = vmatpush.bf16.msra.mxu0 %v1260
  %1299 = vmatpush.bf16.msra.mxu0 %v1258
  %1300 = vmatpush.bf16.msra.mxu0 %v1256
  %1301 = vmatpush.bf16.msra.mxu0 %v1254
  %1302 = vmatpush.bf16.msra.mxu0 %v1252
  %1303 = vmatmul.bf16.gmra.mxu0 %v1181
  %v1304 = vpop.f32.mrf.mxu0
  %v1305 = vadd.f32 0.0, %v1304
  %v1306 = vpop.f32.mrf.mxu0
  %v1307 = vadd.f32 0.0, %v1306
  %1308 = vdwg.mxu0
  %1309 = vmatpush.bf16.msra.mxu0 0
  %1310 = vmatpush.bf16.msra.mxu0 0
  %1311 = vmatpush.bf16.msra.mxu0 0
  %1312 = vmatpush.bf16.msra.mxu0 0
  %1313 = vmatpush.bf16.msra.mxu0 0
  %1314 = vmatpush.bf16.msra.mxu0 0
  %1315 = vmatpush.bf16.msra.mxu0 0
  %1316 = vmatpush.bf16.msra.mxu0 %v1290
  %1317 = vmatmul.bf16.gmra.mxu0 %v1287
  %v1318 = vpop.f32.mrf.mxu0
  %v1319 = vadd.f32 %v1305, %v1318
  %v1320 = vpop.f32.mrf.mxu0
  %v1321 = vadd.f32 %v1307, %v1320
  %1322 = vdwg.mxu0
  %1323 = vmatpush.bf16.msra.mxu0 %v1267
  %1324 = vmatpush.bf16.msra.mxu0 %v1265
  %1325 = vmatpush.bf16.msra.mxu0 %v1263
  %1326 = vmatpush.bf16.msra.mxu0 %v1261
  %1327 = vmatpush.bf16.msra.mxu0 %v1259
  %1328 = vmatpush.bf16.msra.mxu0 %v1257
  %1329 = vmatpush.bf16.msra.mxu0 %v1255
  %1330 = vmatpush.bf16.msra.mxu0 %v1253
  %1331 = vmatmul.bf16.gmra.mxu0 %v1181
  %v1332 = vpop.f32.mrf.mxu0
  %v1333 = vadd.f32 0.0, %v1332
  %v1334 = vpop.f32.mrf.mxu0
  %v1335 = vadd.f32 0.0, %v1334
  %1336 = vdwg.mxu0
  %1337 = vmatpush.bf16.msra.mxu0 0
  %1338 = vmatpush.bf16.msra.mxu0 0
  %1339 = vmatpush.bf16.msra.mxu0 0
  %1340 = vmatpush.bf16.msra.mxu0 0
  %1341 = vmatpush.bf16.msra.mxu0 0
  %1342 = vmatpush.bf16.msra.mxu0 0
  %1343 = vmatpush.bf16.msra.mxu0 0
  %1344 = vmatpush.bf16.msra.mxu0 %v1293
  %1345 = vmatmul.bf16.gmra.mxu0 %v1287
  %v1346 = vpop.f32.mrf.mxu0
  %v1347 = vadd.f32 %v1333, %v1346
  %v1348 = vpop.f32.mrf.mxu0
  %v1349 = vadd.f32 %v1335, %v1348
  %1350 = vdwg.mxu0
  %v1351 = vadd.f32 %v1172, %v1319
  %v1352 = vadd.f32 %v1173, %v1347
  %v1353 = vadd.f32 %v1174, %v1321
  %v1354 = vadd.f32 %v1175, %v1349
  %v1355 = vld [vmem:[%s1176] sm:$0xfe]
  %v1356 = vld [vmem:[%s1176 + $0x8] sm:$0xfe]
  %v1357 = vld [vmem:[%s1176 + $0x10] sm:$0xff]
  %v1358 = vld [vmem:[%s1176 + $0x18] sm:$0xff]
  %v1359 = vld [vmem:[%s1176 + $0x20] sm:$0x1]
  %v1360 = vld [vmem:[%s1176 + $0x28] sm:$0x1]
  %v1361 = vpack.c.bf16 %v1357, %v1355
  %v1362 = vpack.c.bf16 %v1358, %v1356
  %v1363 = vpack.c.bf16 %v1359, %v1359
  %v1364 = vpack.c.bf16 %v1360, %v1360
  %s1365 = scalar_lea.vmem %s1, 952
  %v1366 = vld [vmem:[%s1365] sm:$0xff]
  %v1367 = vld [vmem:[%s1365 + $0x8] sm:$0xff]
  %v1368 = vld [vmem:[%s1365 + $0x10] sm:$0xff]
  %v1369 = vld [vmem:[%s1365 + $0x18] sm:$0xff]
  %v1370 = vld [vmem:[%s1365 + $0x20] sm:$0xff]
  %v1371 = vld [vmem:[%s1365 + $0x28] sm:$0xff]
  %v1372 = vld [vmem:[%s1365 + $0x30] sm:$0xff]
  %v1373 = vld [vmem:[%s1365 + $0x38] sm:$0xff]
  %v1374 = vld [vmem:[%s1365 + $0x40] sm:$0xff]
  %v1375 = vld [vmem:[%s1365 + $0x48] sm:$0xff]
  %v1376 = vld [vmem:[%s1365 + $0x50] sm:$0xff]
  %v1377 = vld [vmem:[%s1365 + $0x58] sm:$0xff]
  %v1378 = vld [vmem:[%s1365 + $0x60] sm:$0xff]
  %v1379 = vld [vmem:[%s1365 + $0x68] sm:$0xff]
  %v1380 = vld [vmem:[%s1365 + $0x70] sm:$0xff]
  %v1381 = vld [vmem:[%s1365 + $0x78] sm:$0xff]
  %v1382 = vld [vmem:[%s1365 + $0x80] sm:$0xff]
  %v1384 = vshrl.u32 %v1361, 16
  %v1386 = vshll.u32 %v1361, 16
  %v1388 = vrot.slane %v1386, 1
  %v1389 = vor.u32 %v1384, %v1388
  %v1391 = vshll.u32 %v1363, 16
  %v1393 = vrot.slane %v1391, 1
  %v1394 = vsel %vm76, %v1389, %v1393
  %v1396 = vshrl.u32 %v1362, 16
  %v1398 = vshll.u32 %v1362, 16
  %v1400 = vrot.slane %v1398, 1
  %v1401 = vor.u32 %v1396, %v1400
  %v1403 = vshll.u32 %v1364, 16
  %v1405 = vrot.slane %v1403, 1
  %v1406 = vsel %vm76, %v1401, %v1405
  %v1425 = vunpack.c.l.b16 %v1366
  %v1426 = vunpack.c.h.b16 %v1366
  %v1427 = vunpack.c.l.b16 %v1367
  %v1428 = vunpack.c.h.b16 %v1367
  %v1429 = vunpack.c.l.b16 %v1368
  %v1430 = vunpack.c.h.b16 %v1368
  %v1431 = vunpack.c.l.b16 %v1369
  %v1432 = vunpack.c.h.b16 %v1369
  %v1433 = vunpack.c.l.b16 %v1370
  %v1434 = vunpack.c.h.b16 %v1370
  %v1435 = vunpack.c.l.b16 %v1371
  %v1436 = vunpack.c.h.b16 %v1371
  %v1437 = vunpack.c.l.b16 %v1372
  %v1438 = vunpack.c.h.b16 %v1372
  %v1439 = vunpack.c.l.b16 %v1373
  %v1440 = vunpack.c.h.b16 %v1373
  %v1441 = vunpack.c.l.b16 %v1374
  %v1442 = vunpack.c.h.b16 %v1374
  %v1443 = vunpack.c.l.b16 %v1375
  %v1444 = vunpack.c.h.b16 %v1375
  %v1445 = vunpack.c.l.b16 %v1376
  %v1446 = vunpack.c.h.b16 %v1376
  %v1447 = vunpack.c.l.b16 %v1377
  %v1448 = vunpack.c.h.b16 %v1377
  %v1449 = vunpack.c.l.b16 %v1378
  %v1450 = vunpack.c.h.b16 %v1378
  %v1451 = vunpack.c.l.b16 %v1379
  %v1452 = vunpack.c.h.b16 %v1379
  %v1453 = vunpack.c.l.b16 %v1380
  %v1454 = vunpack.c.h.b16 %v1380
  %v1455 = vunpack.c.l.b16 %v1381
  %v1456 = vunpack.c.h.b16 %v1381
  %v1457 = vunpack.c.l.b16 %v1382
  %v1458 = vunpack.c.h.b16 %v1382
  %v1459 = vpack.c.b16 %v1427, %v1425
  %v1460 = vpack.c.b16 %v1428, %v1426
  %v1461 = vpack.c.b16 %v1431, %v1429
  %v1462 = vpack.c.b16 %v1432, %v1430
  %v1463 = vpack.c.b16 %v1435, %v1433
  %v1464 = vpack.c.b16 %v1436, %v1434
  %v1465 = vpack.c.b16 %v1439, %v1437
  %v1466 = vpack.c.b16 %v1440, %v1438
  %v1467 = vpack.c.b16 %v1443, %v1441
  %v1468 = vpack.c.b16 %v1444, %v1442
  %v1469 = vpack.c.b16 %v1447, %v1445
  %v1470 = vpack.c.b16 %v1448, %v1446
  %v1471 = vpack.c.b16 %v1451, %v1449
  %v1472 = vpack.c.b16 %v1452, %v1450
  %v1473 = vpack.c.b16 %v1455, %v1453
  %v1474 = vpack.c.b16 %v1456, %v1454
  %v1475 = vpack.c.b16 %v1457, %v1457
  %v1476 = vpack.c.b16 %v1458, %v1458
  %v1494 = vsel %vm187, %v1406, 0
  %v1497 = vsel %vm191, %v1475, 0
  %v1500 = vsel %vm191, %v1476, 0
  %1502 = vmatpush.bf16.msra.mxu0 %v1473
  %1503 = vmatpush.bf16.msra.mxu0 %v1471
  %1504 = vmatpush.bf16.msra.mxu0 %v1469
  %1505 = vmatpush.bf16.msra.mxu0 %v1467
  %1506 = vmatpush.bf16.msra.mxu0 %v1465
  %1507 = vmatpush.bf16.msra.mxu0 %v1463
  %1508 = vmatpush.bf16.msra.mxu0 %v1461
  %1509 = vmatpush.bf16.msra.mxu0 %v1459
  %1510 = vmatmul.bf16.gmra.mxu0 %v1394
  %v1511 = vpop.f32.mrf.mxu0
  %v1512 = vadd.f32 0.0, %v1511
  %v1513 = vpop.f32.mrf.mxu0
  %v1514 = vadd.f32 0.0, %v1513
  %1515 = vdwg.mxu0
  %1516 = vmatpush.bf16.msra.mxu0 0
  %1517 = vmatpush.bf16.msra.mxu0 0
  %1518 = vmatpush.bf16.msra.mxu0 0
  %1519 = vmatpush.bf16.msra.mxu0 0
  %1520 = vmatpush.bf16.msra.mxu0 0
  %1521 = vmatpush.bf16.msra.mxu0 0
  %1522 = vmatpush.bf16.msra.mxu0 0
  %1523 = vmatpush.bf16.msra.mxu0 %v1497
  %1524 = vmatmul.bf16.gmra.mxu0 %v1494
  %v1525 = vpop.f32.mrf.mxu0
  %v1526 = vadd.f32 %v1512, %v1525
  %v1527 = vpop.f32.mrf.mxu0
  %v1528 = vadd.f32 %v1514, %v1527
  %1529 = vdwg.mxu0
  %1530 = vmatpush.bf16.msra.mxu0 %v1474
  %1531 = vmatpush.bf16.msra.mxu0 %v1472
  %1532 = vmatpush.bf16.msra.mxu0 %v1470
  %1533 = vmatpush.bf16.msra.mxu0 %v1468
  %1534 = vmatpush.bf16.msra.mxu0 %v1466
  %1535 = vmatpush.bf16.msra.mxu0 %v1464
  %1536 = vmatpush.bf16.msra.mxu0 %v1462
  %1537 = vmatpush.bf16.msra.mxu0 %v1460
  %1538 = vmatmul.bf16.gmra.mxu0 %v1394
  %v1539 = vpop.f32.mrf.mxu0
  %v1540 = vadd.f32 0.0, %v1539
  %v1541 = vpop.f32.mrf.mxu0
  %v1542 = vadd.f32 0.0, %v1541
  %1543 = vdwg.mxu0
  %1544 = vmatpush.bf16.msra.mxu0 0
  %1545 = vmatpush.bf16.msra.mxu0 0
  %1546 = vmatpush.bf16.msra.mxu0 0
  %1547 = vmatpush.bf16.msra.mxu0 0
  %1548 = vmatpush.bf16.msra.mxu0 0
  %1549 = vmatpush.bf16.msra.mxu0 0
  %1550 = vmatpush.bf16.msra.mxu0 0
  %1551 = vmatpush.bf16.msra.mxu0 %v1500
  %1552 = vmatmul.bf16.gmra.mxu0 %v1494
  %v1553 = vpop.f32.mrf.mxu0
  %v1554 = vadd.f32 %v1540, %v1553
  %v1555 = vpop.f32.mrf.mxu0
  %v1556 = vadd.f32 %v1542, %v1555
  %1557 = vdwg.mxu0
  %v1558 = vadd.f32 %v1351, %v1526
  %v1559 = vadd.f32 %v1352, %v1554
  %v1560 = vadd.f32 %v1353, %v1528
  %v1561 = vadd.f32 %v1354, %v1556
  %v1562 = vld [vmem:[%s2] sm:$0x3]
  %v1564 = vperm.slane %v1562, 0
  %v1565 = vperm.slane %v1562, 1
  %v1568 = vadd.f32 %v1558, %v1564
  %v1569 = vadd.f32 %v1559, %v1565
  %v1570 = vadd.f32 %v1560, %v1564
  %v1571 = vadd.f32 %v1561, %v1565
  %s1572 = scalar_lea.vmem %s0, 48
  %v1573 = vld [vmem:[%s1572] sm:$0xff]
  %v1574 = vld [vmem:[%s1572 + $0x8] sm:$0xff]
  %v1575 = vld [vmem:[%s1572 + $0x10] sm:$0xff]
  %v1576 = vld [vmem:[%s1572 + $0x18] sm:$0xff]
  %v1577 = vpack.c.bf16 %v1575, %v1573
  %v1578 = vpack.c.bf16 %v1576, %v1574
  %v1579 = vld [vmem:[%s1572] sm:$0xfe]
  %v1580 = vld [vmem:[%s1572 + $0x8] sm:$0xfe]
  %v1581 = vld [vmem:[%s1572 + $0x20] sm:$0x1]
  %v1582 = vld [vmem:[%s1572 + $0x28] sm:$0x1]
  %v1583 = vpack.c.bf16 %v1575, %v1579
  %v1584 = vpack.c.bf16 %v1576, %v1580
  %v1585 = vpack.c.bf16 %v1581, %v1581
  %v1586 = vpack.c.bf16 %v1582, %v1582
  %v1588 = vshrl.u32 %v1583, 16
  %v1590 = vshll.u32 %v1583, 16
  %v1592 = vrot.slane %v1590, 1
  %v1593 = vor.u32 %v1588, %v1592
  %v1595 = vshll.u32 %v1585, 16
  %v1597 = vrot.slane %v1595, 1
  %v1598 = vsel %vm76, %v1593, %v1597
  %v1600 = vshrl.u32 %v1584, 16
  %v1602 = vshll.u32 %v1584, 16
  %v1604 = vrot.slane %v1602, 1
  %v1605 = vor.u32 %v1600, %v1604
  %v1607 = vshll.u32 %v1586, 16
  %v1609 = vrot.slane %v1607, 1
  %v1610 = vsel %vm76, %v1605, %v1609
  %v1613 = vsel %vm187, %v1610, 0
  %1615 = vmatpush.bf16.msra.mxu0 %v167
  %1616 = vmatpush.bf16.msra.mxu0 %v165
  %1617 = vmatpush.bf16.msra.mxu0 %v163
  %1618 = vmatpush.bf16.msra.mxu0 %v161
  %1619 = vmatpush.bf16.msra.mxu0 %v159
  %1620 = vmatpush.bf16.msra.mxu0 %v157
  %1621 = vmatpush.bf16.msra.mxu0 %v155
  %1622 = vmatpush.bf16.msra.mxu0 %v153
  %1623 = vmatmul.bf16.gmra.mxu0 %v1598
  %v1624 = vpop.f32.mrf.mxu0
  %v1625 = vadd.f32 0.0, %v1624
  %v1626 = vpop.f32.mrf.mxu0
  %v1627 = vadd.f32 0.0, %v1626
  %1628 = vdwg.mxu0
  %1629 = vmatpush.bf16.msra.mxu0 0
  %1630 = vmatpush.bf16.msra.mxu0 0
  %1631 = vmatpush.bf16.msra.mxu0 0
  %1632 = vmatpush.bf16.msra.mxu0 0
  %1633 = vmatpush.bf16.msra.mxu0 0
  %1634 = vmatpush.bf16.msra.mxu0 0
  %1635 = vmatpush.bf16.msra.mxu0 0
  %1636 = vmatpush.bf16.msra.mxu0 %v193
  %1637 = vmatmul.bf16.gmra.mxu0 %v1613
  %v1638 = vpop.f32.mrf.mxu0
  %v1639 = vadd.f32 %v1625, %v1638
  %v1640 = vpop.f32.mrf.mxu0
  %v1641 = vadd.f32 %v1627, %v1640
  %1642 = vdwg.mxu0
  %1643 = vmatpush.bf16.msra.mxu0 %v168
  %1644 = vmatpush.bf16.msra.mxu0 %v166
  %1645 = vmatpush.bf16.msra.mxu0 %v164
  %1646 = vmatpush.bf16.msra.mxu0 %v162
  %1647 = vmatpush.bf16.msra.mxu0 %v160
  %1648 = vmatpush.bf16.msra.mxu0 %v158
  %1649 = vmatpush.bf16.msra.mxu0 %v156
  %1650 = vmatpush.bf16.msra.mxu0 %v154
  %1651 = vmatmul.bf16.gmra.mxu0 %v1598
  %v1652 = vpop.f32.mrf.mxu0
  %v1653 = vadd.f32 0.0, %v1652
  %v1654 = vpop.f32.mrf.mxu0
  %v1655 = vadd.f32 0.0, %v1654
  %1656 = vdwg.mxu0
  %1657 = vmatpush.bf16.msra.mxu0 0
  %1658 = vmatpush.bf16.msra.mxu0 0
  %1659 = vmatpush.bf16.msra.mxu0 0
  %1660 = vmatpush.bf16.msra.mxu0 0
  %1661 = vmatpush.bf16.msra.mxu0 0
  %1662 = vmatpush.bf16.msra.mxu0 0
  %1663 = vmatpush.bf16.msra.mxu0 0
  %1664 = vmatpush.bf16.msra.mxu0 %v196
  %1665 = vmatmul.bf16.gmra.mxu0 %v1613
  %v1666 = vpop.f32.mrf.mxu0
  %v1667 = vadd.f32 %v1653, %v1666
  %v1668 = vpop.f32.mrf.mxu0
  %v1669 = vadd.f32 %v1655, %v1668
  %1670 = vdwg.mxu0
  %v1672 = vsel %vm187, %v1578, 0
  %1674 = vmatpush.bf16.msra.mxu0 %v319
  %1675 = vmatpush.bf16.msra.mxu0 %v317
  %1676 = vmatpush.bf16.msra.mxu0 %v315
  %1677 = vmatpush.bf16.msra.mxu0 %v313
  %1678 = vmatpush.bf16.msra.mxu0 %v311
  %1679 = vmatpush.bf16.msra.mxu0 %v309
  %1680 = vmatpush.bf16.msra.mxu0 %v307
  %1681 = vmatpush.bf16.msra.mxu0 %v305
  %1682 = vmatmul.bf16.gmra.mxu0 %v1577
  %v1683 = vpop.f32.mrf.mxu0
  %v1684 = vadd.f32 %v1639, %v1683
  %v1685 = vpop.f32.mrf.mxu0
  %v1686 = vadd.f32 %v1641, %v1685
  %1687 = vdwg.mxu0
  %1688 = vmatpush.bf16.msra.mxu0 0
  %1689 = vmatpush.bf16.msra.mxu0 0
  %1690 = vmatpush.bf16.msra.mxu0 0
  %1691 = vmatpush.bf16.msra.mxu0 0
  %1692 = vmatpush.bf16.msra.mxu0 0
  %1693 = vmatpush.bf16.msra.mxu0 0
  %1694 = vmatpush.bf16.msra.mxu0 0
  %1695 = vmatpush.bf16.msra.mxu0 %v343
  %1696 = vmatmul.bf16.gmra.mxu0 %v1672
  %v1697 = vpop.f32.mrf.mxu0
  %v1698 = vadd.f32 %v1684, %v1697
  %v1699 = vpop.f32.mrf.mxu0
  %v1700 = vadd.f32 %v1686, %v1699
  %1701 = vdwg.mxu0
  %1702 = vmatpush.bf16.msra.mxu0 %v320
  %1703 = vmatpush.bf16.msra.mxu0 %v318
  %1704 = vmatpush.bf16.msra.mxu0 %v316
  %1705 = vmatpush.bf16.msra.mxu0 %v314
  %1706 = vmatpush.bf16.msra.mxu0 %v312
  %1707 = vmatpush.bf16.msra.mxu0 %v310
  %1708 = vmatpush.bf16.msra.mxu0 %v308
  %1709 = vmatpush.bf16.msra.mxu0 %v306
  %1710 = vmatmul.bf16.gmra.mxu0 %v1577
  %v1711 = vpop.f32.mrf.mxu0
  %v1712 = vadd.f32 %v1667, %v1711
  %v1713 = vpop.f32.mrf.mxu0
  %v1714 = vadd.f32 %v1669, %v1713
  %1715 = vdwg.mxu0
  %1716 = vmatpush.bf16.msra.mxu0 0
  %1717 = vmatpush.bf16.msra.mxu0 0
  %1718 = vmatpush.bf16.msra.mxu0 0
  %1719 = vmatpush.bf16.msra.mxu0 0
  %1720 = vmatpush.bf16.msra.mxu0 0
  %1721 = vmatpush.bf16.msra.mxu0 0
  %1722 = vmatpush.bf16.msra.mxu0 0
  %1723 = vmatpush.bf16.msra.mxu0 %v346
  %1724 = vmatmul.bf16.gmra.mxu0 %v1672
  %v1725 = vpop.f32.mrf.mxu0
  %v1726 = vadd.f32 %v1712, %v1725
  %v1727 = vpop.f32.mrf.mxu0
  %v1728 = vadd.f32 %v1714, %v1727
  %1729 = vdwg.mxu0
  %s1730 = scalar_lea.vmem %s0, 144
  %v1731 = vld [vmem:[%s1730] sm:$0xff]
  %v1732 = vld [vmem:[%s1730 + $0x8] sm:$0xff]
  %v1733 = vld [vmem:[%s1730 + $0x10] sm:$0xff]
  %v1734 = vld [vmem:[%s1730 + $0x18] sm:$0xff]
  %v1735 = vpack.c.bf16 %v1733, %v1731
  %v1736 = vpack.c.bf16 %v1734, %v1732
  %v1738 = vsel %vm187, %v1736, 0
  %1740 = vmatpush.bf16.msra.mxu0 %v494
  %1741 = vmatpush.bf16.msra.mxu0 %v492
  %1742 = vmatpush.bf16.msra.mxu0 %v490
  %1743 = vmatpush.bf16.msra.mxu0 %v488
  %1744 = vmatpush.bf16.msra.mxu0 %v486
  %1745 = vmatpush.bf16.msra.mxu0 %v484
  %1746 = vmatpush.bf16.msra.mxu0 %v482
  %1747 = vmatpush.bf16.msra.mxu0 %v480
  %1748 = vmatmul.bf16.gmra.mxu0 %v1735
  %v1749 = vpop.f32.mrf.mxu0
  %v1750 = vadd.f32 0.0, %v1749
  %v1751 = vpop.f32.mrf.mxu0
  %v1752 = vadd.f32 0.0, %v1751
  %1753 = vdwg.mxu0
  %1754 = vmatpush.bf16.msra.mxu0 0
  %1755 = vmatpush.bf16.msra.mxu0 0
  %1756 = vmatpush.bf16.msra.mxu0 0
  %1757 = vmatpush.bf16.msra.mxu0 0
  %1758 = vmatpush.bf16.msra.mxu0 0
  %1759 = vmatpush.bf16.msra.mxu0 0
  %1760 = vmatpush.bf16.msra.mxu0 0
  %1761 = vmatpush.bf16.msra.mxu0 %v518
  %1762 = vmatmul.bf16.gmra.mxu0 %v1738
  %v1763 = vpop.f32.mrf.mxu0
  %v1764 = vadd.f32 %v1750, %v1763
  %v1765 = vpop.f32.mrf.mxu0
  %v1766 = vadd.f32 %v1752, %v1765
  %1767 = vdwg.mxu0
  %1768 = vmatpush.bf16.msra.mxu0 %v495
  %1769 = vmatpush.bf16.msra.mxu0 %v493
  %1770 = vmatpush.bf16.msra.mxu0 %v491
  %1771 = vmatpush.bf16.msra.mxu0 %v489
  %1772 = vmatpush.bf16.msra.mxu0 %v487
  %1773 = vmatpush.bf16.msra.mxu0 %v485
  %1774 = vmatpush.bf16.msra.mxu0 %v483
  %1775 = vmatpush.bf16.msra.mxu0 %v481
  %1776 = vmatmul.bf16.gmra.mxu0 %v1735
  %v1777 = vpop.f32.mrf.mxu0
  %v1778 = vadd.f32 0.0, %v1777
  %v1779 = vpop.f32.mrf.mxu0
  %v1780 = vadd.f32 0.0, %v1779
  %1781 = vdwg.mxu0
  %1782 = vmatpush.bf16.msra.mxu0 0
  %1783 = vmatpush.bf16.msra.mxu0 0
  %1784 = vmatpush.bf16.msra.mxu0 0
  %1785 = vmatpush.bf16.msra.mxu0 0
  %1786 = vmatpush.bf16.msra.mxu0 0
  %1787 = vmatpush.bf16.msra.mxu0 0
  %1788 = vmatpush.bf16.msra.mxu0 0
  %1789 = vmatpush.bf16.msra.mxu0 %v521
  %1790 = vmatmul.bf16.gmra.mxu0 %v1738
  %v1791 = vpop.f32.mrf.mxu0
  %v1792 = vadd.f32 %v1778, %v1791
  %v1793 = vpop.f32.mrf.mxu0
  %v1794 = vadd.f32 %v1780, %v1793
  %1795 = vdwg.mxu0
  %v1796 = vadd.f32 %v1698, %v1764
  %v1797 = vadd.f32 %v1726, %v1792
  %v1798 = vadd.f32 %v1700, %v1766
  %v1799 = vadd.f32 %v1728, %v1794
  %v1800 = vld [vmem:[%s1730] sm:$0xfe]
  %v1801 = vld [vmem:[%s1730 + $0x8] sm:$0xfe]
  %v1802 = vld [vmem:[%s1730 + $0x10] sm:$0xff]
  %v1803 = vld [vmem:[%s1730 + $0x18] sm:$0xff]
  %v1804 = vld [vmem:[%s1730 + $0x20] sm:$0x1]
  %v1805 = vld [vmem:[%s1730 + $0x28] sm:$0x1]
  %v1806 = vpack.c.bf16 %v1802, %v1800
  %v1807 = vpack.c.bf16 %v1803, %v1801
  %v1808 = vpack.c.bf16 %v1804, %v1804
  %v1809 = vpack.c.bf16 %v1805, %v1805
  %v1811 = vshrl.u32 %v1806, 16
  %v1813 = vshll.u32 %v1806, 16
  %v1815 = vrot.slane %v1813, 1
  %v1816 = vor.u32 %v1811, %v1815
  %v1818 = vshll.u32 %v1808, 16
  %v1820 = vrot.slane %v1818, 1
  %v1821 = vsel %vm76, %v1816, %v1820
  %v1823 = vshrl.u32 %v1807, 16
  %v1825 = vshll.u32 %v1807, 16
  %v1827 = vrot.slane %v1825, 1
  %v1828 = vor.u32 %v1823, %v1827
  %v1830 = vshll.u32 %v1809, 16
  %v1832 = vrot.slane %v1830, 1
  %v1833 = vsel %vm76, %v1828, %v1832
  %v1836 = vsel %vm187, %v1833, 0
  %1838 = vmatpush.bf16.msra.mxu0 %v701
  %1839 = vmatpush.bf16.msra.mxu0 %v699
  %1840 = vmatpush.bf16.msra.mxu0 %v697
  %1841 = vmatpush.bf16.msra.mxu0 %v695
  %1842 = vmatpush.bf16.msra.mxu0 %v693
  %1843 = vmatpush.bf16.msra.mxu0 %v691
  %1844 = vmatpush.bf16.msra.mxu0 %v689
  %1845 = vmatpush.bf16.msra.mxu0 %v687
  %1846 = vmatmul.bf16.gmra.mxu0 %v1821
  %v1847 = vpop.f32.mrf.mxu0
  %v1848 = vadd.f32 0.0, %v1847
  %v1849 = vpop.f32.mrf.mxu0
  %v1850 = vadd.f32 0.0, %v1849
  %1851 = vdwg.mxu0
  %1852 = vmatpush.bf16.msra.mxu0 0
  %1853 = vmatpush.bf16.msra.mxu0 0
  %1854 = vmatpush.bf16.msra.mxu0 0
  %1855 = vmatpush.bf16.msra.mxu0 0
  %1856 = vmatpush.bf16.msra.mxu0 0
  %1857 = vmatpush.bf16.msra.mxu0 0
  %1858 = vmatpush.bf16.msra.mxu0 0
  %1859 = vmatpush.bf16.msra.mxu0 %v725
  %1860 = vmatmul.bf16.gmra.mxu0 %v1836
  %v1861 = vpop.f32.mrf.mxu0
  %v1862 = vadd.f32 %v1848, %v1861
  %v1863 = vpop.f32.mrf.mxu0
  %v1864 = vadd.f32 %v1850, %v1863
  %1865 = vdwg.mxu0
  %1866 = vmatpush.bf16.msra.mxu0 %v702
  %1867 = vmatpush.bf16.msra.mxu0 %v700
  %1868 = vmatpush.bf16.msra.mxu0 %v698
  %1869 = vmatpush.bf16.msra.mxu0 %v696
  %1870 = vmatpush.bf16.msra.mxu0 %v694
  %1871 = vmatpush.bf16.msra.mxu0 %v692
  %1872 = vmatpush.bf16.msra.mxu0 %v690
  %1873 = vmatpush.bf16.msra.mxu0 %v688
  %1874 = vmatmul.bf16.gmra.mxu0 %v1821
  %v1875 = vpop.f32.mrf.mxu0
  %v1876 = vadd.f32 0.0, %v1875
  %v1877 = vpop.f32.mrf.mxu0
  %v1878 = vadd.f32 0.0, %v1877
  %1879 = vdwg.mxu0
  %1880 = vmatpush.bf16.msra.mxu0 0
  %1881 = vmatpush.bf16.msra.mxu0 0
  %1882 = vmatpush.bf16.msra.mxu0 0
  %1883 = vmatpush.bf16.msra.mxu0 0
  %1884 = vmatpush.bf16.msra.mxu0 0
  %1885 = vmatpush.bf16.msra.mxu0 0
  %1886 = vmatpush.bf16.msra.mxu0 0
  %1887 = vmatpush.bf16.msra.mxu0 %v728
  %1888 = vmatmul.bf16.gmra.mxu0 %v1836
  %v1889 = vpop.f32.mrf.mxu0
  %v1890 = vadd.f32 %v1876, %v1889
  %v1891 = vpop.f32.mrf.mxu0
  %v1892 = vadd.f32 %v1878, %v1891
  %1893 = vdwg.mxu0
  %v1894 = vadd.f32 %v1796, %v1862
  %v1895 = vadd.f32 %v1797, %v1890
  %v1896 = vadd.f32 %v1798, %v1864
  %v1897 = vadd.f32 %v1799, %v1892
  %s1898 = scalar_lea.vmem %s0, 240
  %v1899 = vld [vmem:[%s1898] sm:$0xff]
  %v1900 = vld [vmem:[%s1898 + $0x8] sm:$0xff]
  %v1901 = vld [vmem:[%s1898 + $0x10] sm:$0xff]
  %v1902 = vld [vmem:[%s1898 + $0x18] sm:$0xff]
  %v1903 = vpack.c.bf16 %v1901, %v1899
  %v1904 = vpack.c.bf16 %v1902, %v1900
  %v1906 = vsel %vm187, %v1904, 0
  %1908 = vmatpush.bf16.msra.mxu0 %v880
  %1909 = vmatpush.bf16.msra.mxu0 %v878
  %1910 = vmatpush.bf16.msra.mxu0 %v876
  %1911 = vmatpush.bf16.msra.mxu0 %v874
  %1912 = vmatpush.bf16.msra.mxu0 %v872
  %1913 = vmatpush.bf16.msra.mxu0 %v870
  %1914 = vmatpush.bf16.msra.mxu0 %v868
  %1915 = vmatpush.bf16.msra.mxu0 %v866
  %1916 = vmatmul.bf16.gmra.mxu0 %v1903
  %v1917 = vpop.f32.mrf.mxu0
  %v1918 = vadd.f32 0.0, %v1917
  %v1919 = vpop.f32.mrf.mxu0
  %v1920 = vadd.f32 0.0, %v1919
  %1921 = vdwg.mxu0
  %1922 = vmatpush.bf16.msra.mxu0 0
  %1923 = vmatpush.bf16.msra.mxu0 0
  %1924 = vmatpush.bf16.msra.mxu0 0
  %1925 = vmatpush.bf16.msra.mxu0 0
  %1926 = vmatpush.bf16.msra.mxu0 0
  %1927 = vmatpush.bf16.msra.mxu0 0
  %1928 = vmatpush.bf16.msra.mxu0 0
  %1929 = vmatpush.bf16.msra.mxu0 %v904
  %1930 = vmatmul.bf16.gmra.mxu0 %v1906
  %v1931 = vpop.f32.mrf.mxu0
  %v1932 = vadd.f32 %v1918, %v1931
  %v1933 = vpop.f32.mrf.mxu0
  %v1934 = vadd.f32 %v1920, %v1933
  %1935 = vdwg.mxu0
  %1936 = vmatpush.bf16.msra.mxu0 %v881
  %1937 = vmatpush.bf16.msra.mxu0 %v879
  %1938 = vmatpush.bf16.msra.mxu0 %v877
  %1939 = vmatpush.bf16.msra.mxu0 %v875
  %1940 = vmatpush.bf16.msra.mxu0 %v873
  %1941 = vmatpush.bf16.msra.mxu0 %v871
  %1942 = vmatpush.bf16.msra.mxu0 %v869
  %1943 = vmatpush.bf16.msra.mxu0 %v867
  %1944 = vmatmul.bf16.gmra.mxu0 %v1903
  %v1945 = vpop.f32.mrf.mxu0
  %v1946 = vadd.f32 0.0, %v1945
  %v1947 = vpop.f32.mrf.mxu0
  %v1948 = vadd.f32 0.0, %v1947
  %1949 = vdwg.mxu0
  %1950 = vmatpush.bf16.msra.mxu0 0
  %1951 = vmatpush.bf16.msra.mxu0 0
  %1952 = vmatpush.bf16.msra.mxu0 0
  %1953 = vmatpush.bf16.msra.mxu0 0
  %1954 = vmatpush.bf16.msra.mxu0 0
  %1955 = vmatpush.bf16.msra.mxu0 0
  %1956 = vmatpush.bf16.msra.mxu0 0
  %1957 = vmatpush.bf16.msra.mxu0 %v907
  %1958 = vmatmul.bf16.gmra.mxu0 %v1906
  %v1959 = vpop.f32.mrf.mxu0
  %v1960 = vadd.f32 %v1946, %v1959
  %v1961 = vpop.f32.mrf.mxu0
  %v1962 = vadd.f32 %v1948, %v1961
  %1963 = vdwg.mxu0
  %v1964 = vadd.f32 %v1894, %v1932
  %v1965 = vadd.f32 %v1895, %v1960
  %v1966 = vadd.f32 %v1896, %v1934
  %v1967 = vadd.f32 %v1897, %v1962
  %v1968 = vld [vmem:[%s1898] sm:$0xfe]
  %v1969 = vld [vmem:[%s1898 + $0x8] sm:$0xfe]
  %v1970 = vld [vmem:[%s1898 + $0x10] sm:$0xff]
  %v1971 = vld [vmem:[%s1898 + $0x18] sm:$0xff]
  %v1972 = vld [vmem:[%s1898 + $0x20] sm:$0x1]
  %v1973 = vld [vmem:[%s1898 + $0x28] sm:$0x1]
  %v1974 = vpack.c.bf16 %v1970, %v1968
  %v1975 = vpack.c.bf16 %v1971, %v1969
  %v1976 = vpack.c.bf16 %v1972, %v1972
  %v1977 = vpack.c.bf16 %v1973, %v1973
  %v1979 = vshrl.u32 %v1974, 16
  %v1981 = vshll.u32 %v1974, 16
  %v1983 = vrot.slane %v1981, 1
  %v1984 = vor.u32 %v1979, %v1983
  %v1986 = vshll.u32 %v1976, 16
  %v1988 = vrot.slane %v1986, 1
  %v1989 = vsel %vm76, %v1984, %v1988
  %v1991 = vshrl.u32 %v1975, 16
  %v1993 = vshll.u32 %v1975, 16
  %v1995 = vrot.slane %v1993, 1
  %v1996 = vor.u32 %v1991, %v1995
  %v1998 = vshll.u32 %v1977, 16
  %v2000 = vrot.slane %v1998, 1
  %v2001 = vsel %vm76, %v1996, %v2000
  %v2004 = vsel %vm187, %v2001, 0
  %2006 = vmatpush.bf16.msra.mxu0 %v1087
  %2007 = vmatpush.bf16.msra.mxu0 %v1085
  %2008 = vmatpush.bf16.msra.mxu0 %v1083
  %2009 = vmatpush.bf16.msra.mxu0 %v1081
  %2010 = vmatpush.bf16.msra.mxu0 %v1079
  %2011 = vmatpush.bf16.msra.mxu0 %v1077
  %2012 = vmatpush.bf16.msra.mxu0 %v1075
  %2013 = vmatpush.bf16.msra.mxu0 %v1073
  %2014 = vmatmul.bf16.gmra.mxu0 %v1989
  %v2015 = vpop.f32.mrf.mxu0
  %v2016 = vadd.f32 0.0, %v2015
  %v2017 = vpop.f32.mrf.mxu0
  %v2018 = vadd.f32 0.0, %v2017
  %2019 = vdwg.mxu0
  %2020 = vmatpush.bf16.msra.mxu0 0
  %2021 = vmatpush.bf16.msra.mxu0 0
  %2022 = vmatpush.bf16.msra.mxu0 0
  %2023 = vmatpush.bf16.msra.mxu0 0
  %2024 = vmatpush.bf16.msra.mxu0 0
  %2025 = vmatpush.bf16.msra.mxu0 0
  %2026 = vmatpush.bf16.msra.mxu0 0
  %2027 = vmatpush.bf16.msra.mxu0 %v1111
  %2028 = vmatmul.bf16.gmra.mxu0 %v2004
  %v2029 = vpop.f32.mrf.mxu0
  %v2030 = vadd.f32 %v2016, %v2029
  %v2031 = vpop.f32.mrf.mxu0
  %v2032 = vadd.f32 %v2018, %v2031
  %2033 = vdwg.mxu0
  %2034 = vmatpush.bf16.msra.mxu0 %v1088
  %2035 = vmatpush.bf16.msra.mxu0 %v1086
  %2036 = vmatpush.bf16.msra.mxu0 %v1084
  %2037 = vmatpush.bf16.msra.mxu0 %v1082
  %2038 = vmatpush.bf16.msra.mxu0 %v1080
  %2039 = vmatpush.bf16.msra.mxu0 %v1078
  %2040 = vmatpush.bf16.msra.mxu0 %v1076
  %2041 = vmatpush.bf16.msra.mxu0 %v1074
  %2042 = vmatmul.bf16.gmra.mxu0 %v1989
  %v2043 = vpop.f32.mrf.mxu0
  %v2044 = vadd.f32 0.0, %v2043
  %v2045 = vpop.f32.mrf.mxu0
  %v2046 = vadd.f32 0.0, %v2045
  %2047 = vdwg.mxu0
  %2048 = vmatpush.bf16.msra.mxu0 0
  %2049 = vmatpush.bf16.msra.mxu0 0
  %2050 = vmatpush.bf16.msra.mxu0 0
  %2051 = vmatpush.bf16.msra.mxu0 0
  %2052 = vmatpush.bf16.msra.mxu0 0
  %2053 = vmatpush.bf16.msra.mxu0 0
  %2054 = vmatpush.bf16.msra.mxu0 0
  %2055 = vmatpush.bf16.msra.mxu0 %v1114
  %2056 = vmatmul.bf16.gmra.mxu0 %v2004
  %v2057 = vpop.f32.mrf.mxu0
  %v2058 = vadd.f32 %v2044, %v2057
  %v2059 = vpop.f32.mrf.mxu0
  %v2060 = vadd.f32 %v2046, %v2059
  %2061 = vdwg.mxu0
  %v2062 = vadd.f32 %v1964, %v2030
  %v2063 = vadd.f32 %v1965, %v2058
  %v2064 = vadd.f32 %v1966, %v2032
  %v2065 = vadd.f32 %v1967, %v2060
  %s2066 = scalar_lea.vmem %s0, 336
  %v2067 = vld [vmem:[%s2066] sm:$0xff]
  %v2068 = vld [vmem:[%s2066 + $0x8] sm:$0xff]
  %v2069 = vld [vmem:[%s2066 + $0x10] sm:$0xff]
  %v2070 = vld [vmem:[%s2066 + $0x18] sm:$0xff]
  %v2071 = vpack.c.bf16 %v2069, %v2067
  %v2072 = vpack.c.bf16 %v2070, %v2068
  %v2074 = vsel %vm187, %v2072, 0
  %2076 = vmatpush.bf16.msra.mxu0 %v1266
  %2077 = vmatpush.bf16.msra.mxu0 %v1264
  %2078 = vmatpush.bf16.msra.mxu0 %v1262
  %2079 = vmatpush.bf16.msra.mxu0 %v1260
  %2080 = vmatpush.bf16.msra.mxu0 %v1258
  %2081 = vmatpush.bf16.msra.mxu0 %v1256
  %2082 = vmatpush.bf16.msra.mxu0 %v1254
  %2083 = vmatpush.bf16.msra.mxu0 %v1252
  %2084 = vmatmul.bf16.gmra.mxu0 %v2071
  %v2085 = vpop.f32.mrf.mxu0
  %v2086 = vadd.f32 0.0, %v2085
  %v2087 = vpop.f32.mrf.mxu0
  %v2088 = vadd.f32 0.0, %v2087
  %2089 = vdwg.mxu0
  %2090 = vmatpush.bf16.msra.mxu0 0
  %2091 = vmatpush.bf16.msra.mxu0 0
  %2092 = vmatpush.bf16.msra.mxu0 0
  %2093 = vmatpush.bf16.msra.mxu0 0
  %2094 = vmatpush.bf16.msra.mxu0 0
  %2095 = vmatpush.bf16.msra.mxu0 0
  %2096 = vmatpush.bf16.msra.mxu0 0
  %2097 = vmatpush.bf16.msra.mxu0 %v1290
  %2098 = vmatmul.bf16.gmra.mxu0 %v2074
  %v2099 = vpop.f32.mrf.mxu0
  %v2100 = vadd.f32 %v2086, %v2099
  %v2101 = vpop.f32.mrf.mxu0
  %v2102 = vadd.f32 %v2088, %v2101
  %2103 = vdwg.mxu0
  %2104 = vmatpush.bf16.msra.mxu0 %v1267
  %2105 = vmatpush.bf16.msra.mxu0 %v1265
  %2106 = vmatpush.bf16.msra.mxu0 %v1263
  %2107 = vmatpush.bf16.msra.mxu0 %v1261
  %2108 = vmatpush.bf16.msra.mxu0 %v1259
  %2109 = vmatpush.bf16.msra.mxu0 %v1257
  %2110 = vmatpush.bf16.msra.mxu0 %v1255
  %2111 = vmatpush.bf16.msra.mxu0 %v1253
  %2112 = vmatmul.bf16.gmra.mxu0 %v2071
  %v2113 = vpop.f32.mrf.mxu0
  %v2114 = vadd.f32 0.0, %v2113
  %v2115 = vpop.f32.mrf.mxu0
  %v2116 = vadd.f32 0.0, %v2115
  %2117 = vdwg.mxu0
  %2118 = vmatpush.bf16.msra.mxu0 0
  %2119 = vmatpush.bf16.msra.mxu0 0
  %2120 = vmatpush.bf16.msra.mxu0 0
  %2121 = vmatpush.bf16.msra.mxu0 0
  %2122 = vmatpush.bf16.msra.mxu0 0
  %2123 = vmatpush.bf16.msra.mxu0 0
  %2124 = vmatpush.bf16.msra.mxu0 0
  %2125 = vmatpush.bf16.msra.mxu0 %v1293
  %2126 = vmatmul.bf16.gmra.mxu0 %v2074
  %v2127 = vpop.f32.mrf.mxu0
  %v2128 = vadd.f32 %v2114, %v2127
  %v2129 = vpop.f32.mrf.mxu0
  %v2130 = vadd.f32 %v2116, %v2129
  %2131 = vdwg.mxu0
  %v2132 = vadd.f32 %v2062, %v2100
  %v2133 = vadd.f32 %v2063, %v2128
  %v2134 = vadd.f32 %v2064, %v2102
  %v2135 = vadd.f32 %v2065, %v2130
  %v2136 = vld [vmem:[%s2066] sm:$0xfe]
  %v2137 = vld [vmem:[%s2066 + $0x8] sm:$0xfe]
  %v2138 = vld [vmem:[%s2066 + $0x10] sm:$0xff]
  %v2139 = vld [vmem:[%s2066 + $0x18] sm:$0xff]
  %v2140 = vld [vmem:[%s2066 + $0x20] sm:$0x1]
  %v2141 = vld [vmem:[%s2066 + $0x28] sm:$0x1]
  %v2142 = vpack.c.bf16 %v2138, %v2136
  %v2143 = vpack.c.bf16 %v2139, %v2137
  %v2144 = vpack.c.bf16 %v2140, %v2140
  %v2145 = vpack.c.bf16 %v2141, %v2141
  %v2147 = vshrl.u32 %v2142, 16
  %v2149 = vshll.u32 %v2142, 16
  %v2151 = vrot.slane %v2149, 1
  %v2152 = vor.u32 %v2147, %v2151
  %v2154 = vshll.u32 %v2144, 16
  %v2156 = vrot.slane %v2154, 1
  %v2157 = vsel %vm76, %v2152, %v2156
  %v2159 = vshrl.u32 %v2143, 16
  %v2161 = vshll.u32 %v2143, 16
  %v2163 = vrot.slane %v2161, 1
  %v2164 = vor.u32 %v2159, %v2163
  %v2166 = vshll.u32 %v2145, 16
  %v2168 = vrot.slane %v2166, 1
  %v2169 = vsel %vm76, %v2164, %v2168
  %v2172 = vsel %vm187, %v2169, 0
  %2174 = vmatpush.bf16.msra.mxu0 %v1473
  %2175 = vmatpush.bf16.msra.mxu0 %v1471
  %2176 = vmatpush.bf16.msra.mxu0 %v1469
  %2177 = vmatpush.bf16.msra.mxu0 %v1467
  %2178 = vmatpush.bf16.msra.mxu0 %v1465
  %2179 = vmatpush.bf16.msra.mxu0 %v1463
  %2180 = vmatpush.bf16.msra.mxu0 %v1461
  %2181 = vmatpush.bf16.msra.mxu0 %v1459
  %2182 = vmatmul.bf16.gmra.mxu0 %v2157
  %v2183 = vpop.f32.mrf.mxu0
  %v2184 = vadd.f32 0.0, %v2183
  %v2185 = vpop.f32.mrf.mxu0
  %v2186 = vadd.f32 0.0, %v2185
  %2187 = vdwg.mxu0
  %2188 = vmatpush.bf16.msra.mxu0 0
  %2189 = vmatpush.bf16.msra.mxu0 0
  %2190 = vmatpush.bf16.msra.mxu0 0
  %2191 = vmatpush.bf16.msra.mxu0 0
  %2192 = vmatpush.bf16.msra.mxu0 0
  %2193 = vmatpush.bf16.msra.mxu0 0
  %2194 = vmatpush.bf16.msra.mxu0 0
  %2195 = vmatpush.bf16.msra.mxu0 %v1497
  %2196 = vmatmul.bf16.gmra.mxu0 %v2172
  %v2197 = vpop.f32.mrf.mxu0
  %v2198 = vadd.f32 %v2184, %v2197
  %v2199 = vpop.f32.mrf.mxu0
  %v2200 = vadd.f32 %v2186, %v2199
  %2201 = vdwg.mxu0
  %2202 = vmatpush.bf16.msra.mxu0 %v1474
  %2203 = vmatpush.bf16.msra.mxu0 %v1472
  %2204 = vmatpush.bf16.msra.mxu0 %v1470
  %2205 = vmatpush.bf16.msra.mxu0 %v1468
  %2206 = vmatpush.bf16.msra.mxu0 %v1466
  %2207 = vmatpush.bf16.msra.mxu0 %v1464
  %2208 = vmatpush.bf16.msra.mxu0 %v1462
  %2209 = vmatpush.bf16.msra.mxu0 %v1460
  %2210 = vmatmul.bf16.gmra.mxu0 %v2157
  %v2211 = vpop.f32.mrf.mxu0
  %v2212 = vadd.f32 0.0, %v2211
  %v2213 = vpop.f32.mrf.mxu0
  %v2214 = vadd.f32 0.0, %v2213
  %2215 = vdwg.mxu0
  %2216 = vmatpush.bf16.msra.mxu0 0
  %2217 = vmatpush.bf16.msra.mxu0 0
  %2218 = vmatpush.bf16.msra.mxu0 0
  %2219 = vmatpush.bf16.msra.mxu0 0
  %2220 = vmatpush.bf16.msra.mxu0 0
  %2221 = vmatpush.bf16.msra.mxu0 0
  %2222 = vmatpush.bf16.msra.mxu0 0
  %2223 = vmatpush.bf16.msra.mxu0 %v1500
  %2224 = vmatmul.bf16.gmra.mxu0 %v2172
  %v2225 = vpop.f32.mrf.mxu0
  %v2226 = vadd.f32 %v2212, %v2225
  %v2227 = vpop.f32.mrf.mxu0
  %v2228 = vadd.f32 %v2214, %v2227
  %2229 = vdwg.mxu0
  %v2230 = vadd.f32 %v2132, %v2198
  %v2231 = vadd.f32 %v2133, %v2226
  %v2232 = vadd.f32 %v2134, %v2200
  %v2233 = vadd.f32 %v2135, %v2228
  %v2234 = vadd.f32 %v2230, %v1564
  %v2235 = vadd.f32 %v2231, %v1565
  %v2236 = vadd.f32 %v2232, %v1564
  %v2237 = vadd.f32 %v2233, %v1565
  %v2238 = vadd.f32 %v1568, %v1570
  %v2239 = vrot.slane %v2238, 4
  %v2240 = vadd.f32 %v2238, %v2239
  %v2241 = vrot.slane %v2240, 2
  %v2242 = vadd.f32 %v2240, %v2241
  %v2243 = vrot.slane %v2242, 1
  %v2244 = vadd.f32 %v2242, %v2243
  %v2245 = vadd.f32 %v1569, %v1571
  %v2246 = vrot.slane %v2245, 4
  %v2247 = vadd.f32 %v2245, %v2246
  %v2248 = vrot.slane %v2247, 2
  %v2249 = vadd.f32 %v2247, %v2248
  %v2250 = vrot.slane %v2249, 1
  %v2251 = vadd.f32 %v2249, %v2250
  %v2252 = vadd.f32 %v2244, 0.0
  %v2253 = vadd.f32 %v2251, 0.0
  %v2254 = vmul.f32 %v1568, %v1568
  %v2255 = vmul.f32 %v1569, %v1569
  %v2256 = vmul.f32 %v1570, %v1570
  %v2257 = vmul.f32 %v1571, %v1571
  %v2258 = vadd.f32 %v2254, %v2256
  %v2259 = vrot.slane %v2258, 4
  %v2260 = vadd.f32 %v2258, %v2259
  %v2261 = vrot.slane %v2260, 2
  %v2262 = vadd.f32 %v2260, %v2261
  %v2263 = vrot.slane %v2262, 1
  %v2264 = vadd.f32 %v2262, %v2263
  %v2265 = vadd.f32 %v2255, %v2257
  %v2266 = vrot.slane %v2265, 4
  %v2267 = vadd.f32 %v2265, %v2266
  %v2268 = vrot.slane %v2267, 2
  %v2269 = vadd.f32 %v2267, %v2268
  %v2270 = vrot.slane %v2269, 1
  %v2271 = vadd.f32 %v2269, %v2270
  %v2272 = vadd.f32 %v2264, 0.0
  %v2273 = vadd.f32 %v2271, 0.0
  %v2274 = vadd.f32 %v2234, %v2236
  %v2275 = vrot.slane %v2274, 4
  %v2276 = vadd.f32 %v2274, %v2275
  %v2277 = vrot.slane %v2276, 2
  %v2278 = vadd.f32 %v2276, %v2277
  %v2279 = vrot.slane %v2278, 1
  %v2280 = vadd.f32 %v2278, %v2279
  %v2281 = vadd.f32 %v2235, %v2237
  %v2282 = vrot.slane %v2281, 4
  %v2283 = vadd.f32 %v2281, %v2282
  %v2284 = vrot.slane %v2283, 2
  %v2285 = vadd.f32 %v2283, %v2284
  %v2286 = vrot.slane %v2285, 1
  %v2287 = vadd.f32 %v2285, %v2286
  %v2288 = vadd.f32 %v2252, %v2280
  %v2289 = vadd.f32 %v2253, %v2287
  %v2290 = vmul.f32 %v2234, %v2234
  %v2291 = vmul.f32 %v2235, %v2235
  %v2292 = vmul.f32 %v2236, %v2236
  %v2293 = vmul.f32 %v2237, %v2237
  %v2294 = vadd.f32 %v2290, %v2292
  %v2295 = vrot.slane %v2294, 4
  %v2296 = vadd.f32 %v2294, %v2295
  %v2297 = vrot.slane %v2296, 2
  %v2298 = vadd.f32 %v2296, %v2297
  %v2299 = vrot.slane %v2298, 1
  %v2300 = vadd.f32 %v2298, %v2299
  %v2301 = vadd.f32 %v2291, %v2293
  %v2302 = vrot.slane %v2301, 4
  %v2303 = vadd.f32 %v2301, %v2302
  %v2304 = vrot.slane %v2303, 2
  %v2305 = vadd.f32 %v2303, %v2304
  %v2306 = vrot.slane %v2305, 1
  %v2307 = vadd.f32 %v2305, %v2306
  %v2308 = vadd.f32 %v2272, %v2300
  %v2309 = vadd.f32 %v2273, %v2307
  %v2310 = vld [vmem:[%s3] sm:$0xff]
  %v2311 = vld [vmem:[%s3 + $0x8] sm:$0xff]
  %v2312 = vld [vmem:[%s3 + $0x10] sm:$0xff]
  %v2313 = vld [vmem:[%s3 + $0x18] sm:$0xff]
  %v2314 = vld [vmem:[%s3 + $0x20] sm:$0xff]
  %v2315 = vld [vmem:[%s3 + $0x28] sm:$0xff]
  %v2316 = vld [vmem:[%s3 + $0x30] sm:$0xff]
  %v2317 = vld [vmem:[%s3 + $0x38] sm:$0xff]
  %v2318 = vld [vmem:[%s3 + $0x40] sm:$0xff]
  %v2319 = vld [vmem:[%s3 + $0x48] sm:$0xff]
  %v2320 = vld [vmem:[%s3 + $0x50] sm:$0xff]
  %v2321 = vld [vmem:[%s3 + $0x58] sm:$0xff]
  %v2322 = vld [vmem:[%s3 + $0x60] sm:$0xff]
  %v2323 = vld [vmem:[%s3 + $0x68] sm:$0xff]
  %v2324 = vld [vmem:[%s3 + $0x70] sm:$0xff]
  %v2325 = vld [vmem:[%s3 + $0x78] sm:$0xff]
  %v2326 = vld [vmem:[%s3 + $0x80] sm:$0xff]
  %v2327 = vld [vmem:[%s3 + $0x88] sm:$0xff]
  %v2328 = vld [vmem:[%s3 + $0x90] sm:$0xff]
  %v2329 = vld [vmem:[%s3 + $0x98] sm:$0xff]
  %v2330 = vld [vmem:[%s3 + $0xa0] sm:$0xff]
  %v2331 = vld [vmem:[%s3 + $0xa8] sm:$0xff]
  %v2332 = vld [vmem:[%s3 + $0xb0] sm:$0xff]
  %v2333 = vld [vmem:[%s3 + $0xb8] sm:$0xff]
  %v2334 = vld [vmem:[%s3 + $0xc0] sm:$0xff]
  %v2335 = vld [vmem:[%s3 + $0xc8] sm:$0xff]
  %v2336 = vld [vmem:[%s3 + $0xd0] sm:$0xff]
  %v2337 = vld [vmem:[%s3 + $0xd8] sm:$0xff]
  %v2338 = vld [vmem:[%s3 + $0xe0] sm:$0xff]
  %v2339 = vld [vmem:[%s3 + $0xe8] sm:$0xff]
  %v2340 = vld [vmem:[%s3 + $0xf0] sm:$0xff]
  %v2341 = vld [vmem:[%s3 + $0xf8] sm:$0xff]
  %2342 = vmatpush.msra.mxu0 %v2325
  %2343 = vmatpush.msra.mxu0 %v2324
  %2344 = vmatpush.msra.mxu0 %v2323
  %2345 = vmatpush.msra.mxu0 %v2322
  %2346 = vmatpush.msra.mxu0 %v2321
  %2347 = vmatpush.msra.mxu0 %v2320
  %2348 = vmatpush.msra.mxu0 %v2319
  %2349 = vmatpush.msra.mxu0 %v2318
  %2350 = vmatpush.msra.mxu0 %v2317
  %2351 = vmatpush.msra.mxu0 %v2316
  %2352 = vmatpush.msra.mxu0 %v2315
  %2353 = vmatpush.msra.mxu0 %v2314
  %2354 = vmatpush.msra.mxu0 %v2313
  %2355 = vmatpush.msra.mxu0 %v2312
  %2356 = vmatpush.msra.mxu0 %v2311
  %2357 = vmatpush.msra.mxu0 %v2310
  %2358 = vmatmul.f32.gmra.mxu0 %v2288
  %v2359 = vpop.f32.mrf.mxu0
  %v2360 = vadd.f32 0.0, %v2359
  %2361 = vdwg.mxu0
  %2362 = vmatpush.msra.mxu0 %v2341
  %2363 = vmatpush.msra.mxu0 %v2340
  %2364 = vmatpush.msra.mxu0 %v2339
  %2365 = vmatpush.msra.mxu0 %v2338
  %2366 = vmatpush.msra.mxu0 %v2337
  %2367 = vmatpush.msra.mxu0 %v2336
  %2368 = vmatpush.msra.mxu0 %v2335
  %2369 = vmatpush.msra.mxu0 %v2334
  %2370 = vmatpush.msra.mxu0 %v2333
  %2371 = vmatpush.msra.mxu0 %v2332
  %2372 = vmatpush.msra.mxu0 %v2331
  %2373 = vmatpush.msra.mxu0 %v2330
  %2374 = vmatpush.msra.mxu0 %v2329
  %2375 = vmatpush.msra.mxu0 %v2328
  %2376 = vmatpush.msra.mxu0 %v2327
  %2377 = vmatpush.msra.mxu0 %v2326
  %2378 = vmatmul.f32.gmra.mxu0 %v2289
  %v2379 = vpop.f32.mrf.mxu0
  %v2380 = vadd.f32 %v2360, %v2379
  %2381 = vdwg.mxu0
  %2382 = vmatpush.msra.mxu0 %v2325
  %2383 = vmatpush.msra.mxu0 %v2324
  %2384 = vmatpush.msra.mxu0 %v2323
  %2385 = vmatpush.msra.mxu0 %v2322
  %2386 = vmatpush.msra.mxu0 %v2321
  %2387 = vmatpush.msra.mxu0 %v2320
  %2388 = vmatpush.msra.mxu0 %v2319
  %2389 = vmatpush.msra.mxu0 %v2318
  %2390 = vmatpush.msra.mxu0 %v2317
  %2391 = vmatpush.msra.mxu0 %v2316
  %2392 = vmatpush.msra.mxu0 %v2315
  %2393 = vmatpush.msra.mxu0 %v2314
  %2394 = vmatpush.msra.mxu0 %v2313
  %2395 = vmatpush.msra.mxu0 %v2312
  %2396 = vmatpush.msra.mxu0 %v2311
  %2397 = vmatpush.msra.mxu0 %v2310
  %2398 = vmatmul.f32.gmra.mxu0 %v2308
  %v2399 = vpop.f32.mrf.mxu0
  %v2400 = vadd.f32 0.0, %v2399
  %2401 = vdwg.mxu0
  %2402 = vmatpush.msra.mxu0 %v2341
  %2403 = vmatpush.msra.mxu0 %v2340
  %2404 = vmatpush.msra.mxu0 %v2339
  %2405 = vmatpush.msra.mxu0 %v2338
  %2406 = vmatpush.msra.mxu0 %v2337
  %2407 = vmatpush.msra.mxu0 %v2336
  %2408 = vmatpush.msra.mxu0 %v2335
  %2409 = vmatpush.msra.mxu0 %v2334
  %2410 = vmatpush.msra.mxu0 %v2333
  %2411 = vmatpush.msra.mxu0 %v2332
  %2412 = vmatpush.msra.mxu0 %v2331
  %2413 = vmatpush.msra.mxu0 %v2330
  %2414 = vmatpush.msra.mxu0 %v2329
  %2415 = vmatpush.msra.mxu0 %v2328
  %2416 = vmatpush.msra.mxu0 %v2327
  %2417 = vmatpush.msra.mxu0 %v2326
  %2418 = vmatmul.f32.gmra.mxu0 %v2309
  %v2419 = vpop.f32.mrf.mxu0
  %v2420 = vadd.f32 %v2400, %v2419
  %2421 = vdwg.mxu0
  %v2422 = vrcp.pop 512.0
  %v2423 = vmul.f32 512.0, %v2422
  %v2424 = vsub.f32 1.0, %v2423
  %v2425 = vmul.f32 %v2422, %v2424
  %v2426 = vadd.f32 %v2422, %v2425
  %vm2427 = vweird.f32 %v2422
  %v2428 = vsel %vm2427, %v2422, %v2426
  %v2429 = vmul.f32 %v2380, %v2428
  %v2430 = vmul.f32 %v2420, %v2428
  %v2431 = vmul.f32 %v2429, %v2429
  %v2432 = vsub.f32 %v2430, %v2431
  %v2433 = vld [vmem:[%s5] sm:$0x1]
  %v2434 = vadd.f32 %v2432, 1e-05
  %v2435 = vrsqrt.pop %v2434
  %v2436 = vmul.f32 %v2435, %v2434
  %v2437 = vmul.f32 %v2436, %v2435
  %v2438 = vmul.f32 0.5, %v2437
  %v2439 = vsub.f32 1.5, %v2438
  %v2440 = vmul.f32 %v2435, %v2439
  %vm2441 = vweird.f32 %v2434
  %vm2442 = vweird.f32 %v2435
  %vm2443 = vmor %vm2441, %vm2442
  %v2444 = vsel %vm2443, %v2435, %v2440
  %v2445 = vmul.f32 %v2433, %v2444
  %v2446 = vld [vmem:[%s6] sm:$0x1]
  %v2447 = vmul.f32 %v2429, %v2445
  %v2448 = vsub.f32 %v2446, %v2447
  %v2449 = vld [vmem:[%s4] sm:$0xff]
  %v2450 = vld [vmem:[%s4 + $0x8] sm:$0xff]
  %v2451 = vld [vmem:[%s4 + $0x10] sm:$0xff]
  %v2452 = vld [vmem:[%s4 + $0x18] sm:$0xff]
  %vm2453 = vcmask 130048
  %v2455 = vsel %vm2453, %v2445, 0
  %2457 = vmatpush.msra.mxu0 0.0
  %2458 = vmatpush.msra.mxu0 0.0
  %2459 = vmatpush.msra.mxu0 0.0
  %2460 = vmatpush.msra.mxu0 0.0
  %2461 = vmatpush.msra.mxu0 0.0
  %2462 = vmatpush.msra.mxu0 0.0
  %2463 = vmatpush.msra.mxu0 0.0
  %2464 = vmatpush.msra.mxu0 0.0
  %2465 = vmatpush.msra.mxu0 0.0
  %2466 = vmatpush.msra.mxu0 0.0
  %2467 = vmatpush.msra.mxu0 0.0
  %2468 = vmatpush.msra.mxu0 0.0
  %2469 = vmatpush.msra.mxu0 0.0
  %2470 = vmatpush.msra.mxu0 0.0
  %2471 = vmatpush.msra.mxu0 %v2451
  %2472 = vmatpush.msra.mxu0 %v2449
  %2473 = vmatmul.f32.gmra.mxu0 %v2455
  %v2474 = vpop.f32.mrf.mxu0
  %v2475 = vadd.f32 0.0, %v2474
  %2476 = vdwg.mxu0
  %2477 = vmatpush.msra.mxu0 0.0
  %2478 = vmatpush.msra.mxu0 0.0
  %2479 = vmatpush.msra.mxu0 0.0
  %2480 = vmatpush.msra.mxu0 0.0
  %2481 = vmatpush.msra.mxu0 0.0
  %2482 = vmatpush.msra.mxu0 0.0
  %2483 = vmatpush.msra.mxu0 0.0
  %2484 = vmatpush.msra.mxu0 0.0
  %2485 = vmatpush.msra.mxu0 0.0
  %2486 = vmatpush.msra.mxu0 0.0
  %2487 = vmatpush.msra.mxu0 0.0
  %2488 = vmatpush.msra.mxu0 0.0
  %2489 = vmatpush.msra.mxu0 0.0
  %2490 = vmatpush.msra.mxu0 0.0
  %2491 = vmatpush.msra.mxu0 %v2452
  %2492 = vmatpush.msra.mxu0 %v2450
  %2493 = vmatmul.f32.gmra.mxu0 %v2455
  %v2494 = vpop.f32.mrf.mxu0
  %v2495 = vadd.f32 0.0, %v2494
  %2496 = vdwg.mxu0
  %v2498 = vsel %vm2453, %v2448, 0
  %2500 = vmatpush.msra.mxu0 0.0
  %2501 = vmatpush.msra.mxu0 0.0
  %2502 = vmatpush.msra.mxu0 0.0
  %2503 = vmatpush.msra.mxu0 0.0
  %2504 = vmatpush.msra.mxu0 0.0
  %2505 = vmatpush.msra.mxu0 0.0
  %2506 = vmatpush.msra.mxu0 0.0
  %2507 = vmatpush.msra.mxu0 0.0
  %2508 = vmatpush.msra.mxu0 0.0
  %2509 = vmatpush.msra.mxu0 0.0
  %2510 = vmatpush.msra.mxu0 0.0
  %2511 = vmatpush.msra.mxu0 0.0
  %2512 = vmatpush.msra.mxu0 0.0
  %2513 = vmatpush.msra.mxu0 0.0
  %2514 = vmatpush.msra.mxu0 %v2451
  %2515 = vmatpush.msra.mxu0 %v2449
  %2516 = vmatmul.f32.gmra.mxu0 %v2498
  %v2517 = vpop.f32.mrf.mxu0
  %v2518 = vadd.f32 0.0, %v2517
  %2519 = vdwg.mxu0
  %2520 = vmatpush.msra.mxu0 0.0
  %2521 = vmatpush.msra.mxu0 0.0
  %2522 = vmatpush.msra.mxu0 0.0
  %2523 = vmatpush.msra.mxu0 0.0
  %2524 = vmatpush.msra.mxu0 0.0
  %2525 = vmatpush.msra.mxu0 0.0
  %2526 = vmatpush.msra.mxu0 0.0
  %2527 = vmatpush.msra.mxu0 0.0
  %2528 = vmatpush.msra.mxu0 0.0
  %2529 = vmatpush.msra.mxu0 0.0
  %2530 = vmatpush.msra.mxu0 0.0
  %2531 = vmatpush.msra.mxu0 0.0
  %2532 = vmatpush.msra.mxu0 0.0
  %2533 = vmatpush.msra.mxu0 0.0
  %2534 = vmatpush.msra.mxu0 %v2452
  %2535 = vmatpush.msra.mxu0 %v2450
  %2536 = vmatmul.f32.gmra.mxu0 %v2498
  %v2537 = vpop.f32.mrf.mxu0
  %v2538 = vadd.f32 0.0, %v2537
  %2539 = vdwg.mxu0
  %v2540 = vperm.slane %v2475, 0
  %v2541 = vperm.slane %v2495, 0
  %v2542 = vmul.f32 %v1568, %v2540
  %v2543 = vmul.f32 %v1569, %v2541
  %v2544 = vmul.f32 %v1570, %v2540
  %v2545 = vmul.f32 %v1571, %v2541
  %v2546 = vperm.slane %v2518, 0
  %v2547 = vperm.slane %v2538, 0
  %v2548 = vadd.f32 %v2542, %v2546
  %v2549 = vadd.f32 %v2543, %v2547
  %v2550 = vadd.f32 %v2544, %v2546
  %v2551 = vadd.f32 %v2545, %v2547
  %vm2552 = vcmp.ge.f32.partialorder %v2548, 0.0
  %vm2553 = vcmp.ge.f32.partialorder %v2549, 0.0
  %vm2554 = vcmp.ge.f32.partialorder %v2550, 0.0
  %vm2555 = vcmp.ge.f32.partialorder %v2551, 0.0
  %v2556 = vmul.f32 %v2548, 0.2
  %v2557 = vmul.f32 %v2549, 0.2
  %v2558 = vmul.f32 %v2550, 0.2
  %v2559 = vmul.f32 %v2551, 0.2
  %v2560 = vsel %vm2552, %v2548, %v2556
  %v2561 = vsel %vm2553, %v2549, %v2557
  %v2562 = vsel %vm2554, %v2550, %v2558
  %v2563 = vsel %vm2555, %v2551, %v2559
  %2564 = vst [vmem:[%s7] sm:$0xff] %v2560
  %2565 = vst [vmem:[%s7 + $0x8] sm:$0xff] %v2561
  %2566 = vst [vmem:[%s7 + $0x10] sm:$0xff] %v2562
  %2567 = vst [vmem:[%s7 + $0x18] sm:$0xff] %v2563
  %v2568 = vmul.f32 %v2234, %v2540
  %v2569 = vmul.f32 %v2235, %v2541
  %v2570 = vmul.f32 %v2236, %v2540
  %v2571 = vmul.f32 %v2237, %v2541
  %v2572 = vadd.f32 %v2568, %v2546
  %v2573 = vadd.f32 %v2569, %v2547
  %v2574 = vadd.f32 %v2570, %v2546
  %v2575 = vadd.f32 %v2571, %v2547
  %vm2576 = vcmp.ge.f32.partialorder %v2572, 0.0
  %vm2577 = vcmp.ge.f32.partialorder %v2573, 0.0
  %vm2578 = vcmp.ge.f32.partialorder %v2574, 0.0
  %vm2579 = vcmp.ge.f32.partialorder %v2575, 0.0
  %v2580 = vmul.f32 %v2572, 0.2
  %v2581 = vmul.f32 %v2573, 0.2
  %v2582 = vmul.f32 %v2574, 0.2
  %v2583 = vmul.f32 %v2575, 0.2
  %v2584 = vsel %vm2576, %v2572, %v2580
  %v2585 = vsel %vm2577, %v2573, %v2581
  %v2586 = vsel %vm2578, %v2574, %v2582
  %v2587 = vsel %vm2579, %v2575, %v2583
  %2588 = vst [vmem:[%s7 + $0x20] sm:$0xff] %v2584
  %2589 = vst [vmem:[%s7 + $0x28] sm:$0xff] %v2585
  %2590 = vst [vmem:[%s7 + $0x30] sm:$0xff] %v2586
  %2591 = vst [vmem:[%s7 + $0x38] sm:$0xff] %v2587
  // Predicated region
  $region30: #{discriminator_forward.6} parent=0 // pred_check
    _
  $region31: #{discriminator_forward.6} parent=0 // pred_check_branch
    %2593 = sbr.rel (0) target = $region33
  $region32: #{discriminator_forward.6} parent=0 // pred_region
    _
  $region33: #{discriminator_forward.6} parent=0 // pred_fallthru
    _
  // Predicated region
  $region34: #{discriminator_forward.6} parent=0 // pred_check
    _
  $region35: #{discriminator_forward.6} parent=0 // pred_check_branch
    %2595 = sbr.rel (0) target = $region37
  $region36: #{discriminator_forward.6} parent=0 // pred_region
    _
  $region37: #{discriminator_forward.6} parent=0 // pred_fallthru
    _

// kernel: discriminator_forward.7
$region0: #{discriminator_forward.7}
  #allocation0 [shape = 'u32[]', space=smem, size = 0x4, offset = 0x4, fixed_abs, tag = 'smem constant byte address 0x4 - core index']
  #allocation1 [shape = 'u32[72,128]{1,0:T(1,128)}', space=vmem, size = 0x9000, scoped, tag = 'internal scratch']
  %s0 = inlined_call_operand.vmem [shape: f32[4,2,9,144], index: 0, kind: input, shape index: {}]
  %s1 = inlined_call_operand.vmem [shape: bf16[8,144,256], index: 1, kind: input, shape index: {}]
  %s2 = inlined_call_operand.vmem [shape: f32[1,256], index: 2, kind: input, shape index: {}]
  %s3 = inlined_call_operand.vmem [shape: f32[256,32], index: 3, kind: input, shape index: {}]
  %s4 = inlined_call_operand.vmem [shape: f32[32,256], index: 4, kind: input, shape index: {}]
  %s5 = inlined_call_operand.vmem [shape: f32[1,32], index: 5, kind: input, shape index: {}]
  %s6 = inlined_call_operand.vmem [shape: f32[1,32], index: 6, kind: input, shape index: {}]
  %s7 = inlined_call_operand.vmem [shape: f32[16,256], index: 7, kind: output, shape index: {}]
  %s8 = sld [smem:[#allocation0]]
  $region38: #{discriminator_forward.7} parent=0
    _
  %s10 = ssub.s32 1, %s8
  %s11 = scalar_select 0, %s10, %s8
  // Predicated region
  $region2: #{discriminator_forward.7} parent=0 // pred_check
    _
  $region3: #{discriminator_forward.7} parent=0 // pred_check_branch
    %13 = sbr.rel (0) target = $region5
  $region4: #{discriminator_forward.7} parent=0 // pred_region
    _
  $region5: #{discriminator_forward.7} parent=0 // pred_fallthru
    _
  // Predicated region
  $region6: #{discriminator_forward.7} parent=0 // pred_check
    _
  $region7: #{discriminator_forward.7} parent=0 // pred_check_branch
    %15 = sbr.rel (0) target = $region9
  $region8: #{discriminator_forward.7} parent=0 // pred_region
    _
  $region9: #{discriminator_forward.7} parent=0 // pred_fallthru
    _
  // Predicated region
  $region10: #{discriminator_forward.7} parent=0 // pred_check
    _
  $region11: #{discriminator_forward.7} parent=0 // pred_check_branch
    %17 = sbr.rel (0) target = $region13
  $region12: #{discriminator_forward.7} parent=0 // pred_region
    _
  $region13: #{discriminator_forward.7} parent=0 // pred_fallthru
    _
  // Predicated region
  $region14: #{discriminator_forward.7} parent=0 // pred_check
    _
  $region15: #{discriminator_forward.7} parent=0 // pred_check_branch
    %19 = sbr.rel (0) target = $region17
  $region16: #{discriminator_forward.7} parent=0 // pred_region
    _
  $region17: #{discriminator_forward.7} parent=0 // pred_fallthru
    _
  // Predicated region
  $region18: #{discriminator_forward.7} parent=0 // pred_check
    _
  $region19: #{discriminator_forward.7} parent=0 // pred_check_branch
    %21 = sbr.rel (0) target = $region21
  $region20: #{discriminator_forward.7} parent=0 // pred_region
    _
  $region21: #{discriminator_forward.7} parent=0 // pred_fallthru
    _
  // Predicated region
  $region22: #{discriminator_forward.7} parent=0 // pred_check
    _
  $region23: #{discriminator_forward.7} parent=0 // pred_check_branch
    %23 = sbr.rel (0) target = $region25
  $region24: #{discriminator_forward.7} parent=0 // pred_region
    _
  $region25: #{discriminator_forward.7} parent=0 // pred_fallthru
    _
  // Predicated region
  $region26: #{discriminator_forward.7} parent=0 // pred_check
    _
  $region27: #{discriminator_forward.7} parent=0 // pred_check_branch
    %25 = sbr.rel (0) target = $region29
  $region28: #{discriminator_forward.7} parent=0 // pred_region
    _
  $region29: #{discriminator_forward.7} parent=0 // pred_fallthru
    _
  %v27 = vld [vmem:[%s0] sm:$0xff]
  %v28 = vld [vmem:[%s0 + $0x8] sm:$0xff]
  %v29 = vpack.c.bf16 %v27, %v27
  %v30 = vpack.c.bf16 %v28, %v28
  %v31 = vld [vmem:[%s1] sm:$0xff]
  %v32 = vld [vmem:[%s1 + $0x8] sm:$0xff]
  %v33 = vld [vmem:[%s1 + $0x10] sm:$0xff]
  %v34 = vld [vmem:[%s1 + $0x18] sm:$0xff]
  %v35 = vld [vmem:[%s1 + $0x20] sm:$0xff]
  %v36 = vld [vmem:[%s1 + $0x28] sm:$0xff]
  %v37 = vld [vmem:[%s1 + $0x30] sm:$0xff]
  %v38 = vld [vmem:[%s1 + $0x38] sm:$0xff]
  %v39 = vld [vmem:[%s1 + $0x40] sm:$0xff]
  %v40 = vld [vmem:[%s1 + $0x48] sm:$0xff]
  %v41 = vld [vmem:[%s1 + $0x50] sm:$0xff]
  %v42 = vld [vmem:[%s1 + $0x58] sm:$0xff]
  %v43 = vld [vmem:[%s1 + $0x60] sm:$0xff]
  %v44 = vld [vmem:[%s1 + $0x68] sm:$0xff]
  %v45 = vld [vmem:[%s1 + $0x70] sm:$0xff]
  %v46 = vld [vmem:[%s1 + $0x78] sm:$0xff]
  %v47 = vld [vmem:[%s1 + $0x80] sm:$0xff]
  %v48 = vld [vmem:[%s1 + $0x88] sm:$0xff]
  %v49 = vld [vmem:[%s0] sm:$0xfe]
  %v50 = vld [vmem:[%s0 + $0x8] sm:$0xfe]
  %v51 = vld [vmem:[%s0 + $0x10] sm:$0x1]
  %v52 = vld [vmem:[%s0 + $0x18] sm:$0x1]
  %v53 = vpack.c.bf16 %v51, %v49
  %v54 = vpack.c.bf16 %v52, %v50
  %s55 = scalar_lea.vmem %s1, 144
  %v56 = vld [vmem:[%s55] sm:$0xff]
  %v57 = vld [vmem:[%s55 + $0x8] sm:$0xff]
  %v58 = vld [vmem:[%s55 + $0x10] sm:$0xff]
  %v59 = vld [vmem:[%s55 + $0x18] sm:$0xff]
  %v60 = vld [vmem:[%s55 + $0x20] sm:$0xff]
  %v61 = vld [vmem:[%s55 + $0x28] sm:$0xff]
  %v62 = vld [vmem:[%s55 + $0x30] sm:$0xff]
  %v63 = vld [vmem:[%s55 + $0x38] sm:$0xff]
  %v64 = vld [vmem:[%s55 + $0x40] sm:$0xff]
  %v65 = vld [vmem:[%s55 + $0x48] sm:$0xff]
  %v66 = vld [vmem:[%s55 + $0x50] sm:$0xff]
  %v67 = vld [vmem:[%s55 + $0x58] sm:$0xff]
  %v68 = vld [vmem:[%s55 + $0x60] sm:$0xff]
  %v69 = vld [vmem:[%s55 + $0x68] sm:$0xff]
  %v70 = vld [vmem:[%s55 + $0x70] sm:$0xff]
  %v71 = vld [vmem:[%s55 + $0x78] sm:$0xff]
  %v72 = vld [vmem:[%s55 + $0x80] sm:$0xff]
  %v73 = vld [vmem:[%s55 + $0x88] sm:$0xff]
  %v75 = vshrl.u32 %v53, 16
  %v77 = vshll.u32 %v53, 16
  %v79 = vrot.slane %v77, 1
  %v80 = vor.u32 %v75, %v79
  %v82 = vshrl.u32 %v54, 16
  %v84 = vshll.u32 %v54, 16
  %v86 = vrot.slane %v84, 1
  %v87 = vor.u32 %v82, %v86
  %v107 = vunpack.c.l.b16 %v56
  %v108 = vunpack.c.h.b16 %v56
  %v109 = vunpack.c.l.b16 %v57
  %v110 = vunpack.c.h.b16 %v57
  %v111 = vunpack.c.l.b16 %v58
  %v112 = vunpack.c.h.b16 %v58
  %v113 = vunpack.c.l.b16 %v59
  %v114 = vunpack.c.h.b16 %v59
  %v115 = vunpack.c.l.b16 %v60
  %v116 = vunpack.c.h.b16 %v60
  %v117 = vunpack.c.l.b16 %v61
  %v118 = vunpack.c.h.b16 %v61
  %v119 = vunpack.c.l.b16 %v62
  %v120 = vunpack.c.h.b16 %v62
  %v121 = vunpack.c.l.b16 %v63
  %v122 = vunpack.c.h.b16 %v63
  %v123 = vunpack.c.l.b16 %v64
  %v124 = vunpack.c.h.b16 %v64
  %v125 = vunpack.c.l.b16 %v65
  %v126 = vunpack.c.h.b16 %v65
  %v127 = vunpack.c.l.b16 %v66
  %v128 = vunpack.c.h.b16 %v66
  %v129 = vunpack.c.l.b16 %v67
  %v130 = vunpack.c.h.b16 %v67
  %v131 = vunpack.c.l.b16 %v68
  %v132 = vunpack.c.h.b16 %v68
  %v133 = vunpack.c.l.b16 %v69
  %v134 = vunpack.c.h.b16 %v69
  %v135 = vunpack.c.l.b16 %v70
  %v136 = vunpack.c.h.b16 %v70
  %v137 = vunpack.c.l.b16 %v71
  %v138 = vunpack.c.h.b16 %v71
  %v139 = vunpack.c.l.b16 %v72
  %v140 = vunpack.c.h.b16 %v72
  %v141 = vunpack.c.l.b16 %v73
  %v142 = vunpack.c.h.b16 %v73
  %v143 = vpack.c.b16 %v109, %v107
  %v144 = vpack.c.b16 %v110, %v108
  %v145 = vpack.c.b16 %v113, %v111
  %v146 = vpack.c.b16 %v114, %v112
  %v147 = vpack.c.b16 %v117, %v115
  %v148 = vpack.c.b16 %v118, %v116
  %v149 = vpack.c.b16 %v121, %v119
  %v150 = vpack.c.b16 %v122, %v120
  %v151 = vpack.c.b16 %v125, %v123
  %v152 = vpack.c.b16 %v126, %v124
  %v153 = vpack.c.b16 %v129, %v127
  %v154 = vpack.c.b16 %v130, %v128
  %v155 = vpack.c.b16 %v133, %v131
  %v156 = vpack.c.b16 %v134, %v132
  %v157 = vpack.c.b16 %v137, %v135
  %v158 = vpack.c.b16 %v138, %v136
  %v159 = vpack.c.b16 %v141, %v139
  %v160 = vpack.c.b16 %v142, %v140
  %vm179 = vcmask 130048
  %v181 = vsel %vm179, %v87, 0
  %183 = vmatpush.bf16.msra.mxu0 %v157
  %184 = vmatpush.bf16.msra.mxu0 %v155
  %185 = vmatpush.bf16.msra.mxu0 %v153
  %186 = vmatpush.bf16.msra.mxu0 %v151
  %187 = vmatpush.bf16.msra.mxu0 %v149
  %188 = vmatpush.bf16.msra.mxu0 %v147
  %189 = vmatpush.bf16.msra.mxu0 %v145
  %190 = vmatpush.bf16.msra.mxu0 %v143
  %191 = vmatmul.bf16.gmra.mxu0 %v80
  %v192 = vpop.f32.mrf.mxu0
  %v193 = vadd.f32 0.0, %v192
  %v194 = vpop.f32.mrf.mxu0
  %195 = vdwg.mxu0
  %196 = vmatpush.bf16.msra.mxu0 0
  %197 = vmatpush.bf16.msra.mxu0 0
  %198 = vmatpush.bf16.msra.mxu0 0
  %199 = vmatpush.bf16.msra.mxu0 0
  %200 = vmatpush.bf16.msra.mxu0 0
  %201 = vmatpush.bf16.msra.mxu0 0
  %202 = vmatpush.bf16.msra.mxu0 0
  %203 = vmatpush.bf16.msra.mxu0 %v159
  %204 = vmatmul.bf16.gmra.mxu0 %v181
  %v205 = vpop.f32.mrf.mxu0
  %v206 = vadd.f32 %v193, %v205
  %v207 = vpop.f32.mrf.mxu0
  %208 = vdwg.mxu0
  %209 = vmatpush.bf16.msra.mxu0 %v158
  %210 = vmatpush.bf16.msra.mxu0 %v156
  %211 = vmatpush.bf16.msra.mxu0 %v154
  %212 = vmatpush.bf16.msra.mxu0 %v152
  %213 = vmatpush.bf16.msra.mxu0 %v150
  %214 = vmatpush.bf16.msra.mxu0 %v148
  %215 = vmatpush.bf16.msra.mxu0 %v146
  %216 = vmatpush.bf16.msra.mxu0 %v144
  %217 = vmatmul.bf16.gmra.mxu0 %v80
  %v218 = vpop.f32.mrf.mxu0
  %v219 = vadd.f32 0.0, %v218
  %v220 = vpop.f32.mrf.mxu0
  %221 = vdwg.mxu0
  %222 = vmatpush.bf16.msra.mxu0 0
  %223 = vmatpush.bf16.msra.mxu0 0
  %224 = vmatpush.bf16.msra.mxu0 0
  %225 = vmatpush.bf16.msra.mxu0 0
  %226 = vmatpush.bf16.msra.mxu0 0
  %227 = vmatpush.bf16.msra.mxu0 0
  %228 = vmatpush.bf16.msra.mxu0 0
  %229 = vmatpush.bf16.msra.mxu0 %v160
  %230 = vmatmul.bf16.gmra.mxu0 %v181
  %v231 = vpop.f32.mrf.mxu0
  %v232 = vadd.f32 %v219, %v231
  %v233 = vpop.f32.mrf.mxu0
  %234 = vdwg.mxu0
  %v253 = vunpack.c.l.b16 %v31
  %v254 = vunpack.c.h.b16 %v31
  %v255 = vunpack.c.l.b16 %v32
  %v256 = vunpack.c.h.b16 %v32
  %v257 = vunpack.c.l.b16 %v33
  %v258 = vunpack.c.h.b16 %v33
  %v259 = vunpack.c.l.b16 %v34
  %v260 = vunpack.c.h.b16 %v34
  %v261 = vunpack.c.l.b16 %v35
  %v262 = vunpack.c.h.b16 %v35
  %v263 = vunpack.c.l.b16 %v36
  %v264 = vunpack.c.h.b16 %v36
  %v265 = vunpack.c.l.b16 %v37
  %v266 = vunpack.c.h.b16 %v37
  %v267 = vunpack.c.l.b16 %v38
  %v268 = vunpack.c.h.b16 %v38
  %v269 = vunpack.c.l.b16 %v39
  %v270 = vunpack.c.h.b16 %v39
  %v271 = vunpack.c.l.b16 %v40
  %v272 = vunpack.c.h.b16 %v40
  %v273 = vunpack.c.l.b16 %v41
  %v274 = vunpack.c.h.b16 %v41
  %v275 = vunpack.c.l.b16 %v42
  %v276 = vunpack.c.h.b16 %v42
  %v277 = vunpack.c.l.b16 %v43
  %v278 = vunpack.c.h.b16 %v43
  %v279 = vunpack.c.l.b16 %v44
  %v280 = vunpack.c.h.b16 %v44
  %v281 = vunpack.c.l.b16 %v45
  %v282 = vunpack.c.h.b16 %v45
  %v283 = vunpack.c.l.b16 %v46
  %v284 = vunpack.c.h.b16 %v46
  %v285 = vunpack.c.l.b16 %v47
  %v286 = vunpack.c.h.b16 %v47
  %v287 = vunpack.c.l.b16 %v48
  %v288 = vunpack.c.h.b16 %v48
  %v289 = vpack.c.b16 %v255, %v253
  %v290 = vpack.c.b16 %v256, %v254
  %v291 = vpack.c.b16 %v259, %v257
  %v292 = vpack.c.b16 %v260, %v258
  %v293 = vpack.c.b16 %v263, %v261
  %v294 = vpack.c.b16 %v264, %v262
  %v295 = vpack.c.b16 %v267, %v265
  %v296 = vpack.c.b16 %v268, %v266
  %v297 = vpack.c.b16 %v271, %v269
  %v298 = vpack.c.b16 %v272, %v270
  %v299 = vpack.c.b16 %v275, %v273
  %v300 = vpack.c.b16 %v276, %v274
  %v301 = vpack.c.b16 %v279, %v277
  %v302 = vpack.c.b16 %v280, %v278
  %v303 = vpack.c.b16 %v283, %v281
  %v304 = vpack.c.b16 %v284, %v282
  %v305 = vpack.c.b16 %v287, %v285
  %v306 = vpack.c.b16 %v288, %v286
  %v326 = vsel %vm179, %v30, 0
  %328 = vmatpush.bf16.msra.mxu0 %v303
  %329 = vmatpush.bf16.msra.mxu0 %v301
  %330 = vmatpush.bf16.msra.mxu0 %v299
  %331 = vmatpush.bf16.msra.mxu0 %v297
  %332 = vmatpush.bf16.msra.mxu0 %v295
  %333 = vmatpush.bf16.msra.mxu0 %v293
  %334 = vmatpush.bf16.msra.mxu0 %v291
  %335 = vmatpush.bf16.msra.mxu0 %v289
  %336 = vmatmul.bf16.gmra.mxu0 %v29
  %v337 = vpop.f32.mrf.mxu0
  %v338 = vadd.f32 %v206, %v337
  %v339 = vpop.f32.mrf.mxu0
  %340 = vdwg.mxu0
  %341 = vmatpush.bf16.msra.mxu0 0
  %342 = vmatpush.bf16.msra.mxu0 0
  %343 = vmatpush.bf16.msra.mxu0 0
  %344 = vmatpush.bf16.msra.mxu0 0
  %345 = vmatpush.bf16.msra.mxu0 0
  %346 = vmatpush.bf16.msra.mxu0 0
  %347 = vmatpush.bf16.msra.mxu0 0
  %348 = vmatpush.bf16.msra.mxu0 %v305
  %349 = vmatmul.bf16.gmra.mxu0 %v326
  %v350 = vpop.f32.mrf.mxu0
  %v351 = vadd.f32 %v338, %v350
  %v352 = vpop.f32.mrf.mxu0
  %353 = vdwg.mxu0
  %354 = vmatpush.bf16.msra.mxu0 %v304
  %355 = vmatpush.bf16.msra.mxu0 %v302
  %356 = vmatpush.bf16.msra.mxu0 %v300
  %357 = vmatpush.bf16.msra.mxu0 %v298
  %358 = vmatpush.bf16.msra.mxu0 %v296
  %359 = vmatpush.bf16.msra.mxu0 %v294
  %360 = vmatpush.bf16.msra.mxu0 %v292
  %361 = vmatpush.bf16.msra.mxu0 %v290
  %362 = vmatmul.bf16.gmra.mxu0 %v29
  %v363 = vpop.f32.mrf.mxu0
  %v364 = vadd.f32 %v232, %v363
  %v365 = vpop.f32.mrf.mxu0
  %366 = vdwg.mxu0
  %367 = vmatpush.bf16.msra.mxu0 0
  %368 = vmatpush.bf16.msra.mxu0 0
  %369 = vmatpush.bf16.msra.mxu0 0
  %370 = vmatpush.bf16.msra.mxu0 0
  %371 = vmatpush.bf16.msra.mxu0 0
  %372 = vmatpush.bf16.msra.mxu0 0
  %373 = vmatpush.bf16.msra.mxu0 0
  %374 = vmatpush.bf16.msra.mxu0 %v306
  %375 = vmatmul.bf16.gmra.mxu0 %v326
  %v376 = vpop.f32.mrf.mxu0
  %v377 = vadd.f32 %v364, %v376
  %v378 = vpop.f32.mrf.mxu0
  %379 = vdwg.mxu0
  %s380 = scalar_lea.vmem %s0, 64
  %v381 = vld [vmem:[%s380] sm:$0xff]
  %v382 = vld [vmem:[%s380 + $0x8] sm:$0xff]
  %v383 = vpack.c.bf16 %v381, %v381
  %v384 = vpack.c.bf16 %v382, %v382
  %s385 = scalar_lea.vmem %s1, 288
  %v386 = vld [vmem:[%s385] sm:$0xff]
  %v387 = vld [vmem:[%s385 + $0x8] sm:$0xff]
  %v388 = vld [vmem:[%s385 + $0x10] sm:$0xff]
  %v389 = vld [vmem:[%s385 + $0x18] sm:$0xff]
  %v390 = vld [vmem:[%s385 + $0x20] sm:$0xff]
  %v391 = vld [vmem:[%s385 + $0x28] sm:$0xff]
  %v392 = vld [vmem:[%s385 + $0x30] sm:$0xff]
  %v393 = vld [vmem:[%s385 + $0x38] sm:$0xff]
  %v394 = vld [vmem:[%s385 + $0x40] sm:$0xff]
  %v395 = vld [vmem:[%s385 + $0x48] sm:$0xff]
  %v396 = vld [vmem:[%s385 + $0x50] sm:$0xff]
  %v397 = vld [vmem:[%s385 + $0x58] sm:$0xff]
  %v398 = vld [vmem:[%s385 + $0x60] sm:$0xff]
  %v399 = vld [vmem:[%s385 + $0x68] sm:$0xff]
  %v400 = vld [vmem:[%s385 + $0x70] sm:$0xff]
  %v401 = vld [vmem:[%s385 + $0x78] sm:$0xff]
  %v402 = vld [vmem:[%s385 + $0x80] sm:$0xff]
  %v403 = vld [vmem:[%s385 + $0x88] sm:$0xff]
  %v422 = vunpack.c.l.b16 %v386
  %v423 = vunpack.c.h.b16 %v386
  %v424 = vunpack.c.l.b16 %v387
  %v425 = vunpack.c.h.b16 %v387
  %v426 = vunpack.c.l.b16 %v388
  %v427 = vunpack.c.h.b16 %v388
  %v428 = vunpack.c.l.b16 %v389
  %v429 = vunpack.c.h.b16 %v389
  %v430 = vunpack.c.l.b16 %v390
  %v431 = vunpack.c.h.b16 %v390
  %v432 = vunpack.c.l.b16 %v391
  %v433 = vunpack.c.h.b16 %v391
  %v434 = vunpack.c.l.b16 %v392
  %v435 = vunpack.c.h.b16 %v392
  %v436 = vunpack.c.l.b16 %v393
  %v437 = vunpack.c.h.b16 %v393
  %v438 = vunpack.c.l.b16 %v394
  %v439 = vunpack.c.h.b16 %v394
  %v440 = vunpack.c.l.b16 %v395
  %v441 = vunpack.c.h.b16 %v395
  %v442 = vunpack.c.l.b16 %v396
  %v443 = vunpack.c.h.b16 %v396
  %v444 = vunpack.c.l.b16 %v397
  %v445 = vunpack.c.h.b16 %v397
  %v446 = vunpack.c.l.b16 %v398
  %v447 = vunpack.c.h.b16 %v398
  %v448 = vunpack.c.l.b16 %v399
  %v449 = vunpack.c.h.b16 %v399
  %v450 = vunpack.c.l.b16 %v400
  %v451 = vunpack.c.h.b16 %v400
  %v452 = vunpack.c.l.b16 %v401
  %v453 = vunpack.c.h.b16 %v401
  %v454 = vunpack.c.l.b16 %v402
  %v455 = vunpack.c.h.b16 %v402
  %v456 = vunpack.c.l.b16 %v403
  %v457 = vunpack.c.h.b16 %v403
  %v458 = vpack.c.b16 %v424, %v422
  %v459 = vpack.c.b16 %v425, %v423
  %v460 = vpack.c.b16 %v428, %v426
  %v461 = vpack.c.b16 %v429, %v427
  %v462 = vpack.c.b16 %v432, %v430
  %v463 = vpack.c.b16 %v433, %v431
  %v464 = vpack.c.b16 %v436, %v434
  %v465 = vpack.c.b16 %v437, %v435
  %v466 = vpack.c.b16 %v440, %v438
  %v467 = vpack.c.b16 %v441, %v439
  %v468 = vpack.c.b16 %v444, %v442
  %v469 = vpack.c.b16 %v445, %v443
  %v470 = vpack.c.b16 %v448, %v446
  %v471 = vpack.c.b16 %v449, %v447
  %v472 = vpack.c.b16 %v452, %v450
  %v473 = vpack.c.b16 %v453, %v451
  %v474 = vpack.c.b16 %v456, %v454
  %v475 = vpack.c.b16 %v457, %v455
  %v495 = vsel %vm179, %v384, 0
  %497 = vmatpush.bf16.msra.mxu0 %v472
  %498 = vmatpush.bf16.msra.mxu0 %v470
  %499 = vmatpush.bf16.msra.mxu0 %v468
  %500 = vmatpush.bf16.msra.mxu0 %v466
  %501 = vmatpush.bf16.msra.mxu0 %v464
  %502 = vmatpush.bf16.msra.mxu0 %v462
  %503 = vmatpush.bf16.msra.mxu0 %v460
  %504 = vmatpush.bf16.msra.mxu0 %v458
  %505 = vmatmul.bf16.gmra.mxu0 %v383
  %v506 = vpop.f32.mrf.mxu0
  %v507 = vadd.f32 0.0, %v506
  %v508 = vpop.f32.mrf.mxu0
  %509 = vdwg.mxu0
  %510 = vmatpush.bf16.msra.mxu0 0
  %511 = vmatpush.bf16.msra.mxu0 0
  %512 = vmatpush.bf16.msra.mxu0 0
  %513 = vmatpush.bf16.msra.mxu0 0
  %514 = vmatpush.bf16.msra.mxu0 0
  %515 = vmatpush.bf16.msra.mxu0 0
  %516 = vmatpush.bf16.msra.mxu0 0
  %517 = vmatpush.bf16.msra.mxu0 %v474
  %518 = vmatmul.bf16.gmra.mxu0 %v495
  %v519 = vpop.f32.mrf.mxu0
  %v520 = vadd.f32 %v507, %v519
  %v521 = vpop.f32.mrf.mxu0
  %522 = vdwg.mxu0
  %523 = vmatpush.bf16.msra.mxu0 %v473
  %524 = vmatpush.bf16.msra.mxu0 %v471
  %525 = vmatpush.bf16.msra.mxu0 %v469
  %526 = vmatpush.bf16.msra.mxu0 %v467
  %527 = vmatpush.bf16.msra.mxu0 %v465
  %528 = vmatpush.bf16.msra.mxu0 %v463
  %529 = vmatpush.bf16.msra.mxu0 %v461
  %530 = vmatpush.bf16.msra.mxu0 %v459
  %531 = vmatmul.bf16.gmra.mxu0 %v383
  %v532 = vpop.f32.mrf.mxu0
  %v533 = vadd.f32 0.0, %v532
  %v534 = vpop.f32.mrf.mxu0
  %535 = vdwg.mxu0
  %536 = vmatpush.bf16.msra.mxu0 0
  %537 = vmatpush.bf16.msra.mxu0 0
  %538 = vmatpush.bf16.msra.mxu0 0
  %539 = vmatpush.bf16.msra.mxu0 0
  %540 = vmatpush.bf16.msra.mxu0 0
  %541 = vmatpush.bf16.msra.mxu0 0
  %542 = vmatpush.bf16.msra.mxu0 0
  %543 = vmatpush.bf16.msra.mxu0 %v475
  %544 = vmatmul.bf16.gmra.mxu0 %v495
  %v545 = vpop.f32.mrf.mxu0
  %v546 = vadd.f32 %v533, %v545
  %v547 = vpop.f32.mrf.mxu0
  %548 = vdwg.mxu0
  %v549 = vadd.f32 %v351, %v520
  %v550 = vadd.f32 %v377, %v546
  %v551 = vld [vmem:[%s380] sm:$0xfe]
  %v552 = vld [vmem:[%s380 + $0x8] sm:$0xfe]
  %v553 = vld [vmem:[%s380 + $0x10] sm:$0x1]
  %v554 = vld [vmem:[%s380 + $0x18] sm:$0x1]
  %v555 = vpack.c.bf16 %v553, %v551
  %v556 = vpack.c.bf16 %v554, %v552
  %s557 = scalar_lea.vmem %s1, 432
  %v558 = vld [vmem:[%s557] sm:$0xff]
  %v559 = vld [vmem:[%s557 + $0x8] sm:$0xff]
  %v560 = vld [vmem:[%s557 + $0x10] sm:$0xff]
  %v561 = vld [vmem:[%s557 + $0x18] sm:$0xff]
  %v562 = vld [vmem:[%s557 + $0x20] sm:$0xff]
  %v563 = vld [vmem:[%s557 + $0x28] sm:$0xff]
  %v564 = vld [vmem:[%s557 + $0x30] sm:$0xff]
  %v565 = vld [vmem:[%s557 + $0x38] sm:$0xff]
  %v566 = vld [vmem:[%s557 + $0x40] sm:$0xff]
  %v567 = vld [vmem:[%s557 + $0x48] sm:$0xff]
  %v568 = vld [vmem:[%s557 + $0x50] sm:$0xff]
  %v569 = vld [vmem:[%s557 + $0x58] sm:$0xff]
  %v570 = vld [vmem:[%s557 + $0x60] sm:$0xff]
  %v571 = vld [vmem:[%s557 + $0x68] sm:$0xff]
  %v572 = vld [vmem:[%s557 + $0x70] sm:$0xff]
  %v573 = vld [vmem:[%s557 + $0x78] sm:$0xff]
  %v574 = vld [vmem:[%s557 + $0x80] sm:$0xff]
  %v575 = vld [vmem:[%s557 + $0x88] sm:$0xff]
  %v577 = vshrl.u32 %v555, 16
  %v579 = vshll.u32 %v555, 16
  %v581 = vrot.slane %v579, 1
  %v582 = vor.u32 %v577, %v581
  %v584 = vshrl.u32 %v556, 16
  %v586 = vshll.u32 %v556, 16
  %v588 = vrot.slane %v586, 1
  %v589 = vor.u32 %v584, %v588
  %v609 = vunpack.c.l.b16 %v558
  %v610 = vunpack.c.h.b16 %v558
  %v611 = vunpack.c.l.b16 %v559
  %v612 = vunpack.c.h.b16 %v559
  %v613 = vunpack.c.l.b16 %v560
  %v614 = vunpack.c.h.b16 %v560
  %v615 = vunpack.c.l.b16 %v561
  %v616 = vunpack.c.h.b16 %v561
  %v617 = vunpack.c.l.b16 %v562
  %v618 = vunpack.c.h.b16 %v562
  %v619 = vunpack.c.l.b16 %v563
  %v620 = vunpack.c.h.b16 %v563
  %v621 = vunpack.c.l.b16 %v564
  %v622 = vunpack.c.h.b16 %v564
  %v623 = vunpack.c.l.b16 %v565
  %v624 = vunpack.c.h.b16 %v565
  %v625 = vunpack.c.l.b16 %v566
  %v626 = vunpack.c.h.b16 %v566
  %v627 = vunpack.c.l.b16 %v567
  %v628 = vunpack.c.h.b16 %v567
  %v629 = vunpack.c.l.b16 %v568
  %v630 = vunpack.c.h.b16 %v568
  %v631 = vunpack.c.l.b16 %v569
  %v632 = vunpack.c.h.b16 %v569
  %v633 = vunpack.c.l.b16 %v570
  %v634 = vunpack.c.h.b16 %v570
  %v635 = vunpack.c.l.b16 %v571
  %v636 = vunpack.c.h.b16 %v571
  %v637 = vunpack.c.l.b16 %v572
  %v638 = vunpack.c.h.b16 %v572
  %v639 = vunpack.c.l.b16 %v573
  %v640 = vunpack.c.h.b16 %v573
  %v641 = vunpack.c.l.b16 %v574
  %v642 = vunpack.c.h.b16 %v574
  %v643 = vunpack.c.l.b16 %v575
  %v644 = vunpack.c.h.b16 %v575
  %v645 = vpack.c.b16 %v611, %v609
  %v646 = vpack.c.b16 %v612, %v610
  %v647 = vpack.c.b16 %v615, %v613
  %v648 = vpack.c.b16 %v616, %v614
  %v649 = vpack.c.b16 %v619, %v617
  %v650 = vpack.c.b16 %v620, %v618
  %v651 = vpack.c.b16 %v623, %v621
  %v652 = vpack.c.b16 %v624, %v622
  %v653 = vpack.c.b16 %v627, %v625
  %v654 = vpack.c.b16 %v628, %v626
  %v655 = vpack.c.b16 %v631, %v629
  %v656 = vpack.c.b16 %v632, %v630
  %v657 = vpack.c.b16 %v635, %v633
  %v658 = vpack.c.b16 %v636, %v634
  %v659 = vpack.c.b16 %v639, %v637
  %v660 = vpack.c.b16 %v640, %v638
  %v661 = vpack.c.b16 %v643, %v641
  %v662 = vpack.c.b16 %v644, %v642
  %v682 = vsel %vm179, %v589, 0
  %684 = vmatpush.bf16.msra.mxu0 %v659
  %685 = vmatpush.bf16.msra.mxu0 %v657
  %686 = vmatpush.bf16.msra.mxu0 %v655
  %687 = vmatpush.bf16.msra.mxu0 %v653
  %688 = vmatpush.bf16.msra.mxu0 %v651
  %689 = vmatpush.bf16.msra.mxu0 %v649
  %690 = vmatpush.bf16.msra.mxu0 %v647
  %691 = vmatpush.bf16.msra.mxu0 %v645
  %692 = vmatmul.bf16.gmra.mxu0 %v582
  %v693 = vpop.f32.mrf.mxu0
  %v694 = vadd.f32 0.0, %v693
  %v695 = vpop.f32.mrf.mxu0
  %696 = vdwg.mxu0
  %697 = vmatpush.bf16.msra.mxu0 0
  %698 = vmatpush.bf16.msra.mxu0 0
  %699 = vmatpush.bf16.msra.mxu0 0
  %700 = vmatpush.bf16.msra.mxu0 0
  %701 = vmatpush.bf16.msra.mxu0 0
  %702 = vmatpush.bf16.msra.mxu0 0
  %703 = vmatpush.bf16.msra.mxu0 0
  %704 = vmatpush.bf16.msra.mxu0 %v661
  %705 = vmatmul.bf16.gmra.mxu0 %v682
  %v706 = vpop.f32.mrf.mxu0
  %v707 = vadd.f32 %v694, %v706
  %v708 = vpop.f32.mrf.mxu0
  %709 = vdwg.mxu0
  %710 = vmatpush.bf16.msra.mxu0 %v660
  %711 = vmatpush.bf16.msra.mxu0 %v658
  %712 = vmatpush.bf16.msra.mxu0 %v656
  %713 = vmatpush.bf16.msra.mxu0 %v654
  %714 = vmatpush.bf16.msra.mxu0 %v652
  %715 = vmatpush.bf16.msra.mxu0 %v650
  %716 = vmatpush.bf16.msra.mxu0 %v648
  %717 = vmatpush.bf16.msra.mxu0 %v646
  %718 = vmatmul.bf16.gmra.mxu0 %v582
  %v719 = vpop.f32.mrf.mxu0
  %v720 = vadd.f32 0.0, %v719
  %v721 = vpop.f32.mrf.mxu0
  %722 = vdwg.mxu0
  %723 = vmatpush.bf16.msra.mxu0 0
  %724 = vmatpush.bf16.msra.mxu0 0
  %725 = vmatpush.bf16.msra.mxu0 0
  %726 = vmatpush.bf16.msra.mxu0 0
  %727 = vmatpush.bf16.msra.mxu0 0
  %728 = vmatpush.bf16.msra.mxu0 0
  %729 = vmatpush.bf16.msra.mxu0 0
  %730 = vmatpush.bf16.msra.mxu0 %v662
  %731 = vmatmul.bf16.gmra.mxu0 %v682
  %v732 = vpop.f32.mrf.mxu0
  %v733 = vadd.f32 %v720, %v732
  %v734 = vpop.f32.mrf.mxu0
  %735 = vdwg.mxu0
  %v736 = vadd.f32 %v549, %v707
  %v737 = vadd.f32 %v550, %v733
  %s738 = scalar_lea.vmem %s0, 128
  %v739 = vld [vmem:[%s738] sm:$0xff]
  %v740 = vld [vmem:[%s738 + $0x8] sm:$0xff]
  %v741 = vpack.c.bf16 %v739, %v739
  %v742 = vpack.c.bf16 %v740, %v740
  %s743 = scalar_lea.vmem %s1, 576
  %v744 = vld [vmem:[%s743] sm:$0xff]
  %v745 = vld [vmem:[%s743 + $0x8] sm:$0xff]
  %v746 = vld [vmem:[%s743 + $0x10] sm:$0xff]
  %v747 = vld [vmem:[%s743 + $0x18] sm:$0xff]
  %v748 = vld [vmem:[%s743 + $0x20] sm:$0xff]
  %v749 = vld [vmem:[%s743 + $0x28] sm:$0xff]
  %v750 = vld [vmem:[%s743 + $0x30] sm:$0xff]
  %v751 = vld [vmem:[%s743 + $0x38] sm:$0xff]
  %v752 = vld [vmem:[%s743 + $0x40] sm:$0xff]
  %v753 = vld [vmem:[%s743 + $0x48] sm:$0xff]
  %v754 = vld [vmem:[%s743 + $0x50] sm:$0xff]
  %v755 = vld [vmem:[%s743 + $0x58] sm:$0xff]
  %v756 = vld [vmem:[%s743 + $0x60] sm:$0xff]
  %v757 = vld [vmem:[%s743 + $0x68] sm:$0xff]
  %v758 = vld [vmem:[%s743 + $0x70] sm:$0xff]
  %v759 = vld [vmem:[%s743 + $0x78] sm:$0xff]
  %v760 = vld [vmem:[%s743 + $0x80] sm:$0xff]
  %v761 = vld [vmem:[%s743 + $0x88] sm:$0xff]
  %v780 = vunpack.c.l.b16 %v744
  %v781 = vunpack.c.h.b16 %v744
  %v782 = vunpack.c.l.b16 %v745
  %v783 = vunpack.c.h.b16 %v745
  %v784 = vunpack.c.l.b16 %v746
  %v785 = vunpack.c.h.b16 %v746
  %v786 = vunpack.c.l.b16 %v747
  %v787 = vunpack.c.h.b16 %v747
  %v788 = vunpack.c.l.b16 %v748
  %v789 = vunpack.c.h.b16 %v748
  %v790 = vunpack.c.l.b16 %v749
  %v791 = vunpack.c.h.b16 %v749
  %v792 = vunpack.c.l.b16 %v750
  %v793 = vunpack.c.h.b16 %v750
  %v794 = vunpack.c.l.b16 %v751
  %v795 = vunpack.c.h.b16 %v751
  %v796 = vunpack.c.l.b16 %v752
  %v797 = vunpack.c.h.b16 %v752
  %v798 = vunpack.c.l.b16 %v753
  %v799 = vunpack.c.h.b16 %v753
  %v800 = vunpack.c.l.b16 %v754
  %v801 = vunpack.c.h.b16 %v754
  %v802 = vunpack.c.l.b16 %v755
  %v803 = vunpack.c.h.b16 %v755
  %v804 = vunpack.c.l.b16 %v756
  %v805 = vunpack.c.h.b16 %v756
  %v806 = vunpack.c.l.b16 %v757
  %v807 = vunpack.c.h.b16 %v757
  %v808 = vunpack.c.l.b16 %v758
  %v809 = vunpack.c.h.b16 %v758
  %v810 = vunpack.c.l.b16 %v759
  %v811 = vunpack.c.h.b16 %v759
  %v812 = vunpack.c.l.b16 %v760
  %v813 = vunpack.c.h.b16 %v760
  %v814 = vunpack.c.l.b16 %v761
  %v815 = vunpack.c.h.b16 %v761
  %v816 = vpack.c.b16 %v782, %v780
  %v817 = vpack.c.b16 %v783, %v781
  %v818 = vpack.c.b16 %v786, %v784
  %v819 = vpack.c.b16 %v787, %v785
  %v820 = vpack.c.b16 %v790, %v788
  %v821 = vpack.c.b16 %v791, %v789
  %v822 = vpack.c.b16 %v794, %v792
  %v823 = vpack.c.b16 %v795, %v793
  %v824 = vpack.c.b16 %v798, %v796
  %v825 = vpack.c.b16 %v799, %v797
  %v826 = vpack.c.b16 %v802, %v800
  %v827 = vpack.c.b16 %v803, %v801
  %v828 = vpack.c.b16 %v806, %v804
  %v829 = vpack.c.b16 %v807, %v805
  %v830 = vpack.c.b16 %v810, %v808
  %v831 = vpack.c.b16 %v811, %v809
  %v832 = vpack.c.b16 %v814, %v812
  %v833 = vpack.c.b16 %v815, %v813
  %v853 = vsel %vm179, %v742, 0
  %855 = vmatpush.bf16.msra.mxu0 %v830
  %856 = vmatpush.bf16.msra.mxu0 %v828
  %857 = vmatpush.bf16.msra.mxu0 %v826
  %858 = vmatpush.bf16.msra.mxu0 %v824
  %859 = vmatpush.bf16.msra.mxu0 %v822
  %860 = vmatpush.bf16.msra.mxu0 %v820
  %861 = vmatpush.bf16.msra.mxu0 %v818
  %862 = vmatpush.bf16.msra.mxu0 %v816
  %863 = vmatmul.bf16.gmra.mxu0 %v741
  %v864 = vpop.f32.mrf.mxu0
  %v865 = vadd.f32 0.0, %v864
  %v866 = vpop.f32.mrf.mxu0
  %867 = vdwg.mxu0
  %868 = vmatpush.bf16.msra.mxu0 0
  %869 = vmatpush.bf16.msra.mxu0 0
  %870 = vmatpush.bf16.msra.mxu0 0
  %871 = vmatpush.bf16.msra.mxu0 0
  %872 = vmatpush.bf16.msra.mxu0 0
  %873 = vmatpush.bf16.msra.mxu0 0
  %874 = vmatpush.bf16.msra.mxu0 0
  %875 = vmatpush.bf16.msra.mxu0 %v832
  %876 = vmatmul.bf16.gmra.mxu0 %v853
  %v877 = vpop.f32.mrf.mxu0
  %v878 = vadd.f32 %v865, %v877
  %v879 = vpop.f32.mrf.mxu0
  %880 = vdwg.mxu0
  %881 = vmatpush.bf16.msra.mxu0 %v831
  %882 = vmatpush.bf16.msra.mxu0 %v829
  %883 = vmatpush.bf16.msra.mxu0 %v827
  %884 = vmatpush.bf16.msra.mxu0 %v825
  %885 = vmatpush.bf16.msra.mxu0 %v823
  %886 = vmatpush.bf16.msra.mxu0 %v821
  %887 = vmatpush.bf16.msra.mxu0 %v819
  %888 = vmatpush.bf16.msra.mxu0 %v817
  %889 = vmatmul.bf16.gmra.mxu0 %v741
  %v890 = vpop.f32.mrf.mxu0
  %v891 = vadd.f32 0.0, %v890
  %v892 = vpop.f32.mrf.mxu0
  %893 = vdwg.mxu0
  %894 = vmatpush.bf16.msra.mxu0 0
  %895 = vmatpush.bf16.msra.mxu0 0
  %896 = vmatpush.bf16.msra.mxu0 0
  %897 = vmatpush.bf16.msra.mxu0 0
  %898 = vmatpush.bf16.msra.mxu0 0
  %899 = vmatpush.bf16.msra.mxu0 0
  %900 = vmatpush.bf16.msra.mxu0 0
  %901 = vmatpush.bf16.msra.mxu0 %v833
  %902 = vmatmul.bf16.gmra.mxu0 %v853
  %v903 = vpop.f32.mrf.mxu0
  %v904 = vadd.f32 %v891, %v903
  %v905 = vpop.f32.mrf.mxu0
  %906 = vdwg.mxu0
  %v907 = vadd.f32 %v736, %v878
  %v908 = vadd.f32 %v737, %v904
  %v909 = vld [vmem:[%s738] sm:$0xfe]
  %v910 = vld [vmem:[%s738 + $0x8] sm:$0xfe]
  %v911 = vld [vmem:[%s738 + $0x10] sm:$0x1]
  %v912 = vld [vmem:[%s738 + $0x18] sm:$0x1]
  %v913 = vpack.c.bf16 %v911, %v909
  %v914 = vpack.c.bf16 %v912, %v910
  %s915 = scalar_lea.vmem %s1, 720
  %v916 = vld [vmem:[%s915] sm:$0xff]
  %v917 = vld [vmem:[%s915 + $0x8] sm:$0xff]
  %v918 = vld [vmem:[%s915 + $0x10] sm:$0xff]
  %v919 = vld [vmem:[%s915 + $0x18] sm:$0xff]
  %v920 = vld [vmem:[%s915 + $0x20] sm:$0xff]
  %v921 = vld [vmem:[%s915 + $0x28] sm:$0xff]
  %v922 = vld [vmem:[%s915 + $0x30] sm:$0xff]
  %v923 = vld [vmem:[%s915 + $0x38] sm:$0xff]
  %v924 = vld [vmem:[%s915 + $0x40] sm:$0xff]
  %v925 = vld [vmem:[%s915 + $0x48] sm:$0xff]
  %v926 = vld [vmem:[%s915 + $0x50] sm:$0xff]
  %v927 = vld [vmem:[%s915 + $0x58] sm:$0xff]
  %v928 = vld [vmem:[%s915 + $0x60] sm:$0xff]
  %v929 = vld [vmem:[%s915 + $0x68] sm:$0xff]
  %v930 = vld [vmem:[%s915 + $0x70] sm:$0xff]
  %v931 = vld [vmem:[%s915 + $0x78] sm:$0xff]
  %v932 = vld [vmem:[%s915 + $0x80] sm:$0xff]
  %v933 = vld [vmem:[%s915 + $0x88] sm:$0xff]
  %v935 = vshrl.u32 %v913, 16
  %v937 = vshll.u32 %v913, 16
  %v939 = vrot.slane %v937, 1
  %v940 = vor.u32 %v935, %v939
  %v942 = vshrl.u32 %v914, 16
  %v944 = vshll.u32 %v914, 16
  %v946 = vrot.slane %v944, 1
  %v947 = vor.u32 %v942, %v946
  %v967 = vunpack.c.l.b16 %v916
  %v968 = vunpack.c.h.b16 %v916
  %v969 = vunpack.c.l.b16 %v917
  %v970 = vunpack.c.h.b16 %v917
  %v971 = vunpack.c.l.b16 %v918
  %v972 = vunpack.c.h.b16 %v918
  %v973 = vunpack.c.l.b16 %v919
  %v974 = vunpack.c.h.b16 %v919
  %v975 = vunpack.c.l.b16 %v920
  %v976 = vunpack.c.h.b16 %v920
  %v977 = vunpack.c.l.b16 %v921
  %v978 = vunpack.c.h.b16 %v921
  %v979 = vunpack.c.l.b16 %v922
  %v980 = vunpack.c.h.b16 %v922
  %v981 = vunpack.c.l.b16 %v923
  %v982 = vunpack.c.h.b16 %v923
  %v983 = vunpack.c.l.b16 %v924
  %v984 = vunpack.c.h.b16 %v924
  %v985 = vunpack.c.l.b16 %v925
  %v986 = vunpack.c.h.b16 %v925
  %v987 = vunpack.c.l.b16 %v926
  %v988 = vunpack.c.h.b16 %v926
  %v989 = vunpack.c.l.b16 %v927
  %v990 = vunpack.c.h.b16 %v927
  %v991 = vunpack.c.l.b16 %v928
  %v992 = vunpack.c.h.b16 %v928
  %v993 = vunpack.c.l.b16 %v929
  %v994 = vunpack.c.h.b16 %v929
  %v995 = vunpack.c.l.b16 %v930
  %v996 = vunpack.c.h.b16 %v930
  %v997 = vunpack.c.l.b16 %v931
  %v998 = vunpack.c.h.b16 %v931
  %v999 = vunpack.c.l.b16 %v932
  %v1000 = vunpack.c.h.b16 %v932
  %v1001 = vunpack.c.l.b16 %v933
  %v1002 = vunpack.c.h.b16 %v933
  %v1003 = vpack.c.b16 %v969, %v967
  %v1004 = vpack.c.b16 %v970, %v968
  %v1005 = vpack.c.b16 %v973, %v971
  %v1006 = vpack.c.b16 %v974, %v972
  %v1007 = vpack.c.b16 %v977, %v975
  %v1008 = vpack.c.b16 %v978, %v976
  %v1009 = vpack.c.b16 %v981, %v979
  %v1010 = vpack.c.b16 %v982, %v980
  %v1011 = vpack.c.b16 %v985, %v983
  %v1012 = vpack.c.b16 %v986, %v984
  %v1013 = vpack.c.b16 %v989, %v987
  %v1014 = vpack.c.b16 %v990, %v988
  %v1015 = vpack.c.b16 %v993, %v991
  %v1016 = vpack.c.b16 %v994, %v992
  %v1017 = vpack.c.b16 %v997, %v995
  %v1018 = vpack.c.b16 %v998, %v996
  %v1019 = vpack.c.b16 %v1001, %v999
  %v1020 = vpack.c.b16 %v1002, %v1000
  %v1040 = vsel %vm179, %v947, 0
  %1042 = vmatpush.bf16.msra.mxu0 %v1017
  %1043 = vmatpush.bf16.msra.mxu0 %v1015
  %1044 = vmatpush.bf16.msra.mxu0 %v1013
  %1045 = vmatpush.bf16.msra.mxu0 %v1011
  %1046 = vmatpush.bf16.msra.mxu0 %v1009
  %1047 = vmatpush.bf16.msra.mxu0 %v1007
  %1048 = vmatpush.bf16.msra.mxu0 %v1005
  %1049 = vmatpush.bf16.msra.mxu0 %v1003
  %1050 = vmatmul.bf16.gmra.mxu0 %v940
  %v1051 = vpop.f32.mrf.mxu0
  %v1052 = vadd.f32 0.0, %v1051
  %v1053 = vpop.f32.mrf.mxu0
  %1054 = vdwg.mxu0
  %1055 = vmatpush.bf16.msra.mxu0 0
  %1056 = vmatpush.bf16.msra.mxu0 0
  %1057 = vmatpush.bf16.msra.mxu0 0
  %1058 = vmatpush.bf16.msra.mxu0 0
  %1059 = vmatpush.bf16.msra.mxu0 0
  %1060 = vmatpush.bf16.msra.mxu0 0
  %1061 = vmatpush.bf16.msra.mxu0 0
  %1062 = vmatpush.bf16.msra.mxu0 %v1019
  %1063 = vmatmul.bf16.gmra.mxu0 %v1040
  %v1064 = vpop.f32.mrf.mxu0
  %v1065 = vadd.f32 %v1052, %v1064
  %v1066 = vpop.f32.mrf.mxu0
  %1067 = vdwg.mxu0
  %1068 = vmatpush.bf16.msra.mxu0 %v1018
  %1069 = vmatpush.bf16.msra.mxu0 %v1016
  %1070 = vmatpush.bf16.msra.mxu0 %v1014
  %1071 = vmatpush.bf16.msra.mxu0 %v1012
  %1072 = vmatpush.bf16.msra.mxu0 %v1010
  %1073 = vmatpush.bf16.msra.mxu0 %v1008
  %1074 = vmatpush.bf16.msra.mxu0 %v1006
  %1075 = vmatpush.bf16.msra.mxu0 %v1004
  %1076 = vmatmul.bf16.gmra.mxu0 %v940
  %v1077 = vpop.f32.mrf.mxu0
  %v1078 = vadd.f32 0.0, %v1077
  %v1079 = vpop.f32.mrf.mxu0
  %1080 = vdwg.mxu0
  %1081 = vmatpush.bf16.msra.mxu0 0
  %1082 = vmatpush.bf16.msra.mxu0 0
  %1083 = vmatpush.bf16.msra.mxu0 0
  %1084 = vmatpush.bf16.msra.mxu0 0
  %1085 = vmatpush.bf16.msra.mxu0 0
  %1086 = vmatpush.bf16.msra.mxu0 0
  %1087 = vmatpush.bf16.msra.mxu0 0
  %1088 = vmatpush.bf16.msra.mxu0 %v1020
  %1089 = vmatmul.bf16.gmra.mxu0 %v1040
  %v1090 = vpop.f32.mrf.mxu0
  %v1091 = vadd.f32 %v1078, %v1090
  %v1092 = vpop.f32.mrf.mxu0
  %1093 = vdwg.mxu0
  %v1094 = vadd.f32 %v907, %v1065
  %v1095 = vadd.f32 %v908, %v1091
  %s1096 = scalar_lea.vmem %s0, 192
  %v1097 = vld [vmem:[%s1096] sm:$0xff]
  %v1098 = vld [vmem:[%s1096 + $0x8] sm:$0xff]
  %v1099 = vpack.c.bf16 %v1097, %v1097
  %v1100 = vpack.c.bf16 %v1098, %v1098
  %s1101 = scalar_lea.vmem %s1, 864
  %v1102 = vld [vmem:[%s1101] sm:$0xff]
  %v1103 = vld [vmem:[%s1101 + $0x8] sm:$0xff]
  %v1104 = vld [vmem:[%s1101 + $0x10] sm:$0xff]
  %v1105 = vld [vmem:[%s1101 + $0x18] sm:$0xff]
  %v1106 = vld [vmem:[%s1101 + $0x20] sm:$0xff]
  %v1107 = vld [vmem:[%s1101 + $0x28] sm:$0xff]
  %v1108 = vld [vmem:[%s1101 + $0x30] sm:$0xff]
  %v1109 = vld [vmem:[%s1101 + $0x38] sm:$0xff]
  %v1110 = vld [vmem:[%s1101 + $0x40] sm:$0xff]
  %v1111 = vld [vmem:[%s1101 + $0x48] sm:$0xff]
  %v1112 = vld [vmem:[%s1101 + $0x50] sm:$0xff]
  %v1113 = vld [vmem:[%s1101 + $0x58] sm:$0xff]
  %v1114 = vld [vmem:[%s1101 + $0x60] sm:$0xff]
  %v1115 = vld [vmem:[%s1101 + $0x68] sm:$0xff]
  %v1116 = vld [vmem:[%s1101 + $0x70] sm:$0xff]
  %v1117 = vld [vmem:[%s1101 + $0x78] sm:$0xff]
  %v1118 = vld [vmem:[%s1101 + $0x80] sm:$0xff]
  %v1119 = vld [vmem:[%s1101 + $0x88] sm:$0xff]
  %v1138 = vunpack.c.l.b16 %v1102
  %v1139 = vunpack.c.h.b16 %v1102
  %v1140 = vunpack.c.l.b16 %v1103
  %v1141 = vunpack.c.h.b16 %v1103
  %v1142 = vunpack.c.l.b16 %v1104
  %v1143 = vunpack.c.h.b16 %v1104
  %v1144 = vunpack.c.l.b16 %v1105
  %v1145 = vunpack.c.h.b16 %v1105
  %v1146 = vunpack.c.l.b16 %v1106
  %v1147 = vunpack.c.h.b16 %v1106
  %v1148 = vunpack.c.l.b16 %v1107
  %v1149 = vunpack.c.h.b16 %v1107
  %v1150 = vunpack.c.l.b16 %v1108
  %v1151 = vunpack.c.h.b16 %v1108
  %v1152 = vunpack.c.l.b16 %v1109
  %v1153 = vunpack.c.h.b16 %v1109
  %v1154 = vunpack.c.l.b16 %v1110
  %v1155 = vunpack.c.h.b16 %v1110
  %v1156 = vunpack.c.l.b16 %v1111
  %v1157 = vunpack.c.h.b16 %v1111
  %v1158 = vunpack.c.l.b16 %v1112
  %v1159 = vunpack.c.h.b16 %v1112
  %v1160 = vunpack.c.l.b16 %v1113
  %v1161 = vunpack.c.h.b16 %v1113
  %v1162 = vunpack.c.l.b16 %v1114
  %v1163 = vunpack.c.h.b16 %v1114
  %v1164 = vunpack.c.l.b16 %v1115
  %v1165 = vunpack.c.h.b16 %v1115
  %v1166 = vunpack.c.l.b16 %v1116
  %v1167 = vunpack.c.h.b16 %v1116
  %v1168 = vunpack.c.l.b16 %v1117
  %v1169 = vunpack.c.h.b16 %v1117
  %v1170 = vunpack.c.l.b16 %v1118
  %v1171 = vunpack.c.h.b16 %v1118
  %v1172 = vunpack.c.l.b16 %v1119
  %v1173 = vunpack.c.h.b16 %v1119
  %v1174 = vpack.c.b16 %v1140, %v1138
  %v1175 = vpack.c.b16 %v1141, %v1139
  %v1176 = vpack.c.b16 %v1144, %v1142
  %v1177 = vpack.c.b16 %v1145, %v1143
  %v1178 = vpack.c.b16 %v1148, %v1146
  %v1179 = vpack.c.b16 %v1149, %v1147
  %v1180 = vpack.c.b16 %v1152, %v1150
  %v1181 = vpack.c.b16 %v1153, %v1151
  %v1182 = vpack.c.b16 %v1156, %v1154
  %v1183 = vpack.c.b16 %v1157, %v1155
  %v1184 = vpack.c.b16 %v1160, %v1158
  %v1185 = vpack.c.b16 %v1161, %v1159
  %v1186 = vpack.c.b16 %v1164, %v1162
  %v1187 = vpack.c.b16 %v1165, %v1163
  %v1188 = vpack.c.b16 %v1168, %v1166
  %v1189 = vpack.c.b16 %v1169, %v1167
  %v1190 = vpack.c.b16 %v1172, %v1170
  %v1191 = vpack.c.b16 %v1173, %v1171
  %v1211 = vsel %vm179, %v1100, 0
  %1213 = vmatpush.bf16.msra.mxu0 %v1188
  %1214 = vmatpush.bf16.msra.mxu0 %v1186
  %1215 = vmatpush.bf16.msra.mxu0 %v1184
  %1216 = vmatpush.bf16.msra.mxu0 %v1182
  %1217 = vmatpush.bf16.msra.mxu0 %v1180
  %1218 = vmatpush.bf16.msra.mxu0 %v1178
  %1219 = vmatpush.bf16.msra.mxu0 %v1176
  %1220 = vmatpush.bf16.msra.mxu0 %v1174
  %1221 = vmatmul.bf16.gmra.mxu0 %v1099
  %v1222 = vpop.f32.mrf.mxu0
  %v1223 = vadd.f32 0.0, %v1222
  %v1224 = vpop.f32.mrf.mxu0
  %1225 = vdwg.mxu0
  %1226 = vmatpush.bf16.msra.mxu0 0
  %1227 = vmatpush.bf16.msra.mxu0 0
  %1228 = vmatpush.bf16.msra.mxu0 0
  %1229 = vmatpush.bf16.msra.mxu0 0
  %1230 = vmatpush.bf16.msra.mxu0 0
  %1231 = vmatpush.bf16.msra.mxu0 0
  %1232 = vmatpush.bf16.msra.mxu0 0
  %1233 = vmatpush.bf16.msra.mxu0 %v1190
  %1234 = vmatmul.bf16.gmra.mxu0 %v1211
  %v1235 = vpop.f32.mrf.mxu0
  %v1236 = vadd.f32 %v1223, %v1235
  %v1237 = vpop.f32.mrf.mxu0
  %1238 = vdwg.mxu0
  %1239 = vmatpush.bf16.msra.mxu0 %v1189
  %1240 = vmatpush.bf16.msra.mxu0 %v1187
  %1241 = vmatpush.bf16.msra.mxu0 %v1185
  %1242 = vmatpush.bf16.msra.mxu0 %v1183
  %1243 = vmatpush.bf16.msra.mxu0 %v1181
  %1244 = vmatpush.bf16.msra.mxu0 %v1179
  %1245 = vmatpush.bf16.msra.mxu0 %v1177
  %1246 = vmatpush.bf16.msra.mxu0 %v1175
  %1247 = vmatmul.bf16.gmra.mxu0 %v1099
  %v1248 = vpop.f32.mrf.mxu0
  %v1249 = vadd.f32 0.0, %v1248
  %v1250 = vpop.f32.mrf.mxu0
  %1251 = vdwg.mxu0
  %1252 = vmatpush.bf16.msra.mxu0 0
  %1253 = vmatpush.bf16.msra.mxu0 0
  %1254 = vmatpush.bf16.msra.mxu0 0
  %1255 = vmatpush.bf16.msra.mxu0 0
  %1256 = vmatpush.bf16.msra.mxu0 0
  %1257 = vmatpush.bf16.msra.mxu0 0
  %1258 = vmatpush.bf16.msra.mxu0 0
  %1259 = vmatpush.bf16.msra.mxu0 %v1191
  %1260 = vmatmul.bf16.gmra.mxu0 %v1211
  %v1261 = vpop.f32.mrf.mxu0
  %v1262 = vadd.f32 %v1249, %v1261
  %v1263 = vpop.f32.mrf.mxu0
  %1264 = vdwg.mxu0
  %v1265 = vadd.f32 %v1094, %v1236
  %v1266 = vadd.f32 %v1095, %v1262
  %v1267 = vld [vmem:[%s1096] sm:$0xfe]
  %v1268 = vld [vmem:[%s1096 + $0x8] sm:$0xfe]
  %v1269 = vld [vmem:[%s1096 + $0x10] sm:$0x1]
  %v1270 = vld [vmem:[%s1096 + $0x18] sm:$0x1]
  %v1271 = vpack.c.bf16 %v1269, %v1267
  %v1272 = vpack.c.bf16 %v1270, %v1268
  %s1273 = scalar_lea.vmem %s1, 1008
  %v1274 = vld [vmem:[%s1273] sm:$0xff]
  %v1275 = vld [vmem:[%s1273 + $0x8] sm:$0xff]
  %v1276 = vld [vmem:[%s1273 + $0x10] sm:$0xff]
  %v1277 = vld [vmem:[%s1273 + $0x18] sm:$0xff]
  %v1278 = vld [vmem:[%s1273 + $0x20] sm:$0xff]
  %v1279 = vld [vmem:[%s1273 + $0x28] sm:$0xff]
  %v1280 = vld [vmem:[%s1273 + $0x30] sm:$0xff]
  %v1281 = vld [vmem:[%s1273 + $0x38] sm:$0xff]
  %v1282 = vld [vmem:[%s1273 + $0x40] sm:$0xff]
  %v1283 = vld [vmem:[%s1273 + $0x48] sm:$0xff]
  %v1284 = vld [vmem:[%s1273 + $0x50] sm:$0xff]
  %v1285 = vld [vmem:[%s1273 + $0x58] sm:$0xff]
  %v1286 = vld [vmem:[%s1273 + $0x60] sm:$0xff]
  %v1287 = vld [vmem:[%s1273 + $0x68] sm:$0xff]
  %v1288 = vld [vmem:[%s1273 + $0x70] sm:$0xff]
  %v1289 = vld [vmem:[%s1273 + $0x78] sm:$0xff]
  %v1290 = vld [vmem:[%s1273 + $0x80] sm:$0xff]
  %v1291 = vld [vmem:[%s1273 + $0x88] sm:$0xff]
  %v1293 = vshrl.u32 %v1271, 16
  %v1295 = vshll.u32 %v1271, 16
  %v1297 = vrot.slane %v1295, 1
  %v1298 = vor.u32 %v1293, %v1297
  %v1300 = vshrl.u32 %v1272, 16
  %v1302 = vshll.u32 %v1272, 16
  %v1304 = vrot.slane %v1302, 1
  %v1305 = vor.u32 %v1300, %v1304
  %v1325 = vunpack.c.l.b16 %v1274
  %v1326 = vunpack.c.h.b16 %v1274
  %v1327 = vunpack.c.l.b16 %v1275
  %v1328 = vunpack.c.h.b16 %v1275
  %v1329 = vunpack.c.l.b16 %v1276
  %v1330 = vunpack.c.h.b16 %v1276
  %v1331 = vunpack.c.l.b16 %v1277
  %v1332 = vunpack.c.h.b16 %v1277
  %v1333 = vunpack.c.l.b16 %v1278
  %v1334 = vunpack.c.h.b16 %v1278
  %v1335 = vunpack.c.l.b16 %v1279
  %v1336 = vunpack.c.h.b16 %v1279
  %v1337 = vunpack.c.l.b16 %v1280
  %v1338 = vunpack.c.h.b16 %v1280
  %v1339 = vunpack.c.l.b16 %v1281
  %v1340 = vunpack.c.h.b16 %v1281
  %v1341 = vunpack.c.l.b16 %v1282
  %v1342 = vunpack.c.h.b16 %v1282
  %v1343 = vunpack.c.l.b16 %v1283
  %v1344 = vunpack.c.h.b16 %v1283
  %v1345 = vunpack.c.l.b16 %v1284
  %v1346 = vunpack.c.h.b16 %v1284
  %v1347 = vunpack.c.l.b16 %v1285
  %v1348 = vunpack.c.h.b16 %v1285
  %v1349 = vunpack.c.l.b16 %v1286
  %v1350 = vunpack.c.h.b16 %v1286
  %v1351 = vunpack.c.l.b16 %v1287
  %v1352 = vunpack.c.h.b16 %v1287
  %v1353 = vunpack.c.l.b16 %v1288
  %v1354 = vunpack.c.h.b16 %v1288
  %v1355 = vunpack.c.l.b16 %v1289
  %v1356 = vunpack.c.h.b16 %v1289
  %v1357 = vunpack.c.l.b16 %v1290
  %v1358 = vunpack.c.h.b16 %v1290
  %v1359 = vunpack.c.l.b16 %v1291
  %v1360 = vunpack.c.h.b16 %v1291
  %v1361 = vpack.c.b16 %v1327, %v1325
  %v1362 = vpack.c.b16 %v1328, %v1326
  %v1363 = vpack.c.b16 %v1331, %v1329
  %v1364 = vpack.c.b16 %v1332, %v1330
  %v1365 = vpack.c.b16 %v1335, %v1333
  %v1366 = vpack.c.b16 %v1336, %v1334
  %v1367 = vpack.c.b16 %v1339, %v1337
  %v1368 = vpack.c.b16 %v1340, %v1338
  %v1369 = vpack.c.b16 %v1343, %v1341
  %v1370 = vpack.c.b16 %v1344, %v1342
  %v1371 = vpack.c.b16 %v1347, %v1345
  %v1372 = vpack.c.b16 %v1348, %v1346
  %v1373 = vpack.c.b16 %v1351, %v1349
  %v1374 = vpack.c.b16 %v1352, %v1350
  %v1375 = vpack.c.b16 %v1355, %v1353
  %v1376 = vpack.c.b16 %v1356, %v1354
  %v1377 = vpack.c.b16 %v1359, %v1357
  %v1378 = vpack.c.b16 %v1360, %v1358
  %v1398 = vsel %vm179, %v1305, 0
  %1400 = vmatpush.bf16.msra.mxu0 %v1375
  %1401 = vmatpush.bf16.msra.mxu0 %v1373
  %1402 = vmatpush.bf16.msra.mxu0 %v1371
  %1403 = vmatpush.bf16.msra.mxu0 %v1369
  %1404 = vmatpush.bf16.msra.mxu0 %v1367
  %1405 = vmatpush.bf16.msra.mxu0 %v1365
  %1406 = vmatpush.bf16.msra.mxu0 %v1363
  %1407 = vmatpush.bf16.msra.mxu0 %v1361
  %1408 = vmatmul.bf16.gmra.mxu0 %v1298
  %v1409 = vpop.f32.mrf.mxu0
  %v1410 = vadd.f32 0.0, %v1409
  %v1411 = vpop.f32.mrf.mxu0
  %1412 = vdwg.mxu0
  %1413 = vmatpush.bf16.msra.mxu0 0
  %1414 = vmatpush.bf16.msra.mxu0 0
  %1415 = vmatpush.bf16.msra.mxu0 0
  %1416 = vmatpush.bf16.msra.mxu0 0
  %1417 = vmatpush.bf16.msra.mxu0 0
  %1418 = vmatpush.bf16.msra.mxu0 0
  %1419 = vmatpush.bf16.msra.mxu0 0
  %1420 = vmatpush.bf16.msra.mxu0 %v1377
  %1421 = vmatmul.bf16.gmra.mxu0 %v1398
  %v1422 = vpop.f32.mrf.mxu0
  %v1423 = vadd.f32 %v1410, %v1422
  %v1424 = vpop.f32.mrf.mxu0
  %1425 = vdwg.mxu0
  %1426 = vmatpush.bf16.msra.mxu0 %v1376
  %1427 = vmatpush.bf16.msra.mxu0 %v1374
  %1428 = vmatpush.bf16.msra.mxu0 %v1372
  %1429 = vmatpush.bf16.msra.mxu0 %v1370
  %1430 = vmatpush.bf16.msra.mxu0 %v1368
  %1431 = vmatpush.bf16.msra.mxu0 %v1366
  %1432 = vmatpush.bf16.msra.mxu0 %v1364
  %1433 = vmatpush.bf16.msra.mxu0 %v1362
  %1434 = vmatmul.bf16.gmra.mxu0 %v1298
  %v1435 = vpop.f32.mrf.mxu0
  %v1436 = vadd.f32 0.0, %v1435
  %v1437 = vpop.f32.mrf.mxu0
  %1438 = vdwg.mxu0
  %1439 = vmatpush.bf16.msra.mxu0 0
  %1440 = vmatpush.bf16.msra.mxu0 0
  %1441 = vmatpush.bf16.msra.mxu0 0
  %1442 = vmatpush.bf16.msra.mxu0 0
  %1443 = vmatpush.bf16.msra.mxu0 0
  %1444 = vmatpush.bf16.msra.mxu0 0
  %1445 = vmatpush.bf16.msra.mxu0 0
  %1446 = vmatpush.bf16.msra.mxu0 %v1378
  %1447 = vmatmul.bf16.gmra.mxu0 %v1398
  %v1448 = vpop.f32.mrf.mxu0
  %v1449 = vadd.f32 %v1436, %v1448
  %v1450 = vpop.f32.mrf.mxu0
  %1451 = vdwg.mxu0
  %v1452 = vadd.f32 %v1265, %v1423
  %v1453 = vadd.f32 %v1266, %v1449
  %v1454 = vld [vmem:[%s2] sm:$0x3]
  %v1456 = vperm.slane %v1454, 0
  %v1457 = vperm.slane %v1454, 1
  %v1460 = vadd.f32 %v1452, %v1456
  %v1461 = vadd.f32 %v1453, %v1457
  %s1462 = scalar_lea.vmem %s0, 32
  %v1463 = vld [vmem:[%s1462] sm:$0xff]
  %v1464 = vld [vmem:[%s1462 + $0x8] sm:$0xff]
  %v1465 = vpack.c.bf16 %v1463, %v1463
  %v1466 = vpack.c.bf16 %v1464, %v1464
  %v1467 = vld [vmem:[%s1462] sm:$0xfe]
  %v1468 = vld [vmem:[%s1462 + $0x8] sm:$0xfe]
  %v1469 = vld [vmem:[%s1462 + $0x10] sm:$0x1]
  %v1470 = vld [vmem:[%s1462 + $0x18] sm:$0x1]
  %v1471 = vpack.c.bf16 %v1469, %v1467
  %v1472 = vpack.c.bf16 %v1470, %v1468
  %v1474 = vshrl.u32 %v1471, 16
  %v1476 = vshll.u32 %v1471, 16
  %v1478 = vrot.slane %v1476, 1
  %v1479 = vor.u32 %v1474, %v1478
  %v1481 = vshrl.u32 %v1472, 16
  %v1483 = vshll.u32 %v1472, 16
  %v1485 = vrot.slane %v1483, 1
  %v1486 = vor.u32 %v1481, %v1485
  %v1489 = vsel %vm179, %v1486, 0
  %1491 = vmatpush.bf16.msra.mxu0 %v157
  %1492 = vmatpush.bf16.msra.mxu0 %v155
  %1493 = vmatpush.bf16.msra.mxu0 %v153
  %1494 = vmatpush.bf16.msra.mxu0 %v151
  %1495 = vmatpush.bf16.msra.mxu0 %v149
  %1496 = vmatpush.bf16.msra.mxu0 %v147
  %1497 = vmatpush.bf16.msra.mxu0 %v145
  %1498 = vmatpush.bf16.msra.mxu0 %v143
  %1499 = vmatmul.bf16.gmra.mxu0 %v1479
  %v1500 = vpop.f32.mrf.mxu0
  %v1501 = vadd.f32 0.0, %v1500
  %v1502 = vpop.f32.mrf.mxu0
  %1503 = vdwg.mxu0
  %1504 = vmatpush.bf16.msra.mxu0 0
  %1505 = vmatpush.bf16.msra.mxu0 0
  %1506 = vmatpush.bf16.msra.mxu0 0
  %1507 = vmatpush.bf16.msra.mxu0 0
  %1508 = vmatpush.bf16.msra.mxu0 0
  %1509 = vmatpush.bf16.msra.mxu0 0
  %1510 = vmatpush.bf16.msra.mxu0 0
  %1511 = vmatpush.bf16.msra.mxu0 %v159
  %1512 = vmatmul.bf16.gmra.mxu0 %v1489
  %v1513 = vpop.f32.mrf.mxu0
  %v1514 = vadd.f32 %v1501, %v1513
  %v1515 = vpop.f32.mrf.mxu0
  %1516 = vdwg.mxu0
  %1517 = vmatpush.bf16.msra.mxu0 %v158
  %1518 = vmatpush.bf16.msra.mxu0 %v156
  %1519 = vmatpush.bf16.msra.mxu0 %v154
  %1520 = vmatpush.bf16.msra.mxu0 %v152
  %1521 = vmatpush.bf16.msra.mxu0 %v150
  %1522 = vmatpush.bf16.msra.mxu0 %v148
  %1523 = vmatpush.bf16.msra.mxu0 %v146
  %1524 = vmatpush.bf16.msra.mxu0 %v144
  %1525 = vmatmul.bf16.gmra.mxu0 %v1479
  %v1526 = vpop.f32.mrf.mxu0
  %v1527 = vadd.f32 0.0, %v1526
  %v1528 = vpop.f32.mrf.mxu0
  %1529 = vdwg.mxu0
  %1530 = vmatpush.bf16.msra.mxu0 0
  %1531 = vmatpush.bf16.msra.mxu0 0
  %1532 = vmatpush.bf16.msra.mxu0 0
  %1533 = vmatpush.bf16.msra.mxu0 0
  %1534 = vmatpush.bf16.msra.mxu0 0
  %1535 = vmatpush.bf16.msra.mxu0 0
  %1536 = vmatpush.bf16.msra.mxu0 0
  %1537 = vmatpush.bf16.msra.mxu0 %v160
  %1538 = vmatmul.bf16.gmra.mxu0 %v1489
  %v1539 = vpop.f32.mrf.mxu0
  %v1540 = vadd.f32 %v1527, %v1539
  %v1541 = vpop.f32.mrf.mxu0
  %1542 = vdwg.mxu0
  %v1544 = vsel %vm179, %v1466, 0
  %1546 = vmatpush.bf16.msra.mxu0 %v303
  %1547 = vmatpush.bf16.msra.mxu0 %v301
  %1548 = vmatpush.bf16.msra.mxu0 %v299
  %1549 = vmatpush.bf16.msra.mxu0 %v297
  %1550 = vmatpush.bf16.msra.mxu0 %v295
  %1551 = vmatpush.bf16.msra.mxu0 %v293
  %1552 = vmatpush.bf16.msra.mxu0 %v291
  %1553 = vmatpush.bf16.msra.mxu0 %v289
  %1554 = vmatmul.bf16.gmra.mxu0 %v1465
  %v1555 = vpop.f32.mrf.mxu0
  %v1556 = vadd.f32 %v1514, %v1555
  %v1557 = vpop.f32.mrf.mxu0
  %1558 = vdwg.mxu0
  %1559 = vmatpush.bf16.msra.mxu0 0
  %1560 = vmatpush.bf16.msra.mxu0 0
  %1561 = vmatpush.bf16.msra.mxu0 0
  %1562 = vmatpush.bf16.msra.mxu0 0
  %1563 = vmatpush.bf16.msra.mxu0 0
  %1564 = vmatpush.bf16.msra.mxu0 0
  %1565 = vmatpush.bf16.msra.mxu0 0
  %1566 = vmatpush.bf16.msra.mxu0 %v305
  %1567 = vmatmul.bf16.gmra.mxu0 %v1544
  %v1568 = vpop.f32.mrf.mxu0
  %v1569 = vadd.f32 %v1556, %v1568
  %v1570 = vpop.f32.mrf.mxu0
  %1571 = vdwg.mxu0
  %1572 = vmatpush.bf16.msra.mxu0 %v304
  %1573 = vmatpush.bf16.msra.mxu0 %v302
  %1574 = vmatpush.bf16.msra.mxu0 %v300
  %1575 = vmatpush.bf16.msra.mxu0 %v298
  %1576 = vmatpush.bf16.msra.mxu0 %v296
  %1577 = vmatpush.bf16.msra.mxu0 %v294
  %1578 = vmatpush.bf16.msra.mxu0 %v292
  %1579 = vmatpush.bf16.msra.mxu0 %v290
  %1580 = vmatmul.bf16.gmra.mxu0 %v1465
  %v1581 = vpop.f32.mrf.mxu0
  %v1582 = vadd.f32 %v1540, %v1581
  %v1583 = vpop.f32.mrf.mxu0
  %1584 = vdwg.mxu0
  %1585 = vmatpush.bf16.msra.mxu0 0
  %1586 = vmatpush.bf16.msra.mxu0 0
  %1587 = vmatpush.bf16.msra.mxu0 0
  %1588 = vmatpush.bf16.msra.mxu0 0
  %1589 = vmatpush.bf16.msra.mxu0 0
  %1590 = vmatpush.bf16.msra.mxu0 0
  %1591 = vmatpush.bf16.msra.mxu0 0
  %1592 = vmatpush.bf16.msra.mxu0 %v306
  %1593 = vmatmul.bf16.gmra.mxu0 %v1544
  %v1594 = vpop.f32.mrf.mxu0
  %v1595 = vadd.f32 %v1582, %v1594
  %v1596 = vpop.f32.mrf.mxu0
  %1597 = vdwg.mxu0
  %s1598 = scalar_lea.vmem %s0, 96
  %v1599 = vld [vmem:[%s1598] sm:$0xff]
  %v1600 = vld [vmem:[%s1598 + $0x8] sm:$0xff]
  %v1601 = vpack.c.bf16 %v1599, %v1599
  %v1602 = vpack.c.bf16 %v1600, %v1600
  %v1604 = vsel %vm179, %v1602, 0
  %1606 = vmatpush.bf16.msra.mxu0 %v472
  %1607 = vmatpush.bf16.msra.mxu0 %v470
  %1608 = vmatpush.bf16.msra.mxu0 %v468
  %1609 = vmatpush.bf16.msra.mxu0 %v466
  %1610 = vmatpush.bf16.msra.mxu0 %v464
  %1611 = vmatpush.bf16.msra.mxu0 %v462
  %1612 = vmatpush.bf16.msra.mxu0 %v460
  %1613 = vmatpush.bf16.msra.mxu0 %v458
  %1614 = vmatmul.bf16.gmra.mxu0 %v1601
  %v1615 = vpop.f32.mrf.mxu0
  %v1616 = vadd.f32 0.0, %v1615
  %v1617 = vpop.f32.mrf.mxu0
  %1618 = vdwg.mxu0
  %1619 = vmatpush.bf16.msra.mxu0 0
  %1620 = vmatpush.bf16.msra.mxu0 0
  %1621 = vmatpush.bf16.msra.mxu0 0
  %1622 = vmatpush.bf16.msra.mxu0 0
  %1623 = vmatpush.bf16.msra.mxu0 0
  %1624 = vmatpush.bf16.msra.mxu0 0
  %1625 = vmatpush.bf16.msra.mxu0 0
  %1626 = vmatpush.bf16.msra.mxu0 %v474
  %1627 = vmatmul.bf16.gmra.mxu0 %v1604
  %v1628 = vpop.f32.mrf.mxu0
  %v1629 = vadd.f32 %v1616, %v1628
  %v1630 = vpop.f32.mrf.mxu0
  %1631 = vdwg.mxu0
  %1632 = vmatpush.bf16.msra.mxu0 %v473
  %1633 = vmatpush.bf16.msra.mxu0 %v471
  %1634 = vmatpush.bf16.msra.mxu0 %v469
  %1635 = vmatpush.bf16.msra.mxu0 %v467
  %1636 = vmatpush.bf16.msra.mxu0 %v465
  %1637 = vmatpush.bf16.msra.mxu0 %v463
  %1638 = vmatpush.bf16.msra.mxu0 %v461
  %1639 = vmatpush.bf16.msra.mxu0 %v459
  %1640 = vmatmul.bf16.gmra.mxu0 %v1601
  %v1641 = vpop.f32.mrf.mxu0
  %v1642 = vadd.f32 0.0, %v1641
  %v1643 = vpop.f32.mrf.mxu0
  %1644 = vdwg.mxu0
  %1645 = vmatpush.bf16.msra.mxu0 0
  %1646 = vmatpush.bf16.msra.mxu0 0
  %1647 = vmatpush.bf16.msra.mxu0 0
  %1648 = vmatpush.bf16.msra.mxu0 0
  %1649 = vmatpush.bf16.msra.mxu0 0
  %1650 = vmatpush.bf16.msra.mxu0 0
  %1651 = vmatpush.bf16.msra.mxu0 0
  %1652 = vmatpush.bf16.msra.mxu0 %v475
  %1653 = vmatmul.bf16.gmra.mxu0 %v1604
  %v1654 = vpop.f32.mrf.mxu0
  %v1655 = vadd.f32 %v1642, %v1654
  %v1656 = vpop.f32.mrf.mxu0
  %1657 = vdwg.mxu0
  %v1658 = vadd.f32 %v1569, %v1629
  %v1659 = vadd.f32 %v1595, %v1655
  %v1660 = vld [vmem:[%s1598] sm:$0xfe]
  %v1661 = vld [vmem:[%s1598 + $0x8] sm:$0xfe]
  %v1662 = vld [vmem:[%s1598 + $0x10] sm:$0x1]
  %v1663 = vld [vmem:[%s1598 + $0x18] sm:$0x1]
  %v1664 = vpack.c.bf16 %v1662, %v1660
  %v1665 = vpack.c.bf16 %v1663, %v1661
  %v1667 = vshrl.u32 %v1664, 16
  %v1669 = vshll.u32 %v1664, 16
  %v1671 = vrot.slane %v1669, 1
  %v1672 = vor.u32 %v1667, %v1671
  %v1674 = vshrl.u32 %v1665, 16
  %v1676 = vshll.u32 %v1665, 16
  %v1678 = vrot.slane %v1676, 1
  %v1679 = vor.u32 %v1674, %v1678
  %v1682 = vsel %vm179, %v1679, 0
  %1684 = vmatpush.bf16.msra.mxu0 %v659
  %1685 = vmatpush.bf16.msra.mxu0 %v657
  %1686 = vmatpush.bf16.msra.mxu0 %v655
  %1687 = vmatpush.bf16.msra.mxu0 %v653
  %1688 = vmatpush.bf16.msra.mxu0 %v651
  %1689 = vmatpush.bf16.msra.mxu0 %v649
  %1690 = vmatpush.bf16.msra.mxu0 %v647
  %1691 = vmatpush.bf16.msra.mxu0 %v645
  %1692 = vmatmul.bf16.gmra.mxu0 %v1672
  %v1693 = vpop.f32.mrf.mxu0
  %v1694 = vadd.f32 0.0, %v1693
  %v1695 = vpop.f32.mrf.mxu0
  %1696 = vdwg.mxu0
  %1697 = vmatpush.bf16.msra.mxu0 0
  %1698 = vmatpush.bf16.msra.mxu0 0
  %1699 = vmatpush.bf16.msra.mxu0 0
  %1700 = vmatpush.bf16.msra.mxu0 0
  %1701 = vmatpush.bf16.msra.mxu0 0
  %1702 = vmatpush.bf16.msra.mxu0 0
  %1703 = vmatpush.bf16.msra.mxu0 0
  %1704 = vmatpush.bf16.msra.mxu0 %v661
  %1705 = vmatmul.bf16.gmra.mxu0 %v1682
  %v1706 = vpop.f32.mrf.mxu0
  %v1707 = vadd.f32 %v1694, %v1706
  %v1708 = vpop.f32.mrf.mxu0
  %1709 = vdwg.mxu0
  %1710 = vmatpush.bf16.msra.mxu0 %v660
  %1711 = vmatpush.bf16.msra.mxu0 %v658
  %1712 = vmatpush.bf16.msra.mxu0 %v656
  %1713 = vmatpush.bf16.msra.mxu0 %v654
  %1714 = vmatpush.bf16.msra.mxu0 %v652
  %1715 = vmatpush.bf16.msra.mxu0 %v650
  %1716 = vmatpush.bf16.msra.mxu0 %v648
  %1717 = vmatpush.bf16.msra.mxu0 %v646
  %1718 = vmatmul.bf16.gmra.mxu0 %v1672
  %v1719 = vpop.f32.mrf.mxu0
  %v1720 = vadd.f32 0.0, %v1719
  %v1721 = vpop.f32.mrf.mxu0
  %1722 = vdwg.mxu0
  %1723 = vmatpush.bf16.msra.mxu0 0
  %1724 = vmatpush.bf16.msra.mxu0 0
  %1725 = vmatpush.bf16.msra.mxu0 0
  %1726 = vmatpush.bf16.msra.mxu0 0
  %1727 = vmatpush.bf16.msra.mxu0 0
  %1728 = vmatpush.bf16.msra.mxu0 0
  %1729 = vmatpush.bf16.msra.mxu0 0
  %1730 = vmatpush.bf16.msra.mxu0 %v662
  %1731 = vmatmul.bf16.gmra.mxu0 %v1682
  %v1732 = vpop.f32.mrf.mxu0
  %v1733 = vadd.f32 %v1720, %v1732
  %v1734 = vpop.f32.mrf.mxu0
  %1735 = vdwg.mxu0
  %v1736 = vadd.f32 %v1658, %v1707
  %v1737 = vadd.f32 %v1659, %v1733
  %s1738 = scalar_lea.vmem %s0, 160
  %v1739 = vld [vmem:[%s1738] sm:$0xff]
  %v1740 = vld [vmem:[%s1738 + $0x8] sm:$0xff]
  %v1741 = vpack.c.bf16 %v1739, %v1739
  %v1742 = vpack.c.bf16 %v1740, %v1740
  %v1744 = vsel %vm179, %v1742, 0
  %1746 = vmatpush.bf16.msra.mxu0 %v830
  %1747 = vmatpush.bf16.msra.mxu0 %v828
  %1748 = vmatpush.bf16.msra.mxu0 %v826
  %1749 = vmatpush.bf16.msra.mxu0 %v824
  %1750 = vmatpush.bf16.msra.mxu0 %v822
  %1751 = vmatpush.bf16.msra.mxu0 %v820
  %1752 = vmatpush.bf16.msra.mxu0 %v818
  %1753 = vmatpush.bf16.msra.mxu0 %v816
  %1754 = vmatmul.bf16.gmra.mxu0 %v1741
  %v1755 = vpop.f32.mrf.mxu0
  %v1756 = vadd.f32 0.0, %v1755
  %v1757 = vpop.f32.mrf.mxu0
  %1758 = vdwg.mxu0
  %1759 = vmatpush.bf16.msra.mxu0 0
  %1760 = vmatpush.bf16.msra.mxu0 0
  %1761 = vmatpush.bf16.msra.mxu0 0
  %1762 = vmatpush.bf16.msra.mxu0 0
  %1763 = vmatpush.bf16.msra.mxu0 0
  %1764 = vmatpush.bf16.msra.mxu0 0
  %1765 = vmatpush.bf16.msra.mxu0 0
  %1766 = vmatpush.bf16.msra.mxu0 %v832
  %1767 = vmatmul.bf16.gmra.mxu0 %v1744
  %v1768 = vpop.f32.mrf.mxu0
  %v1769 = vadd.f32 %v1756, %v1768
  %v1770 = vpop.f32.mrf.mxu0
  %1771 = vdwg.mxu0
  %1772 = vmatpush.bf16.msra.mxu0 %v831
  %1773 = vmatpush.bf16.msra.mxu0 %v829
  %1774 = vmatpush.bf16.msra.mxu0 %v827
  %1775 = vmatpush.bf16.msra.mxu0 %v825
  %1776 = vmatpush.bf16.msra.mxu0 %v823
  %1777 = vmatpush.bf16.msra.mxu0 %v821
  %1778 = vmatpush.bf16.msra.mxu0 %v819
  %1779 = vmatpush.bf16.msra.mxu0 %v817
  %1780 = vmatmul.bf16.gmra.mxu0 %v1741
  %v1781 = vpop.f32.mrf.mxu0
  %v1782 = vadd.f32 0.0, %v1781
  %v1783 = vpop.f32.mrf.mxu0
  %1784 = vdwg.mxu0
  %1785 = vmatpush.bf16.msra.mxu0 0
  %1786 = vmatpush.bf16.msra.mxu0 0
  %1787 = vmatpush.bf16.msra.mxu0 0
  %1788 = vmatpush.bf16.msra.mxu0 0
  %1789 = vmatpush.bf16.msra.mxu0 0
  %1790 = vmatpush.bf16.msra.mxu0 0
  %1791 = vmatpush.bf16.msra.mxu0 0
  %1792 = vmatpush.bf16.msra.mxu0 %v833
  %1793 = vmatmul.bf16.gmra.mxu0 %v1744
  %v1794 = vpop.f32.mrf.mxu0
  %v1795 = vadd.f32 %v1782, %v1794
  %v1796 = vpop.f32.mrf.mxu0
  %1797 = vdwg.mxu0
  %v1798 = vadd.f32 %v1736, %v1769
  %v1799 = vadd.f32 %v1737, %v1795
  %v1800 = vld [vmem:[%s1738] sm:$0xfe]
  %v1801 = vld [vmem:[%s1738 + $0x8] sm:$0xfe]
  %v1802 = vld [vmem:[%s1738 + $0x10] sm:$0x1]
  %v1803 = vld [vmem:[%s1738 + $0x18] sm:$0x1]
  %v1804 = vpack.c.bf16 %v1802, %v1800
  %v1805 = vpack.c.bf16 %v1803, %v1801
  %v1807 = vshrl.u32 %v1804, 16
  %v1809 = vshll.u32 %v1804, 16
  %v1811 = vrot.slane %v1809, 1
  %v1812 = vor.u32 %v1807, %v1811
  %v1814 = vshrl.u32 %v1805, 16
  %v1816 = vshll.u32 %v1805, 16
  %v1818 = vrot.slane %v1816, 1
  %v1819 = vor.u32 %v1814, %v1818
  %v1822 = vsel %vm179, %v1819, 0
  %1824 = vmatpush.bf16.msra.mxu0 %v1017
  %1825 = vmatpush.bf16.msra.mxu0 %v1015
  %1826 = vmatpush.bf16.msra.mxu0 %v1013
  %1827 = vmatpush.bf16.msra.mxu0 %v1011
  %1828 = vmatpush.bf16.msra.mxu0 %v1009
  %1829 = vmatpush.bf16.msra.mxu0 %v1007
  %1830 = vmatpush.bf16.msra.mxu0 %v1005
  %1831 = vmatpush.bf16.msra.mxu0 %v1003
  %1832 = vmatmul.bf16.gmra.mxu0 %v1812
  %v1833 = vpop.f32.mrf.mxu0
  %v1834 = vadd.f32 0.0, %v1833
  %v1835 = vpop.f32.mrf.mxu0
  %1836 = vdwg.mxu0
  %1837 = vmatpush.bf16.msra.mxu0 0
  %1838 = vmatpush.bf16.msra.mxu0 0
  %1839 = vmatpush.bf16.msra.mxu0 0
  %1840 = vmatpush.bf16.msra.mxu0 0
  %1841 = vmatpush.bf16.msra.mxu0 0
  %1842 = vmatpush.bf16.msra.mxu0 0
  %1843 = vmatpush.bf16.msra.mxu0 0
  %1844 = vmatpush.bf16.msra.mxu0 %v1019
  %1845 = vmatmul.bf16.gmra.mxu0 %v1822
  %v1846 = vpop.f32.mrf.mxu0
  %v1847 = vadd.f32 %v1834, %v1846
  %v1848 = vpop.f32.mrf.mxu0
  %1849 = vdwg.mxu0
  %1850 = vmatpush.bf16.msra.mxu0 %v1018
  %1851 = vmatpush.bf16.msra.mxu0 %v1016
  %1852 = vmatpush.bf16.msra.mxu0 %v1014
  %1853 = vmatpush.bf16.msra.mxu0 %v1012
  %1854 = vmatpush.bf16.msra.mxu0 %v1010
  %1855 = vmatpush.bf16.msra.mxu0 %v1008
  %1856 = vmatpush.bf16.msra.mxu0 %v1006
  %1857 = vmatpush.bf16.msra.mxu0 %v1004
  %1858 = vmatmul.bf16.gmra.mxu0 %v1812
  %v1859 = vpop.f32.mrf.mxu0
  %v1860 = vadd.f32 0.0, %v1859
  %v1861 = vpop.f32.mrf.mxu0
  %1862 = vdwg.mxu0
  %1863 = vmatpush.bf16.msra.mxu0 0
  %1864 = vmatpush.bf16.msra.mxu0 0
  %1865 = vmatpush.bf16.msra.mxu0 0
  %1866 = vmatpush.bf16.msra.mxu0 0
  %1867 = vmatpush.bf16.msra.mxu0 0
  %1868 = vmatpush.bf16.msra.mxu0 0
  %1869 = vmatpush.bf16.msra.mxu0 0
  %1870 = vmatpush.bf16.msra.mxu0 %v1020
  %1871 = vmatmul.bf16.gmra.mxu0 %v1822
  %v1872 = vpop.f32.mrf.mxu0
  %v1873 = vadd.f32 %v1860, %v1872
  %v1874 = vpop.f32.mrf.mxu0
  %1875 = vdwg.mxu0
  %v1876 = vadd.f32 %v1798, %v1847
  %v1877 = vadd.f32 %v1799, %v1873
  %s1878 = scalar_lea.vmem %s0, 224
  %v1879 = vld [vmem:[%s1878] sm:$0xff]
  %v1880 = vld [vmem:[%s1878 + $0x8] sm:$0xff]
  %v1881 = vpack.c.bf16 %v1879, %v1879
  %v1882 = vpack.c.bf16 %v1880, %v1880
  %v1884 = vsel %vm179, %v1882, 0
  %1886 = vmatpush.bf16.msra.mxu0 %v1188
  %1887 = vmatpush.bf16.msra.mxu0 %v1186
  %1888 = vmatpush.bf16.msra.mxu0 %v1184
  %1889 = vmatpush.bf16.msra.mxu0 %v1182
  %1890 = vmatpush.bf16.msra.mxu0 %v1180
  %1891 = vmatpush.bf16.msra.mxu0 %v1178
  %1892 = vmatpush.bf16.msra.mxu0 %v1176
  %1893 = vmatpush.bf16.msra.mxu0 %v1174
  %1894 = vmatmul.bf16.gmra.mxu0 %v1881
  %v1895 = vpop.f32.mrf.mxu0
  %v1896 = vadd.f32 0.0, %v1895
  %v1897 = vpop.f32.mrf.mxu0
  %1898 = vdwg.mxu0
  %1899 = vmatpush.bf16.msra.mxu0 0
  %1900 = vmatpush.bf16.msra.mxu0 0
  %1901 = vmatpush.bf16.msra.mxu0 0
  %1902 = vmatpush.bf16.msra.mxu0 0
  %1903 = vmatpush.bf16.msra.mxu0 0
  %1904 = vmatpush.bf16.msra.mxu0 0
  %1905 = vmatpush.bf16.msra.mxu0 0
  %1906 = vmatpush.bf16.msra.mxu0 %v1190
  %1907 = vmatmul.bf16.gmra.mxu0 %v1884
  %v1908 = vpop.f32.mrf.mxu0
  %v1909 = vadd.f32 %v1896, %v1908
  %v1910 = vpop.f32.mrf.mxu0
  %1911 = vdwg.mxu0
  %1912 = vmatpush.bf16.msra.mxu0 %v1189
  %1913 = vmatpush.bf16.msra.mxu0 %v1187
  %1914 = vmatpush.bf16.msra.mxu0 %v1185
  %1915 = vmatpush.bf16.msra.mxu0 %v1183
  %1916 = vmatpush.bf16.msra.mxu0 %v1181
  %1917 = vmatpush.bf16.msra.mxu0 %v1179
  %1918 = vmatpush.bf16.msra.mxu0 %v1177
  %1919 = vmatpush.bf16.msra.mxu0 %v1175
  %1920 = vmatmul.bf16.gmra.mxu0 %v1881
  %v1921 = vpop.f32.mrf.mxu0
  %v1922 = vadd.f32 0.0, %v1921
  %v1923 = vpop.f32.mrf.mxu0
  %1924 = vdwg.mxu0
  %1925 = vmatpush.bf16.msra.mxu0 0
  %1926 = vmatpush.bf16.msra.mxu0 0
  %1927 = vmatpush.bf16.msra.mxu0 0
  %1928 = vmatpush.bf16.msra.mxu0 0
  %1929 = vmatpush.bf16.msra.mxu0 0
  %1930 = vmatpush.bf16.msra.mxu0 0
  %1931 = vmatpush.bf16.msra.mxu0 0
  %1932 = vmatpush.bf16.msra.mxu0 %v1191
  %1933 = vmatmul.bf16.gmra.mxu0 %v1884
  %v1934 = vpop.f32.mrf.mxu0
  %v1935 = vadd.f32 %v1922, %v1934
  %v1936 = vpop.f32.mrf.mxu0
  %1937 = vdwg.mxu0
  %v1938 = vadd.f32 %v1876, %v1909
  %v1939 = vadd.f32 %v1877, %v1935
  %v1940 = vld [vmem:[%s1878] sm:$0xfe]
  %v1941 = vld [vmem:[%s1878 + $0x8] sm:$0xfe]
  %v1942 = vld [vmem:[%s1878 + $0x10] sm:$0x1]
  %v1943 = vld [vmem:[%s1878 + $0x18] sm:$0x1]
  %v1944 = vpack.c.bf16 %v1942, %v1940
  %v1945 = vpack.c.bf16 %v1943, %v1941
  %v1947 = vshrl.u32 %v1944, 16
  %v1949 = vshll.u32 %v1944, 16
  %v1951 = vrot.slane %v1949, 1
  %v1952 = vor.u32 %v1947, %v1951
  %v1954 = vshrl.u32 %v1945, 16
  %v1956 = vshll.u32 %v1945, 16
  %v1958 = vrot.slane %v1956, 1
  %v1959 = vor.u32 %v1954, %v1958
  %v1962 = vsel %vm179, %v1959, 0
  %1964 = vmatpush.bf16.msra.mxu0 %v1375
  %1965 = vmatpush.bf16.msra.mxu0 %v1373
  %1966 = vmatpush.bf16.msra.mxu0 %v1371
  %1967 = vmatpush.bf16.msra.mxu0 %v1369
  %1968 = vmatpush.bf16.msra.mxu0 %v1367
  %1969 = vmatpush.bf16.msra.mxu0 %v1365
  %1970 = vmatpush.bf16.msra.mxu0 %v1363
  %1971 = vmatpush.bf16.msra.mxu0 %v1361
  %1972 = vmatmul.bf16.gmra.mxu0 %v1952
  %v1973 = vpop.f32.mrf.mxu0
  %v1974 = vadd.f32 0.0, %v1973
  %v1975 = vpop.f32.mrf.mxu0
  %1976 = vdwg.mxu0
  %1977 = vmatpush.bf16.msra.mxu0 0
  %1978 = vmatpush.bf16.msra.mxu0 0
  %1979 = vmatpush.bf16.msra.mxu0 0
  %1980 = vmatpush.bf16.msra.mxu0 0
  %1981 = vmatpush.bf16.msra.mxu0 0
  %1982 = vmatpush.bf16.msra.mxu0 0
  %1983 = vmatpush.bf16.msra.mxu0 0
  %1984 = vmatpush.bf16.msra.mxu0 %v1377
  %1985 = vmatmul.bf16.gmra.mxu0 %v1962
  %v1986 = vpop.f32.mrf.mxu0
  %v1987 = vadd.f32 %v1974, %v1986
  %v1988 = vpop.f32.mrf.mxu0
  %1989 = vdwg.mxu0
  %1990 = vmatpush.bf16.msra.mxu0 %v1376
  %1991 = vmatpush.bf16.msra.mxu0 %v1374
  %1992 = vmatpush.bf16.msra.mxu0 %v1372
  %1993 = vmatpush.bf16.msra.mxu0 %v1370
  %1994 = vmatpush.bf16.msra.mxu0 %v1368
  %1995 = vmatpush.bf16.msra.mxu0 %v1366
  %1996 = vmatpush.bf16.msra.mxu0 %v1364
  %1997 = vmatpush.bf16.msra.mxu0 %v1362
  %1998 = vmatmul.bf16.gmra.mxu0 %v1952
  %v1999 = vpop.f32.mrf.mxu0
  %v2000 = vadd.f32 0.0, %v1999
  %v2001 = vpop.f32.mrf.mxu0
  %2002 = vdwg.mxu0
  %2003 = vmatpush.bf16.msra.mxu0 0
  %2004 = vmatpush.bf16.msra.mxu0 0
  %2005 = vmatpush.bf16.msra.mxu0 0
  %2006 = vmatpush.bf16.msra.mxu0 0
  %2007 = vmatpush.bf16.msra.mxu0 0
  %2008 = vmatpush.bf16.msra.mxu0 0
  %2009 = vmatpush.bf16.msra.mxu0 0
  %2010 = vmatpush.bf16.msra.mxu0 %v1378
  %2011 = vmatmul.bf16.gmra.mxu0 %v1962
  %v2012 = vpop.f32.mrf.mxu0
  %v2013 = vadd.f32 %v2000, %v2012
  %v2014 = vpop.f32.mrf.mxu0
  %2015 = vdwg.mxu0
  %v2016 = vadd.f32 %v1938, %v1987
  %v2017 = vadd.f32 %v1939, %v2013
  %v2018 = vadd.f32 %v2016, %v1456
  %v2019 = vadd.f32 %v2017, %v1457
  %v2020 = vrot.slane %v1460, 4
  %v2021 = vadd.f32 %v1460, %v2020
  %v2022 = vrot.slane %v2021, 2
  %v2023 = vadd.f32 %v2021, %v2022
  %v2024 = vrot.slane %v2023, 1
  %v2025 = vadd.f32 %v2023, %v2024
  %v2026 = vrot.slane %v1461, 4
  %v2027 = vadd.f32 %v1461, %v2026
  %v2028 = vrot.slane %v2027, 2
  %v2029 = vadd.f32 %v2027, %v2028
  %v2030 = vrot.slane %v2029, 1
  %v2031 = vadd.f32 %v2029, %v2030
  %v2032 = vadd.f32 %v2025, 0.0
  %v2033 = vadd.f32 %v2031, 0.0
  %v2034 = vmul.f32 %v1460, %v1460
  %v2035 = vmul.f32 %v1461, %v1461
  %v2036 = vrot.slane %v2034, 4
  %v2037 = vadd.f32 %v2034, %v2036
  %v2038 = vrot.slane %v2037, 2
  %v2039 = vadd.f32 %v2037, %v2038
  %v2040 = vrot.slane %v2039, 1
  %v2041 = vadd.f32 %v2039, %v2040
  %v2042 = vrot.slane %v2035, 4
  %v2043 = vadd.f32 %v2035, %v2042
  %v2044 = vrot.slane %v2043, 2
  %v2045 = vadd.f32 %v2043, %v2044
  %v2046 = vrot.slane %v2045, 1
  %v2047 = vadd.f32 %v2045, %v2046
  %v2048 = vadd.f32 %v2041, 0.0
  %v2049 = vadd.f32 %v2047, 0.0
  %v2050 = vrot.slane %v2018, 4
  %v2051 = vadd.f32 %v2018, %v2050
  %v2052 = vrot.slane %v2051, 2
  %v2053 = vadd.f32 %v2051, %v2052
  %v2054 = vrot.slane %v2053, 1
  %v2055 = vadd.f32 %v2053, %v2054
  %v2056 = vrot.slane %v2019, 4
  %v2057 = vadd.f32 %v2019, %v2056
  %v2058 = vrot.slane %v2057, 2
  %v2059 = vadd.f32 %v2057, %v2058
  %v2060 = vrot.slane %v2059, 1
  %v2061 = vadd.f32 %v2059, %v2060
  %v2062 = vadd.f32 %v2032, %v2055
  %v2063 = vadd.f32 %v2033, %v2061
  %v2064 = vmul.f32 %v2018, %v2018
  %v2065 = vmul.f32 %v2019, %v2019
  %v2066 = vrot.slane %v2064, 4
  %v2067 = vadd.f32 %v2064, %v2066
  %v2068 = vrot.slane %v2067, 2
  %v2069 = vadd.f32 %v2067, %v2068
  %v2070 = vrot.slane %v2069, 1
  %v2071 = vadd.f32 %v2069, %v2070
  %v2072 = vrot.slane %v2065, 4
  %v2073 = vadd.f32 %v2065, %v2072
  %v2074 = vrot.slane %v2073, 2
  %v2075 = vadd.f32 %v2073, %v2074
  %v2076 = vrot.slane %v2075, 1
  %v2077 = vadd.f32 %v2075, %v2076
  %v2078 = vadd.f32 %v2048, %v2071
  %v2079 = vadd.f32 %v2049, %v2077
  %v2080 = vld [vmem:[%s3] sm:$0xff]
  %v2081 = vld [vmem:[%s3 + $0x8] sm:$0xff]
  %v2082 = vld [vmem:[%s3 + $0x10] sm:$0xff]
  %v2083 = vld [vmem:[%s3 + $0x18] sm:$0xff]
  %v2084 = vld [vmem:[%s3 + $0x20] sm:$0xff]
  %v2085 = vld [vmem:[%s3 + $0x28] sm:$0xff]
  %v2086 = vld [vmem:[%s3 + $0x30] sm:$0xff]
  %v2087 = vld [vmem:[%s3 + $0x38] sm:$0xff]
  %v2088 = vld [vmem:[%s3 + $0x40] sm:$0xff]
  %v2089 = vld [vmem:[%s3 + $0x48] sm:$0xff]
  %v2090 = vld [vmem:[%s3 + $0x50] sm:$0xff]
  %v2091 = vld [vmem:[%s3 + $0x58] sm:$0xff]
  %v2092 = vld [vmem:[%s3 + $0x60] sm:$0xff]
  %v2093 = vld [vmem:[%s3 + $0x68] sm:$0xff]
  %v2094 = vld [vmem:[%s3 + $0x70] sm:$0xff]
  %v2095 = vld [vmem:[%s3 + $0x78] sm:$0xff]
  %v2096 = vld [vmem:[%s3 + $0x80] sm:$0xff]
  %v2097 = vld [vmem:[%s3 + $0x88] sm:$0xff]
  %v2098 = vld [vmem:[%s3 + $0x90] sm:$0xff]
  %v2099 = vld [vmem:[%s3 + $0x98] sm:$0xff]
  %v2100 = vld [vmem:[%s3 + $0xa0] sm:$0xff]
  %v2101 = vld [vmem:[%s3 + $0xa8] sm:$0xff]
  %v2102 = vld [vmem:[%s3 + $0xb0] sm:$0xff]
  %v2103 = vld [vmem:[%s3 + $0xb8] sm:$0xff]
  %v2104 = vld [vmem:[%s3 + $0xc0] sm:$0xff]
  %v2105 = vld [vmem:[%s3 + $0xc8] sm:$0xff]
  %v2106 = vld [vmem:[%s3 + $0xd0] sm:$0xff]
  %v2107 = vld [vmem:[%s3 + $0xd8] sm:$0xff]
  %v2108 = vld [vmem:[%s3 + $0xe0] sm:$0xff]
  %v2109 = vld [vmem:[%s3 + $0xe8] sm:$0xff]
  %v2110 = vld [vmem:[%s3 + $0xf0] sm:$0xff]
  %v2111 = vld [vmem:[%s3 + $0xf8] sm:$0xff]
  %2112 = vmatpush.msra.mxu0 %v2095
  %2113 = vmatpush.msra.mxu0 %v2094
  %2114 = vmatpush.msra.mxu0 %v2093
  %2115 = vmatpush.msra.mxu0 %v2092
  %2116 = vmatpush.msra.mxu0 %v2091
  %2117 = vmatpush.msra.mxu0 %v2090
  %2118 = vmatpush.msra.mxu0 %v2089
  %2119 = vmatpush.msra.mxu0 %v2088
  %2120 = vmatpush.msra.mxu0 %v2087
  %2121 = vmatpush.msra.mxu0 %v2086
  %2122 = vmatpush.msra.mxu0 %v2085
  %2123 = vmatpush.msra.mxu0 %v2084
  %2124 = vmatpush.msra.mxu0 %v2083
  %2125 = vmatpush.msra.mxu0 %v2082
  %2126 = vmatpush.msra.mxu0 %v2081
  %2127 = vmatpush.msra.mxu0 %v2080
  %2128 = vmatmul.f32.gmra.mxu0 %v2062
  %v2129 = vpop.f32.mrf.mxu0
  %v2130 = vadd.f32 0.0, %v2129
  %2131 = vdwg.mxu0
  %2132 = vmatpush.msra.mxu0 %v2111
  %2133 = vmatpush.msra.mxu0 %v2110
  %2134 = vmatpush.msra.mxu0 %v2109
  %2135 = vmatpush.msra.mxu0 %v2108
  %2136 = vmatpush.msra.mxu0 %v2107
  %2137 = vmatpush.msra.mxu0 %v2106
  %2138 = vmatpush.msra.mxu0 %v2105
  %2139 = vmatpush.msra.mxu0 %v2104
  %2140 = vmatpush.msra.mxu0 %v2103
  %2141 = vmatpush.msra.mxu0 %v2102
  %2142 = vmatpush.msra.mxu0 %v2101
  %2143 = vmatpush.msra.mxu0 %v2100
  %2144 = vmatpush.msra.mxu0 %v2099
  %2145 = vmatpush.msra.mxu0 %v2098
  %2146 = vmatpush.msra.mxu0 %v2097
  %2147 = vmatpush.msra.mxu0 %v2096
  %2148 = vmatmul.f32.gmra.mxu0 %v2063
  %v2149 = vpop.f32.mrf.mxu0
  %v2150 = vadd.f32 %v2130, %v2149
  %2151 = vdwg.mxu0
  %2152 = vmatpush.msra.mxu0 %v2095
  %2153 = vmatpush.msra.mxu0 %v2094
  %2154 = vmatpush.msra.mxu0 %v2093
  %2155 = vmatpush.msra.mxu0 %v2092
  %2156 = vmatpush.msra.mxu0 %v2091
  %2157 = vmatpush.msra.mxu0 %v2090
  %2158 = vmatpush.msra.mxu0 %v2089
  %2159 = vmatpush.msra.mxu0 %v2088
  %2160 = vmatpush.msra.mxu0 %v2087
  %2161 = vmatpush.msra.mxu0 %v2086
  %2162 = vmatpush.msra.mxu0 %v2085
  %2163 = vmatpush.msra.mxu0 %v2084
  %2164 = vmatpush.msra.mxu0 %v2083
  %2165 = vmatpush.msra.mxu0 %v2082
  %2166 = vmatpush.msra.mxu0 %v2081
  %2167 = vmatpush.msra.mxu0 %v2080
  %2168 = vmatmul.f32.gmra.mxu0 %v2078
  %v2169 = vpop.f32.mrf.mxu0
  %v2170 = vadd.f32 0.0, %v2169
  %2171 = vdwg.mxu0
  %2172 = vmatpush.msra.mxu0 %v2111
  %2173 = vmatpush.msra.mxu0 %v2110
  %2174 = vmatpush.msra.mxu0 %v2109
  %2175 = vmatpush.msra.mxu0 %v2108
  %2176 = vmatpush.msra.mxu0 %v2107
  %2177 = vmatpush.msra.mxu0 %v2106
  %2178 = vmatpush.msra.mxu0 %v2105
  %2179 = vmatpush.msra.mxu0 %v2104
  %2180 = vmatpush.msra.mxu0 %v2103
  %2181 = vmatpush.msra.mxu0 %v2102
  %2182 = vmatpush.msra.mxu0 %v2101
  %2183 = vmatpush.msra.mxu0 %v2100
  %2184 = vmatpush.msra.mxu0 %v2099
  %2185 = vmatpush.msra.mxu0 %v2098
  %2186 = vmatpush.msra.mxu0 %v2097
  %2187 = vmatpush.msra.mxu0 %v2096
  %2188 = vmatmul.f32.gmra.mxu0 %v2079
  %v2189 = vpop.f32.mrf.mxu0
  %v2190 = vadd.f32 %v2170, %v2189
  %2191 = vdwg.mxu0
  %v2192 = vrcp.pop 128.0
  %v2193 = vmul.f32 128.0, %v2192
  %v2194 = vsub.f32 1.0, %v2193
  %v2195 = vmul.f32 %v2192, %v2194
  %v2196 = vadd.f32 %v2192, %v2195
  %vm2197 = vweird.f32 %v2192
  %v2198 = vsel %vm2197, %v2192, %v2196
  %v2199 = vmul.f32 %v2150, %v2198
  %v2200 = vmul.f32 %v2190, %v2198
  %v2201 = vmul.f32 %v2199, %v2199
  %v2202 = vsub.f32 %v2200, %v2201
  %v2203 = vld [vmem:[%s5] sm:$0x1]
  %v2204 = vadd.f32 %v2202, 1e-05
  %v2205 = vrsqrt.pop %v2204
  %v2206 = vmul.f32 %v2205, %v2204
  %v2207 = vmul.f32 %v2206, %v2205
  %v2208 = vmul.f32 0.5, %v2207
  %v2209 = vsub.f32 1.5, %v2208
  %v2210 = vmul.f32 %v2205, %v2209
  %vm2211 = vweird.f32 %v2204
  %vm2212 = vweird.f32 %v2205
  %vm2213 = vmor %vm2211, %vm2212
  %v2214 = vsel %vm2213, %v2205, %v2210
  %v2215 = vmul.f32 %v2203, %v2214
  %v2216 = vld [vmem:[%s6] sm:$0x1]
  %v2217 = vmul.f32 %v2199, %v2215
  %v2218 = vsub.f32 %v2216, %v2217
  %v2219 = vld [vmem:[%s4] sm:$0xff]
  %v2220 = vld [vmem:[%s4 + $0x8] sm:$0xff]
  %v2221 = vld [vmem:[%s4 + $0x10] sm:$0xff]
  %v2222 = vld [vmem:[%s4 + $0x18] sm:$0xff]
  %v2223 = vld [vmem:[%s4 + $0x20] sm:$0xff]
  %v2224 = vld [vmem:[%s4 + $0x28] sm:$0xff]
  %v2225 = vld [vmem:[%s4 + $0x30] sm:$0xff]
  %v2226 = vld [vmem:[%s4 + $0x38] sm:$0xff]
  %vm2227 = vcmask 261120
  %v2229 = vsel %vm2227, %v2215, 0
  %2231 = vmatpush.msra.mxu0 0.0
  %2232 = vmatpush.msra.mxu0 0.0
  %2233 = vmatpush.msra.mxu0 0.0
  %2234 = vmatpush.msra.mxu0 0.0
  %2235 = vmatpush.msra.mxu0 0.0
  %2236 = vmatpush.msra.mxu0 0.0
  %2237 = vmatpush.msra.mxu0 0.0
  %2238 = vmatpush.msra.mxu0 0.0
  %2239 = vmatpush.msra.mxu0 0.0
  %2240 = vmatpush.msra.mxu0 0.0
  %2241 = vmatpush.msra.mxu0 0.0
  %2242 = vmatpush.msra.mxu0 0.0
  %2243 = vmatpush.msra.mxu0 %v2225
  %2244 = vmatpush.msra.mxu0 %v2223
  %2245 = vmatpush.msra.mxu0 %v2221
  %2246 = vmatpush.msra.mxu0 %v2219
  %2247 = vmatmul.f32.gmra.mxu0 %v2229
  %v2248 = vpop.f32.mrf.mxu0
  %v2249 = vadd.f32 0.0, %v2248
  %2250 = vdwg.mxu0
  %2251 = vmatpush.msra.mxu0 0.0
  %2252 = vmatpush.msra.mxu0 0.0
  %2253 = vmatpush.msra.mxu0 0.0
  %2254 = vmatpush.msra.mxu0 0.0
  %2255 = vmatpush.msra.mxu0 0.0
  %2256 = vmatpush.msra.mxu0 0.0
  %2257 = vmatpush.msra.mxu0 0.0
  %2258 = vmatpush.msra.mxu0 0.0
  %2259 = vmatpush.msra.mxu0 0.0
  %2260 = vmatpush.msra.mxu0 0.0
  %2261 = vmatpush.msra.mxu0 0.0
  %2262 = vmatpush.msra.mxu0 0.0
  %2263 = vmatpush.msra.mxu0 %v2226
  %2264 = vmatpush.msra.mxu0 %v2224
  %2265 = vmatpush.msra.mxu0 %v2222
  %2266 = vmatpush.msra.mxu0 %v2220
  %2267 = vmatmul.f32.gmra.mxu0 %v2229
  %v2268 = vpop.f32.mrf.mxu0
  %v2269 = vadd.f32 0.0, %v2268
  %2270 = vdwg.mxu0
  %v2272 = vsel %vm2227, %v2218, 0
  %2274 = vmatpush.msra.mxu0 0.0
  %2275 = vmatpush.msra.mxu0 0.0
  %2276 = vmatpush.msra.mxu0 0.0
  %2277 = vmatpush.msra.mxu0 0.0
  %2278 = vmatpush.msra.mxu0 0.0
  %2279 = vmatpush.msra.mxu0 0.0
  %2280 = vmatpush.msra.mxu0 0.0
  %2281 = vmatpush.msra.mxu0 0.0
  %2282 = vmatpush.msra.mxu0 0.0
  %2283 = vmatpush.msra.mxu0 0.0
  %2284 = vmatpush.msra.mxu0 0.0
  %2285 = vmatpush.msra.mxu0 0.0
  %2286 = vmatpush.msra.mxu0 %v2225
  %2287 = vmatpush.msra.mxu0 %v2223
  %2288 = vmatpush.msra.mxu0 %v2221
  %2289 = vmatpush.msra.mxu0 %v2219
  %2290 = vmatmul.f32.gmra.mxu0 %v2272
  %v2291 = vpop.f32.mrf.mxu0
  %v2292 = vadd.f32 0.0, %v2291
  %2293 = vdwg.mxu0
  %2294 = vmatpush.msra.mxu0 0.0
  %2295 = vmatpush.msra.mxu0 0.0
  %2296 = vmatpush.msra.mxu0 0.0
  %2297 = vmatpush.msra.mxu0 0.0
  %2298 = vmatpush.msra.mxu0 0.0
  %2299 = vmatpush.msra.mxu0 0.0
  %2300 = vmatpush.msra.mxu0 0.0
  %2301 = vmatpush.msra.mxu0 0.0
  %2302 = vmatpush.msra.mxu0 0.0
  %2303 = vmatpush.msra.mxu0 0.0
  %2304 = vmatpush.msra.mxu0 0.0
  %2305 = vmatpush.msra.mxu0 0.0
  %2306 = vmatpush.msra.mxu0 %v2226
  %2307 = vmatpush.msra.mxu0 %v2224
  %2308 = vmatpush.msra.mxu0 %v2222
  %2309 = vmatpush.msra.mxu0 %v2220
  %2310 = vmatmul.f32.gmra.mxu0 %v2272
  %v2311 = vpop.f32.mrf.mxu0
  %v2312 = vadd.f32 0.0, %v2311
  %2313 = vdwg.mxu0
  %v2314 = vperm.slane %v2249, 0
  %v2315 = vperm.slane %v2269, 0
  %v2316 = vmul.f32 %v1460, %v2314
  %v2317 = vmul.f32 %v1461, %v2315
  %v2318 = vperm.slane %v2292, 0
  %v2319 = vperm.slane %v2312, 0
  %v2320 = vadd.f32 %v2316, %v2318
  %v2321 = vadd.f32 %v2317, %v2319
  %vm2322 = vcmp.ge.f32.partialorder %v2320, 0.0
  %vm2323 = vcmp.ge.f32.partialorder %v2321, 0.0
  %v2324 = vmul.f32 %v2320, 0.2
  %v2325 = vmul.f32 %v2321, 0.2
  %v2326 = vsel %vm2322, %v2320, %v2324
  %v2327 = vsel %vm2323, %v2321, %v2325
  %2328 = vst [vmem:[%s7] sm:$0xff] %v2326
  %2329 = vst [vmem:[%s7 + $0x8] sm:$0xff] %v2327
  %v2330 = vmul.f32 %v2018, %v2314
  %v2331 = vmul.f32 %v2019, %v2315
  %v2332 = vadd.f32 %v2330, %v2318
  %v2333 = vadd.f32 %v2331, %v2319
  %vm2334 = vcmp.ge.f32.partialorder %v2332, 0.0
  %vm2335 = vcmp.ge.f32.partialorder %v2333, 0.0
  %v2336 = vmul.f32 %v2332, 0.2
  %v2337 = vmul.f32 %v2333, 0.2
  %v2338 = vsel %vm2334, %v2332, %v2336
  %v2339 = vsel %vm2335, %v2333, %v2337
  %2340 = vst [vmem:[%s7 + $0x10] sm:$0xff] %v2338
  %2341 = vst [vmem:[%s7 + $0x18] sm:$0xff] %v2339
  // Predicated region
  $region30: #{discriminator_forward.7} parent=0 // pred_check
    _
  $region31: #{discriminator_forward.7} parent=0 // pred_check_branch
    %2343 = sbr.rel (0) target = $region33
  $region32: #{discriminator_forward.7} parent=0 // pred_region
    _
  $region33: #{discriminator_forward.7} parent=0 // pred_fallthru
    _
  // Predicated region
  $region34: #{discriminator_forward.7} parent=0 // pred_check
    _
  $region35: #{discriminator_forward.7} parent=0 // pred_check_branch
    %2345 = sbr.rel (0) target = $region37
  $region36: #{discriminator_forward.7} parent=0 // pred_region
    _
  $region37: #{discriminator_forward.7} parent=0 // pred_fallthru
    _

// kernel: discriminator_forward.9
$region0: #{discriminator_forward.9}
  #allocation0 [shape = 'u32[]', space=smem, size = 0x4, offset = 0x4, fixed_abs, tag = 'smem constant byte address 0x4 - core index']
  #allocation1 [shape = 'u32[72,128]{1,0:T(1,128)}', space=vmem, size = 0x9000, scoped, tag = 'internal scratch']
  #allocation2 [shape = 'f32[1,1]{1,0:T(1,128)S(1)}', space=vmem, size = 0x200, scoped, tag = 'scoped memory for discriminator_forward.9']
  %s0 = inlined_call_operand.vmem [shape: bf16[8,1024], index: 0, kind: input, shape index: {}]
  %s1 = inlined_call_operand.vmem [shape: bf16[1024,256], index: 1, kind: input, shape index: {}]
  %s2 = inlined_call_operand.vmem [shape: f32[1,256], index: 2, kind: input, shape index: {}]
  %s3 = inlined_call_operand.vmem [shape: f32[1,256], index: 3, kind: input, shape index: {}]
  %s4 = inlined_call_operand.<no memory space> [shape: f32[1,1], index: 4, kind: input, shape index: {}]
  %s5 = inlined_call_operand.vmem [shape: f32[8,1], index: 5, kind: output, shape index: {}]
  %s6 = sld [smem:[#allocation0]]
  $region30: #{discriminator_forward.9} parent=0
    _
  %s8 = ssub.s32 1, %s6
  %s9 = scalar_select 0, %s8, %s6
  %v10 = vstv %s4
  %11 = vst [vmem:[#allocation2] sm:$0x1] %v10
  // Predicated region
  $region2: #{discriminator_forward.9} parent=0 // pred_check
    _
  $region3: #{discriminator_forward.9} parent=0 // pred_check_branch
    %13 = sbr.rel (0) target = $region5
  $region4: #{discriminator_forward.9} parent=0 // pred_region
    _
  $region5: #{discriminator_forward.9} parent=0 // pred_fallthru
    _
  // Predicated region
  $region6: #{discriminator_forward.9} parent=0 // pred_check
    _
  $region7: #{discriminator_forward.9} parent=0 // pred_check_branch
    %15 = sbr.rel (0) target = $region9
  $region8: #{discriminator_forward.9} parent=0 // pred_region
    _
  $region9: #{discriminator_forward.9} parent=0 // pred_fallthru
    _
  // Predicated region
  $region10: #{discriminator_forward.9} parent=0 // pred_check
    _
  $region11: #{discriminator_forward.9} parent=0 // pred_check_branch
    %17 = sbr.rel (0) target = $region13
  $region12: #{discriminator_forward.9} parent=0 // pred_region
    _
  $region13: #{discriminator_forward.9} parent=0 // pred_fallthru
    _
  // Predicated region
  $region14: #{discriminator_forward.9} parent=0 // pred_check
    _
  $region15: #{discriminator_forward.9} parent=0 // pred_check_branch
    %19 = sbr.rel (0) target = $region17
  $region16: #{discriminator_forward.9} parent=0 // pred_region
    _
  $region17: #{discriminator_forward.9} parent=0 // pred_fallthru
    _
  // Predicated region
  $region18: #{discriminator_forward.9} parent=0 // pred_check
    _
  $region19: #{discriminator_forward.9} parent=0 // pred_check_branch
    %21 = sbr.rel (0) target = $region21
  $region20: #{discriminator_forward.9} parent=0 // pred_region
    _
  $region21: #{discriminator_forward.9} parent=0 // pred_fallthru
    _
  %v22 = vld [vmem:[%s0] sm:$0xff]
  %v23 = vld [vmem:[%s0 + $0x8] sm:$0xff]
  %v24 = vld [vmem:[%s0 + $0x10] sm:$0xff]
  %v25 = vld [vmem:[%s0 + $0x18] sm:$0xff]
  %v26 = vld [vmem:[%s1] sm:$0xff]
  %v27 = vld [vmem:[%s1 + $0x8] sm:$0xff]
  %v28 = vld [vmem:[%s1 + $0x10] sm:$0xff]
  %v29 = vld [vmem:[%s1 + $0x18] sm:$0xff]
  %v30 = vld [vmem:[%s1 + $0x20] sm:$0xff]
  %v31 = vld [vmem:[%s1 + $0x28] sm:$0xff]
  %v32 = vld [vmem:[%s1 + $0x30] sm:$0xff]
  %v33 = vld [vmem:[%s1 + $0x38] sm:$0xff]
  %v34 = vld [vmem:[%s1 + $0x40] sm:$0xff]
  %v35 = vld [vmem:[%s1 + $0x48] sm:$0xff]
  %v36 = vld [vmem:[%s1 + $0x50] sm:$0xff]
  %v37 = vld [vmem:[%s1 + $0x58] sm:$0xff]
  %v38 = vld [vmem:[%s1 + $0x60] sm:$0xff]
  %v39 = vld [vmem:[%s1 + $0x68] sm:$0xff]
  %v40 = vld [vmem:[%s1 + $0x70] sm:$0xff]
  %v41 = vld [vmem:[%s1 + $0x78] sm:$0xff]
  %v42 = vld [vmem:[%s1 + $0x80] sm:$0xff]
  %v43 = vld [vmem:[%s1 + $0x88] sm:$0xff]
  %v44 = vld [vmem:[%s1 + $0x90] sm:$0xff]
  %v45 = vld [vmem:[%s1 + $0x98] sm:$0xff]
  %v46 = vld [vmem:[%s1 + $0xa0] sm:$0xff]
  %v47 = vld [vmem:[%s1 + $0xa8] sm:$0xff]
  %v48 = vld [vmem:[%s1 + $0xb0] sm:$0xff]
  %v49 = vld [vmem:[%s1 + $0xb8] sm:$0xff]
  %v50 = vld [vmem:[%s1 + $0xc0] sm:$0xff]
  %v51 = vld [vmem:[%s1 + $0xc8] sm:$0xff]
  %v52 = vld [vmem:[%s1 + $0xd0] sm:$0xff]
  %v53 = vld [vmem:[%s1 + $0xd8] sm:$0xff]
  %v54 = vld [vmem:[%s1 + $0xe0] sm:$0xff]
  %v55 = vld [vmem:[%s1 + $0xe8] sm:$0xff]
  %v56 = vld [vmem:[%s1 + $0xf0] sm:$0xff]
  %v57 = vld [vmem:[%s1 + $0xf8] sm:$0xff]
  %v58 = vld [vmem:[%s1 + $0x100] sm:$0xff]
  %v59 = vld [vmem:[%s1 + $0x108] sm:$0xff]
  %v60 = vld [vmem:[%s1 + $0x110] sm:$0xff]
  %v61 = vld [vmem:[%s1 + $0x118] sm:$0xff]
  %v62 = vld [vmem:[%s1 + $0x120] sm:$0xff]
  %v63 = vld [vmem:[%s1 + $0x128] sm:$0xff]
  %v64 = vld [vmem:[%s1 + $0x130] sm:$0xff]
  %v65 = vld [vmem:[%s1 + $0x138] sm:$0xff]
  %v66 = vld [vmem:[%s1 + $0x140] sm:$0xff]
  %v67 = vld [vmem:[%s1 + $0x148] sm:$0xff]
  %v68 = vld [vmem:[%s1 + $0x150] sm:$0xff]
  %v69 = vld [vmem:[%s1 + $0x158] sm:$0xff]
  %v70 = vld [vmem:[%s1 + $0x160] sm:$0xff]
  %v71 = vld [vmem:[%s1 + $0x168] sm:$0xff]
  %v72 = vld [vmem:[%s1 + $0x170] sm:$0xff]
  %v73 = vld [vmem:[%s1 + $0x178] sm:$0xff]
  %v74 = vld [vmem:[%s1 + $0x180] sm:$0xff]
  %v75 = vld [vmem:[%s1 + $0x188] sm:$0xff]
  %v76 = vld [vmem:[%s1 + $0x190] sm:$0xff]
  %v77 = vld [vmem:[%s1 + $0x198] sm:$0xff]
  %v78 = vld [vmem:[%s1 + $0x1a0] sm:$0xff]
  %v79 = vld [vmem:[%s1 + $0x1a8] sm:$0xff]
  %v80 = vld [vmem:[%s1 + $0x1b0] sm:$0xff]
  %v81 = vld [vmem:[%s1 + $0x1b8] sm:$0xff]
  %v82 = vld [vmem:[%s1 + $0x1c0] sm:$0xff]
  %v83 = vld [vmem:[%s1 + $0x1c8] sm:$0xff]
  %v84 = vld [vmem:[%s1 + $0x1d0] sm:$0xff]
  %v85 = vld [vmem:[%s1 + $0x1d8] sm:$0xff]
  %v86 = vld [vmem:[%s1 + $0x1e0] sm:$0xff]
  %v87 = vld [vmem:[%s1 + $0x1e8] sm:$0xff]
  %v88 = vld [vmem:[%s1 + $0x1f0] sm:$0xff]
  %v89 = vld [vmem:[%s1 + $0x1f8] sm:$0xff]
  %v90 = vld [vmem:[%s1 + $0x200] sm:$0xff]
  %v91 = vld [vmem:[%s1 + $0x208] sm:$0xff]
  %v92 = vld [vmem:[%s1 + $0x210] sm:$0xff]
  %v93 = vld [vmem:[%s1 + $0x218] sm:$0xff]
  %v94 = vld [vmem:[%s1 + $0x220] sm:$0xff]
  %v95 = vld [vmem:[%s1 + $0x228] sm:$0xff]
  %v96 = vld [vmem:[%s1 + $0x230] sm:$0xff]
  %v97 = vld [vmem:[%s1 + $0x238] sm:$0xff]
  %v98 = vld [vmem:[%s1 + $0x240] sm:$0xff]
  %v99 = vld [vmem:[%s1 + $0x248] sm:$0xff]
  %v100 = vld [vmem:[%s1 + $0x250] sm:$0xff]
  %v101 = vld [vmem:[%s1 + $0x258] sm:$0xff]
  %v102 = vld [vmem:[%s1 + $0x260] sm:$0xff]
  %v103 = vld [vmem:[%s1 + $0x268] sm:$0xff]
  %v104 = vld [vmem:[%s1 + $0x270] sm:$0xff]
  %v105 = vld [vmem:[%s1 + $0x278] sm:$0xff]
  %v106 = vld [vmem:[%s1 + $0x280] sm:$0xff]
  %v107 = vld [vmem:[%s1 + $0x288] sm:$0xff]
  %v108 = vld [vmem:[%s1 + $0x290] sm:$0xff]
  %v109 = vld [vmem:[%s1 + $0x298] sm:$0xff]
  %v110 = vld [vmem:[%s1 + $0x2a0] sm:$0xff]
  %v111 = vld [vmem:[%s1 + $0x2a8] sm:$0xff]
  %v112 = vld [vmem:[%s1 + $0x2b0] sm:$0xff]
  %v113 = vld [vmem:[%s1 + $0x2b8] sm:$0xff]
  %v114 = vld [vmem:[%s1 + $0x2c0] sm:$0xff]
  %v115 = vld [vmem:[%s1 + $0x2c8] sm:$0xff]
  %v116 = vld [vmem:[%s1 + $0x2d0] sm:$0xff]
  %v117 = vld [vmem:[%s1 + $0x2d8] sm:$0xff]
  %v118 = vld [vmem:[%s1 + $0x2e0] sm:$0xff]
  %v119 = vld [vmem:[%s1 + $0x2e8] sm:$0xff]
  %v120 = vld [vmem:[%s1 + $0x2f0] sm:$0xff]
  %v121 = vld [vmem:[%s1 + $0x2f8] sm:$0xff]
  %v122 = vld [vmem:[%s1 + $0x300] sm:$0xff]
  %v123 = vld [vmem:[%s1 + $0x308] sm:$0xff]
  %v124 = vld [vmem:[%s1 + $0x310] sm:$0xff]
  %v125 = vld [vmem:[%s1 + $0x318] sm:$0xff]
  %v126 = vld [vmem:[%s1 + $0x320] sm:$0xff]
  %v127 = vld [vmem:[%s1 + $0x328] sm:$0xff]
  %v128 = vld [vmem:[%s1 + $0x330] sm:$0xff]
  %v129 = vld [vmem:[%s1 + $0x338] sm:$0xff]
  %v130 = vld [vmem:[%s1 + $0x340] sm:$0xff]
  %v131 = vld [vmem:[%s1 + $0x348] sm:$0xff]
  %v132 = vld [vmem:[%s1 + $0x350] sm:$0xff]
  %v133 = vld [vmem:[%s1 + $0x358] sm:$0xff]
  %v134 = vld [vmem:[%s1 + $0x360] sm:$0xff]
  %v135 = vld [vmem:[%s1 + $0x368] sm:$0xff]
  %v136 = vld [vmem:[%s1 + $0x370] sm:$0xff]
  %v137 = vld [vmem:[%s1 + $0x378] sm:$0xff]
  %v138 = vld [vmem:[%s1 + $0x380] sm:$0xff]
  %v139 = vld [vmem:[%s1 + $0x388] sm:$0xff]
  %v140 = vld [vmem:[%s1 + $0x390] sm:$0xff]
  %v141 = vld [vmem:[%s1 + $0x398] sm:$0xff]
  %v142 = vld [vmem:[%s1 + $0x3a0] sm:$0xff]
  %v143 = vld [vmem:[%s1 + $0x3a8] sm:$0xff]
  %v144 = vld [vmem:[%s1 + $0x3b0] sm:$0xff]
  %v145 = vld [vmem:[%s1 + $0x3b8] sm:$0xff]
  %v146 = vld [vmem:[%s1 + $0x3c0] sm:$0xff]
  %v147 = vld [vmem:[%s1 + $0x3c8] sm:$0xff]
  %v148 = vld [vmem:[%s1 + $0x3d0] sm:$0xff]
  %v149 = vld [vmem:[%s1 + $0x3d8] sm:$0xff]
  %v150 = vld [vmem:[%s1 + $0x3e0] sm:$0xff]
  %v151 = vld [vmem:[%s1 + $0x3e8] sm:$0xff]
  %v152 = vld [vmem:[%s1 + $0x3f0] sm:$0xff]
  %v153 = vld [vmem:[%s1 + $0x3f8] sm:$0xff]
  %v154 = vld [vmem:[%s2] sm:$0x3]
  %v156 = vperm.slane %v154, 0
  %v157 = vperm.slane %v154, 1
  %v164 = vunpack.c.l.b16 %v22
  %v165 = vunpack.c.h.b16 %v22
  %v166 = vunpack.c.l.b16 %v23
  %v167 = vunpack.c.h.b16 %v23
  %v168 = vunpack.c.l.b16 %v24
  %v169 = vunpack.c.h.b16 %v24
  %v170 = vunpack.c.l.b16 %v25
  %v171 = vunpack.c.h.b16 %v25
  %v172 = vpack.c.b16 %v164, %v164
  %v173 = vpack.c.b16 %v165, %v165
  %v174 = vpack.c.b16 %v166, %v166
  %v175 = vpack.c.b16 %v167, %v167
  %v176 = vpack.c.b16 %v168, %v168
  %v177 = vpack.c.b16 %v169, %v169
  %v178 = vpack.c.b16 %v170, %v170
  %v179 = vpack.c.b16 %v171, %v171
  %v316 = vunpack.c.l.b16 %v26
  %v317 = vunpack.c.h.b16 %v26
  %v318 = vunpack.c.l.b16 %v27
  %v319 = vunpack.c.h.b16 %v27
  %v320 = vunpack.c.l.b16 %v28
  %v321 = vunpack.c.h.b16 %v28
  %v322 = vunpack.c.l.b16 %v29
  %v323 = vunpack.c.h.b16 %v29
  %v324 = vunpack.c.l.b16 %v30
  %v325 = vunpack.c.h.b16 %v30
  %v326 = vunpack.c.l.b16 %v31
  %v327 = vunpack.c.h.b16 %v31
  %v328 = vunpack.c.l.b16 %v32
  %v329 = vunpack.c.h.b16 %v32
  %v330 = vunpack.c.l.b16 %v33
  %v331 = vunpack.c.h.b16 %v33
  %v332 = vunpack.c.l.b16 %v34
  %v333 = vunpack.c.h.b16 %v34
  %v334 = vunpack.c.l.b16 %v35
  %v335 = vunpack.c.h.b16 %v35
  %v336 = vunpack.c.l.b16 %v36
  %v337 = vunpack.c.h.b16 %v36
  %v338 = vunpack.c.l.b16 %v37
  %v339 = vunpack.c.h.b16 %v37
  %v340 = vunpack.c.l.b16 %v38
  %v341 = vunpack.c.h.b16 %v38
  %v342 = vunpack.c.l.b16 %v39
  %v343 = vunpack.c.h.b16 %v39
  %v344 = vunpack.c.l.b16 %v40
  %v345 = vunpack.c.h.b16 %v40
  %v346 = vunpack.c.l.b16 %v41
  %v347 = vunpack.c.h.b16 %v41
  %v348 = vunpack.c.l.b16 %v42
  %v349 = vunpack.c.h.b16 %v42
  %v350 = vunpack.c.l.b16 %v43
  %v351 = vunpack.c.h.b16 %v43
  %v352 = vunpack.c.l.b16 %v44
  %v353 = vunpack.c.h.b16 %v44
  %v354 = vunpack.c.l.b16 %v45
  %v355 = vunpack.c.h.b16 %v45
  %v356 = vunpack.c.l.b16 %v46
  %v357 = vunpack.c.h.b16 %v46
  %v358 = vunpack.c.l.b16 %v47
  %v359 = vunpack.c.h.b16 %v47
  %v360 = vunpack.c.l.b16 %v48
  %v361 = vunpack.c.h.b16 %v48
  %v362 = vunpack.c.l.b16 %v49
  %v363 = vunpack.c.h.b16 %v49
  %v364 = vunpack.c.l.b16 %v50
  %v365 = vunpack.c.h.b16 %v50
  %v366 = vunpack.c.l.b16 %v51
  %v367 = vunpack.c.h.b16 %v51
  %v368 = vunpack.c.l.b16 %v52
  %v369 = vunpack.c.h.b16 %v52
  %v370 = vunpack.c.l.b16 %v53
  %v371 = vunpack.c.h.b16 %v53
  %v372 = vunpack.c.l.b16 %v54
  %v373 = vunpack.c.h.b16 %v54
  %v374 = vunpack.c.l.b16 %v55
  %v375 = vunpack.c.h.b16 %v55
  %v376 = vunpack.c.l.b16 %v56
  %v377 = vunpack.c.h.b16 %v56
  %v378 = vunpack.c.l.b16 %v57
  %v379 = vunpack.c.h.b16 %v57
  %v380 = vunpack.c.l.b16 %v58
  %v381 = vunpack.c.h.b16 %v58
  %v382 = vunpack.c.l.b16 %v59
  %v383 = vunpack.c.h.b16 %v59
  %v384 = vunpack.c.l.b16 %v60
  %v385 = vunpack.c.h.b16 %v60
  %v386 = vunpack.c.l.b16 %v61
  %v387 = vunpack.c.h.b16 %v61
  %v388 = vunpack.c.l.b16 %v62
  %v389 = vunpack.c.h.b16 %v62
  %v390 = vunpack.c.l.b16 %v63
  %v391 = vunpack.c.h.b16 %v63
  %v392 = vunpack.c.l.b16 %v64
  %v393 = vunpack.c.h.b16 %v64
  %v394 = vunpack.c.l.b16 %v65
  %v395 = vunpack.c.h.b16 %v65
  %v396 = vunpack.c.l.b16 %v66
  %v397 = vunpack.c.h.b16 %v66
  %v398 = vunpack.c.l.b16 %v67
  %v399 = vunpack.c.h.b16 %v67
  %v400 = vunpack.c.l.b16 %v68
  %v401 = vunpack.c.h.b16 %v68
  %v402 = vunpack.c.l.b16 %v69
  %v403 = vunpack.c.h.b16 %v69
  %v404 = vunpack.c.l.b16 %v70
  %v405 = vunpack.c.h.b16 %v70
  %v406 = vunpack.c.l.b16 %v71
  %v407 = vunpack.c.h.b16 %v71
  %v408 = vunpack.c.l.b16 %v72
  %v409 = vunpack.c.h.b16 %v72
  %v410 = vunpack.c.l.b16 %v73
  %v411 = vunpack.c.h.b16 %v73
  %v412 = vunpack.c.l.b16 %v74
  %v413 = vunpack.c.h.b16 %v74
  %v414 = vunpack.c.l.b16 %v75
  %v415 = vunpack.c.h.b16 %v75
  %v416 = vunpack.c.l.b16 %v76
  %v417 = vunpack.c.h.b16 %v76
  %v418 = vunpack.c.l.b16 %v77
  %v419 = vunpack.c.h.b16 %v77
  %v420 = vunpack.c.l.b16 %v78
  %v421 = vunpack.c.h.b16 %v78
  %v422 = vunpack.c.l.b16 %v79
  %v423 = vunpack.c.h.b16 %v79
  %v424 = vunpack.c.l.b16 %v80
  %v425 = vunpack.c.h.b16 %v80
  %v426 = vunpack.c.l.b16 %v81
  %v427 = vunpack.c.h.b16 %v81
  %v428 = vunpack.c.l.b16 %v82
  %v429 = vunpack.c.h.b16 %v82
  %v430 = vunpack.c.l.b16 %v83
  %v431 = vunpack.c.h.b16 %v83
  %v432 = vunpack.c.l.b16 %v84
  %v433 = vunpack.c.h.b16 %v84
  %v434 = vunpack.c.l.b16 %v85
  %v435 = vunpack.c.h.b16 %v85
  %v436 = vunpack.c.l.b16 %v86
  %v437 = vunpack.c.h.b16 %v86
  %v438 = vunpack.c.l.b16 %v87
  %v439 = vunpack.c.h.b16 %v87
  %v440 = vunpack.c.l.b16 %v88
  %v441 = vunpack.c.h.b16 %v88
  %v442 = vunpack.c.l.b16 %v89
  %v443 = vunpack.c.h.b16 %v89
  %v444 = vunpack.c.l.b16 %v90
  %v445 = vunpack.c.h.b16 %v90
  %v446 = vunpack.c.l.b16 %v91
  %v447 = vunpack.c.h.b16 %v91
  %v448 = vunpack.c.l.b16 %v92
  %v449 = vunpack.c.h.b16 %v92
  %v450 = vunpack.c.l.b16 %v93
  %v451 = vunpack.c.h.b16 %v93
  %v452 = vunpack.c.l.b16 %v94
  %v453 = vunpack.c.h.b16 %v94
  %v454 = vunpack.c.l.b16 %v95
  %v455 = vunpack.c.h.b16 %v95
  %v456 = vunpack.c.l.b16 %v96
  %v457 = vunpack.c.h.b16 %v96
  %v458 = vunpack.c.l.b16 %v97
  %v459 = vunpack.c.h.b16 %v97
  %v460 = vunpack.c.l.b16 %v98
  %v461 = vunpack.c.h.b16 %v98
  %v462 = vunpack.c.l.b16 %v99
  %v463 = vunpack.c.h.b16 %v99
  %v464 = vunpack.c.l.b16 %v100
  %v465 = vunpack.c.h.b16 %v100
  %v466 = vunpack.c.l.b16 %v101
  %v467 = vunpack.c.h.b16 %v101
  %v468 = vunpack.c.l.b16 %v102
  %v469 = vunpack.c.h.b16 %v102
  %v470 = vunpack.c.l.b16 %v103
  %v471 = vunpack.c.h.b16 %v103
  %v472 = vunpack.c.l.b16 %v104
  %v473 = vunpack.c.h.b16 %v104
  %v474 = vunpack.c.l.b16 %v105
  %v475 = vunpack.c.h.b16 %v105
  %v476 = vunpack.c.l.b16 %v106
  %v477 = vunpack.c.h.b16 %v106
  %v478 = vunpack.c.l.b16 %v107
  %v479 = vunpack.c.h.b16 %v107
  %v480 = vunpack.c.l.b16 %v108
  %v481 = vunpack.c.h.b16 %v108
  %v482 = vunpack.c.l.b16 %v109
  %v483 = vunpack.c.h.b16 %v109
  %v484 = vunpack.c.l.b16 %v110
  %v485 = vunpack.c.h.b16 %v110
  %v486 = vunpack.c.l.b16 %v111
  %v487 = vunpack.c.h.b16 %v111
  %v488 = vunpack.c.l.b16 %v112
  %v489 = vunpack.c.h.b16 %v112
  %v490 = vunpack.c.l.b16 %v113
  %v491 = vunpack.c.h.b16 %v113
  %v492 = vunpack.c.l.b16 %v114
  %v493 = vunpack.c.h.b16 %v114
  %v494 = vunpack.c.l.b16 %v115
  %v495 = vunpack.c.h.b16 %v115
  %v496 = vunpack.c.l.b16 %v116
  %v497 = vunpack.c.h.b16 %v116
  %v498 = vunpack.c.l.b16 %v117
  %v499 = vunpack.c.h.b16 %v117
  %v500 = vunpack.c.l.b16 %v118
  %v501 = vunpack.c.h.b16 %v118
  %v502 = vunpack.c.l.b16 %v119
  %v503 = vunpack.c.h.b16 %v119
  %v504 = vunpack.c.l.b16 %v120
  %v505 = vunpack.c.h.b16 %v120
  %v506 = vunpack.c.l.b16 %v121
  %v507 = vunpack.c.h.b16 %v121
  %v508 = vunpack.c.l.b16 %v122
  %v509 = vunpack.c.h.b16 %v122
  %v510 = vunpack.c.l.b16 %v123
  %v511 = vunpack.c.h.b16 %v123
  %v512 = vunpack.c.l.b16 %v124
  %v513 = vunpack.c.h.b16 %v124
  %v514 = vunpack.c.l.b16 %v125
  %v515 = vunpack.c.h.b16 %v125
  %v516 = vunpack.c.l.b16 %v126
  %v517 = vunpack.c.h.b16 %v126
  %v518 = vunpack.c.l.b16 %v127
  %v519 = vunpack.c.h.b16 %v127
  %v520 = vunpack.c.l.b16 %v128
  %v521 = vunpack.c.h.b16 %v128
  %v522 = vunpack.c.l.b16 %v129
  %v523 = vunpack.c.h.b16 %v129
  %v524 = vunpack.c.l.b16 %v130
  %v525 = vunpack.c.h.b16 %v130
  %v526 = vunpack.c.l.b16 %v131
  %v527 = vunpack.c.h.b16 %v131
  %v528 = vunpack.c.l.b16 %v132
  %v529 = vunpack.c.h.b16 %v132
  %v530 = vunpack.c.l.b16 %v133
  %v531 = vunpack.c.h.b16 %v133
  %v532 = vunpack.c.l.b16 %v134
  %v533 = vunpack.c.h.b16 %v134
  %v534 = vunpack.c.l.b16 %v135
  %v535 = vunpack.c.h.b16 %v135
  %v536 = vunpack.c.l.b16 %v136
  %v537 = vunpack.c.h.b16 %v136
  %v538 = vunpack.c.l.b16 %v137
  %v539 = vunpack.c.h.b16 %v137
  %v540 = vunpack.c.l.b16 %v138
  %v541 = vunpack.c.h.b16 %v138
  %v542 = vunpack.c.l.b16 %v139
  %v543 = vunpack.c.h.b16 %v139
  %v544 = vunpack.c.l.b16 %v140
  %v545 = vunpack.c.h.b16 %v140
  %v546 = vunpack.c.l.b16 %v141
  %v547 = vunpack.c.h.b16 %v141
  %v548 = vunpack.c.l.b16 %v142
  %v549 = vunpack.c.h.b16 %v142
  %v550 = vunpack.c.l.b16 %v143
  %v551 = vunpack.c.h.b16 %v143
  %v552 = vunpack.c.l.b16 %v144
  %v553 = vunpack.c.h.b16 %v144
  %v554 = vunpack.c.l.b16 %v145
  %v555 = vunpack.c.h.b16 %v145
  %v556 = vunpack.c.l.b16 %v146
  %v557 = vunpack.c.h.b16 %v146
  %v558 = vunpack.c.l.b16 %v147
  %v559 = vunpack.c.h.b16 %v147
  %v560 = vunpack.c.l.b16 %v148
  %v561 = vunpack.c.h.b16 %v148
  %v562 = vunpack.c.l.b16 %v149
  %v563 = vunpack.c.h.b16 %v149
  %v564 = vunpack.c.l.b16 %v150
  %v565 = vunpack.c.h.b16 %v150
  %v566 = vunpack.c.l.b16 %v151
  %v567 = vunpack.c.h.b16 %v151
  %v568 = vunpack.c.l.b16 %v152
  %v569 = vunpack.c.h.b16 %v152
  %v570 = vunpack.c.l.b16 %v153
  %v571 = vunpack.c.h.b16 %v153
  %v572 = vpack.c.b16 %v318, %v316
  %v573 = vpack.c.b16 %v319, %v317
  %v574 = vpack.c.b16 %v322, %v320
  %v575 = vpack.c.b16 %v323, %v321
  %v576 = vpack.c.b16 %v326, %v324
  %v577 = vpack.c.b16 %v327, %v325
  %v578 = vpack.c.b16 %v330, %v328
  %v579 = vpack.c.b16 %v331, %v329
  %v580 = vpack.c.b16 %v334, %v332
  %v581 = vpack.c.b16 %v335, %v333
  %v582 = vpack.c.b16 %v338, %v336
  %v583 = vpack.c.b16 %v339, %v337
  %v584 = vpack.c.b16 %v342, %v340
  %v585 = vpack.c.b16 %v343, %v341
  %v586 = vpack.c.b16 %v346, %v344
  %v587 = vpack.c.b16 %v347, %v345
  %v588 = vpack.c.b16 %v350, %v348
  %v589 = vpack.c.b16 %v351, %v349
  %v590 = vpack.c.b16 %v354, %v352
  %v591 = vpack.c.b16 %v355, %v353
  %v592 = vpack.c.b16 %v358, %v356
  %v593 = vpack.c.b16 %v359, %v357
  %v594 = vpack.c.b16 %v362, %v360
  %v595 = vpack.c.b16 %v363, %v361
  %v596 = vpack.c.b16 %v366, %v364
  %v597 = vpack.c.b16 %v367, %v365
  %v598 = vpack.c.b16 %v370, %v368
  %v599 = vpack.c.b16 %v371, %v369
  %v600 = vpack.c.b16 %v374, %v372
  %v601 = vpack.c.b16 %v375, %v373
  %v602 = vpack.c.b16 %v378, %v376
  %v603 = vpack.c.b16 %v379, %v377
  %v604 = vpack.c.b16 %v382, %v380
  %v605 = vpack.c.b16 %v383, %v381
  %v606 = vpack.c.b16 %v386, %v384
  %v607 = vpack.c.b16 %v387, %v385
  %v608 = vpack.c.b16 %v390, %v388
  %v609 = vpack.c.b16 %v391, %v389
  %v610 = vpack.c.b16 %v394, %v392
  %v611 = vpack.c.b16 %v395, %v393
  %v612 = vpack.c.b16 %v398, %v396
  %v613 = vpack.c.b16 %v399, %v397
  %v614 = vpack.c.b16 %v402, %v400
  %v615 = vpack.c.b16 %v403, %v401
  %v616 = vpack.c.b16 %v406, %v404
  %v617 = vpack.c.b16 %v407, %v405
  %v618 = vpack.c.b16 %v410, %v408
  %v619 = vpack.c.b16 %v411, %v409
  %v620 = vpack.c.b16 %v414, %v412
  %v621 = vpack.c.b16 %v415, %v413
  %v622 = vpack.c.b16 %v418, %v416
  %v623 = vpack.c.b16 %v419, %v417
  %v624 = vpack.c.b16 %v422, %v420
  %v625 = vpack.c.b16 %v423, %v421
  %v626 = vpack.c.b16 %v426, %v424
  %v627 = vpack.c.b16 %v427, %v425
  %v628 = vpack.c.b16 %v430, %v428
  %v629 = vpack.c.b16 %v431, %v429
  %v630 = vpack.c.b16 %v434, %v432
  %v631 = vpack.c.b16 %v435, %v433
  %v632 = vpack.c.b16 %v438, %v436
  %v633 = vpack.c.b16 %v439, %v437
  %v634 = vpack.c.b16 %v442, %v440
  %v635 = vpack.c.b16 %v443, %v441
  %v636 = vpack.c.b16 %v446, %v444
  %v637 = vpack.c.b16 %v447, %v445
  %v638 = vpack.c.b16 %v450, %v448
  %v639 = vpack.c.b16 %v451, %v449
  %v640 = vpack.c.b16 %v454, %v452
  %v641 = vpack.c.b16 %v455, %v453
  %v642 = vpack.c.b16 %v458, %v456
  %v643 = vpack.c.b16 %v459, %v457
  %v644 = vpack.c.b16 %v462, %v460
  %v645 = vpack.c.b16 %v463, %v461
  %v646 = vpack.c.b16 %v466, %v464
  %v647 = vpack.c.b16 %v467, %v465
  %v648 = vpack.c.b16 %v470, %v468
  %v649 = vpack.c.b16 %v471, %v469
  %v650 = vpack.c.b16 %v474, %v472
  %v651 = vpack.c.b16 %v475, %v473
  %v652 = vpack.c.b16 %v478, %v476
  %v653 = vpack.c.b16 %v479, %v477
  %v654 = vpack.c.b16 %v482, %v480
  %v655 = vpack.c.b16 %v483, %v481
  %v656 = vpack.c.b16 %v486, %v484
  %v657 = vpack.c.b16 %v487, %v485
  %v658 = vpack.c.b16 %v490, %v488
  %v659 = vpack.c.b16 %v491, %v489
  %v660 = vpack.c.b16 %v494, %v492
  %v661 = vpack.c.b16 %v495, %v493
  %v662 = vpack.c.b16 %v498, %v496
  %v663 = vpack.c.b16 %v499, %v497
  %v664 = vpack.c.b16 %v502, %v500
  %v665 = vpack.c.b16 %v503, %v501
  %v666 = vpack.c.b16 %v506, %v504
  %v667 = vpack.c.b16 %v507, %v505
  %v668 = vpack.c.b16 %v510, %v508
  %v669 = vpack.c.b16 %v511, %v509
  %v670 = vpack.c.b16 %v514, %v512
  %v671 = vpack.c.b16 %v515, %v513
  %v672 = vpack.c.b16 %v518, %v516
  %v673 = vpack.c.b16 %v519, %v517
  %v674 = vpack.c.b16 %v522, %v520
  %v675 = vpack.c.b16 %v523, %v521
  %v676 = vpack.c.b16 %v526, %v524
  %v677 = vpack.c.b16 %v527, %v525
  %v678 = vpack.c.b16 %v530, %v528
  %v679 = vpack.c.b16 %v531, %v529
  %v680 = vpack.c.b16 %v534, %v532
  %v681 = vpack.c.b16 %v535, %v533
  %v682 = vpack.c.b16 %v538, %v536
  %v683 = vpack.c.b16 %v539, %v537
  %v684 = vpack.c.b16 %v542, %v540
  %v685 = vpack.c.b16 %v543, %v541
  %v686 = vpack.c.b16 %v546, %v544
  %v687 = vpack.c.b16 %v547, %v545
  %v688 = vpack.c.b16 %v550, %v548
  %v689 = vpack.c.b16 %v551, %v549
  %v690 = vpack.c.b16 %v554, %v552
  %v691 = vpack.c.b16 %v555, %v553
  %v692 = vpack.c.b16 %v558, %v556
  %v693 = vpack.c.b16 %v559, %v557
  %v694 = vpack.c.b16 %v562, %v560
  %v695 = vpack.c.b16 %v563, %v561
  %v696 = vpack.c.b16 %v566, %v564
  %v697 = vpack.c.b16 %v567, %v565
  %v698 = vpack.c.b16 %v570, %v568
  %v699 = vpack.c.b16 %v571, %v569
  %828 = vmatpush.bf16.msra.mxu0 %v586
  %829 = vmatpush.bf16.msra.mxu0 %v584
  %830 = vmatpush.bf16.msra.mxu0 %v582
  %831 = vmatpush.bf16.msra.mxu0 %v580
  %832 = vmatpush.bf16.msra.mxu0 %v578
  %833 = vmatpush.bf16.msra.mxu0 %v576
  %834 = vmatpush.bf16.msra.mxu0 %v574
  %835 = vmatpush.bf16.msra.mxu0 %v572
  %836 = vmatmul.bf16.gmra.mxu0 %v172
  %v837 = vpop.f32.mrf.mxu0
  %v838 = vadd.f32 %v156, %v837
  %v839 = vpop.f32.mrf.mxu0
  %840 = vdwg.mxu0
  %841 = vmatpush.bf16.msra.mxu0 %v602
  %842 = vmatpush.bf16.msra.mxu0 %v600
  %843 = vmatpush.bf16.msra.mxu0 %v598
  %844 = vmatpush.bf16.msra.mxu0 %v596
  %845 = vmatpush.bf16.msra.mxu0 %v594
  %846 = vmatpush.bf16.msra.mxu0 %v592
  %847 = vmatpush.bf16.msra.mxu0 %v590
  %848 = vmatpush.bf16.msra.mxu0 %v588
  %849 = vmatmul.bf16.gmra.mxu0 %v173
  %v850 = vpop.f32.mrf.mxu0
  %v851 = vadd.f32 %v838, %v850
  %v852 = vpop.f32.mrf.mxu0
  %853 = vdwg.mxu0
  %854 = vmatpush.bf16.msra.mxu0 %v618
  %855 = vmatpush.bf16.msra.mxu0 %v616
  %856 = vmatpush.bf16.msra.mxu0 %v614
  %857 = vmatpush.bf16.msra.mxu0 %v612
  %858 = vmatpush.bf16.msra.mxu0 %v610
  %859 = vmatpush.bf16.msra.mxu0 %v608
  %860 = vmatpush.bf16.msra.mxu0 %v606
  %861 = vmatpush.bf16.msra.mxu0 %v604
  %862 = vmatmul.bf16.gmra.mxu0 %v174
  %v863 = vpop.f32.mrf.mxu0
  %v864 = vadd.f32 %v851, %v863
  %v865 = vpop.f32.mrf.mxu0
  %866 = vdwg.mxu0
  %867 = vmatpush.bf16.msra.mxu0 %v634
  %868 = vmatpush.bf16.msra.mxu0 %v632
  %869 = vmatpush.bf16.msra.mxu0 %v630
  %870 = vmatpush.bf16.msra.mxu0 %v628
  %871 = vmatpush.bf16.msra.mxu0 %v626
  %872 = vmatpush.bf16.msra.mxu0 %v624
  %873 = vmatpush.bf16.msra.mxu0 %v622
  %874 = vmatpush.bf16.msra.mxu0 %v620
  %875 = vmatmul.bf16.gmra.mxu0 %v175
  %v876 = vpop.f32.mrf.mxu0
  %v877 = vadd.f32 %v864, %v876
  %v878 = vpop.f32.mrf.mxu0
  %879 = vdwg.mxu0
  %880 = vmatpush.bf16.msra.mxu0 %v650
  %881 = vmatpush.bf16.msra.mxu0 %v648
  %882 = vmatpush.bf16.msra.mxu0 %v646
  %883 = vmatpush.bf16.msra.mxu0 %v644
  %884 = vmatpush.bf16.msra.mxu0 %v642
  %885 = vmatpush.bf16.msra.mxu0 %v640
  %886 = vmatpush.bf16.msra.mxu0 %v638
  %887 = vmatpush.bf16.msra.mxu0 %v636
  %888 = vmatmul.bf16.gmra.mxu0 %v176
  %v889 = vpop.f32.mrf.mxu0
  %v890 = vadd.f32 %v877, %v889
  %v891 = vpop.f32.mrf.mxu0
  %892 = vdwg.mxu0
  %893 = vmatpush.bf16.msra.mxu0 %v666
  %894 = vmatpush.bf16.msra.mxu0 %v664
  %895 = vmatpush.bf16.msra.mxu0 %v662
  %896 = vmatpush.bf16.msra.mxu0 %v660
  %897 = vmatpush.bf16.msra.mxu0 %v658
  %898 = vmatpush.bf16.msra.mxu0 %v656
  %899 = vmatpush.bf16.msra.mxu0 %v654
  %900 = vmatpush.bf16.msra.mxu0 %v652
  %901 = vmatmul.bf16.gmra.mxu0 %v177
  %v902 = vpop.f32.mrf.mxu0
  %v903 = vadd.f32 %v890, %v902
  %v904 = vpop.f32.mrf.mxu0
  %905 = vdwg.mxu0
  %906 = vmatpush.bf16.msra.mxu0 %v682
  %907 = vmatpush.bf16.msra.mxu0 %v680
  %908 = vmatpush.bf16.msra.mxu0 %v678
  %909 = vmatpush.bf16.msra.mxu0 %v676
  %910 = vmatpush.bf16.msra.mxu0 %v674
  %911 = vmatpush.bf16.msra.mxu0 %v672
  %912 = vmatpush.bf16.msra.mxu0 %v670
  %913 = vmatpush.bf16.msra.mxu0 %v668
  %914 = vmatmul.bf16.gmra.mxu0 %v178
  %v915 = vpop.f32.mrf.mxu0
  %v916 = vadd.f32 %v903, %v915
  %v917 = vpop.f32.mrf.mxu0
  %918 = vdwg.mxu0
  %919 = vmatpush.bf16.msra.mxu0 %v698
  %920 = vmatpush.bf16.msra.mxu0 %v696
  %921 = vmatpush.bf16.msra.mxu0 %v694
  %922 = vmatpush.bf16.msra.mxu0 %v692
  %923 = vmatpush.bf16.msra.mxu0 %v690
  %924 = vmatpush.bf16.msra.mxu0 %v688
  %925 = vmatpush.bf16.msra.mxu0 %v686
  %926 = vmatpush.bf16.msra.mxu0 %v684
  %927 = vmatmul.bf16.gmra.mxu0 %v179
  %v928 = vpop.f32.mrf.mxu0
  %v929 = vadd.f32 %v916, %v928
  %v930 = vpop.f32.mrf.mxu0
  %931 = vdwg.mxu0
  %932 = vmatpush.bf16.msra.mxu0 %v587
  %933 = vmatpush.bf16.msra.mxu0 %v585
  %934 = vmatpush.bf16.msra.mxu0 %v583
  %935 = vmatpush.bf16.msra.mxu0 %v581
  %936 = vmatpush.bf16.msra.mxu0 %v579
  %937 = vmatpush.bf16.msra.mxu0 %v577
  %938 = vmatpush.bf16.msra.mxu0 %v575
  %939 = vmatpush.bf16.msra.mxu0 %v573
  %940 = vmatmul.bf16.gmra.mxu0 %v172
  %v941 = vpop.f32.mrf.mxu0
  %v942 = vadd.f32 %v157, %v941
  %v943 = vpop.f32.mrf.mxu0
  %944 = vdwg.mxu0
  %945 = vmatpush.bf16.msra.mxu0 %v603
  %946 = vmatpush.bf16.msra.mxu0 %v601
  %947 = vmatpush.bf16.msra.mxu0 %v599
  %948 = vmatpush.bf16.msra.mxu0 %v597
  %949 = vmatpush.bf16.msra.mxu0 %v595
  %950 = vmatpush.bf16.msra.mxu0 %v593
  %951 = vmatpush.bf16.msra.mxu0 %v591
  %952 = vmatpush.bf16.msra.mxu0 %v589
  %953 = vmatmul.bf16.gmra.mxu0 %v173
  %v954 = vpop.f32.mrf.mxu0
  %v955 = vadd.f32 %v942, %v954
  %v956 = vpop.f32.mrf.mxu0
  %957 = vdwg.mxu0
  %958 = vmatpush.bf16.msra.mxu0 %v619
  %959 = vmatpush.bf16.msra.mxu0 %v617
  %960 = vmatpush.bf16.msra.mxu0 %v615
  %961 = vmatpush.bf16.msra.mxu0 %v613
  %962 = vmatpush.bf16.msra.mxu0 %v611
  %963 = vmatpush.bf16.msra.mxu0 %v609
  %964 = vmatpush.bf16.msra.mxu0 %v607
  %965 = vmatpush.bf16.msra.mxu0 %v605
  %966 = vmatmul.bf16.gmra.mxu0 %v174
  %v967 = vpop.f32.mrf.mxu0
  %v968 = vadd.f32 %v955, %v967
  %v969 = vpop.f32.mrf.mxu0
  %970 = vdwg.mxu0
  %971 = vmatpush.bf16.msra.mxu0 %v635
  %972 = vmatpush.bf16.msra.mxu0 %v633
  %973 = vmatpush.bf16.msra.mxu0 %v631
  %974 = vmatpush.bf16.msra.mxu0 %v629
  %975 = vmatpush.bf16.msra.mxu0 %v627
  %976 = vmatpush.bf16.msra.mxu0 %v625
  %977 = vmatpush.bf16.msra.mxu0 %v623
  %978 = vmatpush.bf16.msra.mxu0 %v621
  %979 = vmatmul.bf16.gmra.mxu0 %v175
  %v980 = vpop.f32.mrf.mxu0
  %v981 = vadd.f32 %v968, %v980
  %v982 = vpop.f32.mrf.mxu0
  %983 = vdwg.mxu0
  %984 = vmatpush.bf16.msra.mxu0 %v651
  %985 = vmatpush.bf16.msra.mxu0 %v649
  %986 = vmatpush.bf16.msra.mxu0 %v647
  %987 = vmatpush.bf16.msra.mxu0 %v645
  %988 = vmatpush.bf16.msra.mxu0 %v643
  %989 = vmatpush.bf16.msra.mxu0 %v641
  %990 = vmatpush.bf16.msra.mxu0 %v639
  %991 = vmatpush.bf16.msra.mxu0 %v637
  %992 = vmatmul.bf16.gmra.mxu0 %v176
  %v993 = vpop.f32.mrf.mxu0
  %v994 = vadd.f32 %v981, %v993
  %v995 = vpop.f32.mrf.mxu0
  %996 = vdwg.mxu0
  %997 = vmatpush.bf16.msra.mxu0 %v667
  %998 = vmatpush.bf16.msra.mxu0 %v665
  %999 = vmatpush.bf16.msra.mxu0 %v663
  %1000 = vmatpush.bf16.msra.mxu0 %v661
  %1001 = vmatpush.bf16.msra.mxu0 %v659
  %1002 = vmatpush.bf16.msra.mxu0 %v657
  %1003 = vmatpush.bf16.msra.mxu0 %v655
  %1004 = vmatpush.bf16.msra.mxu0 %v653
  %1005 = vmatmul.bf16.gmra.mxu0 %v177
  %v1006 = vpop.f32.mrf.mxu0
  %v1007 = vadd.f32 %v994, %v1006
  %v1008 = vpop.f32.mrf.mxu0
  %1009 = vdwg.mxu0
  %1010 = vmatpush.bf16.msra.mxu0 %v683
  %1011 = vmatpush.bf16.msra.mxu0 %v681
  %1012 = vmatpush.bf16.msra.mxu0 %v679
  %1013 = vmatpush.bf16.msra.mxu0 %v677
  %1014 = vmatpush.bf16.msra.mxu0 %v675
  %1015 = vmatpush.bf16.msra.mxu0 %v673
  %1016 = vmatpush.bf16.msra.mxu0 %v671
  %1017 = vmatpush.bf16.msra.mxu0 %v669
  %1018 = vmatmul.bf16.gmra.mxu0 %v178
  %v1019 = vpop.f32.mrf.mxu0
  %v1020 = vadd.f32 %v1007, %v1019
  %v1021 = vpop.f32.mrf.mxu0
  %1022 = vdwg.mxu0
  %1023 = vmatpush.bf16.msra.mxu0 %v699
  %1024 = vmatpush.bf16.msra.mxu0 %v697
  %1025 = vmatpush.bf16.msra.mxu0 %v695
  %1026 = vmatpush.bf16.msra.mxu0 %v693
  %1027 = vmatpush.bf16.msra.mxu0 %v691
  %1028 = vmatpush.bf16.msra.mxu0 %v689
  %1029 = vmatpush.bf16.msra.mxu0 %v687
  %1030 = vmatpush.bf16.msra.mxu0 %v685
  %1031 = vmatmul.bf16.gmra.mxu0 %v179
  %v1032 = vpop.f32.mrf.mxu0
  %v1033 = vadd.f32 %v1020, %v1032
  %v1034 = vpop.f32.mrf.mxu0
  %1035 = vdwg.mxu0
  %v1036 = vld [vmem:[%s3] sm:$0x3]
  %v1038 = vperm.slane %v1036, 0
  %v1039 = vperm.slane %v1036, 1
  %v1042 = vmul.f32 %v929, %v1038
  %v1043 = vmul.f32 %v1033, %v1039
  %v1044 = vadd.f32 %v1042, %v1043
  %1045 = vadd.xlane.f32.xlu0 %v1044
  %v1046 = vpop.xlane.xlu0 %1045
  %v1047 = vld [vmem:[#allocation2] sm:$0x1]
  %v1049 = vperm.slane %v1047, 0
  %v1051 = vadd.f32 %v1046, %v1049
  %vm1052 = vcmask 7168
  %1053 = vst.msk [vmem:[%s5] sm:$0xff] %vm1052, %v1051
  // Predicated region
  $region22: #{discriminator_forward.9} parent=0 // pred_check
    _
  $region23: #{discriminator_forward.9} parent=0 // pred_check_branch
    %1055 = sbr.rel (0) target = $region25
  $region24: #{discriminator_forward.9} parent=0 // pred_region
    _
  $region25: #{discriminator_forward.9} parent=0 // pred_fallthru
    _
  // Predicated region
  $region26: #{discriminator_forward.9} parent=0 // pred_check
    _
  $region27: #{discriminator_forward.9} parent=0 // pred_check_branch
    %1057 = sbr.rel (0) target = $region29
  $region28: #{discriminator_forward.9} parent=0 // pred_region
    _
  $region29: #{discriminator_forward.9} parent=0 // pred_fallthru
    _

// kernel: discriminator_forward.8
$region0: #{discriminator_forward.8}
  #allocation0 [shape = 'u32[]', space=smem, size = 0x4, offset = 0x4, fixed_abs, tag = 'smem constant byte address 0x4 - core index']
  #allocation1 [shape = 'u32[72,128]{1,0:T(1,128)}', space=vmem, size = 0x9000, scoped, tag = 'internal scratch']
  %s0 = inlined_call_operand.vmem [shape: f32[4,2,5,160], index: 0, kind: input, shape index: {}]
  %s1 = inlined_call_operand.vmem [shape: bf16[8,160,256], index: 1, kind: input, shape index: {}]
  %s2 = inlined_call_operand.vmem [shape: f32[1,256], index: 2, kind: input, shape index: {}]
  %s3 = inlined_call_operand.vmem [shape: f32[256,64], index: 3, kind: input, shape index: {}]
  %s4 = inlined_call_operand.vmem [shape: f32[64,256], index: 4, kind: input, shape index: {}]
  %s5 = inlined_call_operand.vmem [shape: f32[1,64], index: 5, kind: input, shape index: {}]
  %s6 = inlined_call_operand.vmem [shape: f32[1,64], index: 6, kind: input, shape index: {}]
  %s7 = inlined_call_operand.vmem [shape: f32[8,256], index: 7, kind: output, shape index: {}]
  %s8 = sld [smem:[#allocation0]]
  $region38: #{discriminator_forward.8} parent=0
    _
  %s10 = ssub.s32 1, %s8
  %s11 = scalar_select 0, %s10, %s8
  // Predicated region
  $region2: #{discriminator_forward.8} parent=0 // pred_check
    _
  $region3: #{discriminator_forward.8} parent=0 // pred_check_branch
    %13 = sbr.rel (0) target = $region5
  $region4: #{discriminator_forward.8} parent=0 // pred_region
    _
  $region5: #{discriminator_forward.8} parent=0 // pred_fallthru
    _
  // Predicated region
  $region6: #{discriminator_forward.8} parent=0 // pred_check
    _
  $region7: #{discriminator_forward.8} parent=0 // pred_check_branch
    %15 = sbr.rel (0) target = $region9
  $region8: #{discriminator_forward.8} parent=0 // pred_region
    _
  $region9: #{discriminator_forward.8} parent=0 // pred_fallthru
    _
  // Predicated region
  $region10: #{discriminator_forward.8} parent=0 // pred_check
    _
  $region11: #{discriminator_forward.8} parent=0 // pred_check_branch
    %17 = sbr.rel (0) target = $region13
  $region12: #{discriminator_forward.8} parent=0 // pred_region
    _
  $region13: #{discriminator_forward.8} parent=0 // pred_fallthru
    _
  // Predicated region
  $region14: #{discriminator_forward.8} parent=0 // pred_check
    _
  $region15: #{discriminator_forward.8} parent=0 // pred_check_branch
    %19 = sbr.rel (0) target = $region17
  $region16: #{discriminator_forward.8} parent=0 // pred_region
    _
  $region17: #{discriminator_forward.8} parent=0 // pred_fallthru
    _
  // Predicated region
  $region18: #{discriminator_forward.8} parent=0 // pred_check
    _
  $region19: #{discriminator_forward.8} parent=0 // pred_check_branch
    %21 = sbr.rel (0) target = $region21
  $region20: #{discriminator_forward.8} parent=0 // pred_region
    _
  $region21: #{discriminator_forward.8} parent=0 // pred_fallthru
    _
  // Predicated region
  $region22: #{discriminator_forward.8} parent=0 // pred_check
    _
  $region23: #{discriminator_forward.8} parent=0 // pred_check_branch
    %23 = sbr.rel (0) target = $region25
  $region24: #{discriminator_forward.8} parent=0 // pred_region
    _
  $region25: #{discriminator_forward.8} parent=0 // pred_fallthru
    _
  // Predicated region
  $region26: #{discriminator_forward.8} parent=0 // pred_check
    _
  $region27: #{discriminator_forward.8} parent=0 // pred_check_branch
    %25 = sbr.rel (0) target = $region29
  $region28: #{discriminator_forward.8} parent=0 // pred_region
    _
  $region29: #{discriminator_forward.8} parent=0 // pred_fallthru
    _
  %v27 = vld [vmem:[%s0] sm:$0xf]
  %v28 = vld [vmem:[%s0 + $0x8] sm:$0xf]
  %v29 = vpack.c.bf16 %v27, %v27
  %v30 = vpack.c.bf16 %v28, %v28
  %v31 = vld [vmem:[%s1] sm:$0xff]
  %v32 = vld [vmem:[%s1 + $0x8] sm:$0xff]
  %v33 = vld [vmem:[%s1 + $0x10] sm:$0xff]
  %v34 = vld [vmem:[%s1 + $0x18] sm:$0xff]
  %v35 = vld [vmem:[%s1 + $0x20] sm:$0xff]
  %v36 = vld [vmem:[%s1 + $0x28] sm:$0xff]
  %v37 = vld [vmem:[%s1 + $0x30] sm:$0xff]
  %v38 = vld [vmem:[%s1 + $0x38] sm:$0xff]
  %v39 = vld [vmem:[%s1 + $0x40] sm:$0xff]
  %v40 = vld [vmem:[%s1 + $0x48] sm:$0xff]
  %v41 = vld [vmem:[%s1 + $0x50] sm:$0xff]
  %v42 = vld [vmem:[%s1 + $0x58] sm:$0xff]
  %v43 = vld [vmem:[%s1 + $0x60] sm:$0xff]
  %v44 = vld [vmem:[%s1 + $0x68] sm:$0xff]
  %v45 = vld [vmem:[%s1 + $0x70] sm:$0xff]
  %v46 = vld [vmem:[%s1 + $0x78] sm:$0xff]
  %v47 = vld [vmem:[%s1 + $0x80] sm:$0xff]
  %v48 = vld [vmem:[%s1 + $0x88] sm:$0xff]
  %v49 = vld [vmem:[%s1 + $0x90] sm:$0xff]
  %v50 = vld [vmem:[%s1 + $0x98] sm:$0xff]
  %v51 = vld [vmem:[%s0] sm:$0x1e]
  %v52 = vld [vmem:[%s0 + $0x8] sm:$0x1e]
  %v53 = vpack.c.bf16 %v51, %v51
  %v54 = vpack.c.bf16 %v52, %v52
  %s55 = scalar_lea.vmem %s1, 160
  %v56 = vld [vmem:[%s55] sm:$0xff]
  %v57 = vld [vmem:[%s55 + $0x8] sm:$0xff]
  %v58 = vld [vmem:[%s55 + $0x10] sm:$0xff]
  %v59 = vld [vmem:[%s55 + $0x18] sm:$0xff]
  %v60 = vld [vmem:[%s55 + $0x20] sm:$0xff]
  %v61 = vld [vmem:[%s55 + $0x28] sm:$0xff]
  %v62 = vld [vmem:[%s55 + $0x30] sm:$0xff]
  %v63 = vld [vmem:[%s55 + $0x38] sm:$0xff]
  %v64 = vld [vmem:[%s55 + $0x40] sm:$0xff]
  %v65 = vld [vmem:[%s55 + $0x48] sm:$0xff]
  %v66 = vld [vmem:[%s55 + $0x50] sm:$0xff]
  %v67 = vld [vmem:[%s55 + $0x58] sm:$0xff]
  %v68 = vld [vmem:[%s55 + $0x60] sm:$0xff]
  %v69 = vld [vmem:[%s55 + $0x68] sm:$0xff]
  %v70 = vld [vmem:[%s55 + $0x70] sm:$0xff]
  %v71 = vld [vmem:[%s55 + $0x78] sm:$0xff]
  %v72 = vld [vmem:[%s55 + $0x80] sm:$0xff]
  %v73 = vld [vmem:[%s55 + $0x88] sm:$0xff]
  %v74 = vld [vmem:[%s55 + $0x90] sm:$0xff]
  %v75 = vld [vmem:[%s55 + $0x98] sm:$0xff]
  %v77 = vshrl.u32 %v53, 16
  %v79 = vshll.u32 %v53, 16
  %v81 = vrot.slane %v79, 1
  %v82 = vor.u32 %v77, %v81
  %v84 = vshrl.u32 %v54, 16
  %v86 = vshll.u32 %v54, 16
  %v88 = vrot.slane %v86, 1
  %v89 = vor.u32 %v84, %v88
  %v111 = vunpack.c.l.b16 %v56
  %v112 = vunpack.c.h.b16 %v56
  %v113 = vunpack.c.l.b16 %v57
  %v114 = vunpack.c.h.b16 %v57
  %v115 = vunpack.c.l.b16 %v58
  %v116 = vunpack.c.h.b16 %v58
  %v117 = vunpack.c.l.b16 %v59
  %v118 = vunpack.c.h.b16 %v59
  %v119 = vunpack.c.l.b16 %v60
  %v120 = vunpack.c.h.b16 %v60
  %v121 = vunpack.c.l.b16 %v61
  %v122 = vunpack.c.h.b16 %v61
  %v123 = vunpack.c.l.b16 %v62
  %v124 = vunpack.c.h.b16 %v62
  %v125 = vunpack.c.l.b16 %v63
  %v126 = vunpack.c.h.b16 %v63
  %v127 = vunpack.c.l.b16 %v64
  %v128 = vunpack.c.h.b16 %v64
  %v129 = vunpack.c.l.b16 %v65
  %v130 = vunpack.c.h.b16 %v65
  %v131 = vunpack.c.l.b16 %v66
  %v132 = vunpack.c.h.b16 %v66
  %v133 = vunpack.c.l.b16 %v67
  %v134 = vunpack.c.h.b16 %v67
  %v135 = vunpack.c.l.b16 %v68
  %v136 = vunpack.c.h.b16 %v68
  %v137 = vunpack.c.l.b16 %v69
  %v138 = vunpack.c.h.b16 %v69
  %v139 = vunpack.c.l.b16 %v70
  %v140 = vunpack.c.h.b16 %v70
  %v141 = vunpack.c.l.b16 %v71
  %v142 = vunpack.c.h.b16 %v71
  %v143 = vunpack.c.l.b16 %v72
  %v144 = vunpack.c.h.b16 %v72
  %v145 = vunpack.c.l.b16 %v73
  %v146 = vunpack.c.h.b16 %v73
  %v147 = vunpack.c.l.b16 %v74
  %v148 = vunpack.c.h.b16 %v74
  %v149 = vunpack.c.l.b16 %v75
  %v150 = vunpack.c.h.b16 %v75
  %v151 = vpack.c.b16 %v113, %v111
  %v152 = vpack.c.b16 %v114, %v112
  %v153 = vpack.c.b16 %v117, %v115
  %v154 = vpack.c.b16 %v118, %v116
  %v155 = vpack.c.b16 %v121, %v119
  %v156 = vpack.c.b16 %v122, %v120
  %v157 = vpack.c.b16 %v125, %v123
  %v158 = vpack.c.b16 %v126, %v124
  %v159 = vpack.c.b16 %v129, %v127
  %v160 = vpack.c.b16 %v130, %v128
  %v161 = vpack.c.b16 %v133, %v131
  %v162 = vpack.c.b16 %v134, %v132
  %v163 = vpack.c.b16 %v137, %v135
  %v164 = vpack.c.b16 %v138, %v136
  %v165 = vpack.c.b16 %v141, %v139
  %v166 = vpack.c.b16 %v142, %v140
  %v167 = vpack.c.b16 %v145, %v143
  %v168 = vpack.c.b16 %v146, %v144
  %v169 = vpack.c.b16 %v149, %v147
  %v170 = vpack.c.b16 %v150, %v148
  %vm191 = vcmask 261120
  %v193 = vsel %vm191, %v89, 0
  %195 = vmatpush.bf16.msra.mxu0 %v165
  %196 = vmatpush.bf16.msra.mxu0 %v163
  %197 = vmatpush.bf16.msra.mxu0 %v161
  %198 = vmatpush.bf16.msra.mxu0 %v159
  %199 = vmatpush.bf16.msra.mxu0 %v157
  %200 = vmatpush.bf16.msra.mxu0 %v155
  %201 = vmatpush.bf16.msra.mxu0 %v153
  %202 = vmatpush.bf16.msra.mxu0 %v151
  %203 = vmatmul.bf16.gmra.mxu0 %v82
  %v204 = vpop.f32.mrf.mxu0
  %v205 = vadd.f32 0.0, %v204
  %v206 = vpop.f32.mrf.mxu0
  %207 = vdwg.mxu0
  %208 = vmatpush.bf16.msra.mxu0 0
  %209 = vmatpush.bf16.msra.mxu0 0
  %210 = vmatpush.bf16.msra.mxu0 0
  %211 = vmatpush.bf16.msra.mxu0 0
  %212 = vmatpush.bf16.msra.mxu0 0
  %213 = vmatpush.bf16.msra.mxu0 0
  %214 = vmatpush.bf16.msra.mxu0 %v169
  %215 = vmatpush.bf16.msra.mxu0 %v167
  %216 = vmatmul.bf16.gmra.mxu0 %v193
  %v217 = vpop.f32.mrf.mxu0
  %v218 = vadd.f32 %v205, %v217
  %v219 = vpop.f32.mrf.mxu0
  %220 = vdwg.mxu0
  %221 = vmatpush.bf16.msra.mxu0 %v166
  %222 = vmatpush.bf16.msra.mxu0 %v164
  %223 = vmatpush.bf16.msra.mxu0 %v162
  %224 = vmatpush.bf16.msra.mxu0 %v160
  %225 = vmatpush.bf16.msra.mxu0 %v158
  %226 = vmatpush.bf16.msra.mxu0 %v156
  %227 = vmatpush.bf16.msra.mxu0 %v154
  %228 = vmatpush.bf16.msra.mxu0 %v152
  %229 = vmatmul.bf16.gmra.mxu0 %v82
  %v230 = vpop.f32.mrf.mxu0
  %v231 = vadd.f32 0.0, %v230
  %v232 = vpop.f32.mrf.mxu0
  %233 = vdwg.mxu0
  %234 = vmatpush.bf16.msra.mxu0 0
  %235 = vmatpush.bf16.msra.mxu0 0
  %236 = vmatpush.bf16.msra.mxu0 0
  %237 = vmatpush.bf16.msra.mxu0 0
  %238 = vmatpush.bf16.msra.mxu0 0
  %239 = vmatpush.bf16.msra.mxu0 0
  %240 = vmatpush.bf16.msra.mxu0 %v170
  %241 = vmatpush.bf16.msra.mxu0 %v168
  %242 = vmatmul.bf16.gmra.mxu0 %v193
  %v243 = vpop.f32.mrf.mxu0
  %v244 = vadd.f32 %v231, %v243
  %v245 = vpop.f32.mrf.mxu0
  %246 = vdwg.mxu0
  %v267 = vunpack.c.l.b16 %v31
  %v268 = vunpack.c.h.b16 %v31
  %v269 = vunpack.c.l.b16 %v32
  %v270 = vunpack.c.h.b16 %v32
  %v271 = vunpack.c.l.b16 %v33
  %v272 = vunpack.c.h.b16 %v33
  %v273 = vunpack.c.l.b16 %v34
  %v274 = vunpack.c.h.b16 %v34
  %v275 = vunpack.c.l.b16 %v35
  %v276 = vunpack.c.h.b16 %v35
  %v277 = vunpack.c.l.b16 %v36
  %v278 = vunpack.c.h.b16 %v36
  %v279 = vunpack.c.l.b16 %v37
  %v280 = vunpack.c.h.b16 %v37
  %v281 = vunpack.c.l.b16 %v38
  %v282 = vunpack.c.h.b16 %v38
  %v283 = vunpack.c.l.b16 %v39
  %v284 = vunpack.c.h.b16 %v39
  %v285 = vunpack.c.l.b16 %v40
  %v286 = vunpack.c.h.b16 %v40
  %v287 = vunpack.c.l.b16 %v41
  %v288 = vunpack.c.h.b16 %v41
  %v289 = vunpack.c.l.b16 %v42
  %v290 = vunpack.c.h.b16 %v42
  %v291 = vunpack.c.l.b16 %v43
  %v292 = vunpack.c.h.b16 %v43
  %v293 = vunpack.c.l.b16 %v44
  %v294 = vunpack.c.h.b16 %v44
  %v295 = vunpack.c.l.b16 %v45
  %v296 = vunpack.c.h.b16 %v45
  %v297 = vunpack.c.l.b16 %v46
  %v298 = vunpack.c.h.b16 %v46
  %v299 = vunpack.c.l.b16 %v47
  %v300 = vunpack.c.h.b16 %v47
  %v301 = vunpack.c.l.b16 %v48
  %v302 = vunpack.c.h.b16 %v48
  %v303 = vunpack.c.l.b16 %v49
  %v304 = vunpack.c.h.b16 %v49
  %v305 = vunpack.c.l.b16 %v50
  %v306 = vunpack.c.h.b16 %v50
  %v307 = vpack.c.b16 %v269, %v267
  %v308 = vpack.c.b16 %v270, %v268
  %v309 = vpack.c.b16 %v273, %v271
  %v310 = vpack.c.b16 %v274, %v272
  %v311 = vpack.c.b16 %v277, %v275
  %v312 = vpack.c.b16 %v278, %v276
  %v313 = vpack.c.b16 %v281, %v279
  %v314 = vpack.c.b16 %v282, %v280
  %v315 = vpack.c.b16 %v285, %v283
  %v316 = vpack.c.b16 %v286, %v284
  %v317 = vpack.c.b16 %v289, %v287
  %v318 = vpack.c.b16 %v290, %v288
  %v319 = vpack.c.b16 %v293, %v291
  %v320 = vpack.c.b16 %v294, %v292
  %v321 = vpack.c.b16 %v297, %v295
  %v322 = vpack.c.b16 %v298, %v296
  %v323 = vpack.c.b16 %v301, %v299
  %v324 = vpack.c.b16 %v302, %v300
  %v325 = vpack.c.b16 %v305, %v303
  %v326 = vpack.c.b16 %v306, %v304
  %v348 = vsel %vm191, %v30, 0
  %350 = vmatpush.bf16.msra.mxu0 %v321
  %351 = vmatpush.bf16.msra.mxu0 %v319
  %352 = vmatpush.bf16.msra.mxu0 %v317
  %353 = vmatpush.bf16.msra.mxu0 %v315
  %354 = vmatpush.bf16.msra.mxu0 %v313
  %355 = vmatpush.bf16.msra.mxu0 %v311
  %356 = vmatpush.bf16.msra.mxu0 %v309
  %357 = vmatpush.bf16.msra.mxu0 %v307
  %358 = vmatmul.bf16.gmra.mxu0 %v29
  %v359 = vpop.f32.mrf.mxu0
  %v360 = vadd.f32 %v218, %v359
  %v361 = vpop.f32.mrf.mxu0
  %362 = vdwg.mxu0
  %363 = vmatpush.bf16.msra.mxu0 0
  %364 = vmatpush.bf16.msra.mxu0 0
  %365 = vmatpush.bf16.msra.mxu0 0
  %366 = vmatpush.bf16.msra.mxu0 0
  %367 = vmatpush.bf16.msra.mxu0 0
  %368 = vmatpush.bf16.msra.mxu0 0
  %369 = vmatpush.bf16.msra.mxu0 %v325
  %370 = vmatpush.bf16.msra.mxu0 %v323
  %371 = vmatmul.bf16.gmra.mxu0 %v348
  %v372 = vpop.f32.mrf.mxu0
  %v373 = vadd.f32 %v360, %v372
  %v374 = vpop.f32.mrf.mxu0
  %375 = vdwg.mxu0
  %376 = vmatpush.bf16.msra.mxu0 %v322
  %377 = vmatpush.bf16.msra.mxu0 %v320
  %378 = vmatpush.bf16.msra.mxu0 %v318
  %379 = vmatpush.bf16.msra.mxu0 %v316
  %380 = vmatpush.bf16.msra.mxu0 %v314
  %381 = vmatpush.bf16.msra.mxu0 %v312
  %382 = vmatpush.bf16.msra.mxu0 %v310
  %383 = vmatpush.bf16.msra.mxu0 %v308
  %384 = vmatmul.bf16.gmra.mxu0 %v29
  %v385 = vpop.f32.mrf.mxu0
  %v386 = vadd.f32 %v244, %v385
  %v387 = vpop.f32.mrf.mxu0
  %388 = vdwg.mxu0
  %389 = vmatpush.bf16.msra.mxu0 0
  %390 = vmatpush.bf16.msra.mxu0 0
  %391 = vmatpush.bf16.msra.mxu0 0
  %392 = vmatpush.bf16.msra.mxu0 0
  %393 = vmatpush.bf16.msra.mxu0 0
  %394 = vmatpush.bf16.msra.mxu0 0
  %395 = vmatpush.bf16.msra.mxu0 %v326
  %396 = vmatpush.bf16.msra.mxu0 %v324
  %397 = vmatmul.bf16.gmra.mxu0 %v348
  %v398 = vpop.f32.mrf.mxu0
  %v399 = vadd.f32 %v386, %v398
  %v400 = vpop.f32.mrf.mxu0
  %401 = vdwg.mxu0
  %s402 = scalar_lea.vmem %s0, 32
  %v403 = vld [vmem:[%s402] sm:$0xf]
  %v404 = vld [vmem:[%s402 + $0x8] sm:$0xf]
  %v405 = vpack.c.bf16 %v403, %v403
  %v406 = vpack.c.bf16 %v404, %v404
  %s407 = scalar_lea.vmem %s1, 320
  %v408 = vld [vmem:[%s407] sm:$0xff]
  %v409 = vld [vmem:[%s407 + $0x8] sm:$0xff]
  %v410 = vld [vmem:[%s407 + $0x10] sm:$0xff]
  %v411 = vld [vmem:[%s407 + $0x18] sm:$0xff]
  %v412 = vld [vmem:[%s407 + $0x20] sm:$0xff]
  %v413 = vld [vmem:[%s407 + $0x28] sm:$0xff]
  %v414 = vld [vmem:[%s407 + $0x30] sm:$0xff]
  %v415 = vld [vmem:[%s407 + $0x38] sm:$0xff]
  %v416 = vld [vmem:[%s407 + $0x40] sm:$0xff]
  %v417 = vld [vmem:[%s407 + $0x48] sm:$0xff]
  %v418 = vld [vmem:[%s407 + $0x50] sm:$0xff]
  %v419 = vld [vmem:[%s407 + $0x58] sm:$0xff]
  %v420 = vld [vmem:[%s407 + $0x60] sm:$0xff]
  %v421 = vld [vmem:[%s407 + $0x68] sm:$0xff]
  %v422 = vld [vmem:[%s407 + $0x70] sm:$0xff]
  %v423 = vld [vmem:[%s407 + $0x78] sm:$0xff]
  %v424 = vld [vmem:[%s407 + $0x80] sm:$0xff]
  %v425 = vld [vmem:[%s407 + $0x88] sm:$0xff]
  %v426 = vld [vmem:[%s407 + $0x90] sm:$0xff]
  %v427 = vld [vmem:[%s407 + $0x98] sm:$0xff]
  %v448 = vunpack.c.l.b16 %v408
  %v449 = vunpack.c.h.b16 %v408
  %v450 = vunpack.c.l.b16 %v409
  %v451 = vunpack.c.h.b16 %v409
  %v452 = vunpack.c.l.b16 %v410
  %v453 = vunpack.c.h.b16 %v410
  %v454 = vunpack.c.l.b16 %v411
  %v455 = vunpack.c.h.b16 %v411
  %v456 = vunpack.c.l.b16 %v412
  %v457 = vunpack.c.h.b16 %v412
  %v458 = vunpack.c.l.b16 %v413
  %v459 = vunpack.c.h.b16 %v413
  %v460 = vunpack.c.l.b16 %v414
  %v461 = vunpack.c.h.b16 %v414
  %v462 = vunpack.c.l.b16 %v415
  %v463 = vunpack.c.h.b16 %v415
  %v464 = vunpack.c.l.b16 %v416
  %v465 = vunpack.c.h.b16 %v416
  %v466 = vunpack.c.l.b16 %v417
  %v467 = vunpack.c.h.b16 %v417
  %v468 = vunpack.c.l.b16 %v418
  %v469 = vunpack.c.h.b16 %v418
  %v470 = vunpack.c.l.b16 %v419
  %v471 = vunpack.c.h.b16 %v419
  %v472 = vunpack.c.l.b16 %v420
  %v473 = vunpack.c.h.b16 %v420
  %v474 = vunpack.c.l.b16 %v421
  %v475 = vunpack.c.h.b16 %v421
  %v476 = vunpack.c.l.b16 %v422
  %v477 = vunpack.c.h.b16 %v422
  %v478 = vunpack.c.l.b16 %v423
  %v479 = vunpack.c.h.b16 %v423
  %v480 = vunpack.c.l.b16 %v424
  %v481 = vunpack.c.h.b16 %v424
  %v482 = vunpack.c.l.b16 %v425
  %v483 = vunpack.c.h.b16 %v425
  %v484 = vunpack.c.l.b16 %v426
  %v485 = vunpack.c.h.b16 %v426
  %v486 = vunpack.c.l.b16 %v427
  %v487 = vunpack.c.h.b16 %v427
  %v488 = vpack.c.b16 %v450, %v448
  %v489 = vpack.c.b16 %v451, %v449
  %v490 = vpack.c.b16 %v454, %v452
  %v491 = vpack.c.b16 %v455, %v453
  %v492 = vpack.c.b16 %v458, %v456
  %v493 = vpack.c.b16 %v459, %v457
  %v494 = vpack.c.b16 %v462, %v460
  %v495 = vpack.c.b16 %v463, %v461
  %v496 = vpack.c.b16 %v466, %v464
  %v497 = vpack.c.b16 %v467, %v465
  %v498 = vpack.c.b16 %v470, %v468
  %v499 = vpack.c.b16 %v471, %v469
  %v500 = vpack.c.b16 %v474, %v472
  %v501 = vpack.c.b16 %v475, %v473
  %v502 = vpack.c.b16 %v478, %v476
  %v503 = vpack.c.b16 %v479, %v477
  %v504 = vpack.c.b16 %v482, %v480
  %v505 = vpack.c.b16 %v483, %v481
  %v506 = vpack.c.b16 %v486, %v484
  %v507 = vpack.c.b16 %v487, %v485
  %v529 = vsel %vm191, %v406, 0
  %531 = vmatpush.bf16.msra.mxu0 %v502
  %532 = vmatpush.bf16.msra.mxu0 %v500
  %533 = vmatpush.bf16.msra.mxu0 %v498
  %534 = vmatpush.bf16.msra.mxu0 %v496
  %535 = vmatpush.bf16.msra.mxu0 %v494
  %536 = vmatpush.bf16.msra.mxu0 %v492
  %537 = vmatpush.bf16.msra.mxu0 %v490
  %538 = vmatpush.bf16.msra.mxu0 %v488
  %539 = vmatmul.bf16.gmra.mxu0 %v405
  %v540 = vpop.f32.mrf.mxu0
  %v541 = vadd.f32 0.0, %v540
  %v542 = vpop.f32.mrf.mxu0
  %543 = vdwg.mxu0
  %544 = vmatpush.bf16.msra.mxu0 0
  %545 = vmatpush.bf16.msra.mxu0 0
  %546 = vmatpush.bf16.msra.mxu0 0
  %547 = vmatpush.bf16.msra.mxu0 0
  %548 = vmatpush.bf16.msra.mxu0 0
  %549 = vmatpush.bf16.msra.mxu0 0
  %550 = vmatpush.bf16.msra.mxu0 %v506
  %551 = vmatpush.bf16.msra.mxu0 %v504
  %552 = vmatmul.bf16.gmra.mxu0 %v529
  %v553 = vpop.f32.mrf.mxu0
  %v554 = vadd.f32 %v541, %v553
  %v555 = vpop.f32.mrf.mxu0
  %556 = vdwg.mxu0
  %557 = vmatpush.bf16.msra.mxu0 %v503
  %558 = vmatpush.bf16.msra.mxu0 %v501
  %559 = vmatpush.bf16.msra.mxu0 %v499
  %560 = vmatpush.bf16.msra.mxu0 %v497
  %561 = vmatpush.bf16.msra.mxu0 %v495
  %562 = vmatpush.bf16.msra.mxu0 %v493
  %563 = vmatpush.bf16.msra.mxu0 %v491
  %564 = vmatpush.bf16.msra.mxu0 %v489
  %565 = vmatmul.bf16.gmra.mxu0 %v405
  %v566 = vpop.f32.mrf.mxu0
  %v567 = vadd.f32 0.0, %v566
  %v568 = vpop.f32.mrf.mxu0
  %569 = vdwg.mxu0
  %570 = vmatpush.bf16.msra.mxu0 0
  %571 = vmatpush.bf16.msra.mxu0 0
  %572 = vmatpush.bf16.msra.mxu0 0
  %573 = vmatpush.bf16.msra.mxu0 0
  %574 = vmatpush.bf16.msra.mxu0 0
  %575 = vmatpush.bf16.msra.mxu0 0
  %576 = vmatpush.bf16.msra.mxu0 %v507
  %577 = vmatpush.bf16.msra.mxu0 %v505
  %578 = vmatmul.bf16.gmra.mxu0 %v529
  %v579 = vpop.f32.mrf.mxu0
  %v580 = vadd.f32 %v567, %v579
  %v581 = vpop.f32.mrf.mxu0
  %582 = vdwg.mxu0
  %v583 = vadd.f32 %v373, %v554
  %v584 = vadd.f32 %v399, %v580
  %v585 = vld [vmem:[%s402] sm:$0x1e]
  %v586 = vld [vmem:[%s402 + $0x8] sm:$0x1e]
  %v587 = vpack.c.bf16 %v585, %v585
  %v588 = vpack.c.bf16 %v586, %v586
  %s589 = scalar_lea.vmem %s1, 480
  %v590 = vld [vmem:[%s589] sm:$0xff]
  %v591 = vld [vmem:[%s589 + $0x8] sm:$0xff]
  %v592 = vld [vmem:[%s589 + $0x10] sm:$0xff]
  %v593 = vld [vmem:[%s589 + $0x18] sm:$0xff]
  %v594 = vld [vmem:[%s589 + $0x20] sm:$0xff]
  %v595 = vld [vmem:[%s589 + $0x28] sm:$0xff]
  %v596 = vld [vmem:[%s589 + $0x30] sm:$0xff]
  %v597 = vld [vmem:[%s589 + $0x38] sm:$0xff]
  %v598 = vld [vmem:[%s589 + $0x40] sm:$0xff]
  %v599 = vld [vmem:[%s589 + $0x48] sm:$0xff]
  %v600 = vld [vmem:[%s589 + $0x50] sm:$0xff]
  %v601 = vld [vmem:[%s589 + $0x58] sm:$0xff]
  %v602 = vld [vmem:[%s589 + $0x60] sm:$0xff]
  %v603 = vld [vmem:[%s589 + $0x68] sm:$0xff]
  %v604 = vld [vmem:[%s589 + $0x70] sm:$0xff]
  %v605 = vld [vmem:[%s589 + $0x78] sm:$0xff]
  %v606 = vld [vmem:[%s589 + $0x80] sm:$0xff]
  %v607 = vld [vmem:[%s589 + $0x88] sm:$0xff]
  %v608 = vld [vmem:[%s589 + $0x90] sm:$0xff]
  %v609 = vld [vmem:[%s589 + $0x98] sm:$0xff]
  %v611 = vshrl.u32 %v587, 16
  %v613 = vshll.u32 %v587, 16
  %v615 = vrot.slane %v613, 1
  %v616 = vor.u32 %v611, %v615
  %v618 = vshrl.u32 %v588, 16
  %v620 = vshll.u32 %v588, 16
  %v622 = vrot.slane %v620, 1
  %v623 = vor.u32 %v618, %v622
  %v645 = vunpack.c.l.b16 %v590
  %v646 = vunpack.c.h.b16 %v590
  %v647 = vunpack.c.l.b16 %v591
  %v648 = vunpack.c.h.b16 %v591
  %v649 = vunpack.c.l.b16 %v592
  %v650 = vunpack.c.h.b16 %v592
  %v651 = vunpack.c.l.b16 %v593
  %v652 = vunpack.c.h.b16 %v593
  %v653 = vunpack.c.l.b16 %v594
  %v654 = vunpack.c.h.b16 %v594
  %v655 = vunpack.c.l.b16 %v595
  %v656 = vunpack.c.h.b16 %v595
  %v657 = vunpack.c.l.b16 %v596
  %v658 = vunpack.c.h.b16 %v596
  %v659 = vunpack.c.l.b16 %v597
  %v660 = vunpack.c.h.b16 %v597
  %v661 = vunpack.c.l.b16 %v598
  %v662 = vunpack.c.h.b16 %v598
  %v663 = vunpack.c.l.b16 %v599
  %v664 = vunpack.c.h.b16 %v599
  %v665 = vunpack.c.l.b16 %v600
  %v666 = vunpack.c.h.b16 %v600
  %v667 = vunpack.c.l.b16 %v601
  %v668 = vunpack.c.h.b16 %v601
  %v669 = vunpack.c.l.b16 %v602
  %v670 = vunpack.c.h.b16 %v602
  %v671 = vunpack.c.l.b16 %v603
  %v672 = vunpack.c.h.b16 %v603
  %v673 = vunpack.c.l.b16 %v604
  %v674 = vunpack.c.h.b16 %v604
  %v675 = vunpack.c.l.b16 %v605
  %v676 = vunpack.c.h.b16 %v605
  %v677 = vunpack.c.l.b16 %v606
  %v678 = vunpack.c.h.b16 %v606
  %v679 = vunpack.c.l.b16 %v607
  %v680 = vunpack.c.h.b16 %v607
  %v681 = vunpack.c.l.b16 %v608
  %v682 = vunpack.c.h.b16 %v608
  %v683 = vunpack.c.l.b16 %v609
  %v684 = vunpack.c.h.b16 %v609
  %v685 = vpack.c.b16 %v647, %v645
  %v686 = vpack.c.b16 %v648, %v646
  %v687 = vpack.c.b16 %v651, %v649
  %v688 = vpack.c.b16 %v652, %v650
  %v689 = vpack.c.b16 %v655, %v653
  %v690 = vpack.c.b16 %v656, %v654
  %v691 = vpack.c.b16 %v659, %v657
  %v692 = vpack.c.b16 %v660, %v658
  %v693 = vpack.c.b16 %v663, %v661
  %v694 = vpack.c.b16 %v664, %v662
  %v695 = vpack.c.b16 %v667, %v665
  %v696 = vpack.c.b16 %v668, %v666
  %v697 = vpack.c.b16 %v671, %v669
  %v698 = vpack.c.b16 %v672, %v670
  %v699 = vpack.c.b16 %v675, %v673
  %v700 = vpack.c.b16 %v676, %v674
  %v701 = vpack.c.b16 %v679, %v677
  %v702 = vpack.c.b16 %v680, %v678
  %v703 = vpack.c.b16 %v683, %v681
  %v704 = vpack.c.b16 %v684, %v682
  %v726 = vsel %vm191, %v623, 0
  %728 = vmatpush.bf16.msra.mxu0 %v699
  %729 = vmatpush.bf16.msra.mxu0 %v697
  %730 = vmatpush.bf16.msra.mxu0 %v695
  %731 = vmatpush.bf16.msra.mxu0 %v693
  %732 = vmatpush.bf16.msra.mxu0 %v691
  %733 = vmatpush.bf16.msra.mxu0 %v689
  %734 = vmatpush.bf16.msra.mxu0 %v687
  %735 = vmatpush.bf16.msra.mxu0 %v685
  %736 = vmatmul.bf16.gmra.mxu0 %v616
  %v737 = vpop.f32.mrf.mxu0
  %v738 = vadd.f32 0.0, %v737
  %v739 = vpop.f32.mrf.mxu0
  %740 = vdwg.mxu0
  %741 = vmatpush.bf16.msra.mxu0 0
  %742 = vmatpush.bf16.msra.mxu0 0
  %743 = vmatpush.bf16.msra.mxu0 0
  %744 = vmatpush.bf16.msra.mxu0 0
  %745 = vmatpush.bf16.msra.mxu0 0
  %746 = vmatpush.bf16.msra.mxu0 0
  %747 = vmatpush.bf16.msra.mxu0 %v703
  %748 = vmatpush.bf16.msra.mxu0 %v701
  %749 = vmatmul.bf16.gmra.mxu0 %v726
  %v750 = vpop.f32.mrf.mxu0
  %v751 = vadd.f32 %v738, %v750
  %v752 = vpop.f32.mrf.mxu0
  %753 = vdwg.mxu0
  %754 = vmatpush.bf16.msra.mxu0 %v700
  %755 = vmatpush.bf16.msra.mxu0 %v698
  %756 = vmatpush.bf16.msra.mxu0 %v696
  %757 = vmatpush.bf16.msra.mxu0 %v694
  %758 = vmatpush.bf16.msra.mxu0 %v692
  %759 = vmatpush.bf16.msra.mxu0 %v690
  %760 = vmatpush.bf16.msra.mxu0 %v688
  %761 = vmatpush.bf16.msra.mxu0 %v686
  %762 = vmatmul.bf16.gmra.mxu0 %v616
  %v763 = vpop.f32.mrf.mxu0
  %v764 = vadd.f32 0.0, %v763
  %v765 = vpop.f32.mrf.mxu0
  %766 = vdwg.mxu0
  %767 = vmatpush.bf16.msra.mxu0 0
  %768 = vmatpush.bf16.msra.mxu0 0
  %769 = vmatpush.bf16.msra.mxu0 0
  %770 = vmatpush.bf16.msra.mxu0 0
  %771 = vmatpush.bf16.msra.mxu0 0
  %772 = vmatpush.bf16.msra.mxu0 0
  %773 = vmatpush.bf16.msra.mxu0 %v704
  %774 = vmatpush.bf16.msra.mxu0 %v702
  %775 = vmatmul.bf16.gmra.mxu0 %v726
  %v776 = vpop.f32.mrf.mxu0
  %v777 = vadd.f32 %v764, %v776
  %v778 = vpop.f32.mrf.mxu0
  %779 = vdwg.mxu0
  %v780 = vadd.f32 %v583, %v751
  %v781 = vadd.f32 %v584, %v777
  %s782 = scalar_lea.vmem %s0, 64
  %v783 = vld [vmem:[%s782] sm:$0xf]
  %v784 = vld [vmem:[%s782 + $0x8] sm:$0xf]
  %v785 = vpack.c.bf16 %v783, %v783
  %v786 = vpack.c.bf16 %v784, %v784
  %s787 = scalar_lea.vmem %s1, 640
  %v788 = vld [vmem:[%s787] sm:$0xff]
  %v789 = vld [vmem:[%s787 + $0x8] sm:$0xff]
  %v790 = vld [vmem:[%s787 + $0x10] sm:$0xff]
  %v791 = vld [vmem:[%s787 + $0x18] sm:$0xff]
  %v792 = vld [vmem:[%s787 + $0x20] sm:$0xff]
  %v793 = vld [vmem:[%s787 + $0x28] sm:$0xff]
  %v794 = vld [vmem:[%s787 + $0x30] sm:$0xff]
  %v795 = vld [vmem:[%s787 + $0x38] sm:$0xff]
  %v796 = vld [vmem:[%s787 + $0x40] sm:$0xff]
  %v797 = vld [vmem:[%s787 + $0x48] sm:$0xff]
  %v798 = vld [vmem:[%s787 + $0x50] sm:$0xff]
  %v799 = vld [vmem:[%s787 + $0x58] sm:$0xff]
  %v800 = vld [vmem:[%s787 + $0x60] sm:$0xff]
  %v801 = vld [vmem:[%s787 + $0x68] sm:$0xff]
  %v802 = vld [vmem:[%s787 + $0x70] sm:$0xff]
  %v803 = vld [vmem:[%s787 + $0x78] sm:$0xff]
  %v804 = vld [vmem:[%s787 + $0x80] sm:$0xff]
  %v805 = vld [vmem:[%s787 + $0x88] sm:$0xff]
  %v806 = vld [vmem:[%s787 + $0x90] sm:$0xff]
  %v807 = vld [vmem:[%s787 + $0x98] sm:$0xff]
  %v828 = vunpack.c.l.b16 %v788
  %v829 = vunpack.c.h.b16 %v788
  %v830 = vunpack.c.l.b16 %v789
  %v831 = vunpack.c.h.b16 %v789
  %v832 = vunpack.c.l.b16 %v790
  %v833 = vunpack.c.h.b16 %v790
  %v834 = vunpack.c.l.b16 %v791
  %v835 = vunpack.c.h.b16 %v791
  %v836 = vunpack.c.l.b16 %v792
  %v837 = vunpack.c.h.b16 %v792
  %v838 = vunpack.c.l.b16 %v793
  %v839 = vunpack.c.h.b16 %v793
  %v840 = vunpack.c.l.b16 %v794
  %v841 = vunpack.c.h.b16 %v794
  %v842 = vunpack.c.l.b16 %v795
  %v843 = vunpack.c.h.b16 %v795
  %v844 = vunpack.c.l.b16 %v796
  %v845 = vunpack.c.h.b16 %v796
  %v846 = vunpack.c.l.b16 %v797
  %v847 = vunpack.c.h.b16 %v797
  %v848 = vunpack.c.l.b16 %v798
  %v849 = vunpack.c.h.b16 %v798
  %v850 = vunpack.c.l.b16 %v799
  %v851 = vunpack.c.h.b16 %v799
  %v852 = vunpack.c.l.b16 %v800
  %v853 = vunpack.c.h.b16 %v800
  %v854 = vunpack.c.l.b16 %v801
  %v855 = vunpack.c.h.b16 %v801
  %v856 = vunpack.c.l.b16 %v802
  %v857 = vunpack.c.h.b16 %v802
  %v858 = vunpack.c.l.b16 %v803
  %v859 = vunpack.c.h.b16 %v803
  %v860 = vunpack.c.l.b16 %v804
  %v861 = vunpack.c.h.b16 %v804
  %v862 = vunpack.c.l.b16 %v805
  %v863 = vunpack.c.h.b16 %v805
  %v864 = vunpack.c.l.b16 %v806
  %v865 = vunpack.c.h.b16 %v806
  %v866 = vunpack.c.l.b16 %v807
  %v867 = vunpack.c.h.b16 %v807
  %v868 = vpack.c.b16 %v830, %v828
  %v869 = vpack.c.b16 %v831, %v829
  %v870 = vpack.c.b16 %v834, %v832
  %v871 = vpack.c.b16 %v835, %v833
  %v872 = vpack.c.b16 %v838, %v836
  %v873 = vpack.c.b16 %v839, %v837
  %v874 = vpack.c.b16 %v842, %v840
  %v875 = vpack.c.b16 %v843, %v841
  %v876 = vpack.c.b16 %v846, %v844
  %v877 = vpack.c.b16 %v847, %v845
  %v878 = vpack.c.b16 %v850, %v848
  %v879 = vpack.c.b16 %v851, %v849
  %v880 = vpack.c.b16 %v854, %v852
  %v881 = vpack.c.b16 %v855, %v853
  %v882 = vpack.c.b16 %v858, %v856
  %v883 = vpack.c.b16 %v859, %v857
  %v884 = vpack.c.b16 %v862, %v860
  %v885 = vpack.c.b16 %v863, %v861
  %v886 = vpack.c.b16 %v866, %v864
  %v887 = vpack.c.b16 %v867, %v865
  %v909 = vsel %vm191, %v786, 0
  %911 = vmatpush.bf16.msra.mxu0 %v882
  %912 = vmatpush.bf16.msra.mxu0 %v880
  %913 = vmatpush.bf16.msra.mxu0 %v878
  %914 = vmatpush.bf16.msra.mxu0 %v876
  %915 = vmatpush.bf16.msra.mxu0 %v874
  %916 = vmatpush.bf16.msra.mxu0 %v872
  %917 = vmatpush.bf16.msra.mxu0 %v870
  %918 = vmatpush.bf16.msra.mxu0 %v868
  %919 = vmatmul.bf16.gmra.mxu0 %v785
  %v920 = vpop.f32.mrf.mxu0
  %v921 = vadd.f32 0.0, %v920
  %v922 = vpop.f32.mrf.mxu0
  %923 = vdwg.mxu0
  %924 = vmatpush.bf16.msra.mxu0 0
  %925 = vmatpush.bf16.msra.mxu0 0
  %926 = vmatpush.bf16.msra.mxu0 0
  %927 = vmatpush.bf16.msra.mxu0 0
  %928 = vmatpush.bf16.msra.mxu0 0
  %929 = vmatpush.bf16.msra.mxu0 0
  %930 = vmatpush.bf16.msra.mxu0 %v886
  %931 = vmatpush.bf16.msra.mxu0 %v884
  %932 = vmatmul.bf16.gmra.mxu0 %v909
  %v933 = vpop.f32.mrf.mxu0
  %v934 = vadd.f32 %v921, %v933
  %v935 = vpop.f32.mrf.mxu0
  %936 = vdwg.mxu0
  %937 = vmatpush.bf16.msra.mxu0 %v883
  %938 = vmatpush.bf16.msra.mxu0 %v881
  %939 = vmatpush.bf16.msra.mxu0 %v879
  %940 = vmatpush.bf16.msra.mxu0 %v877
  %941 = vmatpush.bf16.msra.mxu0 %v875
  %942 = vmatpush.bf16.msra.mxu0 %v873
  %943 = vmatpush.bf16.msra.mxu0 %v871
  %944 = vmatpush.bf16.msra.mxu0 %v869
  %945 = vmatmul.bf16.gmra.mxu0 %v785
  %v946 = vpop.f32.mrf.mxu0
  %v947 = vadd.f32 0.0, %v946
  %v948 = vpop.f32.mrf.mxu0
  %949 = vdwg.mxu0
  %950 = vmatpush.bf16.msra.mxu0 0
  %951 = vmatpush.bf16.msra.mxu0 0
  %952 = vmatpush.bf16.msra.mxu0 0
  %953 = vmatpush.bf16.msra.mxu0 0
  %954 = vmatpush.bf16.msra.mxu0 0
  %955 = vmatpush.bf16.msra.mxu0 0
  %956 = vmatpush.bf16.msra.mxu0 %v887
  %957 = vmatpush.bf16.msra.mxu0 %v885
  %958 = vmatmul.bf16.gmra.mxu0 %v909
  %v959 = vpop.f32.mrf.mxu0
  %v960 = vadd.f32 %v947, %v959
  %v961 = vpop.f32.mrf.mxu0
  %962 = vdwg.mxu0
  %v963 = vadd.f32 %v780, %v934
  %v964 = vadd.f32 %v781, %v960
  %v965 = vld [vmem:[%s782] sm:$0x1e]
  %v966 = vld [vmem:[%s782 + $0x8] sm:$0x1e]
  %v967 = vpack.c.bf16 %v965, %v965
  %v968 = vpack.c.bf16 %v966, %v966
  %s969 = scalar_lea.vmem %s1, 800
  %v970 = vld [vmem:[%s969] sm:$0xff]
  %v971 = vld [vmem:[%s969 + $0x8] sm:$0xff]
  %v972 = vld [vmem:[%s969 + $0x10] sm:$0xff]
  %v973 = vld [vmem:[%s969 + $0x18] sm:$0xff]
  %v974 = vld [vmem:[%s969 + $0x20] sm:$0xff]
  %v975 = vld [vmem:[%s969 + $0x28] sm:$0xff]
  %v976 = vld [vmem:[%s969 + $0x30] sm:$0xff]
  %v977 = vld [vmem:[%s969 + $0x38] sm:$0xff]
  %v978 = vld [vmem:[%s969 + $0x40] sm:$0xff]
  %v979 = vld [vmem:[%s969 + $0x48] sm:$0xff]
  %v980 = vld [vmem:[%s969 + $0x50] sm:$0xff]
  %v981 = vld [vmem:[%s969 + $0x58] sm:$0xff]
  %v982 = vld [vmem:[%s969 + $0x60] sm:$0xff]
  %v983 = vld [vmem:[%s969 + $0x68] sm:$0xff]
  %v984 = vld [vmem:[%s969 + $0x70] sm:$0xff]
  %v985 = vld [vmem:[%s969 + $0x78] sm:$0xff]
  %v986 = vld [vmem:[%s969 + $0x80] sm:$0xff]
  %v987 = vld [vmem:[%s969 + $0x88] sm:$0xff]
  %v988 = vld [vmem:[%s969 + $0x90] sm:$0xff]
  %v989 = vld [vmem:[%s969 + $0x98] sm:$0xff]
  %v991 = vshrl.u32 %v967, 16
  %v993 = vshll.u32 %v967, 16
  %v995 = vrot.slane %v993, 1
  %v996 = vor.u32 %v991, %v995
  %v998 = vshrl.u32 %v968, 16
  %v1000 = vshll.u32 %v968, 16
  %v1002 = vrot.slane %v1000, 1
  %v1003 = vor.u32 %v998, %v1002
  %v1025 = vunpack.c.l.b16 %v970
  %v1026 = vunpack.c.h.b16 %v970
  %v1027 = vunpack.c.l.b16 %v971
  %v1028 = vunpack.c.h.b16 %v971
  %v1029 = vunpack.c.l.b16 %v972
  %v1030 = vunpack.c.h.b16 %v972
  %v1031 = vunpack.c.l.b16 %v973
  %v1032 = vunpack.c.h.b16 %v973
  %v1033 = vunpack.c.l.b16 %v974
  %v1034 = vunpack.c.h.b16 %v974
  %v1035 = vunpack.c.l.b16 %v975
  %v1036 = vunpack.c.h.b16 %v975
  %v1037 = vunpack.c.l.b16 %v976
  %v1038 = vunpack.c.h.b16 %v976
  %v1039 = vunpack.c.l.b16 %v977
  %v1040 = vunpack.c.h.b16 %v977
  %v1041 = vunpack.c.l.b16 %v978
  %v1042 = vunpack.c.h.b16 %v978
  %v1043 = vunpack.c.l.b16 %v979
  %v1044 = vunpack.c.h.b16 %v979
  %v1045 = vunpack.c.l.b16 %v980
  %v1046 = vunpack.c.h.b16 %v980
  %v1047 = vunpack.c.l.b16 %v981
  %v1048 = vunpack.c.h.b16 %v981
  %v1049 = vunpack.c.l.b16 %v982
  %v1050 = vunpack.c.h.b16 %v982
  %v1051 = vunpack.c.l.b16 %v983
  %v1052 = vunpack.c.h.b16 %v983
  %v1053 = vunpack.c.l.b16 %v984
  %v1054 = vunpack.c.h.b16 %v984
  %v1055 = vunpack.c.l.b16 %v985
  %v1056 = vunpack.c.h.b16 %v985
  %v1057 = vunpack.c.l.b16 %v986
  %v1058 = vunpack.c.h.b16 %v986
  %v1059 = vunpack.c.l.b16 %v987
  %v1060 = vunpack.c.h.b16 %v987
  %v1061 = vunpack.c.l.b16 %v988
  %v1062 = vunpack.c.h.b16 %v988
  %v1063 = vunpack.c.l.b16 %v989
  %v1064 = vunpack.c.h.b16 %v989
  %v1065 = vpack.c.b16 %v1027, %v1025
  %v1066 = vpack.c.b16 %v1028, %v1026
  %v1067 = vpack.c.b16 %v1031, %v1029
  %v1068 = vpack.c.b16 %v1032, %v1030
  %v1069 = vpack.c.b16 %v1035, %v1033
  %v1070 = vpack.c.b16 %v1036, %v1034
  %v1071 = vpack.c.b16 %v1039, %v1037
  %v1072 = vpack.c.b16 %v1040, %v1038
  %v1073 = vpack.c.b16 %v1043, %v1041
  %v1074 = vpack.c.b16 %v1044, %v1042
  %v1075 = vpack.c.b16 %v1047, %v1045
  %v1076 = vpack.c.b16 %v1048, %v1046
  %v1077 = vpack.c.b16 %v1051, %v1049
  %v1078 = vpack.c.b16 %v1052, %v1050
  %v1079 = vpack.c.b16 %v1055, %v1053
  %v1080 = vpack.c.b16 %v1056, %v1054
  %v1081 = vpack.c.b16 %v1059, %v1057
  %v1082 = vpack.c.b16 %v1060, %v1058
  %v1083 = vpack.c.b16 %v1063, %v1061
  %v1084 = vpack.c.b16 %v1064, %v1062
  %v1106 = vsel %vm191, %v1003, 0
  %1108 = vmatpush.bf16.msra.mxu0 %v1079
  %1109 = vmatpush.bf16.msra.mxu0 %v1077
  %1110 = vmatpush.bf16.msra.mxu0 %v1075
  %1111 = vmatpush.bf16.msra.mxu0 %v1073
  %1112 = vmatpush.bf16.msra.mxu0 %v1071
  %1113 = vmatpush.bf16.msra.mxu0 %v1069
  %1114 = vmatpush.bf16.msra.mxu0 %v1067
  %1115 = vmatpush.bf16.msra.mxu0 %v1065
  %1116 = vmatmul.bf16.gmra.mxu0 %v996
  %v1117 = vpop.f32.mrf.mxu0
  %v1118 = vadd.f32 0.0, %v1117
  %v1119 = vpop.f32.mrf.mxu0
  %1120 = vdwg.mxu0
  %1121 = vmatpush.bf16.msra.mxu0 0
  %1122 = vmatpush.bf16.msra.mxu0 0
  %1123 = vmatpush.bf16.msra.mxu0 0
  %1124 = vmatpush.bf16.msra.mxu0 0
  %1125 = vmatpush.bf16.msra.mxu0 0
  %1126 = vmatpush.bf16.msra.mxu0 0
  %1127 = vmatpush.bf16.msra.mxu0 %v1083
  %1128 = vmatpush.bf16.msra.mxu0 %v1081
  %1129 = vmatmul.bf16.gmra.mxu0 %v1106
  %v1130 = vpop.f32.mrf.mxu0
  %v1131 = vadd.f32 %v1118, %v1130
  %v1132 = vpop.f32.mrf.mxu0
  %1133 = vdwg.mxu0
  %1134 = vmatpush.bf16.msra.mxu0 %v1080
  %1135 = vmatpush.bf16.msra.mxu0 %v1078
  %1136 = vmatpush.bf16.msra.mxu0 %v1076
  %1137 = vmatpush.bf16.msra.mxu0 %v1074
  %1138 = vmatpush.bf16.msra.mxu0 %v1072
  %1139 = vmatpush.bf16.msra.mxu0 %v1070
  %1140 = vmatpush.bf16.msra.mxu0 %v1068
  %1141 = vmatpush.bf16.msra.mxu0 %v1066
  %1142 = vmatmul.bf16.gmra.mxu0 %v996
  %v1143 = vpop.f32.mrf.mxu0
  %v1144 = vadd.f32 0.0, %v1143
  %v1145 = vpop.f32.mrf.mxu0
  %1146 = vdwg.mxu0
  %1147 = vmatpush.bf16.msra.mxu0 0
  %1148 = vmatpush.bf16.msra.mxu0 0
  %1149 = vmatpush.bf16.msra.mxu0 0
  %1150 = vmatpush.bf16.msra.mxu0 0
  %1151 = vmatpush.bf16.msra.mxu0 0
  %1152 = vmatpush.bf16.msra.mxu0 0
  %1153 = vmatpush.bf16.msra.mxu0 %v1084
  %1154 = vmatpush.bf16.msra.mxu0 %v1082
  %1155 = vmatmul.bf16.gmra.mxu0 %v1106
  %v1156 = vpop.f32.mrf.mxu0
  %v1157 = vadd.f32 %v1144, %v1156
  %v1158 = vpop.f32.mrf.mxu0
  %1159 = vdwg.mxu0
  %v1160 = vadd.f32 %v963, %v1131
  %v1161 = vadd.f32 %v964, %v1157
  %s1162 = scalar_lea.vmem %s0, 96
  %v1163 = vld [vmem:[%s1162] sm:$0xf]
  %v1164 = vld [vmem:[%s1162 + $0x8] sm:$0xf]
  %v1165 = vpack.c.bf16 %v1163, %v1163
  %v1166 = vpack.c.bf16 %v1164, %v1164
  %s1167 = scalar_lea.vmem %s1, 960
  %v1168 = vld [vmem:[%s1167] sm:$0xff]
  %v1169 = vld [vmem:[%s1167 + $0x8] sm:$0xff]
  %v1170 = vld [vmem:[%s1167 + $0x10] sm:$0xff]
  %v1171 = vld [vmem:[%s1167 + $0x18] sm:$0xff]
  %v1172 = vld [vmem:[%s1167 + $0x20] sm:$0xff]
  %v1173 = vld [vmem:[%s1167 + $0x28] sm:$0xff]
  %v1174 = vld [vmem:[%s1167 + $0x30] sm:$0xff]
  %v1175 = vld [vmem:[%s1167 + $0x38] sm:$0xff]
  %v1176 = vld [vmem:[%s1167 + $0x40] sm:$0xff]
  %v1177 = vld [vmem:[%s1167 + $0x48] sm:$0xff]
  %v1178 = vld [vmem:[%s1167 + $0x50] sm:$0xff]
  %v1179 = vld [vmem:[%s1167 + $0x58] sm:$0xff]
  %v1180 = vld [vmem:[%s1167 + $0x60] sm:$0xff]
  %v1181 = vld [vmem:[%s1167 + $0x68] sm:$0xff]
  %v1182 = vld [vmem:[%s1167 + $0x70] sm:$0xff]
  %v1183 = vld [vmem:[%s1167 + $0x78] sm:$0xff]
  %v1184 = vld [vmem:[%s1167 + $0x80] sm:$0xff]
  %v1185 = vld [vmem:[%s1167 + $0x88] sm:$0xff]
  %v1186 = vld [vmem:[%s1167 + $0x90] sm:$0xff]
  %v1187 = vld [vmem:[%s1167 + $0x98] sm:$0xff]
  %v1208 = vunpack.c.l.b16 %v1168
  %v1209 = vunpack.c.h.b16 %v1168
  %v1210 = vunpack.c.l.b16 %v1169
  %v1211 = vunpack.c.h.b16 %v1169
  %v1212 = vunpack.c.l.b16 %v1170
  %v1213 = vunpack.c.h.b16 %v1170
  %v1214 = vunpack.c.l.b16 %v1171
  %v1215 = vunpack.c.h.b16 %v1171
  %v1216 = vunpack.c.l.b16 %v1172
  %v1217 = vunpack.c.h.b16 %v1172
  %v1218 = vunpack.c.l.b16 %v1173
  %v1219 = vunpack.c.h.b16 %v1173
  %v1220 = vunpack.c.l.b16 %v1174
  %v1221 = vunpack.c.h.b16 %v1174
  %v1222 = vunpack.c.l.b16 %v1175
  %v1223 = vunpack.c.h.b16 %v1175
  %v1224 = vunpack.c.l.b16 %v1176
  %v1225 = vunpack.c.h.b16 %v1176
  %v1226 = vunpack.c.l.b16 %v1177
  %v1227 = vunpack.c.h.b16 %v1177
  %v1228 = vunpack.c.l.b16 %v1178
  %v1229 = vunpack.c.h.b16 %v1178
  %v1230 = vunpack.c.l.b16 %v1179
  %v1231 = vunpack.c.h.b16 %v1179
  %v1232 = vunpack.c.l.b16 %v1180
  %v1233 = vunpack.c.h.b16 %v1180
  %v1234 = vunpack.c.l.b16 %v1181
  %v1235 = vunpack.c.h.b16 %v1181
  %v1236 = vunpack.c.l.b16 %v1182
  %v1237 = vunpack.c.h.b16 %v1182
  %v1238 = vunpack.c.l.b16 %v1183
  %v1239 = vunpack.c.h.b16 %v1183
  %v1240 = vunpack.c.l.b16 %v1184
  %v1241 = vunpack.c.h.b16 %v1184
  %v1242 = vunpack.c.l.b16 %v1185
  %v1243 = vunpack.c.h.b16 %v1185
  %v1244 = vunpack.c.l.b16 %v1186
  %v1245 = vunpack.c.h.b16 %v1186
  %v1246 = vunpack.c.l.b16 %v1187
  %v1247 = vunpack.c.h.b16 %v1187
  %v1248 = vpack.c.b16 %v1210, %v1208
  %v1249 = vpack.c.b16 %v1211, %v1209
  %v1250 = vpack.c.b16 %v1214, %v1212
  %v1251 = vpack.c.b16 %v1215, %v1213
  %v1252 = vpack.c.b16 %v1218, %v1216
  %v1253 = vpack.c.b16 %v1219, %v1217
  %v1254 = vpack.c.b16 %v1222, %v1220
  %v1255 = vpack.c.b16 %v1223, %v1221
  %v1256 = vpack.c.b16 %v1226, %v1224
  %v1257 = vpack.c.b16 %v1227, %v1225
  %v1258 = vpack.c.b16 %v1230, %v1228
  %v1259 = vpack.c.b16 %v1231, %v1229
  %v1260 = vpack.c.b16 %v1234, %v1232
  %v1261 = vpack.c.b16 %v1235, %v1233
  %v1262 = vpack.c.b16 %v1238, %v1236
  %v1263 = vpack.c.b16 %v1239, %v1237
  %v1264 = vpack.c.b16 %v1242, %v1240
  %v1265 = vpack.c.b16 %v1243, %v1241
  %v1266 = vpack.c.b16 %v1246, %v1244
  %v1267 = vpack.c.b16 %v1247, %v1245
  %v1289 = vsel %vm191, %v1166, 0
  %1291 = vmatpush.bf16.msra.mxu0 %v1262
  %1292 = vmatpush.bf16.msra.mxu0 %v1260
  %1293 = vmatpush.bf16.msra.mxu0 %v1258
  %1294 = vmatpush.bf16.msra.mxu0 %v1256
  %1295 = vmatpush.bf16.msra.mxu0 %v1254
  %1296 = vmatpush.bf16.msra.mxu0 %v1252
  %1297 = vmatpush.bf16.msra.mxu0 %v1250
  %1298 = vmatpush.bf16.msra.mxu0 %v1248
  %1299 = vmatmul.bf16.gmra.mxu0 %v1165
  %v1300 = vpop.f32.mrf.mxu0
  %v1301 = vadd.f32 0.0, %v1300
  %v1302 = vpop.f32.mrf.mxu0
  %1303 = vdwg.mxu0
  %1304 = vmatpush.bf16.msra.mxu0 0
  %1305 = vmatpush.bf16.msra.mxu0 0
  %1306 = vmatpush.bf16.msra.mxu0 0
  %1307 = vmatpush.bf16.msra.mxu0 0
  %1308 = vmatpush.bf16.msra.mxu0 0
  %1309 = vmatpush.bf16.msra.mxu0 0
  %1310 = vmatpush.bf16.msra.mxu0 %v1266
  %1311 = vmatpush.bf16.msra.mxu0 %v1264
  %1312 = vmatmul.bf16.gmra.mxu0 %v1289
  %v1313 = vpop.f32.mrf.mxu0
  %v1314 = vadd.f32 %v1301, %v1313
  %v1315 = vpop.f32.mrf.mxu0
  %1316 = vdwg.mxu0
  %1317 = vmatpush.bf16.msra.mxu0 %v1263
  %1318 = vmatpush.bf16.msra.mxu0 %v1261
  %1319 = vmatpush.bf16.msra.mxu0 %v1259
  %1320 = vmatpush.bf16.msra.mxu0 %v1257
  %1321 = vmatpush.bf16.msra.mxu0 %v1255
  %1322 = vmatpush.bf16.msra.mxu0 %v1253
  %1323 = vmatpush.bf16.msra.mxu0 %v1251
  %1324 = vmatpush.bf16.msra.mxu0 %v1249
  %1325 = vmatmul.bf16.gmra.mxu0 %v1165
  %v1326 = vpop.f32.mrf.mxu0
  %v1327 = vadd.f32 0.0, %v1326
  %v1328 = vpop.f32.mrf.mxu0
  %1329 = vdwg.mxu0
  %1330 = vmatpush.bf16.msra.mxu0 0
  %1331 = vmatpush.bf16.msra.mxu0 0
  %1332 = vmatpush.bf16.msra.mxu0 0
  %1333 = vmatpush.bf16.msra.mxu0 0
  %1334 = vmatpush.bf16.msra.mxu0 0
  %1335 = vmatpush.bf16.msra.mxu0 0
  %1336 = vmatpush.bf16.msra.mxu0 %v1267
  %1337 = vmatpush.bf16.msra.mxu0 %v1265
  %1338 = vmatmul.bf16.gmra.mxu0 %v1289
  %v1339 = vpop.f32.mrf.mxu0
  %v1340 = vadd.f32 %v1327, %v1339
  %v1341 = vpop.f32.mrf.mxu0
  %1342 = vdwg.mxu0
  %v1343 = vadd.f32 %v1160, %v1314
  %v1344 = vadd.f32 %v1161, %v1340
  %v1345 = vld [vmem:[%s1162] sm:$0x1e]
  %v1346 = vld [vmem:[%s1162 + $0x8] sm:$0x1e]
  %v1347 = vpack.c.bf16 %v1345, %v1345
  %v1348 = vpack.c.bf16 %v1346, %v1346
  %s1349 = scalar_lea.vmem %s1, 1120
  %v1350 = vld [vmem:[%s1349] sm:$0xff]
  %v1351 = vld [vmem:[%s1349 + $0x8] sm:$0xff]
  %v1352 = vld [vmem:[%s1349 + $0x10] sm:$0xff]
  %v1353 = vld [vmem:[%s1349 + $0x18] sm:$0xff]
  %v1354 = vld [vmem:[%s1349 + $0x20] sm:$0xff]
  %v1355 = vld [vmem:[%s1349 + $0x28] sm:$0xff]
  %v1356 = vld [vmem:[%s1349 + $0x30] sm:$0xff]
  %v1357 = vld [vmem:[%s1349 + $0x38] sm:$0xff]
  %v1358 = vld [vmem:[%s1349 + $0x40] sm:$0xff]
  %v1359 = vld [vmem:[%s1349 + $0x48] sm:$0xff]
  %v1360 = vld [vmem:[%s1349 + $0x50] sm:$0xff]
  %v1361 = vld [vmem:[%s1349 + $0x58] sm:$0xff]
  %v1362 = vld [vmem:[%s1349 + $0x60] sm:$0xff]
  %v1363 = vld [vmem:[%s1349 + $0x68] sm:$0xff]
  %v1364 = vld [vmem:[%s1349 + $0x70] sm:$0xff]
  %v1365 = vld [vmem:[%s1349 + $0x78] sm:$0xff]
  %v1366 = vld [vmem:[%s1349 + $0x80] sm:$0xff]
  %v1367 = vld [vmem:[%s1349 + $0x88] sm:$0xff]
  %v1368 = vld [vmem:[%s1349 + $0x90] sm:$0xff]
  %v1369 = vld [vmem:[%s1349 + $0x98] sm:$0xff]
  %v1371 = vshrl.u32 %v1347, 16
  %v1373 = vshll.u32 %v1347, 16
  %v1375 = vrot.slane %v1373, 1
  %v1376 = vor.u32 %v1371, %v1375
  %v1378 = vshrl.u32 %v1348, 16
  %v1380 = vshll.u32 %v1348, 16
  %v1382 = vrot.slane %v1380, 1
  %v1383 = vor.u32 %v1378, %v1382
  %v1405 = vunpack.c.l.b16 %v1350
  %v1406 = vunpack.c.h.b16 %v1350
  %v1407 = vunpack.c.l.b16 %v1351
  %v1408 = vunpack.c.h.b16 %v1351
  %v1409 = vunpack.c.l.b16 %v1352
  %v1410 = vunpack.c.h.b16 %v1352
  %v1411 = vunpack.c.l.b16 %v1353
  %v1412 = vunpack.c.h.b16 %v1353
  %v1413 = vunpack.c.l.b16 %v1354
  %v1414 = vunpack.c.h.b16 %v1354
  %v1415 = vunpack.c.l.b16 %v1355
  %v1416 = vunpack.c.h.b16 %v1355
  %v1417 = vunpack.c.l.b16 %v1356
  %v1418 = vunpack.c.h.b16 %v1356
  %v1419 = vunpack.c.l.b16 %v1357
  %v1420 = vunpack.c.h.b16 %v1357
  %v1421 = vunpack.c.l.b16 %v1358
  %v1422 = vunpack.c.h.b16 %v1358
  %v1423 = vunpack.c.l.b16 %v1359
  %v1424 = vunpack.c.h.b16 %v1359
  %v1425 = vunpack.c.l.b16 %v1360
  %v1426 = vunpack.c.h.b16 %v1360
  %v1427 = vunpack.c.l.b16 %v1361
  %v1428 = vunpack.c.h.b16 %v1361
  %v1429 = vunpack.c.l.b16 %v1362
  %v1430 = vunpack.c.h.b16 %v1362
  %v1431 = vunpack.c.l.b16 %v1363
  %v1432 = vunpack.c.h.b16 %v1363
  %v1433 = vunpack.c.l.b16 %v1364
  %v1434 = vunpack.c.h.b16 %v1364
  %v1435 = vunpack.c.l.b16 %v1365
  %v1436 = vunpack.c.h.b16 %v1365
  %v1437 = vunpack.c.l.b16 %v1366
  %v1438 = vunpack.c.h.b16 %v1366
  %v1439 = vunpack.c.l.b16 %v1367
  %v1440 = vunpack.c.h.b16 %v1367
  %v1441 = vunpack.c.l.b16 %v1368
  %v1442 = vunpack.c.h.b16 %v1368
  %v1443 = vunpack.c.l.b16 %v1369
  %v1444 = vunpack.c.h.b16 %v1369
  %v1445 = vpack.c.b16 %v1407, %v1405
  %v1446 = vpack.c.b16 %v1408, %v1406
  %v1447 = vpack.c.b16 %v1411, %v1409
  %v1448 = vpack.c.b16 %v1412, %v1410
  %v1449 = vpack.c.b16 %v1415, %v1413
  %v1450 = vpack.c.b16 %v1416, %v1414
  %v1451 = vpack.c.b16 %v1419, %v1417
  %v1452 = vpack.c.b16 %v1420, %v1418
  %v1453 = vpack.c.b16 %v1423, %v1421
  %v1454 = vpack.c.b16 %v1424, %v1422
  %v1455 = vpack.c.b16 %v1427, %v1425
  %v1456 = vpack.c.b16 %v1428, %v1426
  %v1457 = vpack.c.b16 %v1431, %v1429
  %v1458 = vpack.c.b16 %v1432, %v1430
  %v1459 = vpack.c.b16 %v1435, %v1433
  %v1460 = vpack.c.b16 %v1436, %v1434
  %v1461 = vpack.c.b16 %v1439, %v1437
  %v1462 = vpack.c.b16 %v1440, %v1438
  %v1463 = vpack.c.b16 %v1443, %v1441
  %v1464 = vpack.c.b16 %v1444, %v1442
  %v1486 = vsel %vm191, %v1383, 0
  %1488 = vmatpush.bf16.msra.mxu0 %v1459
  %1489 = vmatpush.bf16.msra.mxu0 %v1457
  %1490 = vmatpush.bf16.msra.mxu0 %v1455
  %1491 = vmatpush.bf16.msra.mxu0 %v1453
  %1492 = vmatpush.bf16.msra.mxu0 %v1451
  %1493 = vmatpush.bf16.msra.mxu0 %v1449
  %1494 = vmatpush.bf16.msra.mxu0 %v1447
  %1495 = vmatpush.bf16.msra.mxu0 %v1445
  %1496 = vmatmul.bf16.gmra.mxu0 %v1376
  %v1497 = vpop.f32.mrf.mxu0
  %v1498 = vadd.f32 0.0, %v1497
  %v1499 = vpop.f32.mrf.mxu0
  %1500 = vdwg.mxu0
  %1501 = vmatpush.bf16.msra.mxu0 0
  %1502 = vmatpush.bf16.msra.mxu0 0
  %1503 = vmatpush.bf16.msra.mxu0 0
  %1504 = vmatpush.bf16.msra.mxu0 0
  %1505 = vmatpush.bf16.msra.mxu0 0
  %1506 = vmatpush.bf16.msra.mxu0 0
  %1507 = vmatpush.bf16.msra.mxu0 %v1463
  %1508 = vmatpush.bf16.msra.mxu0 %v1461
  %1509 = vmatmul.bf16.gmra.mxu0 %v1486
  %v1510 = vpop.f32.mrf.mxu0
  %v1511 = vadd.f32 %v1498, %v1510
  %v1512 = vpop.f32.mrf.mxu0
  %1513 = vdwg.mxu0
  %1514 = vmatpush.bf16.msra.mxu0 %v1460
  %1515 = vmatpush.bf16.msra.mxu0 %v1458
  %1516 = vmatpush.bf16.msra.mxu0 %v1456
  %1517 = vmatpush.bf16.msra.mxu0 %v1454
  %1518 = vmatpush.bf16.msra.mxu0 %v1452
  %1519 = vmatpush.bf16.msra.mxu0 %v1450
  %1520 = vmatpush.bf16.msra.mxu0 %v1448
  %1521 = vmatpush.bf16.msra.mxu0 %v1446
  %1522 = vmatmul.bf16.gmra.mxu0 %v1376
  %v1523 = vpop.f32.mrf.mxu0
  %v1524 = vadd.f32 0.0, %v1523
  %v1525 = vpop.f32.mrf.mxu0
  %1526 = vdwg.mxu0
  %1527 = vmatpush.bf16.msra.mxu0 0
  %1528 = vmatpush.bf16.msra.mxu0 0
  %1529 = vmatpush.bf16.msra.mxu0 0
  %1530 = vmatpush.bf16.msra.mxu0 0
  %1531 = vmatpush.bf16.msra.mxu0 0
  %1532 = vmatpush.bf16.msra.mxu0 0
  %1533 = vmatpush.bf16.msra.mxu0 %v1464
  %1534 = vmatpush.bf16.msra.mxu0 %v1462
  %1535 = vmatmul.bf16.gmra.mxu0 %v1486
  %v1536 = vpop.f32.mrf.mxu0
  %v1537 = vadd.f32 %v1524, %v1536
  %v1538 = vpop.f32.mrf.mxu0
  %1539 = vdwg.mxu0
  %v1540 = vadd.f32 %v1343, %v1511
  %v1541 = vadd.f32 %v1344, %v1537
  %v1542 = vld [vmem:[%s2] sm:$0x3]
  %v1544 = vperm.slane %v1542, 0
  %v1545 = vperm.slane %v1542, 1
  %v1548 = vadd.f32 %v1540, %v1544
  %v1549 = vadd.f32 %v1541, %v1545
  %s1550 = scalar_lea.vmem %s0, 16
  %v1551 = vld [vmem:[%s1550] sm:$0xf]
  %v1552 = vld [vmem:[%s1550 + $0x8] sm:$0xf]
  %v1553 = vpack.c.bf16 %v1551, %v1551
  %v1554 = vpack.c.bf16 %v1552, %v1552
  %v1555 = vld [vmem:[%s1550] sm:$0x1e]
  %v1556 = vld [vmem:[%s1550 + $0x8] sm:$0x1e]
  %v1557 = vpack.c.bf16 %v1555, %v1555
  %v1558 = vpack.c.bf16 %v1556, %v1556
  %v1560 = vshrl.u32 %v1557, 16
  %v1562 = vshll.u32 %v1557, 16
  %v1564 = vrot.slane %v1562, 1
  %v1565 = vor.u32 %v1560, %v1564
  %v1567 = vshrl.u32 %v1558, 16
  %v1569 = vshll.u32 %v1558, 16
  %v1571 = vrot.slane %v1569, 1
  %v1572 = vor.u32 %v1567, %v1571
  %v1575 = vsel %vm191, %v1572, 0
  %1577 = vmatpush.bf16.msra.mxu0 %v165
  %1578 = vmatpush.bf16.msra.mxu0 %v163
  %1579 = vmatpush.bf16.msra.mxu0 %v161
  %1580 = vmatpush.bf16.msra.mxu0 %v159
  %1581 = vmatpush.bf16.msra.mxu0 %v157
  %1582 = vmatpush.bf16.msra.mxu0 %v155
  %1583 = vmatpush.bf16.msra.mxu0 %v153
  %1584 = vmatpush.bf16.msra.mxu0 %v151
  %1585 = vmatmul.bf16.gmra.mxu0 %v1565
  %v1586 = vpop.f32.mrf.mxu0
  %v1587 = vadd.f32 0.0, %v1586
  %v1588 = vpop.f32.mrf.mxu0
  %1589 = vdwg.mxu0
  %1590 = vmatpush.bf16.msra.mxu0 0
  %1591 = vmatpush.bf16.msra.mxu0 0
  %1592 = vmatpush.bf16.msra.mxu0 0
  %1593 = vmatpush.bf16.msra.mxu0 0
  %1594 = vmatpush.bf16.msra.mxu0 0
  %1595 = vmatpush.bf16.msra.mxu0 0
  %1596 = vmatpush.bf16.msra.mxu0 %v169
  %1597 = vmatpush.bf16.msra.mxu0 %v167
  %1598 = vmatmul.bf16.gmra.mxu0 %v1575
  %v1599 = vpop.f32.mrf.mxu0
  %v1600 = vadd.f32 %v1587, %v1599
  %v1601 = vpop.f32.mrf.mxu0
  %1602 = vdwg.mxu0
  %1603 = vmatpush.bf16.msra.mxu0 %v166
  %1604 = vmatpush.bf16.msra.mxu0 %v164
  %1605 = vmatpush.bf16.msra.mxu0 %v162
  %1606 = vmatpush.bf16.msra.mxu0 %v160
  %1607 = vmatpush.bf16.msra.mxu0 %v158
  %1608 = vmatpush.bf16.msra.mxu0 %v156
  %1609 = vmatpush.bf16.msra.mxu0 %v154
  %1610 = vmatpush.bf16.msra.mxu0 %v152
  %1611 = vmatmul.bf16.gmra.mxu0 %v1565
  %v1612 = vpop.f32.mrf.mxu0
  %v1613 = vadd.f32 0.0, %v1612
  %v1614 = vpop.f32.mrf.mxu0
  %1615 = vdwg.mxu0
  %1616 = vmatpush.bf16.msra.mxu0 0
  %1617 = vmatpush.bf16.msra.mxu0 0
  %1618 = vmatpush.bf16.msra.mxu0 0
  %1619 = vmatpush.bf16.msra.mxu0 0
  %1620 = vmatpush.bf16.msra.mxu0 0
  %1621 = vmatpush.bf16.msra.mxu0 0
  %1622 = vmatpush.bf16.msra.mxu0 %v170
  %1623 = vmatpush.bf16.msra.mxu0 %v168
  %1624 = vmatmul.bf16.gmra.mxu0 %v1575
  %v1625 = vpop.f32.mrf.mxu0
  %v1626 = vadd.f32 %v1613, %v1625
  %v1627 = vpop.f32.mrf.mxu0
  %1628 = vdwg.mxu0
  %v1630 = vsel %vm191, %v1554, 0
  %1632 = vmatpush.bf16.msra.mxu0 %v321
  %1633 = vmatpush.bf16.msra.mxu0 %v319
  %1634 = vmatpush.bf16.msra.mxu0 %v317
  %1635 = vmatpush.bf16.msra.mxu0 %v315
  %1636 = vmatpush.bf16.msra.mxu0 %v313
  %1637 = vmatpush.bf16.msra.mxu0 %v311
  %1638 = vmatpush.bf16.msra.mxu0 %v309
  %1639 = vmatpush.bf16.msra.mxu0 %v307
  %1640 = vmatmul.bf16.gmra.mxu0 %v1553
  %v1641 = vpop.f32.mrf.mxu0
  %v1642 = vadd.f32 %v1600, %v1641
  %v1643 = vpop.f32.mrf.mxu0
  %1644 = vdwg.mxu0
  %1645 = vmatpush.bf16.msra.mxu0 0
  %1646 = vmatpush.bf16.msra.mxu0 0
  %1647 = vmatpush.bf16.msra.mxu0 0
  %1648 = vmatpush.bf16.msra.mxu0 0
  %1649 = vmatpush.bf16.msra.mxu0 0
  %1650 = vmatpush.bf16.msra.mxu0 0
  %1651 = vmatpush.bf16.msra.mxu0 %v325
  %1652 = vmatpush.bf16.msra.mxu0 %v323
  %1653 = vmatmul.bf16.gmra.mxu0 %v1630
  %v1654 = vpop.f32.mrf.mxu0
  %v1655 = vadd.f32 %v1642, %v1654
  %v1656 = vpop.f32.mrf.mxu0
  %1657 = vdwg.mxu0
  %1658 = vmatpush.bf16.msra.mxu0 %v322
  %1659 = vmatpush.bf16.msra.mxu0 %v320
  %1660 = vmatpush.bf16.msra.mxu0 %v318
  %1661 = vmatpush.bf16.msra.mxu0 %v316
  %1662 = vmatpush.bf16.msra.mxu0 %v314
  %1663 = vmatpush.bf16.msra.mxu0 %v312
  %1664 = vmatpush.bf16.msra.mxu0 %v310
  %1665 = vmatpush.bf16.msra.mxu0 %v308
  %1666 = vmatmul.bf16.gmra.mxu0 %v1553
  %v1667 = vpop.f32.mrf.mxu0
  %v1668 = vadd.f32 %v1626, %v1667
  %v1669 = vpop.f32.mrf.mxu0
  %1670 = vdwg.mxu0
  %1671 = vmatpush.bf16.msra.mxu0 0
  %1672 = vmatpush.bf16.msra.mxu0 0
  %1673 = vmatpush.bf16.msra.mxu0 0
  %1674 = vmatpush.bf16.msra.mxu0 0
  %1675 = vmatpush.bf16.msra.mxu0 0
  %1676 = vmatpush.bf16.msra.mxu0 0
  %1677 = vmatpush.bf16.msra.mxu0 %v326
  %1678 = vmatpush.bf16.msra.mxu0 %v324
  %1679 = vmatmul.bf16.gmra.mxu0 %v1630
  %v1680 = vpop.f32.mrf.mxu0
  %v1681 = vadd.f32 %v1668, %v1680
  %v1682 = vpop.f32.mrf.mxu0
  %1683 = vdwg.mxu0
  %s1684 = scalar_lea.vmem %s0, 48
  %v1685 = vld [vmem:[%s1684] sm:$0xf]
  %v1686 = vld [vmem:[%s1684 + $0x8] sm:$0xf]
  %v1687 = vpack.c.bf16 %v1685, %v1685
  %v1688 = vpack.c.bf16 %v1686, %v1686
  %v1690 = vsel %vm191, %v1688, 0
  %1692 = vmatpush.bf16.msra.mxu0 %v502
  %1693 = vmatpush.bf16.msra.mxu0 %v500
  %1694 = vmatpush.bf16.msra.mxu0 %v498
  %1695 = vmatpush.bf16.msra.mxu0 %v496
  %1696 = vmatpush.bf16.msra.mxu0 %v494
  %1697 = vmatpush.bf16.msra.mxu0 %v492
  %1698 = vmatpush.bf16.msra.mxu0 %v490
  %1699 = vmatpush.bf16.msra.mxu0 %v488
  %1700 = vmatmul.bf16.gmra.mxu0 %v1687
  %v1701 = vpop.f32.mrf.mxu0
  %v1702 = vadd.f32 0.0, %v1701
  %v1703 = vpop.f32.mrf.mxu0
  %1704 = vdwg.mxu0
  %1705 = vmatpush.bf16.msra.mxu0 0
  %1706 = vmatpush.bf16.msra.mxu0 0
  %1707 = vmatpush.bf16.msra.mxu0 0
  %1708 = vmatpush.bf16.msra.mxu0 0
  %1709 = vmatpush.bf16.msra.mxu0 0
  %1710 = vmatpush.bf16.msra.mxu0 0
  %1711 = vmatpush.bf16.msra.mxu0 %v506
  %1712 = vmatpush.bf16.msra.mxu0 %v504
  %1713 = vmatmul.bf16.gmra.mxu0 %v1690
  %v1714 = vpop.f32.mrf.mxu0
  %v1715 = vadd.f32 %v1702, %v1714
  %v1716 = vpop.f32.mrf.mxu0
  %1717 = vdwg.mxu0
  %1718 = vmatpush.bf16.msra.mxu0 %v503
  %1719 = vmatpush.bf16.msra.mxu0 %v501
  %1720 = vmatpush.bf16.msra.mxu0 %v499
  %1721 = vmatpush.bf16.msra.mxu0 %v497
  %1722 = vmatpush.bf16.msra.mxu0 %v495
  %1723 = vmatpush.bf16.msra.mxu0 %v493
  %1724 = vmatpush.bf16.msra.mxu0 %v491
  %1725 = vmatpush.bf16.msra.mxu0 %v489
  %1726 = vmatmul.bf16.gmra.mxu0 %v1687
  %v1727 = vpop.f32.mrf.mxu0
  %v1728 = vadd.f32 0.0, %v1727
  %v1729 = vpop.f32.mrf.mxu0
  %1730 = vdwg.mxu0
  %1731 = vmatpush.bf16.msra.mxu0 0
  %1732 = vmatpush.bf16.msra.mxu0 0
  %1733 = vmatpush.bf16.msra.mxu0 0
  %1734 = vmatpush.bf16.msra.mxu0 0
  %1735 = vmatpush.bf16.msra.mxu0 0
  %1736 = vmatpush.bf16.msra.mxu0 0
  %1737 = vmatpush.bf16.msra.mxu0 %v507
  %1738 = vmatpush.bf16.msra.mxu0 %v505
  %1739 = vmatmul.bf16.gmra.mxu0 %v1690
  %v1740 = vpop.f32.mrf.mxu0
  %v1741 = vadd.f32 %v1728, %v1740
  %v1742 = vpop.f32.mrf.mxu0
  %1743 = vdwg.mxu0
  %v1744 = vadd.f32 %v1655, %v1715
  %v1745 = vadd.f32 %v1681, %v1741
  %v1746 = vld [vmem:[%s1684] sm:$0x1e]
  %v1747 = vld [vmem:[%s1684 + $0x8] sm:$0x1e]
  %v1748 = vpack.c.bf16 %v1746, %v1746
  %v1749 = vpack.c.bf16 %v1747, %v1747
  %v1751 = vshrl.u32 %v1748, 16
  %v1753 = vshll.u32 %v1748, 16
  %v1755 = vrot.slane %v1753, 1
  %v1756 = vor.u32 %v1751, %v1755
  %v1758 = vshrl.u32 %v1749, 16
  %v1760 = vshll.u32 %v1749, 16
  %v1762 = vrot.slane %v1760, 1
  %v1763 = vor.u32 %v1758, %v1762
  %v1766 = vsel %vm191, %v1763, 0
  %1768 = vmatpush.bf16.msra.mxu0 %v699
  %1769 = vmatpush.bf16.msra.mxu0 %v697
  %1770 = vmatpush.bf16.msra.mxu0 %v695
  %1771 = vmatpush.bf16.msra.mxu0 %v693
  %1772 = vmatpush.bf16.msra.mxu0 %v691
  %1773 = vmatpush.bf16.msra.mxu0 %v689
  %1774 = vmatpush.bf16.msra.mxu0 %v687
  %1775 = vmatpush.bf16.msra.mxu0 %v685
  %1776 = vmatmul.bf16.gmra.mxu0 %v1756
  %v1777 = vpop.f32.mrf.mxu0
  %v1778 = vadd.f32 0.0, %v1777
  %v1779 = vpop.f32.mrf.mxu0
  %1780 = vdwg.mxu0
  %1781 = vmatpush.bf16.msra.mxu0 0
  %1782 = vmatpush.bf16.msra.mxu0 0
  %1783 = vmatpush.bf16.msra.mxu0 0
  %1784 = vmatpush.bf16.msra.mxu0 0
  %1785 = vmatpush.bf16.msra.mxu0 0
  %1786 = vmatpush.bf16.msra.mxu0 0
  %1787 = vmatpush.bf16.msra.mxu0 %v703
  %1788 = vmatpush.bf16.msra.mxu0 %v701
  %1789 = vmatmul.bf16.gmra.mxu0 %v1766
  %v1790 = vpop.f32.mrf.mxu0
  %v1791 = vadd.f32 %v1778, %v1790
  %v1792 = vpop.f32.mrf.mxu0
  %1793 = vdwg.mxu0
  %1794 = vmatpush.bf16.msra.mxu0 %v700
  %1795 = vmatpush.bf16.msra.mxu0 %v698
  %1796 = vmatpush.bf16.msra.mxu0 %v696
  %1797 = vmatpush.bf16.msra.mxu0 %v694
  %1798 = vmatpush.bf16.msra.mxu0 %v692
  %1799 = vmatpush.bf16.msra.mxu0 %v690
  %1800 = vmatpush.bf16.msra.mxu0 %v688
  %1801 = vmatpush.bf16.msra.mxu0 %v686
  %1802 = vmatmul.bf16.gmra.mxu0 %v1756
  %v1803 = vpop.f32.mrf.mxu0
  %v1804 = vadd.f32 0.0, %v1803
  %v1805 = vpop.f32.mrf.mxu0
  %1806 = vdwg.mxu0
  %1807 = vmatpush.bf16.msra.mxu0 0
  %1808 = vmatpush.bf16.msra.mxu0 0
  %1809 = vmatpush.bf16.msra.mxu0 0
  %1810 = vmatpush.bf16.msra.mxu0 0
  %1811 = vmatpush.bf16.msra.mxu0 0
  %1812 = vmatpush.bf16.msra.mxu0 0
  %1813 = vmatpush.bf16.msra.mxu0 %v704
  %1814 = vmatpush.bf16.msra.mxu0 %v702
  %1815 = vmatmul.bf16.gmra.mxu0 %v1766
  %v1816 = vpop.f32.mrf.mxu0
  %v1817 = vadd.f32 %v1804, %v1816
  %v1818 = vpop.f32.mrf.mxu0
  %1819 = vdwg.mxu0
  %v1820 = vadd.f32 %v1744, %v1791
  %v1821 = vadd.f32 %v1745, %v1817
  %s1822 = scalar_lea.vmem %s0, 80
  %v1823 = vld [vmem:[%s1822] sm:$0xf]
  %v1824 = vld [vmem:[%s1822 + $0x8] sm:$0xf]
  %v1825 = vpack.c.bf16 %v1823, %v1823
  %v1826 = vpack.c.bf16 %v1824, %v1824
  %v1828 = vsel %vm191, %v1826, 0
  %1830 = vmatpush.bf16.msra.mxu0 %v882
  %1831 = vmatpush.bf16.msra.mxu0 %v880
  %1832 = vmatpush.bf16.msra.mxu0 %v878
  %1833 = vmatpush.bf16.msra.mxu0 %v876
  %1834 = vmatpush.bf16.msra.mxu0 %v874
  %1835 = vmatpush.bf16.msra.mxu0 %v872
  %1836 = vmatpush.bf16.msra.mxu0 %v870
  %1837 = vmatpush.bf16.msra.mxu0 %v868
  %1838 = vmatmul.bf16.gmra.mxu0 %v1825
  %v1839 = vpop.f32.mrf.mxu0
  %v1840 = vadd.f32 0.0, %v1839
  %v1841 = vpop.f32.mrf.mxu0
  %1842 = vdwg.mxu0
  %1843 = vmatpush.bf16.msra.mxu0 0
  %1844 = vmatpush.bf16.msra.mxu0 0
  %1845 = vmatpush.bf16.msra.mxu0 0
  %1846 = vmatpush.bf16.msra.mxu0 0
  %1847 = vmatpush.bf16.msra.mxu0 0
  %1848 = vmatpush.bf16.msra.mxu0 0
  %1849 = vmatpush.bf16.msra.mxu0 %v886
  %1850 = vmatpush.bf16.msra.mxu0 %v884
  %1851 = vmatmul.bf16.gmra.mxu0 %v1828
  %v1852 = vpop.f32.mrf.mxu0
  %v1853 = vadd.f32 %v1840, %v1852
  %v1854 = vpop.f32.mrf.mxu0
  %1855 = vdwg.mxu0
  %1856 = vmatpush.bf16.msra.mxu0 %v883
  %1857 = vmatpush.bf16.msra.mxu0 %v881
  %1858 = vmatpush.bf16.msra.mxu0 %v879
  %1859 = vmatpush.bf16.msra.mxu0 %v877
  %1860 = vmatpush.bf16.msra.mxu0 %v875
  %1861 = vmatpush.bf16.msra.mxu0 %v873
  %1862 = vmatpush.bf16.msra.mxu0 %v871
  %1863 = vmatpush.bf16.msra.mxu0 %v869
  %1864 = vmatmul.bf16.gmra.mxu0 %v1825
  %v1865 = vpop.f32.mrf.mxu0
  %v1866 = vadd.f32 0.0, %v1865
  %v1867 = vpop.f32.mrf.mxu0
  %1868 = vdwg.mxu0
  %1869 = vmatpush.bf16.msra.mxu0 0
  %1870 = vmatpush.bf16.msra.mxu0 0
  %1871 = vmatpush.bf16.msra.mxu0 0
  %1872 = vmatpush.bf16.msra.mxu0 0
  %1873 = vmatpush.bf16.msra.mxu0 0
  %1874 = vmatpush.bf16.msra.mxu0 0
  %1875 = vmatpush.bf16.msra.mxu0 %v887
  %1876 = vmatpush.bf16.msra.mxu0 %v885
  %1877 = vmatmul.bf16.gmra.mxu0 %v1828
  %v1878 = vpop.f32.mrf.mxu0
  %v1879 = vadd.f32 %v1866, %v1878
  %v1880 = vpop.f32.mrf.mxu0
  %1881 = vdwg.mxu0
  %v1882 = vadd.f32 %v1820, %v1853
  %v1883 = vadd.f32 %v1821, %v1879
  %v1884 = vld [vmem:[%s1822] sm:$0x1e]
  %v1885 = vld [vmem:[%s1822 + $0x8] sm:$0x1e]
  %v1886 = vpack.c.bf16 %v1884, %v1884
  %v1887 = vpack.c.bf16 %v1885, %v1885
  %v1889 = vshrl.u32 %v1886, 16
  %v1891 = vshll.u32 %v1886, 16
  %v1893 = vrot.slane %v1891, 1
  %v1894 = vor.u32 %v1889, %v1893
  %v1896 = vshrl.u32 %v1887, 16
  %v1898 = vshll.u32 %v1887, 16
  %v1900 = vrot.slane %v1898, 1
  %v1901 = vor.u32 %v1896, %v1900
  %v1904 = vsel %vm191, %v1901, 0
  %1906 = vmatpush.bf16.msra.mxu0 %v1079
  %1907 = vmatpush.bf16.msra.mxu0 %v1077
  %1908 = vmatpush.bf16.msra.mxu0 %v1075
  %1909 = vmatpush.bf16.msra.mxu0 %v1073
  %1910 = vmatpush.bf16.msra.mxu0 %v1071
  %1911 = vmatpush.bf16.msra.mxu0 %v1069
  %1912 = vmatpush.bf16.msra.mxu0 %v1067
  %1913 = vmatpush.bf16.msra.mxu0 %v1065
  %1914 = vmatmul.bf16.gmra.mxu0 %v1894
  %v1915 = vpop.f32.mrf.mxu0
  %v1916 = vadd.f32 0.0, %v1915
  %v1917 = vpop.f32.mrf.mxu0
  %1918 = vdwg.mxu0
  %1919 = vmatpush.bf16.msra.mxu0 0
  %1920 = vmatpush.bf16.msra.mxu0 0
  %1921 = vmatpush.bf16.msra.mxu0 0
  %1922 = vmatpush.bf16.msra.mxu0 0
  %1923 = vmatpush.bf16.msra.mxu0 0
  %1924 = vmatpush.bf16.msra.mxu0 0
  %1925 = vmatpush.bf16.msra.mxu0 %v1083
  %1926 = vmatpush.bf16.msra.mxu0 %v1081
  %1927 = vmatmul.bf16.gmra.mxu0 %v1904
  %v1928 = vpop.f32.mrf.mxu0
  %v1929 = vadd.f32 %v1916, %v1928
  %v1930 = vpop.f32.mrf.mxu0
  %1931 = vdwg.mxu0
  %1932 = vmatpush.bf16.msra.mxu0 %v1080
  %1933 = vmatpush.bf16.msra.mxu0 %v1078
  %1934 = vmatpush.bf16.msra.mxu0 %v1076
  %1935 = vmatpush.bf16.msra.mxu0 %v1074
  %1936 = vmatpush.bf16.msra.mxu0 %v1072
  %1937 = vmatpush.bf16.msra.mxu0 %v1070
  %1938 = vmatpush.bf16.msra.mxu0 %v1068
  %1939 = vmatpush.bf16.msra.mxu0 %v1066
  %1940 = vmatmul.bf16.gmra.mxu0 %v1894
  %v1941 = vpop.f32.mrf.mxu0
  %v1942 = vadd.f32 0.0, %v1941
  %v1943 = vpop.f32.mrf.mxu0
  %1944 = vdwg.mxu0
  %1945 = vmatpush.bf16.msra.mxu0 0
  %1946 = vmatpush.bf16.msra.mxu0 0
  %1947 = vmatpush.bf16.msra.mxu0 0
  %1948 = vmatpush.bf16.msra.mxu0 0
  %1949 = vmatpush.bf16.msra.mxu0 0
  %1950 = vmatpush.bf16.msra.mxu0 0
  %1951 = vmatpush.bf16.msra.mxu0 %v1084
  %1952 = vmatpush.bf16.msra.mxu0 %v1082
  %1953 = vmatmul.bf16.gmra.mxu0 %v1904
  %v1954 = vpop.f32.mrf.mxu0
  %v1955 = vadd.f32 %v1942, %v1954
  %v1956 = vpop.f32.mrf.mxu0
  %1957 = vdwg.mxu0
  %v1958 = vadd.f32 %v1882, %v1929
  %v1959 = vadd.f32 %v1883, %v1955
  %s1960 = scalar_lea.vmem %s0, 112
  %v1961 = vld [vmem:[%s1960] sm:$0xf]
  %v1962 = vld [vmem:[%s1960 + $0x8] sm:$0xf]
  %v1963 = vpack.c.bf16 %v1961, %v1961
  %v1964 = vpack.c.bf16 %v1962, %v1962
  %v1966 = vsel %vm191, %v1964, 0
  %1968 = vmatpush.bf16.msra.mxu0 %v1262
  %1969 = vmatpush.bf16.msra.mxu0 %v1260
  %1970 = vmatpush.bf16.msra.mxu0 %v1258
  %1971 = vmatpush.bf16.msra.mxu0 %v1256
  %1972 = vmatpush.bf16.msra.mxu0 %v1254
  %1973 = vmatpush.bf16.msra.mxu0 %v1252
  %1974 = vmatpush.bf16.msra.mxu0 %v1250
  %1975 = vmatpush.bf16.msra.mxu0 %v1248
  %1976 = vmatmul.bf16.gmra.mxu0 %v1963
  %v1977 = vpop.f32.mrf.mxu0
  %v1978 = vadd.f32 0.0, %v1977
  %v1979 = vpop.f32.mrf.mxu0
  %1980 = vdwg.mxu0
  %1981 = vmatpush.bf16.msra.mxu0 0
  %1982 = vmatpush.bf16.msra.mxu0 0
  %1983 = vmatpush.bf16.msra.mxu0 0
  %1984 = vmatpush.bf16.msra.mxu0 0
  %1985 = vmatpush.bf16.msra.mxu0 0
  %1986 = vmatpush.bf16.msra.mxu0 0
  %1987 = vmatpush.bf16.msra.mxu0 %v1266
  %1988 = vmatpush.bf16.msra.mxu0 %v1264
  %1989 = vmatmul.bf16.gmra.mxu0 %v1966
  %v1990 = vpop.f32.mrf.mxu0
  %v1991 = vadd.f32 %v1978, %v1990
  %v1992 = vpop.f32.mrf.mxu0
  %1993 = vdwg.mxu0
  %1994 = vmatpush.bf16.msra.mxu0 %v1263
  %1995 = vmatpush.bf16.msra.mxu0 %v1261
  %1996 = vmatpush.bf16.msra.mxu0 %v1259
  %1997 = vmatpush.bf16.msra.mxu0 %v1257
  %1998 = vmatpush.bf16.msra.mxu0 %v1255
  %1999 = vmatpush.bf16.msra.mxu0 %v1253
  %2000 = vmatpush.bf16.msra.mxu0 %v1251
  %2001 = vmatpush.bf16.msra.mxu0 %v1249
  %2002 = vmatmul.bf16.gmra.mxu0 %v1963
  %v2003 = vpop.f32.mrf.mxu0
  %v2004 = vadd.f32 0.0, %v2003
  %v2005 = vpop.f32.mrf.mxu0
  %2006 = vdwg.mxu0
  %2007 = vmatpush.bf16.msra.mxu0 0
  %2008 = vmatpush.bf16.msra.mxu0 0
  %2009 = vmatpush.bf16.msra.mxu0 0
  %2010 = vmatpush.bf16.msra.mxu0 0
  %2011 = vmatpush.bf16.msra.mxu0 0
  %2012 = vmatpush.bf16.msra.mxu0 0
  %2013 = vmatpush.bf16.msra.mxu0 %v1267
  %2014 = vmatpush.bf16.msra.mxu0 %v1265
  %2015 = vmatmul.bf16.gmra.mxu0 %v1966
  %v2016 = vpop.f32.mrf.mxu0
  %v2017 = vadd.f32 %v2004, %v2016
  %v2018 = vpop.f32.mrf.mxu0
  %2019 = vdwg.mxu0
  %v2020 = vadd.f32 %v1958, %v1991
  %v2021 = vadd.f32 %v1959, %v2017
  %v2022 = vld [vmem:[%s1960] sm:$0x1e]
  %v2023 = vld [vmem:[%s1960 + $0x8] sm:$0x1e]
  %v2024 = vpack.c.bf16 %v2022, %v2022
  %v2025 = vpack.c.bf16 %v2023, %v2023
  %v2027 = vshrl.u32 %v2024, 16
  %v2029 = vshll.u32 %v2024, 16
  %v2031 = vrot.slane %v2029, 1
  %v2032 = vor.u32 %v2027, %v2031
  %v2034 = vshrl.u32 %v2025, 16
  %v2036 = vshll.u32 %v2025, 16
  %v2038 = vrot.slane %v2036, 1
  %v2039 = vor.u32 %v2034, %v2038
  %v2042 = vsel %vm191, %v2039, 0
  %2044 = vmatpush.bf16.msra.mxu0 %v1459
  %2045 = vmatpush.bf16.msra.mxu0 %v1457
  %2046 = vmatpush.bf16.msra.mxu0 %v1455
  %2047 = vmatpush.bf16.msra.mxu0 %v1453
  %2048 = vmatpush.bf16.msra.mxu0 %v1451
  %2049 = vmatpush.bf16.msra.mxu0 %v1449
  %2050 = vmatpush.bf16.msra.mxu0 %v1447
  %2051 = vmatpush.bf16.msra.mxu0 %v1445
  %2052 = vmatmul.bf16.gmra.mxu0 %v2032
  %v2053 = vpop.f32.mrf.mxu0
  %v2054 = vadd.f32 0.0, %v2053
  %v2055 = vpop.f32.mrf.mxu0
  %2056 = vdwg.mxu0
  %2057 = vmatpush.bf16.msra.mxu0 0
  %2058 = vmatpush.bf16.msra.mxu0 0
  %2059 = vmatpush.bf16.msra.mxu0 0
  %2060 = vmatpush.bf16.msra.mxu0 0
  %2061 = vmatpush.bf16.msra.mxu0 0
  %2062 = vmatpush.bf16.msra.mxu0 0
  %2063 = vmatpush.bf16.msra.mxu0 %v1463
  %2064 = vmatpush.bf16.msra.mxu0 %v1461
  %2065 = vmatmul.bf16.gmra.mxu0 %v2042
  %v2066 = vpop.f32.mrf.mxu0
  %v2067 = vadd.f32 %v2054, %v2066
  %v2068 = vpop.f32.mrf.mxu0
  %2069 = vdwg.mxu0
  %2070 = vmatpush.bf16.msra.mxu0 %v1460
  %2071 = vmatpush.bf16.msra.mxu0 %v1458
  %2072 = vmatpush.bf16.msra.mxu0 %v1456
  %2073 = vmatpush.bf16.msra.mxu0 %v1454
  %2074 = vmatpush.bf16.msra.mxu0 %v1452
  %2075 = vmatpush.bf16.msra.mxu0 %v1450
  %2076 = vmatpush.bf16.msra.mxu0 %v1448
  %2077 = vmatpush.bf16.msra.mxu0 %v1446
  %2078 = vmatmul.bf16.gmra.mxu0 %v2032
  %v2079 = vpop.f32.mrf.mxu0
  %v2080 = vadd.f32 0.0, %v2079
  %v2081 = vpop.f32.mrf.mxu0
  %2082 = vdwg.mxu0
  %2083 = vmatpush.bf16.msra.mxu0 0
  %2084 = vmatpush.bf16.msra.mxu0 0
  %2085 = vmatpush.bf16.msra.mxu0 0
  %2086 = vmatpush.bf16.msra.mxu0 0
  %2087 = vmatpush.bf16.msra.mxu0 0
  %2088 = vmatpush.bf16.msra.mxu0 0
  %2089 = vmatpush.bf16.msra.mxu0 %v1464
  %2090 = vmatpush.bf16.msra.mxu0 %v1462
  %2091 = vmatmul.bf16.gmra.mxu0 %v2042
  %v2092 = vpop.f32.mrf.mxu0
  %v2093 = vadd.f32 %v2080, %v2092
  %v2094 = vpop.f32.mrf.mxu0
  %2095 = vdwg.mxu0
  %v2096 = vadd.f32 %v2020, %v2067
  %v2097 = vadd.f32 %v2021, %v2093
  %v2098 = vadd.f32 %v2096, %v1544
  %v2099 = vadd.f32 %v2097, %v1545
  %vm2100 = vcmask 1043456
  %v2101 = vsel %vm2100, %v1548, 0.0
  %v2102 = vrot.slane %v2101, 4
  %v2103 = vadd.f32 %v2101, %v2102
  %v2104 = vrot.slane %v2103, 2
  %v2105 = vadd.f32 %v2103, %v2104
  %v2106 = vrot.slane %v2105, 1
  %v2107 = vadd.f32 %v2105, %v2106
  %v2108 = vsel %vm2100, %v1549, 0.0
  %v2109 = vrot.slane %v2108, 4
  %v2110 = vadd.f32 %v2108, %v2109
  %v2111 = vrot.slane %v2110, 2
  %v2112 = vadd.f32 %v2110, %v2111
  %v2113 = vrot.slane %v2112, 1
  %v2114 = vadd.f32 %v2112, %v2113
  %v2115 = vadd.f32 %v2107, 0.0
  %v2116 = vadd.f32 %v2114, 0.0
  %v2117 = vmul.f32 %v1548, %v1548
  %v2118 = vmul.f32 %v1549, %v1549
  %v2119 = vsel %vm2100, %v2117, 0.0
  %v2120 = vrot.slane %v2119, 4
  %v2121 = vadd.f32 %v2119, %v2120
  %v2122 = vrot.slane %v2121, 2
  %v2123 = vadd.f32 %v2121, %v2122
  %v2124 = vrot.slane %v2123, 1
  %v2125 = vadd.f32 %v2123, %v2124
  %v2126 = vsel %vm2100, %v2118, 0.0
  %v2127 = vrot.slane %v2126, 4
  %v2128 = vadd.f32 %v2126, %v2127
  %v2129 = vrot.slane %v2128, 2
  %v2130 = vadd.f32 %v2128, %v2129
  %v2131 = vrot.slane %v2130, 1
  %v2132 = vadd.f32 %v2130, %v2131
  %v2133 = vadd.f32 %v2125, 0.0
  %v2134 = vadd.f32 %v2132, 0.0
  %v2135 = vsel %vm2100, %v2098, 0.0
  %v2136 = vrot.slane %v2135, 4
  %v2137 = vadd.f32 %v2135, %v2136
  %v2138 = vrot.slane %v2137, 2
  %v2139 = vadd.f32 %v2137, %v2138
  %v2140 = vrot.slane %v2139, 1
  %v2141 = vadd.f32 %v2139, %v2140
  %v2142 = vsel %vm2100, %v2099, 0.0
  %v2143 = vrot.slane %v2142, 4
  %v2144 = vadd.f32 %v2142, %v2143
  %v2145 = vrot.slane %v2144, 2
  %v2146 = vadd.f32 %v2144, %v2145
  %v2147 = vrot.slane %v2146, 1
  %v2148 = vadd.f32 %v2146, %v2147
  %v2149 = vadd.f32 %v2115, %v2141
  %v2150 = vadd.f32 %v2116, %v2148
  %v2151 = vmul.f32 %v2098, %v2098
  %v2152 = vmul.f32 %v2099, %v2099
  %v2153 = vsel %vm2100, %v2151, 0.0
  %v2154 = vrot.slane %v2153, 4
  %v2155 = vadd.f32 %v2153, %v2154
  %v2156 = vrot.slane %v2155, 2
  %v2157 = vadd.f32 %v2155, %v2156
  %v2158 = vrot.slane %v2157, 1
  %v2159 = vadd.f32 %v2157, %v2158
  %v2160 = vsel %vm2100, %v2152, 0.0
  %v2161 = vrot.slane %v2160, 4
  %v2162 = vadd.f32 %v2160, %v2161
  %v2163 = vrot.slane %v2162, 2
  %v2164 = vadd.f32 %v2162, %v2163
  %v2165 = vrot.slane %v2164, 1
  %v2166 = vadd.f32 %v2164, %v2165
  %v2167 = vadd.f32 %v2133, %v2159
  %v2168 = vadd.f32 %v2134, %v2166
  %v2169 = vld [vmem:[%s3] sm:$0xff]
  %v2170 = vld [vmem:[%s3 + $0x8] sm:$0xff]
  %v2171 = vld [vmem:[%s3 + $0x10] sm:$0xff]
  %v2172 = vld [vmem:[%s3 + $0x18] sm:$0xff]
  %v2173 = vld [vmem:[%s3 + $0x20] sm:$0xff]
  %v2174 = vld [vmem:[%s3 + $0x28] sm:$0xff]
  %v2175 = vld [vmem:[%s3 + $0x30] sm:$0xff]
  %v2176 = vld [vmem:[%s3 + $0x38] sm:$0xff]
  %v2177 = vld [vmem:[%s3 + $0x40] sm:$0xff]
  %v2178 = vld [vmem:[%s3 + $0x48] sm:$0xff]
  %v2179 = vld [vmem:[%s3 + $0x50] sm:$0xff]
  %v2180 = vld [vmem:[%s3 + $0x58] sm:$0xff]
  %v2181 = vld [vmem:[%s3 + $0x60] sm:$0xff]
  %v2182 = vld [vmem:[%s3 + $0x68] sm:$0xff]
  %v2183 = vld [vmem:[%s3 + $0x70] sm:$0xff]
  %v2184 = vld [vmem:[%s3 + $0x78] sm:$0xff]
  %v2185 = vld [vmem:[%s3 + $0x80] sm:$0xff]
  %v2186 = vld [vmem:[%s3 + $0x88] sm:$0xff]
  %v2187 = vld [vmem:[%s3 + $0x90] sm:$0xff]
  %v2188 = vld [vmem:[%s3 + $0x98] sm:$0xff]
  %v2189 = vld [vmem:[%s3 + $0xa0] sm:$0xff]
  %v2190 = vld [vmem:[%s3 + $0xa8] sm:$0xff]
  %v2191 = vld [vmem:[%s3 + $0xb0] sm:$0xff]
  %v2192 = vld [vmem:[%s3 + $0xb8] sm:$0xff]
  %v2193 = vld [vmem:[%s3 + $0xc0] sm:$0xff]
  %v2194 = vld [vmem:[%s3 + $0xc8] sm:$0xff]
  %v2195 = vld [vmem:[%s3 + $0xd0] sm:$0xff]
  %v2196 = vld [vmem:[%s3 + $0xd8] sm:$0xff]
  %v2197 = vld [vmem:[%s3 + $0xe0] sm:$0xff]
  %v2198 = vld [vmem:[%s3 + $0xe8] sm:$0xff]
  %v2199 = vld [vmem:[%s3 + $0xf0] sm:$0xff]
  %v2200 = vld [vmem:[%s3 + $0xf8] sm:$0xff]
  %2201 = vmatpush.msra.mxu0 %v2184
  %2202 = vmatpush.msra.mxu0 %v2183
  %2203 = vmatpush.msra.mxu0 %v2182
  %2204 = vmatpush.msra.mxu0 %v2181
  %2205 = vmatpush.msra.mxu0 %v2180
  %2206 = vmatpush.msra.mxu0 %v2179
  %2207 = vmatpush.msra.mxu0 %v2178
  %2208 = vmatpush.msra.mxu0 %v2177
  %2209 = vmatpush.msra.mxu0 %v2176
  %2210 = vmatpush.msra.mxu0 %v2175
  %2211 = vmatpush.msra.mxu0 %v2174
  %2212 = vmatpush.msra.mxu0 %v2173
  %2213 = vmatpush.msra.mxu0 %v2172
  %2214 = vmatpush.msra.mxu0 %v2171
  %2215 = vmatpush.msra.mxu0 %v2170
  %2216 = vmatpush.msra.mxu0 %v2169
  %2217 = vmatmul.f32.gmra.mxu0 %v2149
  %v2218 = vpop.f32.mrf.mxu0
  %v2219 = vadd.f32 0.0, %v2218
  %2220 = vdwg.mxu0
  %2221 = vmatpush.msra.mxu0 %v2200
  %2222 = vmatpush.msra.mxu0 %v2199
  %2223 = vmatpush.msra.mxu0 %v2198
  %2224 = vmatpush.msra.mxu0 %v2197
  %2225 = vmatpush.msra.mxu0 %v2196
  %2226 = vmatpush.msra.mxu0 %v2195
  %2227 = vmatpush.msra.mxu0 %v2194
  %2228 = vmatpush.msra.mxu0 %v2193
  %2229 = vmatpush.msra.mxu0 %v2192
  %2230 = vmatpush.msra.mxu0 %v2191
  %2231 = vmatpush.msra.mxu0 %v2190
  %2232 = vmatpush.msra.mxu0 %v2189
  %2233 = vmatpush.msra.mxu0 %v2188
  %2234 = vmatpush.msra.mxu0 %v2187
  %2235 = vmatpush.msra.mxu0 %v2186
  %2236 = vmatpush.msra.mxu0 %v2185
  %2237 = vmatmul.f32.gmra.mxu0 %v2150
  %v2238 = vpop.f32.mrf.mxu0
  %v2239 = vadd.f32 %v2219, %v2238
  %2240 = vdwg.mxu0
  %2241 = vmatpush.msra.mxu0 %v2184
  %2242 = vmatpush.msra.mxu0 %v2183
  %2243 = vmatpush.msra.mxu0 %v2182
  %2244 = vmatpush.msra.mxu0 %v2181
  %2245 = vmatpush.msra.mxu0 %v2180
  %2246 = vmatpush.msra.mxu0 %v2179
  %2247 = vmatpush.msra.mxu0 %v2178
  %2248 = vmatpush.msra.mxu0 %v2177
  %2249 = vmatpush.msra.mxu0 %v2176
  %2250 = vmatpush.msra.mxu0 %v2175
  %2251 = vmatpush.msra.mxu0 %v2174
  %2252 = vmatpush.msra.mxu0 %v2173
  %2253 = vmatpush.msra.mxu0 %v2172
  %2254 = vmatpush.msra.mxu0 %v2171
  %2255 = vmatpush.msra.mxu0 %v2170
  %2256 = vmatpush.msra.mxu0 %v2169
  %2257 = vmatmul.f32.gmra.mxu0 %v2167
  %v2258 = vpop.f32.mrf.mxu0
  %v2259 = vadd.f32 0.0, %v2258
  %2260 = vdwg.mxu0
  %2261 = vmatpush.msra.mxu0 %v2200
  %2262 = vmatpush.msra.mxu0 %v2199
  %2263 = vmatpush.msra.mxu0 %v2198
  %2264 = vmatpush.msra.mxu0 %v2197
  %2265 = vmatpush.msra.mxu0 %v2196
  %2266 = vmatpush.msra.mxu0 %v2195
  %2267 = vmatpush.msra.mxu0 %v2194
  %2268 = vmatpush.msra.mxu0 %v2193
  %2269 = vmatpush.msra.mxu0 %v2192
  %2270 = vmatpush.msra.mxu0 %v2191
  %2271 = vmatpush.msra.mxu0 %v2190
  %2272 = vmatpush.msra.mxu0 %v2189
  %2273 = vmatpush.msra.mxu0 %v2188
  %2274 = vmatpush.msra.mxu0 %v2187
  %2275 = vmatpush.msra.mxu0 %v2186
  %2276 = vmatpush.msra.mxu0 %v2185
  %2277 = vmatmul.f32.gmra.mxu0 %v2168
  %v2278 = vpop.f32.mrf.mxu0
  %v2279 = vadd.f32 %v2259, %v2278
  %2280 = vdwg.mxu0
  %v2281 = vrcp.pop 32.0
  %v2282 = vmul.f32 32.0, %v2281
  %v2283 = vsub.f32 1.0, %v2282
  %v2284 = vmul.f32 %v2281, %v2283
  %v2285 = vadd.f32 %v2281, %v2284
  %vm2286 = vweird.f32 %v2281
  %v2287 = vsel %vm2286, %v2281, %v2285
  %v2288 = vmul.f32 %v2239, %v2287
  %v2289 = vmul.f32 %v2279, %v2287
  %v2290 = vmul.f32 %v2288, %v2288
  %v2291 = vsub.f32 %v2289, %v2290
  %v2292 = vld [vmem:[%s5] sm:$0x1]
  %v2293 = vadd.f32 %v2291, 1e-05
  %v2294 = vrsqrt.pop %v2293
  %v2295 = vmul.f32 %v2294, %v2293
  %v2296 = vmul.f32 %v2295, %v2294
  %v2297 = vmul.f32 0.5, %v2296
  %v2298 = vsub.f32 1.5, %v2297
  %v2299 = vmul.f32 %v2294, %v2298
  %vm2300 = vweird.f32 %v2293
  %vm2301 = vweird.f32 %v2294
  %vm2302 = vmor %vm2300, %vm2301
  %v2303 = vsel %vm2302, %v2294, %v2299
  %v2304 = vmul.f32 %v2292, %v2303
  %v2305 = vld [vmem:[%s6] sm:$0x1]
  %v2306 = vmul.f32 %v2288, %v2304
  %v2307 = vsub.f32 %v2305, %v2306
  %v2308 = vld [vmem:[%s4] sm:$0xff]
  %v2309 = vld [vmem:[%s4 + $0x8] sm:$0xff]
  %v2310 = vld [vmem:[%s4 + $0x10] sm:$0xff]
  %v2311 = vld [vmem:[%s4 + $0x18] sm:$0xff]
  %v2312 = vld [vmem:[%s4 + $0x20] sm:$0xff]
  %v2313 = vld [vmem:[%s4 + $0x28] sm:$0xff]
  %v2314 = vld [vmem:[%s4 + $0x30] sm:$0xff]
  %v2315 = vld [vmem:[%s4 + $0x38] sm:$0xff]
  %v2316 = vld [vmem:[%s4 + $0x40] sm:$0xff]
  %v2317 = vld [vmem:[%s4 + $0x48] sm:$0xff]
  %v2318 = vld [vmem:[%s4 + $0x50] sm:$0xff]
  %v2319 = vld [vmem:[%s4 + $0x58] sm:$0xff]
  %v2320 = vld [vmem:[%s4 + $0x60] sm:$0xff]
  %v2321 = vld [vmem:[%s4 + $0x68] sm:$0xff]
  %v2322 = vld [vmem:[%s4 + $0x70] sm:$0xff]
  %v2323 = vld [vmem:[%s4 + $0x78] sm:$0xff]
  %vm2324 = vcmask 523264
  %v2326 = vsel %vm2324, %v2304, 0
  %2328 = vmatpush.msra.mxu0 0.0
  %2329 = vmatpush.msra.mxu0 0.0
  %2330 = vmatpush.msra.mxu0 0.0
  %2331 = vmatpush.msra.mxu0 0.0
  %2332 = vmatpush.msra.mxu0 0.0
  %2333 = vmatpush.msra.mxu0 0.0
  %2334 = vmatpush.msra.mxu0 0.0
  %2335 = vmatpush.msra.mxu0 0.0
  %2336 = vmatpush.msra.mxu0 %v2322
  %2337 = vmatpush.msra.mxu0 %v2320
  %2338 = vmatpush.msra.mxu0 %v2318
  %2339 = vmatpush.msra.mxu0 %v2316
  %2340 = vmatpush.msra.mxu0 %v2314
  %2341 = vmatpush.msra.mxu0 %v2312
  %2342 = vmatpush.msra.mxu0 %v2310
  %2343 = vmatpush.msra.mxu0 %v2308
  %2344 = vmatmul.f32.gmra.mxu0 %v2326
  %v2345 = vpop.f32.mrf.mxu0
  %v2346 = vadd.f32 0.0, %v2345
  %2347 = vdwg.mxu0
  %2348 = vmatpush.msra.mxu0 0.0
  %2349 = vmatpush.msra.mxu0 0.0
  %2350 = vmatpush.msra.mxu0 0.0
  %2351 = vmatpush.msra.mxu0 0.0
  %2352 = vmatpush.msra.mxu0 0.0
  %2353 = vmatpush.msra.mxu0 0.0
  %2354 = vmatpush.msra.mxu0 0.0
  %2355 = vmatpush.msra.mxu0 0.0
  %2356 = vmatpush.msra.mxu0 %v2323
  %2357 = vmatpush.msra.mxu0 %v2321
  %2358 = vmatpush.msra.mxu0 %v2319
  %2359 = vmatpush.msra.mxu0 %v2317
  %2360 = vmatpush.msra.mxu0 %v2315
  %2361 = vmatpush.msra.mxu0 %v2313
  %2362 = vmatpush.msra.mxu0 %v2311
  %2363 = vmatpush.msra.mxu0 %v2309
  %2364 = vmatmul.f32.gmra.mxu0 %v2326
  %v2365 = vpop.f32.mrf.mxu0
  %v2366 = vadd.f32 0.0, %v2365
  %2367 = vdwg.mxu0
  %v2369 = vsel %vm2324, %v2307, 0
  %2371 = vmatpush.msra.mxu0 0.0
  %2372 = vmatpush.msra.mxu0 0.0
  %2373 = vmatpush.msra.mxu0 0.0
  %2374 = vmatpush.msra.mxu0 0.0
  %2375 = vmatpush.msra.mxu0 0.0
  %2376 = vmatpush.msra.mxu0 0.0
  %2377 = vmatpush.msra.mxu0 0.0
  %2378 = vmatpush.msra.mxu0 0.0
  %2379 = vmatpush.msra.mxu0 %v2322
  %2380 = vmatpush.msra.mxu0 %v2320
  %2381 = vmatpush.msra.mxu0 %v2318
  %2382 = vmatpush.msra.mxu0 %v2316
  %2383 = vmatpush.msra.mxu0 %v2314
  %2384 = vmatpush.msra.mxu0 %v2312
  %2385 = vmatpush.msra.mxu0 %v2310
  %2386 = vmatpush.msra.mxu0 %v2308
  %2387 = vmatmul.f32.gmra.mxu0 %v2369
  %v2388 = vpop.f32.mrf.mxu0
  %v2389 = vadd.f32 0.0, %v2388
  %2390 = vdwg.mxu0
  %2391 = vmatpush.msra.mxu0 0.0
  %2392 = vmatpush.msra.mxu0 0.0
  %2393 = vmatpush.msra.mxu0 0.0
  %2394 = vmatpush.msra.mxu0 0.0
  %2395 = vmatpush.msra.mxu0 0.0
  %2396 = vmatpush.msra.mxu0 0.0
  %2397 = vmatpush.msra.mxu0 0.0
  %2398 = vmatpush.msra.mxu0 0.0
  %2399 = vmatpush.msra.mxu0 %v2323
  %2400 = vmatpush.msra.mxu0 %v2321
  %2401 = vmatpush.msra.mxu0 %v2319
  %2402 = vmatpush.msra.mxu0 %v2317
  %2403 = vmatpush.msra.mxu0 %v2315
  %2404 = vmatpush.msra.mxu0 %v2313
  %2405 = vmatpush.msra.mxu0 %v2311
  %2406 = vmatpush.msra.mxu0 %v2309
  %2407 = vmatmul.f32.gmra.mxu0 %v2369
  %v2408 = vpop.f32.mrf.mxu0
  %v2409 = vadd.f32 0.0, %v2408
  %2410 = vdwg.mxu0
  %v2411 = vperm.slane %v2346, 0
  %v2412 = vperm.slane %v2366, 0
  %v2413 = vmul.f32 %v1548, %v2411
  %v2414 = vmul.f32 %v1549, %v2412
  %v2415 = vperm.slane %v2389, 0
  %v2416 = vperm.slane %v2409, 0
  %v2417 = vadd.f32 %v2413, %v2415
  %v2418 = vadd.f32 %v2414, %v2416
  %vm2419 = vcmp.ge.f32.partialorder %v2417, 0.0
  %vm2420 = vcmp.ge.f32.partialorder %v2418, 0.0
  %v2421 = vmul.f32 %v2417, 0.2
  %v2422 = vmul.f32 %v2418, 0.2
  %v2423 = vsel %vm2419, %v2417, %v2421
  %v2424 = vsel %vm2420, %v2418, %v2422
  %2425 = vst [vmem:[%s7] sm:$0xf] %v2423
  %2426 = vst [vmem:[%s7 + $0x8] sm:$0xf] %v2424
  %v2427 = vmul.f32 %v2098, %v2411
  %v2428 = vmul.f32 %v2099, %v2412
  %v2429 = vadd.f32 %v2427, %v2415
  %v2430 = vadd.f32 %v2428, %v2416
  %vm2431 = vcmp.ge.f32.partialorder %v2429, 0.0
  %vm2432 = vcmp.ge.f32.partialorder %v2430, 0.0
  %v2433 = vmul.f32 %v2429, 0.2
  %v2434 = vmul.f32 %v2430, 0.2
  %v2435 = vsel %vm2431, %v2429, %v2433
  %v2436 = vsel %vm2432, %v2430, %v2434
  %v2439 = vrot.slane %v2435, 4
  %v2440 = vrot.slane %v2436, 4
  %2443 = vst [vmem:[%s7] sm:$0xf0] %v2439
  %2444 = vst [vmem:[%s7 + $0x8] sm:$0xf0] %v2440
  // Predicated region
  $region30: #{discriminator_forward.8} parent=0 // pred_check
    _
  $region31: #{discriminator_forward.8} parent=0 // pred_check_branch
    %2446 = sbr.rel (0) target = $region33
  $region32: #{discriminator_forward.8} parent=0 // pred_region
    _
  $region33: #{discriminator_forward.8} parent=0 // pred_fallthru
    _
  // Predicated region
  $region34: #{discriminator_forward.8} parent=0 // pred_check
    _
  $region35: #{discriminator_forward.8} parent=0 // pred_check_branch
    %2448 = sbr.rel (0) target = $region37
  $region36: #{discriminator_forward.8} parent=0 // pred_region
    _
  $region37: #{discriminator_forward.8} parent=0 // pred_fallthru
    _

</llo_original>
